<compile_context>
chip_gen: v5e
topology: v5e:2x2
jax: 0.10.0
libtpu: 0.0.40
codegen_flags: <defaults>
</compile_context>

<pallas_src>
import jax
import jax.numpy as jnp
from jax import lax
from jax.experimental import pallas as pl
from jax.experimental.pallas import tpu as pltpu

EXPANSION = 4
BN_EPS = 1e-5


# ------------------------------------------------------------------
# Fused Bottleneck kernel
# ------------------------------------------------------------------
def _make_bottleneck_kernel(H, W, P, C4, stride, has_shortcut):
    """Build the fused Bottleneck kernel for static spatial / channel sizes."""
    Ho = (H - 1) // stride + 1
    Wo = (W - 1) // stride + 1

    def kernel(x_ref, w1_ref, b1_ref, w2_ref, b2_ref, w3_ref, b3_ref,
               o_ref, pad_ref):
        bb = x_ref.shape[0]
        cin = x_ref.shape[3]
        m_in = bb * H * W
        m_out = bb * Ho * Wo

        x = x_ref[...]                              # (bb, H, W, Cin) bf16
        x2d = x.reshape(m_in, cin)

        # ---- conv1 (1x1) + folded BN1 + ReLU ----
        h1 = jnp.dot(x2d, w1_ref[...], preferred_element_type=jnp.float32)
        h1 = jnp.maximum(h1 + b1_ref[...], 0.0)

        # ---- stage h1 into the padded VMEM scratch ----
        # Interior: full overwrite every step.  Border (conv2's padding=1): zeroed
        # explicitly every step — cheap (halo only) and robust under megacore sharding.
        pad_ref[:, 1:H + 1, 1:W + 1, :] = h1.reshape(bb, H, W, P).astype(pad_ref.dtype)
        zrow = jnp.zeros((bb, 1, W + 2, P), pad_ref.dtype)
        zcol = jnp.zeros((bb, H, 1, P), pad_ref.dtype)
        pad_ref[:, 0:1, :, :] = zrow
        pad_ref[:, H + 1:H + 2, :, :] = zrow
        pad_ref[:, 1:H + 1, 0:1, :] = zcol
        pad_ref[:, 1:H + 1, W + 1:W + 2, :] = zcol

        # ---- conv2 (3x3, stride) + folded BN2 + ReLU ----
        # Single im2col matmul: concatenate the 9 taps along the channel/K axis in VMEM
        # (K = 9*P) and do ONE dot against the tap-major packed weight (9*P, P).
        taps = []
        for kh in range(3):
            for kw in range(3):
                if stride == 1:
                    t = pad_ref[:, kh:kh + Ho, kw:kw + Wo, :]
                else:
                    # TODO(synk): stride>1 still uses 9 strided gathers; parity-split
                    # compaction of the pad buffer is not implemented.
                    t = pad_ref[:, pl.ds(kh, Ho, stride=stride),
                                pl.ds(kw, Wo, stride=stride), :]
                taps.append(t)
        lhs2 = jnp.concatenate(taps, axis=-1).reshape(m_out, 9 * P)   # bf16, K = 9P
        h2 = jnp.dot(lhs2, w2_ref[...], preferred_element_type=jnp.float32)
        h2 = jnp.maximum(h2 + b2_ref[...], 0.0).astype(x.dtype)       # back to bf16

        # ---- conv3 (1x1) + folded BN3 (+ merged projection shortcut) ----
        if has_shortcut:
            if stride == 1:
                xs = x2d
            else:
                xs = x_ref[:, pl.ds(0, Ho, stride=stride),
                           pl.ds(0, Wo, stride=stride), :].reshape(m_out, cin)
            lhs3 = jnp.concatenate([h2, xs], axis=-1)                 # (m_out, P+Cin) bf16
            y = jnp.dot(lhs3, w3_ref[...],
                        preferred_element_type=jnp.float32) + b3_ref[...]
        else:
            y = jnp.dot(h2, w3_ref[...],
                        preferred_element_type=jnp.float32) + b3_ref[...]
            y = y + x2d.astype(jnp.float32)          # identity residual (Cin == 4*planes)

        # ---- final ReLU + lane-dense store ----
        y = jnp.maximum(y, 0.0)
        o_ref[...] = y.reshape(bb, Ho, Wo, C4).astype(o_ref.dtype)

    return kernel


def _pick_batch_block(B, H, W, Cin, P, C4, stride, out_itemsize,
                      budget_bytes=20 * 1024 * 1024):
    """Largest batch block whose per-step VMEM footprint fits the budget while keeping
    >= 2 grid steps (so the pipeline has work and v7x's two cores both get steps)."""
    Ho = (H - 1) // stride + 1
    Wo = (W - 1) // stride + 1
    lane = lambda c: ((c + 127) // 128) * 128               # physical lane padding

    def footprint(bb):
        x_blk = 2 * bb * H * W * lane(Cin) * 2              # double-buffered bf16 input
        o_blk = 2 * bb * Ho * Wo * lane(C4) * out_itemsize  # double-buffered output
        pad = bb * (H + 2) * (W + 2) * lane(P) * 2          # bf16 pad scratch
        live = (bb * H * W * lane(P) * 4                    # h1 (f32)
                + bb * Ho * Wo * lane(9 * P) * 2            # im2col LHS (bf16)
                + 2 * bb * Ho * Wo * lane(C4) * 4)          # conv3 acc + epilogue (f32)
        return x_blk + o_blk + pad + live

    best = 1
    for bb in range(1, B + 1):
        if B % bb:
            continue
        nb = B // bb
        if footprint(bb) <= budget_bytes and (nb >= 2 or B == 1):
            best = bb
    return best


def bottleneck_forward(x_nhwc, params, *, batch_block=None, out_dtype=jnp.bfloat16):
    """Run one fused Bottleneck block.

    x_nhwc: (B, H, W, Cin) float; returns (B, Ho, Wo, 4*planes) in `out_dtype`."""
    B, H, W, Cin = x_nhwc.shape
    stride = params['stride']
    P = params['planes']
    C4 = EXPANSION * P
    has_shortcut = params['has_shortcut']
    if not has_shortcut:
        assert stride == 1 and Cin == C4, "identity shortcut requires stride=1 and Cin == 4*planes"

    Ho = (H - 1) // stride + 1
    Wo = (W - 1) // stride + 1
    out_itemsize = jnp.dtype(out_dtype).itemsize

    if batch_block is None:
        bb = _pick_batch_block(B, H, W, Cin, P, C4, stride, out_itemsize)
    else:
        bb = max(1, min(batch_block, B))
    assert B % bb == 0, "batch must be divisible by batch_block"
    nb = B // bb

    x_bf16 = x_nhwc.astype(jnp.bfloat16)            # halve DMA bytes; f32 accumulation in-kernel

    inputs = [x_bf16, params['w1'], params['b1'], params['w2'], params['b2']]
    in_specs = [
        pl.BlockSpec((bb, H, W, Cin), lambda i: (i, 0, 0, 0)),
        pl.BlockSpec((Cin, P), lambda i: (0, 0)),
        pl.BlockSpec((1, P), lambda i: (0, 0)),
        pl.BlockSpec((9 * P, P), lambda i: (0, 0)),
        pl.BlockSpec((1, P), lambda i: (0, 0)),
    ]
    if has_shortcut:
        inputs += [params['w3sc'], params['b3sc']]
        in_specs += [pl.BlockSpec((P + Cin, C4), lambda i: (0, 0)),
                     pl.BlockSpec((1, C4), lambda i: (0, 0))]
    else:
        inputs += [params['w3'], params['b3']]
        in_specs += [pl.BlockSpec((P, C4), lambda i: (0, 0)),
                     pl.BlockSpec((1, C4), lambda i: (0, 0))]

    kernel = _make_bottleneck_kernel(H, W, P, C4, stride, has_shortcut)

    # Advisory cost estimate: one im2col conv2 dot + conv1 + merged conv3/shortcut.
    flops = (2 * B * H * W * Cin * P
             + 2 * B * Ho * Wo * (9 * P) * P
             + 2 * B * Ho * Wo * (P + (Cin if has_shortcut else 0)) * C4)
    bytes_accessed = (int(x_bf16.size) * 2
                      + sum(int(v.size) * v.dtype.itemsize for v in inputs[1:])
                      + B * Ho * Wo * C4 * out_itemsize)
    cost = pl.CostEstimate(flops=flops, transcendentals=0, bytes_accessed=bytes_accessed)

    return pl.pallas_call(
        kernel,
        out_shape=jax.ShapeDtypeStruct((B, Ho, Wo, C4), out_dtype),
        grid=(nb,),
        in_specs=in_specs,
        out_specs=pl.BlockSpec((bb, Ho, Wo, C4), lambda i: (i, 0, 0, 0)),
        scratch_shapes=[pltpu.VMEM((bb, H + 2, W + 2, P), jnp.bfloat16)],
        compiler_params=pltpu.CompilerParams(
            dimension_semantics=("parallel",),
            vmem_limit_bytes=48 * 1024 * 1024),
        cost_estimate=cost,
    )(*inputs)


# ------------------------------------------------------------------
# Parameters: PyTorch-layout raw params + BN folding into bf16 weights
# ------------------------------------------------------------------
def init_bottleneck_params(key, in_planes, planes, stride=1):
    c4 = EXPANSION * planes
    keys = jax.random.split(key, 8)

    def conv_w(k, cout, cin, kh, kw):
        fan_in = cin * kh * kw
        return jax.random.normal(k, (cout, cin, kh, kw), jnp.float32) * (2.0 / fan_in) ** 0.5

    def bn_stats(k, c):
        k1, k2, k3, k4 = jax.random.split(k, 4)
        gamma = 1.0 + 0.1 * jax.random.normal(k1, (c,), jnp.float32)
        beta = 0.1 * jax.random.normal(k2, (c,), jnp.float32)
        mean = 0.1 * jax.random.normal(k3, (c,), jnp.float32)
        var = 1.0 + 0.1 * jnp.abs(jax.random.normal(k4, (c,), jnp.float32))
        return (gamma, beta, mean, var)

    raw = {
        'stride': stride, 'planes': planes, 'in_planes': in_planes,
        'has_shortcut': (stride != 1 or in_planes != c4),
        'conv1_w': conv_w(keys[0], planes, in_planes, 1, 1), 'bn1': bn_stats(keys[1], planes),
        'conv2_w': conv_w(keys[2], planes, planes, 3, 3),    'bn2': bn_stats(keys[3], planes),
        'conv3_w': conv_w(keys[4], c4, planes, 1, 1),        'bn3': bn_stats(keys[5], c4),
    }
    if raw['has_shortcut']:
        raw['sc_w'] = conv_w(keys[6], c4, in_planes, 1, 1)
        raw['sc_bn'] = bn_stats(keys[7], c4)
    return raw


def pack_params(raw):
    """Fold BN (eval mode) into bf16 weights + f32 bias; reorder weights to (K, Cout).

    conv2 is packed tap-major as a single (9*P, P) im2col weight; conv3 and the projection
    shortcut (if present) are packed into one (P+Cin, 4P) weight with a combined bias."""
    def fold(w, bn):                                 # w: (..., Cout), scale broadcasts on Cout
        gamma, beta, mean, var = bn
        scale = gamma / jnp.sqrt(var + BN_EPS)
        return (w * scale).astype(jnp.bfloat16), \
               (beta - mean * scale).reshape(1, -1).astype(jnp.float32)

    P = raw['planes']
    p = {'stride': raw['stride'], 'planes': P, 'has_shortcut': raw['has_shortcut']}

    w1 = jnp.transpose(raw['conv1_w'][:, :, 0, 0])                  # (Cin, P)
    p['w1'], p['b1'] = fold(w1, raw['bn1'])

    w2 = jnp.transpose(raw['conv2_w'], (2, 3, 1, 0))                # (3, 3, Cin, Cout)
    w2f, p['b2'] = fold(w2, raw['bn2'])
    p['w2'] = w2f.reshape(9 * P, P)                                 # tap-major (kh*3 + kw, c)

    w3 = jnp.transpose(raw['conv3_w'][:, :, 0, 0])                  # (P, 4P)
    w3f, b3 = fold(w3, raw['bn3'])

    if raw['has_shortcut']:
        wsc = jnp.transpose(raw['sc_w'][:, :, 0, 0])                # (Cin, 4P)
        wscf, bsc = fold(wsc, raw['sc_bn'])
        p['w3sc'] = jnp.concatenate([w3f, wscf], axis=0)            # (P+Cin, 4P)
        p['b3sc'] = b3 + bsc
    else:
        p['w3'], p['b3'] = w3f, b3
    return p


# ------------------------------------------------------------------
# Plain-JAX f32 reference (eval-mode BatchNorm), for validation
# ------------------------------------------------------------------
def bottleneck_ref(x_nhwc, raw):
    def bn_apply(y, stats):
        gamma, beta, mean, var = stats
        return (y - mean) * (gamma / jnp.sqrt(var + BN_EPS)) + beta

    def conv(y, w_oihw, stride=1, pad=0):
        w = jnp.transpose(w_oihw, (2, 3, 1, 0))                     # OIHW -> HWIO
        return lax.conv_general_dilated(
            y, w, window_strides=(stride, stride),
            padding=((pad, pad), (pad, pad)),
            dimension_numbers=('NHWC', 'HWIO', 'NHWC'))

    s = raw['stride']
    out = jax.nn.relu(bn_apply(conv(x_nhwc, raw['conv1_w']), raw['bn1']))
    out = jax.nn.relu(bn_apply(conv(out, raw['conv2_w'], stride=s, pad=1), raw['bn2']))
    out = bn_apply(conv(out, raw['conv3_w']), raw['bn3'])
    if raw['has_shortcut']:
        sc = bn_apply(conv(x_nhwc, raw['sc_w'], stride=s), raw['sc_bn'])
    else:
        sc = x_nhwc
    return jax.nn.relu(out + sc)


# ------------------------------------------------------------------
# Demo
# ------------------------------------------------------------------
if __name__ == "__main__":
    key = jax.random.PRNGKey(0)
    kx, ka, kb = jax.random.split(key, 3)

    # Public input follows the PyTorch module's NCHW layout.
    B, Cin, H, W = 2, 64, 16, 16
    x_nchw = jax.random.normal(kx, (B, Cin, H, W), jnp.float32)
    x_nhwc = jnp.transpose(x_nchw, (0, 2, 3, 1))

    # Block A: projection shortcut (in_planes != 4*planes).  Block B: identity shortcut.
    # Output channels = 4*32 = 128 -> lane-dense stores.
    raw_a = init_bottleneck_params(ka, in_planes=64, planes=32, stride=1)
    raw_b = init_bottleneck_params(kb, in_planes=128, planes=32, stride=1)
    params_a, params_b = pack_params(raw_a), pack_params(raw_b)

    @jax.jit
    def fwd(x):
        y = bottleneck_forward(x, params_a)          # bf16 out feeds the next block directly
        y = bottleneck_forward(y, params_b)
        return y

    y = jax.block_until_ready(fwd(x_nhwc))

    # Validate against the plain-JAX f32 eval-mode reference.
    y_ref = bottleneck_ref(bottleneck_ref(x_nhwc, raw_a), raw_b)
    rel = float(jnp.linalg.norm(y.astype(jnp.float32) - y_ref) /
                (jnp.linalg.norm(y_ref) + 1e-12))

    assert y.shape == (B, H, W, EXPANSION * 32)
    assert bool(jnp.all(jnp.isfinite(y.astype(jnp.float32))))
    assert bool(jnp.all(y >= 0.0))                       # final ReLU
    assert rel < 5e-2, f"relative error vs f32 reference too high: {rel}"

    y_nchw = jnp.transpose(y, (0, 3, 1, 2))              # back to the module's NCHW layout
    assert y_nchw.shape == (B, 128, H, W)
    print("KERNEL_OK")
</pallas_src>

<mosaic_0001>
module attributes {stable_mosaic.version = 11 : i64} {
  func.func @kernel(%arg0: i32, %arg1: memref<1x16x16x64xbf16, #tpu.memory_space<vmem>>, %arg2: memref<64x32xbf16, #tpu.memory_space<vmem>>, %arg3: memref<1x32xf32, #tpu.memory_space<vmem>>, %arg4: memref<288x32xbf16, #tpu.memory_space<vmem>>, %arg5: memref<1x32xf32, #tpu.memory_space<vmem>>, %arg6: memref<96x128xbf16, #tpu.memory_space<vmem>>, %arg7: memref<1x128xf32, #tpu.memory_space<vmem>>, %arg8: memref<1x16x16x128xbf16, #tpu.memory_space<vmem>>, %arg9: memref<1x18x18x32xbf16, #tpu.memory_space<vmem>>) attributes {dimension_semantics = [#tpu.dimension_semantics<parallel>], iteration_bounds = array<i64: 2>, scalar_prefetch = 0 : i64, scratch_operands = 1 : i64, tpu.core_type = #tpu.core_type<tc>, window_params = [{transform_indices = @transform_0, window_bounds = array<i64: 1, 16, 16, 64>}, {pipeline_mode = #tpu.pipeline_mode<synchronous>, transform_indices = @transform_1, window_bounds = array<i64: 64, 32>}, {pipeline_mode = #tpu.pipeline_mode<synchronous>, transform_indices = @transform_2, window_bounds = array<i64: 1, 32>}, {pipeline_mode = #tpu.pipeline_mode<synchronous>, transform_indices = @transform_3, window_bounds = array<i64: 288, 32>}, {pipeline_mode = #tpu.pipeline_mode<synchronous>, transform_indices = @transform_4, window_bounds = array<i64: 1, 32>}, {pipeline_mode = #tpu.pipeline_mode<synchronous>, transform_indices = @transform_5, window_bounds = array<i64: 96, 128>}, {pipeline_mode = #tpu.pipeline_mode<synchronous>, transform_indices = @transform_6, window_bounds = array<i64: 1, 128>}, {transform_indices = @transform_7, window_bounds = array<i64: 1, 16, 16, 128>}]} {
    %c0 = arith.constant 0 : index
    %c0_0 = arith.constant 0 : index
    %c0_1 = arith.constant 0 : index
    %c0_2 = arith.constant 0 : index
    %0 = vector.load %arg1[%c0, %c0_0, %c0_1, %c0_2] : memref<1x16x16x64xbf16, #tpu.memory_space<vmem>>, vector<1x16x16x64xbf16>
    %1 = vector.shape_cast %0 : vector<1x16x16x64xbf16> to vector<256x64xbf16>
    %c0_3 = arith.constant 0 : index
    %c0_4 = arith.constant 0 : index
    %2 = vector.load %arg2[%c0_3, %c0_4] : memref<64x32xbf16, #tpu.memory_space<vmem>>, vector<64x32xbf16>
    %cst = arith.constant dense<0.000000e+00> : vector<256x32xf32>
    %3 = tpu.matmul %1, %2, %cst {dimension_numbers = #tpu.dot_dimension_numbers<[1], [0], [0], [1], [0, 0, 1, 1], [], []>} : vector<256x64xbf16>, vector<64x32xbf16>, vector<256x32xf32> -> vector<256x32xf32>
    %c0_5 = arith.constant 0 : index
    %c0_6 = arith.constant 0 : index
    %4 = vector.load %arg3[%c0_5, %c0_6] : memref<1x32xf32, #tpu.memory_space<vmem>>, vector<1x32xf32>
    %5 = vector.broadcast %4 : vector<1x32xf32> to vector<256x32xf32>
    %6 = arith.addf %3, %5 : vector<256x32xf32>
    %cst_7 = arith.constant 0.000000e+00 : f32
    %7 = vector.broadcast %cst_7 : f32 to vector<256x32xf32>
    %8 = arith.maximumf %6, %7 : vector<256x32xf32>
    %9 = vector.shape_cast %8 : vector<256x32xf32> to vector<1x16x16x32xf32>
    %10 = arith.truncf %9 : vector<1x16x16x32xf32> to vector<1x16x16x32xbf16>
    %c0_8 = arith.constant 0 : index
    %c1 = arith.constant 1 : index
    %c1_9 = arith.constant 1 : index
    %c0_10 = arith.constant 0 : index
    %11 = vector.load %arg9[%c0_8, %c1, %c1_9, %c0_10] : memref<1x18x18x32xbf16, #tpu.memory_space<vmem>>, vector<1x16x16x32xbf16>
    tpu.vector_store %arg9[%c0_8, %c1, %c1_9, %c0_10], %10 {strides = array<i32>} : memref<1x18x18x32xbf16, #tpu.memory_space<vmem>>, vector<1x16x16x32xbf16>,
    %cst_11 = arith.constant 0.000000e+00 : bf16
    %12 = vector.broadcast %cst_11 : bf16 to vector<1x1x18x32xbf16>
    %cst_12 = arith.constant 0.000000e+00 : bf16
    %13 = vector.broadcast %cst_12 : bf16 to vector<1x16x1x32xbf16>
    %c0_13 = arith.constant 0 : index
    %c0_14 = arith.constant 0 : index
    %c0_15 = arith.constant 0 : index
    %c0_16 = arith.constant 0 : index
    %14 = vector.load %arg9[%c0_13, %c0_14, %c0_15, %c0_16] : memref<1x18x18x32xbf16, #tpu.memory_space<vmem>>, vector<1x1x18x32xbf16>
    tpu.vector_store %arg9[%c0_13, %c0_14, %c0_15, %c0_16], %12 {strides = array<i32>} : memref<1x18x18x32xbf16, #tpu.memory_space<vmem>>, vector<1x1x18x32xbf16>,
    %c0_17 = arith.constant 0 : index
    %c17 = arith.constant 17 : index
    %c0_18 = arith.constant 0 : index
    %c0_19 = arith.constant 0 : index
    %15 = vector.load %arg9[%c0_17, %c17, %c0_18, %c0_19] : memref<1x18x18x32xbf16, #tpu.memory_space<vmem>>, vector<1x1x18x32xbf16>
    tpu.vector_store %arg9[%c0_17, %c17, %c0_18, %c0_19], %12 {strides = array<i32>} : memref<1x18x18x32xbf16, #tpu.memory_space<vmem>>, vector<1x1x18x32xbf16>,
    %c0_20 = arith.constant 0 : index
    %c1_21 = arith.constant 1 : index
    %c0_22 = arith.constant 0 : index
    %c0_23 = arith.constant 0 : index
    %16 = vector.load %arg9[%c0_20, %c1_21, %c0_22, %c0_23] : memref<1x18x18x32xbf16, #tpu.memory_space<vmem>>, vector<1x16x1x32xbf16>
    tpu.vector_store %arg9[%c0_20, %c1_21, %c0_22, %c0_23], %13 {strides = array<i32>} : memref<1x18x18x32xbf16, #tpu.memory_space<vmem>>, vector<1x16x1x32xbf16>,
    %c0_24 = arith.constant 0 : index
    %c1_25 = arith.constant 1 : index
    %c17_26 = arith.constant 17 : index
    %c0_27 = arith.constant 0 : index
    %17 = vector.load %arg9[%c0_24, %c1_25, %c17_26, %c0_27] : memref<1x18x18x32xbf16, #tpu.memory_space<vmem>>, vector<1x16x1x32xbf16>
    tpu.vector_store %arg9[%c0_24, %c1_25, %c17_26, %c0_27], %13 {strides = array<i32>} : memref<1x18x18x32xbf16, #tpu.memory_space<vmem>>, vector<1x16x1x32xbf16>,
    %c0_28 = arith.constant 0 : index
    %c0_29 = arith.constant 0 : index
    %c0_30 = arith.constant 0 : index
    %c0_31 = arith.constant 0 : index
    %18 = vector.load %arg9[%c0_28, %c0_29, %c0_30, %c0_31] : memref<1x18x18x32xbf16, #tpu.memory_space<vmem>>, vector<1x16x16x32xbf16>
    %c0_32 = arith.constant 0 : index
    %c0_33 = arith.constant 0 : index
    %c1_34 = arith.constant 1 : index
    %c0_35 = arith.constant 0 : index
    %19 = vector.load %arg9[%c0_32, %c0_33, %c1_34, %c0_35] : memref<1x18x18x32xbf16, #tpu.memory_space<vmem>>, vector<1x16x16x32xbf16>
    %c0_36 = arith.constant 0 : index
    %c0_37 = arith.constant 0 : index
    %c2 = arith.constant 2 : index
    %c0_38 = arith.constant 0 : index
    %20 = vector.load %arg9[%c0_36, %c0_37, %c2, %c0_38] : memref<1x18x18x32xbf16, #tpu.memory_space<vmem>>, vector<1x16x16x32xbf16>
    %c0_39 = arith.constant 0 : index
    %c1_40 = arith.constant 1 : index
    %c0_41 = arith.constant 0 : index
    %c0_42 = arith.constant 0 : index
    %21 = vector.load %arg9[%c0_39, %c1_40, %c0_41, %c0_42] : memref<1x18x18x32xbf16, #tpu.memory_space<vmem>>, vector<1x16x16x32xbf16>
    %c0_43 = arith.constant 0 : index
    %c1_44 = arith.constant 1 : index
    %c1_45 = arith.constant 1 : index
    %c0_46 = arith.constant 0 : index
    %22 = vector.load %arg9[%c0_43, %c1_44, %c1_45, %c0_46] : memref<1x18x18x32xbf16, #tpu.memory_space<vmem>>, vector<1x16x16x32xbf16>
    %c0_47 = arith.constant 0 : index
    %c1_48 = arith.constant 1 : index
    %c2_49 = arith.constant 2 : index
    %c0_50 = arith.constant 0 : index
    %23 = vector.load %arg9[%c0_47, %c1_48, %c2_49, %c0_50] : memref<1x18x18x32xbf16, #tpu.memory_space<vmem>>, vector<1x16x16x32xbf16>
    %c0_51 = arith.constant 0 : index
    %c2_52 = arith.constant 2 : index
    %c0_53 = arith.constant 0 : index
    %c0_54 = arith.constant 0 : index
    %24 = vector.load %arg9[%c0_51, %c2_52, %c0_53, %c0_54] : memref<1x18x18x32xbf16, #tpu.memory_space<vmem>>, vector<1x16x16x32xbf16>
    %c0_55 = arith.constant 0 : index
    %c2_56 = arith.constant 2 : index
    %c1_57 = arith.constant 1 : index
    %c0_58 = arith.constant 0 : index
    %25 = vector.load %arg9[%c0_55, %c2_56, %c1_57, %c0_58] : memref<1x18x18x32xbf16, #tpu.memory_space<vmem>>, vector<1x16x16x32xbf16>
    %c0_59 = arith.constant 0 : index
    %c2_60 = arith.constant 2 : index
    %c2_61 = arith.constant 2 : index
    %c0_62 = arith.constant 0 : index
    %26 = vector.load %arg9[%c0_59, %c2_60, %c2_61, %c0_62] : memref<1x18x18x32xbf16, #tpu.memory_space<vmem>>, vector<1x16x16x32xbf16>
    %27 = tpu.concatenate %18, %19, %20, %21, %22, %23, %24, %25, %26 in 3 : vector<1x16x16x32xbf16>, vector<1x16x16x32xbf16>, vector<1x16x16x32xbf16>, vector<1x16x16x32xbf16>, vector<1x16x16x32xbf16>, vector<1x16x16x32xbf16>, vector<1x16x16x32xbf16>, vector<1x16x16x32xbf16>, vector<1x16x16x32xbf16> -> vector<1x16x16x288xbf16>
    %28 = vector.shape_cast %27 : vector<1x16x16x288xbf16> to vector<256x288xbf16>
    %c0_63 = arith.constant 0 : index
    %c0_64 = arith.constant 0 : index
    %29 = vector.load %arg4[%c0_63, %c0_64] : memref<288x32xbf16, #tpu.memory_space<vmem>>, vector<288x32xbf16>
    %cst_65 = arith.constant dense<0.000000e+00> : vector<256x32xf32>
    %30 = tpu.matmul %28, %29, %cst_65 {dimension_numbers = #tpu.dot_dimension_numbers<[1], [0], [0], [1], [0, 0, 1, 1], [], []>} : vector<256x288xbf16>, vector<288x32xbf16>, vector<256x32xf32> -> vector<256x32xf32>
    %c0_66 = arith.constant 0 : index
    %c0_67 = arith.constant 0 : index
    %31 = vector.load %arg5[%c0_66, %c0_67] : memref<1x32xf32, #tpu.memory_space<vmem>>, vector<1x32xf32>
    %32 = vector.broadcast %31 : vector<1x32xf32> to vector<256x32xf32>
    %33 = arith.addf %30, %32 : vector<256x32xf32>
    %cst_68 = arith.constant 0.000000e+00 : f32
    %34 = vector.broadcast %cst_68 : f32 to vector<256x32xf32>
    %35 = arith.maximumf %33, %34 : vector<256x32xf32>
    %36 = arith.truncf %35 : vector<256x32xf32> to vector<256x32xbf16>
    %37 = tpu.concatenate %36, %1 in 1 : vector<256x32xbf16>, vector<256x64xbf16> -> vector<256x96xbf16>
    %c0_69 = arith.constant 0 : index
    %c0_70 = arith.constant 0 : index
    %38 = vector.load %arg6[%c0_69, %c0_70] : memref<96x128xbf16, #tpu.memory_space<vmem>>, vector<96x128xbf16>
    %cst_71 = arith.constant dense<0.000000e+00> : vector<256x128xf32>
    %39 = tpu.matmul %37, %38, %cst_71 {dimension_numbers = #tpu.dot_dimension_numbers<[1], [0], [0], [1], [0, 0, 1, 1], [], []>} : vector<256x96xbf16>, vector<96x128xbf16>, vector<256x128xf32> -> vector<256x128xf32>
    %c0_72 = arith.constant 0 : index
    %c0_73 = arith.constant 0 : index
    %40 = vector.load %arg7[%c0_72, %c0_73] : memref<1x128xf32, #tpu.memory_space<vmem>>, vector<1x128xf32>
    %41 = vector.broadcast %40 : vector<1x128xf32> to vector<256x128xf32>
    %42 = arith.addf %39, %41 : vector<256x128xf32>
    %cst_74 = arith.constant 0.000000e+00 : f32
    %43 = vector.broadcast %cst_74 : f32 to vector<256x128xf32>
    %44 = arith.maximumf %42, %43 : vector<256x128xf32>
    %45 = vector.shape_cast %44 : vector<256x128xf32> to vector<1x16x16x128xf32>
    %46 = arith.truncf %45 : vector<1x16x16x128xf32> to vector<1x16x16x128xbf16>
    %c0_75 = arith.constant 0 : index
    %c0_76 = arith.constant 0 : index
    %c0_77 = arith.constant 0 : index
    %c0_78 = arith.constant 0 : index
    %47 = vector.load %arg8[%c0_75, %c0_76, %c0_77, %c0_78] : memref<1x16x16x128xbf16, #tpu.memory_space<vmem>>, vector<1x16x16x128xbf16>
    tpu.vector_store %arg8[%c0_75, %c0_76, %c0_77, %c0_78], %46 {strides = array<i32>} : memref<1x16x16x128xbf16, #tpu.memory_space<vmem>>, vector<1x16x16x128xbf16>,
    return
  }
  func.func @transform_0(%arg0: i32) -> (i32, i32, i32, i32) {
    %c0_i32 = arith.constant 0 : i32
    %c0_i32_0 = arith.constant 0 : i32
    %c0_i32_1 = arith.constant 0 : i32
    %c0_i32_2 = arith.constant 0 : i32
    return %arg0, %c0_i32, %c0_i32_0, %c0_i32_1 : i32, i32, i32, i32
  }
  func.func @transform_1(%arg0: i32) -> (i32, i32) {
    %c0_i32 = arith.constant 0 : i32
    %c0_i32_0 = arith.constant 0 : i32
    %c0_i32_1 = arith.constant 0 : i32
    return %c0_i32, %c0_i32_0 : i32, i32
  }
  func.func @transform_2(%arg0: i32) -> (i32, i32) {
    %c0_i32 = arith.constant 0 : i32
    %c0_i32_0 = arith.constant 0 : i32
    %c0_i32_1 = arith.constant 0 : i32
    return %c0_i32, %c0_i32_0 : i32, i32
  }
  func.func @transform_3(%arg0: i32) -> (i32, i32) {
    %c0_i32 = arith.constant 0 : i32
    %c0_i32_0 = arith.constant 0 : i32
    %c0_i32_1 = arith.constant 0 : i32
    return %c0_i32, %c0_i32_0 : i32, i32
  }
  func.func @transform_4(%arg0: i32) -> (i32, i32) {
    %c0_i32 = arith.constant 0 : i32
    %c0_i32_0 = arith.constant 0 : i32
    %c0_i32_1 = arith.constant 0 : i32
    return %c0_i32, %c0_i32_0 : i32, i32
  }
  func.func @transform_5(%arg0: i32) -> (i32, i32) {
    %c0_i32 = arith.constant 0 : i32
    %c0_i32_0 = arith.constant 0 : i32
    %c0_i32_1 = arith.constant 0 : i32
    return %c0_i32, %c0_i32_0 : i32, i32
  }
  func.func @transform_6(%arg0: i32) -> (i32, i32) {
    %c0_i32 = arith.constant 0 : i32
    %c0_i32_0 = arith.constant 0 : i32
    %c0_i32_1 = arith.constant 0 : i32
    return %c0_i32, %c0_i32_0 : i32, i32
  }
  func.func @transform_7(%arg0: i32) -> (i32, i32, i32, i32) {
    %c0_i32 = arith.constant 0 : i32
    %c0_i32_0 = arith.constant 0 : i32
    %c0_i32_1 = arith.constant 0 : i32
    %c0_i32_2 = arith.constant 0 : i32
    return %arg0, %c0_i32, %c0_i32_0, %c0_i32_1 : i32, i32, i32, i32
  }
}

module attributes {stable_mosaic.version = 11 : i64} {
  func.func @kernel(%arg0: i32, %arg1: memref<1x16x16x128xbf16, #tpu.memory_space<vmem>>, %arg2: memref<128x32xbf16, #tpu.memory_space<vmem>>, %arg3: memref<1x32xf32, #tpu.memory_space<vmem>>, %arg4: memref<288x32xbf16, #tpu.memory_space<vmem>>, %arg5: memref<1x32xf32, #tpu.memory_space<vmem>>, %arg6: memref<32x128xbf16, #tpu.memory_space<vmem>>, %arg7: memref<1x128xf32, #tpu.memory_space<vmem>>, %arg8: memref<1x16x16x128xbf16, #tpu.memory_space<vmem>>, %arg9: memref<1x18x18x32xbf16, #tpu.memory_space<vmem>>) attributes {dimension_semantics = [#tpu.dimension_semantics<parallel>], iteration_bounds = array<i64: 2>, scalar_prefetch = 0 : i64, scratch_operands = 1 : i64, tpu.core_type = #tpu.core_type<tc>, window_params = [{transform_indices = @transform_0, window_bounds = array<i64: 1, 16, 16, 128>}, {pipeline_mode = #tpu.pipeline_mode<synchronous>, transform_indices = @transform_1, window_bounds = array<i64: 128, 32>}, {pipeline_mode = #tpu.pipeline_mode<synchronous>, transform_indices = @transform_2, window_bounds = array<i64: 1, 32>}, {pipeline_mode = #tpu.pipeline_mode<synchronous>, transform_indices = @transform_3, window_bounds = array<i64: 288, 32>}, {pipeline_mode = #tpu.pipeline_mode<synchronous>, transform_indices = @transform_4, window_bounds = array<i64: 1, 32>}, {pipeline_mode = #tpu.pipeline_mode<synchronous>, transform_indices = @transform_5, window_bounds = array<i64: 32, 128>}, {pipeline_mode = #tpu.pipeline_mode<synchronous>, transform_indices = @transform_6, window_bounds = array<i64: 1, 128>}, {transform_indices = @transform_7, window_bounds = array<i64: 1, 16, 16, 128>}]} {
    %c0 = arith.constant 0 : index
    %c0_0 = arith.constant 0 : index
    %c0_1 = arith.constant 0 : index
    %c0_2 = arith.constant 0 : index
    %0 = vector.load %arg1[%c0, %c0_0, %c0_1, %c0_2] : memref<1x16x16x128xbf16, #tpu.memory_space<vmem>>, vector<1x16x16x128xbf16>
    %1 = vector.shape_cast %0 : vector<1x16x16x128xbf16> to vector<256x128xbf16>
    %c0_3 = arith.constant 0 : index
    %c0_4 = arith.constant 0 : index
    %2 = vector.load %arg2[%c0_3, %c0_4] : memref<128x32xbf16, #tpu.memory_space<vmem>>, vector<128x32xbf16>
    %cst = arith.constant dense<0.000000e+00> : vector<256x32xf32>
    %3 = tpu.matmul %1, %2, %cst {dimension_numbers = #tpu.dot_dimension_numbers<[1], [0], [0], [1], [0, 0, 1, 1], [], []>} : vector<256x128xbf16>, vector<128x32xbf16>, vector<256x32xf32> -> vector<256x32xf32>
    %c0_5 = arith.constant 0 : index
    %c0_6 = arith.constant 0 : index
    %4 = vector.load %arg3[%c0_5, %c0_6] : memref<1x32xf32, #tpu.memory_space<vmem>>, vector<1x32xf32>
    %5 = vector.broadcast %4 : vector<1x32xf32> to vector<256x32xf32>
    %6 = arith.addf %3, %5 : vector<256x32xf32>
    %cst_7 = arith.constant 0.000000e+00 : f32
    %7 = vector.broadcast %cst_7 : f32 to vector<256x32xf32>
    %8 = arith.maximumf %6, %7 : vector<256x32xf32>
    %9 = vector.shape_cast %8 : vector<256x32xf32> to vector<1x16x16x32xf32>
    %10 = arith.truncf %9 : vector<1x16x16x32xf32> to vector<1x16x16x32xbf16>
    %c0_8 = arith.constant 0 : index
    %c1 = arith.constant 1 : index
    %c1_9 = arith.constant 1 : index
    %c0_10 = arith.constant 0 : index
    %11 = vector.load %arg9[%c0_8, %c1, %c1_9, %c0_10] : memref<1x18x18x32xbf16, #tpu.memory_space<vmem>>, vector<1x16x16x32xbf16>
    tpu.vector_store %arg9[%c0_8, %c1, %c1_9, %c0_10], %10 {strides = array<i32>} : memref<1x18x18x32xbf16, #tpu.memory_space<vmem>>, vector<1x16x16x32xbf16>,
    %cst_11 = arith.constant 0.000000e+00 : bf16
    %12 = vector.broadcast %cst_11 : bf16 to vector<1x1x18x32xbf16>
    %cst_12 = arith.constant 0.000000e+00 : bf16
    %13 = vector.broadcast %cst_12 : bf16 to vector<1x16x1x32xbf16>
    %c0_13 = arith.constant 0 : index
    %c0_14 = arith.constant 0 : index
    %c0_15 = arith.constant 0 : index
    %c0_16 = arith.constant 0 : index
    %14 = vector.load %arg9[%c0_13, %c0_14, %c0_15, %c0_16] : memref<1x18x18x32xbf16, #tpu.memory_space<vmem>>, vector<1x1x18x32xbf16>
    tpu.vector_store %arg9[%c0_13, %c0_14, %c0_15, %c0_16], %12 {strides = array<i32>} : memref<1x18x18x32xbf16, #tpu.memory_space<vmem>>, vector<1x1x18x32xbf16>,
    %c0_17 = arith.constant 0 : index
    %c17 = arith.constant 17 : index
    %c0_18 = arith.constant 0 : index
    %c0_19 = arith.constant 0 : index
    %15 = vector.load %arg9[%c0_17, %c17, %c0_18, %c0_19] : memref<1x18x18x32xbf16, #tpu.memory_space<vmem>>, vector<1x1x18x32xbf16>
    tpu.vector_store %arg9[%c0_17, %c17, %c0_18, %c0_19], %12 {strides = array<i32>} : memref<1x18x18x32xbf16, #tpu.memory_space<vmem>>, vector<1x1x18x32xbf16>,
    %c0_20 = arith.constant 0 : index
    %c1_21 = arith.constant 1 : index
    %c0_22 = arith.constant 0 : index
    %c0_23 = arith.constant 0 : index
    %16 = vector.load %arg9[%c0_20, %c1_21, %c0_22, %c0_23] : memref<1x18x18x32xbf16, #tpu.memory_space<vmem>>, vector<1x16x1x32xbf16>
    tpu.vector_store %arg9[%c0_20, %c1_21, %c0_22, %c0_23], %13 {strides = array<i32>} : memref<1x18x18x32xbf16, #tpu.memory_space<vmem>>, vector<1x16x1x32xbf16>,
    %c0_24 = arith.constant 0 : index
    %c1_25 = arith.constant 1 : index
    %c17_26 = arith.constant 17 : index
    %c0_27 = arith.constant 0 : index
    %17 = vector.load %arg9[%c0_24, %c1_25, %c17_26, %c0_27] : memref<1x18x18x32xbf16, #tpu.memory_space<vmem>>, vector<1x16x1x32xbf16>
    tpu.vector_store %arg9[%c0_24, %c1_25, %c17_26, %c0_27], %13 {strides = array<i32>} : memref<1x18x18x32xbf16, #tpu.memory_space<vmem>>, vector<1x16x1x32xbf16>,
    %c0_28 = arith.constant 0 : index
    %c0_29 = arith.constant 0 : index
    %c0_30 = arith.constant 0 : index
    %c0_31 = arith.constant 0 : index
    %18 = vector.load %arg9[%c0_28, %c0_29, %c0_30, %c0_31] : memref<1x18x18x32xbf16, #tpu.memory_space<vmem>>, vector<1x16x16x32xbf16>
    %c0_32 = arith.constant 0 : index
    %c0_33 = arith.constant 0 : index
    %c1_34 = arith.constant 1 : index
    %c0_35 = arith.constant 0 : index
    %19 = vector.load %arg9[%c0_32, %c0_33, %c1_34, %c0_35] : memref<1x18x18x32xbf16, #tpu.memory_space<vmem>>, vector<1x16x16x32xbf16>
    %c0_36 = arith.constant 0 : index
    %c0_37 = arith.constant 0 : index
    %c2 = arith.constant 2 : index
    %c0_38 = arith.constant 0 : index
    %20 = vector.load %arg9[%c0_36, %c0_37, %c2, %c0_38] : memref<1x18x18x32xbf16, #tpu.memory_space<vmem>>, vector<1x16x16x32xbf16>
    %c0_39 = arith.constant 0 : index
    %c1_40 = arith.constant 1 : index
    %c0_41 = arith.constant 0 : index
    %c0_42 = arith.constant 0 : index
    %21 = vector.load %arg9[%c0_39, %c1_40, %c0_41, %c0_42] : memref<1x18x18x32xbf16, #tpu.memory_space<vmem>>, vector<1x16x16x32xbf16>
    %c0_43 = arith.constant 0 : index
    %c1_44 = arith.constant 1 : index
    %c1_45 = arith.constant 1 : index
    %c0_46 = arith.constant 0 : index
    %22 = vector.load %arg9[%c0_43, %c1_44, %c1_45, %c0_46] : memref<1x18x18x32xbf16, #tpu.memory_space<vmem>>, vector<1x16x16x32xbf16>
    %c0_47 = arith.constant 0 : index
    %c1_48 = arith.constant 1 : index
    %c2_49 = arith.constant 2 : index
    %c0_50 = arith.constant 0 : index
    %23 = vector.load %arg9[%c0_47, %c1_48, %c2_49, %c0_50] : memref<1x18x18x32xbf16, #tpu.memory_space<vmem>>, vector<1x16x16x32xbf16>
    %c0_51 = arith.constant 0 : index
    %c2_52 = arith.constant 2 : index
    %c0_53 = arith.constant 0 : index
    %c0_54 = arith.constant 0 : index
    %24 = vector.load %arg9[%c0_51, %c2_52, %c0_53, %c0_54] : memref<1x18x18x32xbf16, #tpu.memory_space<vmem>>, vector<1x16x16x32xbf16>
    %c0_55 = arith.constant 0 : index
    %c2_56 = arith.constant 2 : index
    %c1_57 = arith.constant 1 : index
    %c0_58 = arith.constant 0 : index
    %25 = vector.load %arg9[%c0_55, %c2_56, %c1_57, %c0_58] : memref<1x18x18x32xbf16, #tpu.memory_space<vmem>>, vector<1x16x16x32xbf16>
    %c0_59 = arith.constant 0 : index
    %c2_60 = arith.constant 2 : index
    %c2_61 = arith.constant 2 : index
    %c0_62 = arith.constant 0 : index
    %26 = vector.load %arg9[%c0_59, %c2_60, %c2_61, %c0_62] : memref<1x18x18x32xbf16, #tpu.memory_space<vmem>>, vector<1x16x16x32xbf16>
    %27 = tpu.concatenate %18, %19, %20, %21, %22, %23, %24, %25, %26 in 3 : vector<1x16x16x32xbf16>, vector<1x16x16x32xbf16>, vector<1x16x16x32xbf16>, vector<1x16x16x32xbf16>, vector<1x16x16x32xbf16>, vector<1x16x16x32xbf16>, vector<1x16x16x32xbf16>, vector<1x16x16x32xbf16>, vector<1x16x16x32xbf16> -> vector<1x16x16x288xbf16>
    %28 = vector.shape_cast %27 : vector<1x16x16x288xbf16> to vector<256x288xbf16>
    %c0_63 = arith.constant 0 : index
    %c0_64 = arith.constant 0 : index
    %29 = vector.load %arg4[%c0_63, %c0_64] : memref<288x32xbf16, #tpu.memory_space<vmem>>, vector<288x32xbf16>
    %cst_65 = arith.constant dense<0.000000e+00> : vector<256x32xf32>
    %30 = tpu.matmul %28, %29, %cst_65 {dimension_numbers = #tpu.dot_dimension_numbers<[1], [0], [0], [1], [0, 0, 1, 1], [], []>} : vector<256x288xbf16>, vector<288x32xbf16>, vector<256x32xf32> -> vector<256x32xf32>
    %c0_66 = arith.constant 0 : index
    %c0_67 = arith.constant 0 : index
    %31 = vector.load %arg5[%c0_66, %c0_67] : memref<1x32xf32, #tpu.memory_space<vmem>>, vector<1x32xf32>
    %32 = vector.broadcast %31 : vector<1x32xf32> to vector<256x32xf32>
    %33 = arith.addf %30, %32 : vector<256x32xf32>
    %cst_68 = arith.constant 0.000000e+00 : f32
    %34 = vector.broadcast %cst_68 : f32 to vector<256x32xf32>
    %35 = arith.maximumf %33, %34 : vector<256x32xf32>
    %36 = arith.truncf %35 : vector<256x32xf32> to vector<256x32xbf16>
    %c0_69 = arith.constant 0 : index
    %c0_70 = arith.constant 0 : index
    %37 = vector.load %arg6[%c0_69, %c0_70] : memref<32x128xbf16, #tpu.memory_space<vmem>>, vector<32x128xbf16>
    %cst_71 = arith.constant dense<0.000000e+00> : vector<256x128xf32>
    %38 = tpu.matmul %36, %37, %cst_71 {dimension_numbers = #tpu.dot_dimension_numbers<[1], [0], [0], [1], [0, 0, 1, 1], [], []>} : vector<256x32xbf16>, vector<32x128xbf16>, vector<256x128xf32> -> vector<256x128xf32>
    %c0_72 = arith.constant 0 : index
    %c0_73 = arith.constant 0 : index
    %39 = vector.load %arg7[%c0_72, %c0_73] : memref<1x128xf32, #tpu.memory_space<vmem>>, vector<1x128xf32>
    %40 = vector.broadcast %39 : vector<1x128xf32> to vector<256x128xf32>
    %41 = arith.addf %38, %40 : vector<256x128xf32>
    %42 = arith.extf %1 : vector<256x128xbf16> to vector<256x128xf32>
    %43 = arith.addf %41, %42 : vector<256x128xf32>
    %cst_74 = arith.constant 0.000000e+00 : f32
    %44 = vector.broadcast %cst_74 : f32 to vector<256x128xf32>
    %45 = arith.maximumf %43, %44 : vector<256x128xf32>
    %46 = vector.shape_cast %45 : vector<256x128xf32> to vector<1x16x16x128xf32>
    %47 = arith.truncf %46 : vector<1x16x16x128xf32> to vector<1x16x16x128xbf16>
    %c0_75 = arith.constant 0 : index
    %c0_76 = arith.constant 0 : index
    %c0_77 = arith.constant 0 : index
    %c0_78 = arith.constant 0 : index
    %48 = vector.load %arg8[%c0_75, %c0_76, %c0_77, %c0_78] : memref<1x16x16x128xbf16, #tpu.memory_space<vmem>>, vector<1x16x16x128xbf16>
    tpu.vector_store %arg8[%c0_75, %c0_76, %c0_77, %c0_78], %47 {strides = array<i32>} : memref<1x16x16x128xbf16, #tpu.memory_space<vmem>>, vector<1x16x16x128xbf16>,
    return
  }
  func.func @transform_0(%arg0: i32) -> (i32, i32, i32, i32) {
    %c0_i32 = arith.constant 0 : i32
    %c0_i32_0 = arith.constant 0 : i32
    %c0_i32_1 = arith.constant 0 : i32
    %c0_i32_2 = arith.constant 0 : i32
    return %arg0, %c0_i32, %c0_i32_0, %c0_i32_1 : i32, i32, i32, i32
  }
  func.func @transform_1(%arg0: i32) -> (i32, i32) {
    %c0_i32 = arith.constant 0 : i32
    %c0_i32_0 = arith.constant 0 : i32
    %c0_i32_1 = arith.constant 0 : i32
    return %c0_i32, %c0_i32_0 : i32, i32
  }
  func.func @transform_2(%arg0: i32) -> (i32, i32) {
    %c0_i32 = arith.constant 0 : i32
    %c0_i32_0 = arith.constant 0 : i32
    %c0_i32_1 = arith.constant 0 : i32
    return %c0_i32, %c0_i32_0 : i32, i32
  }
  func.func @transform_3(%arg0: i32) -> (i32, i32) {
    %c0_i32 = arith.constant 0 : i32
    %c0_i32_0 = arith.constant 0 : i32
    %c0_i32_1 = arith.constant 0 : i32
    return %c0_i32, %c0_i32_0 : i32, i32
  }
  func.func @transform_4(%arg0: i32) -> (i32, i32) {
    %c0_i32 = arith.constant 0 : i32
    %c0_i32_0 = arith.constant 0 : i32
    %c0_i32_1 = arith.constant 0 : i32
    return %c0_i32, %c0_i32_0 : i32, i32
  }
  func.func @transform_5(%arg0: i32) -> (i32, i32) {
    %c0_i32 = arith.constant 0 : i32
    %c0_i32_0 = arith.constant 0 : i32
    %c0_i32_1 = arith.constant 0 : i32
    return %c0_i32, %c0_i32_0 : i32, i32
  }
  func.func @transform_6(%arg0: i32) -> (i32, i32) {
    %c0_i32 = arith.constant 0 : i32
    %c0_i32_0 = arith.constant 0 : i32
    %c0_i32_1 = arith.constant 0 : i32
    return %c0_i32, %c0_i32_0 : i32, i32
  }
  func.func @transform_7(%arg0: i32) -> (i32, i32, i32, i32) {
    %c0_i32 = arith.constant 0 : i32
    %c0_i32_0 = arith.constant 0 : i32
    %c0_i32_1 = arith.constant 0 : i32
    %c0_i32_2 = arith.constant 0 : i32
    return %arg0, %c0_i32, %c0_i32_0, %c0_i32_1 : i32, i32, i32, i32
  }
}

</mosaic_0001>

<llo_original>
// kernel: fwd.2
$region0: #{fwd.2}
  #allocation0 [shape = 'u32[]', space=smem, size = 0x4, offset = 0x4, fixed_abs, tag = 'smem constant byte address 0x4 - core index']
  #allocation1 [shape = 'u32[72,128]{1,0:T(1,128)}', space=vmem, size = 0x9000, scoped, tag = 'internal scratch']
  #allocation2 [shape = 'bf16[1,18,18,32]{3,2,1,0:T(8,128)(2,1)}', space=vmem, size = 0x1b000, scoped, tag = 'scratch operand']
  %s0 = inlined_call_operand.vmem [shape: bf16[2,16,16,64], index: 0, kind: input, shape index: {}]
  %s1 = inlined_call_operand.vmem [shape: bf16[64,32], index: 1, kind: input, shape index: {}]
  %s2 = inlined_call_operand.vmem [shape: f32[1,32], index: 2, kind: input, shape index: {}]
  %s3 = inlined_call_operand.vmem [shape: bf16[288,32], index: 3, kind: input, shape index: {}]
  %s4 = inlined_call_operand.vmem [shape: f32[1,32], index: 4, kind: input, shape index: {}]
  %s5 = inlined_call_operand.vmem [shape: bf16[96,128], index: 5, kind: input, shape index: {}]
  %s6 = inlined_call_operand.vmem [shape: f32[1,128], index: 6, kind: input, shape index: {}]
  %s7 = inlined_call_operand.vmem [shape: bf16[2,16,16,128], index: 7, kind: output, shape index: {}]
  %s8 = sld [smem:[#allocation0]]
  $region61: #{fwd.2} parent=0
    _
  %s10 = ssub.s32 1, %s8
  %s11 = scalar_select 0, %s10, %s8
  loop: start=0, step=1, limit=4
  $region2: #{fwd.2} parent=0 // loop_pre_header
    _
  $region3: #{fwd.2} parent=0 // loop_header
    %s13 = sphi 0, %s17
    %p14 = scmp.ge.s32.totalorder %s13, 4
    %s23 = sphi 0, %s25
    %s26 = sphi 0, %s23
    %s27 = sphi 0, %s26
    %s43 = sphi 0, %s27
    %s47 = sphi 0, %s47
    %s49 = sphi 0, %s47
    %s50 = sphi 0, %s49
    %s64 = sphi 0, %s50
    %s68 = sphi 0, %s68
    %s70 = sphi 0, %s68
    %s71 = sphi 0, %s70
    %s85 = sphi 0, %s71
    %s89 = sphi 0, %s89
    %s91 = sphi 0, %s89
    %s92 = sphi 0, %s91
    %s106 = sphi 0, %s92
    %s110 = sphi 0, %s110
    %s112 = sphi 0, %s110
    %s113 = sphi 0, %s112
    %s127 = sphi 0, %s113
    %s131 = sphi 0, %s131
    %s133 = sphi 0, %s131
    %s134 = sphi 0, %s133
    %s148 = sphi 0, %s134
    %s152 = sphi 0, %s152
    %s154 = sphi 0, %s152
    %s155 = sphi 0, %s154
    %s169 = sphi 0, %s155
    %s175 = sphi 0, %s177
    %s178 = sphi 0, %s175
    %s179 = sphi 0, %s178
    %s195 = sphi 0, %s179
  $region4: #{fwd.2} parent=0 // loop_header_branch
    %16 = sbr.rel (%p14) target = $region8
  $region5: #{fwd.2} parent=0 // loop_body
    %s18 = ssub.s32 %s13, 1
    %s19 = ssub.s32 %s13, 2
    %s20 = sadd.s32 %s13, 1
    %s21 = ssub.s32 %s13, %s20
    %p22 = scmp.eq.s32.totalorder %s21, 0
    %s24 = sadd.s32 %s23, 1
    %s25 = scalar_select %p22, %s23, %s24
    %p28 = pneg %p22
    %p29 = scmp.eq.s32.totalorder %s13, 1
    %p30 = por %p28, %p29
    %p31 = scmp.ne.s32.totalorder %s23, %s26
    %p32 = scmp.eq.s32.totalorder %s13, 0
    %p33 = por %p31, %p32
    %p34 = scmp.ne.s32.totalorder %s23, %s26
    %p35 = scmp.eq.s32.totalorder %s18, 1
    %p36 = por %p34, %p35
    %p37 = scmp.ne.s32.totalorder %s26, %s27
    %p38 = scmp.eq.s32.totalorder %s18, 0
    %p39 = por %p37, %p38
    %p40 = scmp.ne.s32.totalorder %s26, %s27
    %p41 = scmp.eq.s32.totalorder %s19, 1
    %p42 = por %p40, %p41
    %p44 = scmp.ne.s32.totalorder %s27, %s43
    %p45 = scmp.eq.s32.totalorder %s19, 0
    %p46 = por %p44, %p45
    %s48 = sadd.s32 %s47, 1
    %p51 = scmp.eq.s32.totalorder %s13, 1
    %p52 = scmp.ne.s32.totalorder %s47, %s49
    %p53 = scmp.eq.s32.totalorder %s13, 0
    %p54 = por %p52, %p53
    %p55 = scmp.ne.s32.totalorder %s47, %s49
    %p56 = scmp.eq.s32.totalorder %s18, 1
    %p57 = por %p55, %p56
    %p58 = scmp.ne.s32.totalorder %s49, %s50
    %p59 = scmp.eq.s32.totalorder %s18, 0
    %p60 = por %p58, %p59
    %p61 = scmp.ne.s32.totalorder %s49, %s50
    %p62 = scmp.eq.s32.totalorder %s19, 1
    %p63 = por %p61, %p62
    %p65 = scmp.ne.s32.totalorder %s50, %s64
    %p66 = scmp.eq.s32.totalorder %s19, 0
    %p67 = por %p65, %p66
    %s69 = sadd.s32 %s68, 1
    %p72 = scmp.eq.s32.totalorder %s13, 1
    %p73 = scmp.ne.s32.totalorder %s68, %s70
    %p74 = scmp.eq.s32.totalorder %s13, 0
    %p75 = por %p73, %p74
    %p76 = scmp.ne.s32.totalorder %s68, %s70
    %p77 = scmp.eq.s32.totalorder %s18, 1
    %p78 = por %p76, %p77
    %p79 = scmp.ne.s32.totalorder %s70, %s71
    %p80 = scmp.eq.s32.totalorder %s18, 0
    %p81 = por %p79, %p80
    %p82 = scmp.ne.s32.totalorder %s70, %s71
    %p83 = scmp.eq.s32.totalorder %s19, 1
    %p84 = por %p82, %p83
    %p86 = scmp.ne.s32.totalorder %s71, %s85
    %p87 = scmp.eq.s32.totalorder %s19, 0
    %p88 = por %p86, %p87
    %s90 = sadd.s32 %s89, 1
    %p93 = scmp.eq.s32.totalorder %s13, 1
    %p94 = scmp.ne.s32.totalorder %s89, %s91
    %p95 = scmp.eq.s32.totalorder %s13, 0
    %p96 = por %p94, %p95
    %p97 = scmp.ne.s32.totalorder %s89, %s91
    %p98 = scmp.eq.s32.totalorder %s18, 1
    %p99 = por %p97, %p98
    %p100 = scmp.ne.s32.totalorder %s91, %s92
    %p101 = scmp.eq.s32.totalorder %s18, 0
    %p102 = por %p100, %p101
    %p103 = scmp.ne.s32.totalorder %s91, %s92
    %p104 = scmp.eq.s32.totalorder %s19, 1
    %p105 = por %p103, %p104
    %p107 = scmp.ne.s32.totalorder %s92, %s106
    %p108 = scmp.eq.s32.totalorder %s19, 0
    %p109 = por %p107, %p108
    %s111 = sadd.s32 %s110, 1
    %p114 = scmp.eq.s32.totalorder %s13, 1
    %p115 = scmp.ne.s32.totalorder %s110, %s112
    %p116 = scmp.eq.s32.totalorder %s13, 0
    %p117 = por %p115, %p116
    %p118 = scmp.ne.s32.totalorder %s110, %s112
    %p119 = scmp.eq.s32.totalorder %s18, 1
    %p120 = por %p118, %p119
    %p121 = scmp.ne.s32.totalorder %s112, %s113
    %p122 = scmp.eq.s32.totalorder %s18, 0
    %p123 = por %p121, %p122
    %p124 = scmp.ne.s32.totalorder %s112, %s113
    %p125 = scmp.eq.s32.totalorder %s19, 1
    %p126 = por %p124, %p125
    %p128 = scmp.ne.s32.totalorder %s113, %s127
    %p129 = scmp.eq.s32.totalorder %s19, 0
    %p130 = por %p128, %p129
    %s132 = sadd.s32 %s131, 1
    %p135 = scmp.eq.s32.totalorder %s13, 1
    %p136 = scmp.ne.s32.totalorder %s131, %s133
    %p137 = scmp.eq.s32.totalorder %s13, 0
    %p138 = por %p136, %p137
    %p139 = scmp.ne.s32.totalorder %s131, %s133
    %p140 = scmp.eq.s32.totalorder %s18, 1
    %p141 = por %p139, %p140
    %p142 = scmp.ne.s32.totalorder %s133, %s134
    %p143 = scmp.eq.s32.totalorder %s18, 0
    %p144 = por %p142, %p143
    %p145 = scmp.ne.s32.totalorder %s133, %s134
    %p146 = scmp.eq.s32.totalorder %s19, 1
    %p147 = por %p145, %p146
    %p149 = scmp.ne.s32.totalorder %s134, %s148
    %p150 = scmp.eq.s32.totalorder %s19, 0
    %p151 = por %p149, %p150
    %s153 = sadd.s32 %s152, 1
    %p156 = scmp.eq.s32.totalorder %s13, 1
    %p157 = scmp.ne.s32.totalorder %s152, %s154
    %p158 = scmp.eq.s32.totalorder %s13, 0
    %p159 = por %p157, %p158
    %p160 = scmp.ne.s32.totalorder %s152, %s154
    %p161 = scmp.eq.s32.totalorder %s18, 1
    %p162 = por %p160, %p161
    %p163 = scmp.ne.s32.totalorder %s154, %s155
    %p164 = scmp.eq.s32.totalorder %s18, 0
    %p165 = por %p163, %p164
    %p166 = scmp.ne.s32.totalorder %s154, %s155
    %p167 = scmp.eq.s32.totalorder %s19, 1
    %p168 = por %p166, %p167
    %p170 = scmp.ne.s32.totalorder %s155, %s169
    %p171 = scmp.eq.s32.totalorder %s19, 0
    %p172 = por %p170, %p171
    %s173 = ssub.s32 %s13, %s20
    %p174 = scmp.eq.s32.totalorder %s173, 0
    %s176 = sadd.s32 %s175, 1
    %s177 = scalar_select %p174, %s175, %s176
    %p180 = pneg %p174
    %p181 = scmp.eq.s32.totalorder %s13, 1
    %p182 = por %p180, %p181
    %p183 = scmp.ne.s32.totalorder %s175, %s178
    %p184 = scmp.eq.s32.totalorder %s13, 0
    %p185 = por %p183, %p184
    %p186 = scmp.ne.s32.totalorder %s175, %s178
    %p187 = scmp.eq.s32.totalorder %s18, 1
    %p188 = por %p186, %p187
    %p189 = scmp.ne.s32.totalorder %s178, %s179
    %p190 = scmp.eq.s32.totalorder %s18, 0
    %p191 = por %p189, %p190
    %p192 = scmp.ne.s32.totalorder %s178, %s179
    %p193 = scmp.eq.s32.totalorder %s19, 1
    %p194 = por %p192, %p193
    %p196 = scmp.ne.s32.totalorder %s179, %s195
    %p197 = scmp.eq.s32.totalorder %s19, 0
    %p198 = por %p196, %p197
    %p199 = scmp.le.s32.totalorder 1, %s13
    %p200 = scmp.lt.s32.totalorder %s13, 3
    %p201 = pnand %p199, %p200
    %p202 = pneg %p201
    // Predicated region
    $region9: #{fwd.2} parent=5 // pred_check
      _
    $region10: #{fwd.2} parent=5 // pred_check_branch
      %204 = sbr.rel (%p201) target = $region12
    $region11: #{fwd.2} parent=5 // pred_region
      %s205 = ssub.s32 %s13, 1
      // Predicated region
      $region13: #{fwd.2} parent=11 // pred_check
        %p206 = pneg %p60
      $region14: #{fwd.2} parent=11 // pred_check_branch
        %208 = sbr.rel (%p206) target = $region16
      $region15: #{fwd.2} parent=11 // pred_region
        _
      $region16: #{fwd.2} parent=11 // pred_fallthru
        _
      // Predicated region
      $region17: #{fwd.2} parent=11 // pred_check
        %p209 = pneg %p81
      $region18: #{fwd.2} parent=11 // pred_check_branch
        %211 = sbr.rel (%p209) target = $region20
      $region19: #{fwd.2} parent=11 // pred_region
        _
      $region20: #{fwd.2} parent=11 // pred_fallthru
        _
      // Predicated region
      $region21: #{fwd.2} parent=11 // pred_check
        %p212 = pneg %p102
      $region22: #{fwd.2} parent=11 // pred_check_branch
        %214 = sbr.rel (%p212) target = $region24
      $region23: #{fwd.2} parent=11 // pred_region
        _
      $region24: #{fwd.2} parent=11 // pred_fallthru
        _
      // Predicated region
      $region25: #{fwd.2} parent=11 // pred_check
        %p215 = pneg %p123
      $region26: #{fwd.2} parent=11 // pred_check_branch
        %217 = sbr.rel (%p215) target = $region28
      $region27: #{fwd.2} parent=11 // pred_region
        _
      $region28: #{fwd.2} parent=11 // pred_fallthru
        _
      // Predicated region
      $region29: #{fwd.2} parent=11 // pred_check
        %p218 = pneg %p144
      $region30: #{fwd.2} parent=11 // pred_check_branch
        %220 = sbr.rel (%p218) target = $region32
      $region31: #{fwd.2} parent=11 // pred_region
        _
      $region32: #{fwd.2} parent=11 // pred_fallthru
        _
      // Predicated region
      $region33: #{fwd.2} parent=11 // pred_check
        %p221 = pneg %p165
      $region34: #{fwd.2} parent=11 // pred_check_branch
        %223 = sbr.rel (%p221) target = $region36
      $region35: #{fwd.2} parent=11 // pred_region
        _
      $region36: #{fwd.2} parent=11 // pred_fallthru
        _
    $region12: #{fwd.2} parent=5 // pred_fallthru
      _
    %p224 = scmp.lt.s32.totalorder %s13, 2
    // Predicated region
    $region37: #{fwd.2} parent=5 // pred_check
      %p225 = pneg %p224
    $region38: #{fwd.2} parent=5 // pred_check_branch
      %227 = sbr.rel (%p225) target = $region40
    $region39: #{fwd.2} parent=5 // pred_region
      // Predicated region
      $region41: #{fwd.2} parent=39 // pred_check
        %p228 = pneg %p33
      $region42: #{fwd.2} parent=39 // pred_check_branch
        %230 = sbr.rel (%p228) target = $region44
      $region43: #{fwd.2} parent=39 // pred_region
        %p231 = scmp.lt.s32.totalorder %s13, 1
        %s232 = scalar_select %p231, %s13, 1
        %s233 = smul.addr %s232, 32
        %s234 = smul.addr %s233, 4
        %s235 = scalar_lea.vmem %s0, %s234
      $region44: #{fwd.2} parent=39 // pred_fallthru
        _
    $region40: #{fwd.2} parent=5 // pred_fallthru
      _
    %p236 = scmp.le.s32.totalorder 1, %s13
    %p237 = scmp.lt.s32.totalorder %s13, 3
    %p238 = pnand %p236, %p237
    %p239 = pneg %p238
    // Predicated region
    $region45: #{fwd.2} parent=5 // pred_check
      _
    $region46: #{fwd.2} parent=5 // pred_check_branch
      %241 = sbr.rel (%p238) target = $region48
    $region47: #{fwd.2} parent=5 // pred_region
      %s242 = ssub.s32 %s13, 1
      %p243 = scmp.lt.s32.totalorder %s18, 1
      %s244 = scalar_select %p243, %s18, 1
      %s245 = smul.addr %s244, 32
      %s246 = smul.addr %s245, 4
      %s247 = scalar_lea.vmem %s0, %s246
      %p248 = pneg %p39
      %p249 = pneg %p36
      %p250 = pneg %p60
      %p251 = pneg %p57
      %p252 = pneg %p81
      %p253 = pneg %p78
      %p254 = pneg %p102
      %p255 = pneg %p99
      %p256 = pneg %p123
      %p257 = pneg %p120
      %p258 = pneg %p144
      %p259 = pneg %p141
      %p260 = pneg %p165
      %p261 = pneg %p162
      %p262 = pneg %p191
      %p263 = pneg %p188
      %p264 = scmp.lt.s32.totalorder %s18, 1
      %s265 = scalar_select %p264, %s18, 1
      %s266 = smul.addr %s265, 32
      %s267 = smul.addr %s266, 4
      %s268 = scalar_lea.vmem %s7, %s267
      %p269 = scmp.lt.s32.totalorder %s18, 1
      %s270 = scalar_select %p269, %s18, 1
      %s271 = smul.addr %s270, 32
      %s272 = smul.addr %s271, 4
      %s273 = scalar_lea.vmem %s0, %s272
      %p274 = scmp.lt.s32.totalorder %s18, 1
      %s275 = scalar_select %p274, %s18, 1
      %s276 = smul.addr %s275, 32
      %s277 = smul.addr %s276, 4
      %s278 = scalar_lea.vmem %s7, %s277
      %v280 = vld [vmem:[%s273] sm:$0xf]
      %v281 = vld [vmem:[%s273 + $0x4] sm:$0xf]
      %v282 = vld [vmem:[%s273 + $0x8] sm:$0xf]
      %v283 = vld [vmem:[%s273 + $0xc] sm:$0xf]
      %v284 = vld [vmem:[%s273 + $0x10] sm:$0xf]
      %v285 = vld [vmem:[%s273 + $0x14] sm:$0xf]
      %v286 = vld [vmem:[%s273 + $0x18] sm:$0xf]
      %v287 = vld [vmem:[%s273 + $0x1c] sm:$0xf]
      %v288 = vld [vmem:[%s273 + $0x20] sm:$0xf]
      %v289 = vld [vmem:[%s273 + $0x24] sm:$0xf]
      %v290 = vld [vmem:[%s273 + $0x28] sm:$0xf]
      %v291 = vld [vmem:[%s273 + $0x2c] sm:$0xf]
      %v292 = vld [vmem:[%s273 + $0x30] sm:$0xf]
      %v293 = vld [vmem:[%s273 + $0x34] sm:$0xf]
      %v294 = vld [vmem:[%s273 + $0x38] sm:$0xf]
      %v295 = vld [vmem:[%s273 + $0x3c] sm:$0xf]
      %v296 = vld [vmem:[%s273 + $0x40] sm:$0xf]
      %v297 = vld [vmem:[%s273 + $0x44] sm:$0xf]
      %v298 = vld [vmem:[%s273 + $0x48] sm:$0xf]
      %v299 = vld [vmem:[%s273 + $0x4c] sm:$0xf]
      %v300 = vld [vmem:[%s273 + $0x50] sm:$0xf]
      %v301 = vld [vmem:[%s273 + $0x54] sm:$0xf]
      %v302 = vld [vmem:[%s273 + $0x58] sm:$0xf]
      %v303 = vld [vmem:[%s273 + $0x5c] sm:$0xf]
      %v304 = vld [vmem:[%s273 + $0x60] sm:$0xf]
      %v305 = vld [vmem:[%s273 + $0x64] sm:$0xf]
      %v306 = vld [vmem:[%s273 + $0x68] sm:$0xf]
      %v307 = vld [vmem:[%s273 + $0x6c] sm:$0xf]
      %v308 = vld [vmem:[%s273 + $0x70] sm:$0xf]
      %v309 = vld [vmem:[%s273 + $0x74] sm:$0xf]
      %v310 = vld [vmem:[%s273 + $0x78] sm:$0xf]
      %v311 = vld [vmem:[%s273 + $0x7c] sm:$0xf]
      %v312 = vld [vmem:[%s1] sm:$0xf]
      %v313 = vld [vmem:[%s1 + $0x4] sm:$0xf]
      %v314 = vld [vmem:[%s1 + $0x8] sm:$0xf]
      %v315 = vld [vmem:[%s1 + $0xc] sm:$0xf]
      %v316 = vld [vmem:[%s1 + $0x10] sm:$0xf]
      %v317 = vld [vmem:[%s1 + $0x14] sm:$0xf]
      %v318 = vld [vmem:[%s1 + $0x18] sm:$0xf]
      %v319 = vld [vmem:[%s1 + $0x1c] sm:$0xf]
      %v320 = vld [vmem:[%s2] sm:$0x1]
      %v322 = vperm.slane %v320, 0
      %v356 = vunpack.c.l.b16 %v280
      %v357 = vunpack.c.l.b16 %v281
      %v358 = vunpack.c.l.b16 %v282
      %v359 = vunpack.c.l.b16 %v283
      %v360 = vunpack.c.l.b16 %v284
      %v361 = vunpack.c.l.b16 %v285
      %v362 = vunpack.c.l.b16 %v286
      %v363 = vunpack.c.l.b16 %v287
      %v364 = vunpack.c.l.b16 %v288
      %v365 = vunpack.c.l.b16 %v289
      %v366 = vunpack.c.l.b16 %v290
      %v367 = vunpack.c.l.b16 %v291
      %v368 = vunpack.c.l.b16 %v292
      %v369 = vunpack.c.l.b16 %v293
      %v370 = vunpack.c.l.b16 %v294
      %v371 = vunpack.c.l.b16 %v295
      %v372 = vunpack.c.l.b16 %v296
      %v373 = vunpack.c.l.b16 %v297
      %v374 = vunpack.c.l.b16 %v298
      %v375 = vunpack.c.l.b16 %v299
      %v376 = vunpack.c.l.b16 %v300
      %v377 = vunpack.c.l.b16 %v301
      %v378 = vunpack.c.l.b16 %v302
      %v379 = vunpack.c.l.b16 %v303
      %v380 = vunpack.c.l.b16 %v304
      %v381 = vunpack.c.l.b16 %v305
      %v382 = vunpack.c.l.b16 %v306
      %v383 = vunpack.c.l.b16 %v307
      %v384 = vunpack.c.l.b16 %v308
      %v385 = vunpack.c.l.b16 %v309
      %v386 = vunpack.c.l.b16 %v310
      %v387 = vunpack.c.l.b16 %v311
      %v388 = vpack.c.b16 %v357, %v356
      %v389 = vpack.c.b16 %v359, %v358
      %v390 = vpack.c.b16 %v361, %v360
      %v391 = vpack.c.b16 %v363, %v362
      %v392 = vpack.c.b16 %v365, %v364
      %v393 = vpack.c.b16 %v367, %v366
      %v394 = vpack.c.b16 %v369, %v368
      %v395 = vpack.c.b16 %v371, %v370
      %v396 = vpack.c.b16 %v373, %v372
      %v397 = vpack.c.b16 %v375, %v374
      %v398 = vpack.c.b16 %v377, %v376
      %v399 = vpack.c.b16 %v379, %v378
      %v400 = vpack.c.b16 %v381, %v380
      %v401 = vpack.c.b16 %v383, %v382
      %v402 = vpack.c.b16 %v385, %v384
      %v403 = vpack.c.b16 %v387, %v386
      %v412 = vunpack.c.l.b16 %v312
      %v413 = vunpack.c.l.b16 %v313
      %v414 = vunpack.c.l.b16 %v314
      %v415 = vunpack.c.l.b16 %v315
      %v416 = vunpack.c.l.b16 %v316
      %v417 = vunpack.c.l.b16 %v317
      %v418 = vunpack.c.l.b16 %v318
      %v419 = vunpack.c.l.b16 %v319
      %v420 = vpack.c.b16 %v413, %v412
      %v421 = vpack.c.b16 %v415, %v414
      %v422 = vpack.c.b16 %v417, %v416
      %v423 = vpack.c.b16 %v419, %v418
      %vm428 = vcmask 523264
      %v430 = vsel %vm428, %v388, 0
      %v433 = vsel %vm428, %v389, 0
      %v436 = vsel %vm428, %v390, 0
      %v439 = vsel %vm428, %v391, 0
      %v442 = vsel %vm428, %v392, 0
      %v445 = vsel %vm428, %v393, 0
      %v448 = vsel %vm428, %v394, 0
      %v451 = vsel %vm428, %v395, 0
      %v454 = vsel %vm428, %v396, 0
      %v457 = vsel %vm428, %v397, 0
      %v460 = vsel %vm428, %v398, 0
      %v463 = vsel %vm428, %v399, 0
      %v466 = vsel %vm428, %v400, 0
      %v469 = vsel %vm428, %v401, 0
      %v472 = vsel %vm428, %v402, 0
      %v475 = vsel %vm428, %v403, 0
      %477 = vmatpush.bf16.msra.mxu0 0
      %478 = vmatpush.bf16.msra.mxu0 0
      %479 = vmatpush.bf16.msra.mxu0 0
      %480 = vmatpush.bf16.msra.mxu0 0
      %481 = vmatpush.bf16.msra.mxu0 %v423
      %482 = vmatpush.bf16.msra.mxu0 %v422
      %483 = vmatpush.bf16.msra.mxu0 %v421
      %484 = vmatpush.bf16.msra.mxu0 %v420
      %485 = vmatmul.bf16.gmra.mxu0 %v430
      %v486 = vpop.f32.mrf.mxu0
      %v487 = vadd.f32 %v322, %v486
      %v488 = vpop.f32.mrf.mxu0
      %v489 = vadd.f32 %v322, %v488
      %490 = vmatmul.bf16.gmra.mxu0 %v433
      %v491 = vpop.f32.mrf.mxu0
      %v492 = vadd.f32 %v322, %v491
      %v493 = vpop.f32.mrf.mxu0
      %v494 = vadd.f32 %v322, %v493
      %495 = vmatmul.bf16.gmra.mxu0 %v436
      %v496 = vpop.f32.mrf.mxu0
      %v497 = vadd.f32 %v322, %v496
      %v498 = vpop.f32.mrf.mxu0
      %v499 = vadd.f32 %v322, %v498
      %500 = vmatmul.bf16.gmra.mxu0 %v439
      %v501 = vpop.f32.mrf.mxu0
      %v502 = vadd.f32 %v322, %v501
      %v503 = vpop.f32.mrf.mxu0
      %v504 = vadd.f32 %v322, %v503
      %505 = vmatmul.bf16.gmra.mxu0 %v442
      %v506 = vpop.f32.mrf.mxu0
      %v507 = vadd.f32 %v322, %v506
      %v508 = vpop.f32.mrf.mxu0
      %v509 = vadd.f32 %v322, %v508
      %510 = vmatmul.bf16.gmra.mxu0 %v445
      %v511 = vpop.f32.mrf.mxu0
      %v512 = vadd.f32 %v322, %v511
      %v513 = vpop.f32.mrf.mxu0
      %v514 = vadd.f32 %v322, %v513
      %515 = vmatmul.bf16.gmra.mxu0 %v448
      %v516 = vpop.f32.mrf.mxu0
      %v517 = vadd.f32 %v322, %v516
      %v518 = vpop.f32.mrf.mxu0
      %v519 = vadd.f32 %v322, %v518
      %520 = vmatmul.bf16.gmra.mxu0 %v451
      %v521 = vpop.f32.mrf.mxu0
      %v522 = vadd.f32 %v322, %v521
      %v523 = vpop.f32.mrf.mxu0
      %v524 = vadd.f32 %v322, %v523
      %525 = vmatmul.bf16.gmra.mxu0 %v454
      %v526 = vpop.f32.mrf.mxu0
      %v527 = vadd.f32 %v322, %v526
      %v528 = vpop.f32.mrf.mxu0
      %v529 = vadd.f32 %v322, %v528
      %530 = vmatmul.bf16.gmra.mxu0 %v457
      %v531 = vpop.f32.mrf.mxu0
      %v532 = vadd.f32 %v322, %v531
      %v533 = vpop.f32.mrf.mxu0
      %v534 = vadd.f32 %v322, %v533
      %535 = vmatmul.bf16.gmra.mxu0 %v460
      %v536 = vpop.f32.mrf.mxu0
      %v537 = vadd.f32 %v322, %v536
      %v538 = vpop.f32.mrf.mxu0
      %v539 = vadd.f32 %v322, %v538
      %540 = vmatmul.bf16.gmra.mxu0 %v463
      %v541 = vpop.f32.mrf.mxu0
      %v542 = vadd.f32 %v322, %v541
      %v543 = vpop.f32.mrf.mxu0
      %v544 = vadd.f32 %v322, %v543
      %545 = vmatmul.bf16.gmra.mxu0 %v466
      %v546 = vpop.f32.mrf.mxu0
      %v547 = vadd.f32 %v322, %v546
      %v548 = vpop.f32.mrf.mxu0
      %v549 = vadd.f32 %v322, %v548
      %550 = vmatmul.bf16.gmra.mxu0 %v469
      %v551 = vpop.f32.mrf.mxu0
      %v552 = vadd.f32 %v322, %v551
      %v553 = vpop.f32.mrf.mxu0
      %v554 = vadd.f32 %v322, %v553
      %555 = vmatmul.bf16.gmra.mxu0 %v472
      %v556 = vpop.f32.mrf.mxu0
      %v557 = vadd.f32 %v322, %v556
      %v558 = vpop.f32.mrf.mxu0
      %v559 = vadd.f32 %v322, %v558
      %560 = vmatmul.bf16.gmra.mxu0 %v475
      %v561 = vpop.f32.mrf.mxu0
      %v562 = vadd.f32 %v322, %v561
      %v563 = vpop.f32.mrf.mxu0
      %v564 = vadd.f32 %v322, %v563
      %565 = vdwg.mxu0
      %v566 = vmax.f32 %v487, 0.0
      %v567 = vmax.f32 %v489, 0.0
      %v568 = vmax.f32 %v492, 0.0
      %v569 = vmax.f32 %v494, 0.0
      %v570 = vmax.f32 %v497, 0.0
      %v571 = vmax.f32 %v499, 0.0
      %v572 = vmax.f32 %v502, 0.0
      %v573 = vmax.f32 %v504, 0.0
      %v574 = vmax.f32 %v507, 0.0
      %v575 = vmax.f32 %v509, 0.0
      %v576 = vmax.f32 %v512, 0.0
      %v577 = vmax.f32 %v514, 0.0
      %v578 = vmax.f32 %v517, 0.0
      %v579 = vmax.f32 %v519, 0.0
      %v580 = vmax.f32 %v522, 0.0
      %v581 = vmax.f32 %v524, 0.0
      %v582 = vmax.f32 %v527, 0.0
      %v583 = vmax.f32 %v529, 0.0
      %v584 = vmax.f32 %v532, 0.0
      %v585 = vmax.f32 %v534, 0.0
      %v586 = vmax.f32 %v537, 0.0
      %v587 = vmax.f32 %v539, 0.0
      %v588 = vmax.f32 %v542, 0.0
      %v589 = vmax.f32 %v544, 0.0
      %v590 = vmax.f32 %v547, 0.0
      %v591 = vmax.f32 %v549, 0.0
      %v592 = vmax.f32 %v552, 0.0
      %v593 = vmax.f32 %v554, 0.0
      %v594 = vmax.f32 %v557, 0.0
      %v595 = vmax.f32 %v559, 0.0
      %v596 = vmax.f32 %v562, 0.0
      %v597 = vmax.f32 %v564, 0.0
      %v598 = vpack.c.bf16 %v566, %v566
      %v599 = vpack.c.bf16 %v567, %v567
      %v600 = vpack.c.bf16 %v568, %v568
      %v601 = vpack.c.bf16 %v569, %v569
      %v602 = vpack.c.bf16 %v570, %v570
      %v603 = vpack.c.bf16 %v571, %v571
      %v604 = vpack.c.bf16 %v572, %v572
      %v605 = vpack.c.bf16 %v573, %v573
      %v606 = vpack.c.bf16 %v574, %v574
      %v607 = vpack.c.bf16 %v575, %v575
      %v608 = vpack.c.bf16 %v576, %v576
      %v609 = vpack.c.bf16 %v577, %v577
      %v610 = vpack.c.bf16 %v578, %v578
      %v611 = vpack.c.bf16 %v579, %v579
      %v612 = vpack.c.bf16 %v580, %v580
      %v613 = vpack.c.bf16 %v581, %v581
      %v614 = vpack.c.bf16 %v582, %v582
      %v615 = vpack.c.bf16 %v583, %v583
      %v616 = vpack.c.bf16 %v584, %v584
      %v617 = vpack.c.bf16 %v585, %v585
      %v618 = vpack.c.bf16 %v586, %v586
      %v619 = vpack.c.bf16 %v587, %v587
      %v620 = vpack.c.bf16 %v588, %v588
      %v621 = vpack.c.bf16 %v589, %v589
      %v622 = vpack.c.bf16 %v590, %v590
      %v623 = vpack.c.bf16 %v591, %v591
      %v624 = vpack.c.bf16 %v592, %v592
      %v625 = vpack.c.bf16 %v593, %v593
      %v626 = vpack.c.bf16 %v594, %v594
      %v627 = vpack.c.bf16 %v595, %v595
      %v628 = vpack.c.bf16 %v596, %v596
      %v629 = vpack.c.bf16 %v597, %v597
      %vm630 = vsmask.f32 256
      %vm631 = vsmask.f32 4368
      %vm632 = vmor %vm630, %vm631
      %v634 = vshrl.u32 %v598, 16
      %v636 = vrot.slane %v634, 7
      %v637 = vshll.u32 %v598, 16
      %v639 = vor.u32 %v636, %v637
      %v640 = vrot.slane %v636, 4
      %v642 = vshrl.u32 %v599, 16
      %v644 = vrot.slane %v642, 7
      %v645 = vshll.u32 %v599, 16
      %v647 = vor.u32 %v644, %v645
      %v648 = vsel %vm632, %v640, %v647
      %v649 = vrot.slane %v644, 4
      %v651 = vshrl.u32 %v600, 16
      %v653 = vrot.slane %v651, 7
      %v654 = vshll.u32 %v600, 16
      %v656 = vor.u32 %v653, %v654
      %v657 = vrot.slane %v653, 4
      %v659 = vshrl.u32 %v601, 16
      %v661 = vrot.slane %v659, 7
      %v662 = vshll.u32 %v601, 16
      %v664 = vor.u32 %v661, %v662
      %v665 = vsel %vm632, %v657, %v664
      %v666 = vrot.slane %v661, 4
      %v668 = vshrl.u32 %v602, 16
      %v670 = vrot.slane %v668, 7
      %v671 = vshll.u32 %v602, 16
      %v673 = vor.u32 %v670, %v671
      %v674 = vrot.slane %v670, 4
      %v676 = vshrl.u32 %v603, 16
      %v678 = vrot.slane %v676, 7
      %v679 = vshll.u32 %v603, 16
      %v681 = vor.u32 %v678, %v679
      %v682 = vsel %vm632, %v674, %v681
      %v683 = vrot.slane %v678, 4
      %v685 = vshrl.u32 %v604, 16
      %v687 = vrot.slane %v685, 7
      %v688 = vshll.u32 %v604, 16
      %v690 = vor.u32 %v687, %v688
      %v691 = vrot.slane %v687, 4
      %v693 = vshrl.u32 %v605, 16
      %v695 = vrot.slane %v693, 7
      %v696 = vshll.u32 %v605, 16
      %v698 = vor.u32 %v695, %v696
      %v699 = vsel %vm632, %v691, %v698
      %v700 = vrot.slane %v695, 4
      %v702 = vshrl.u32 %v606, 16
      %v704 = vrot.slane %v702, 7
      %v705 = vshll.u32 %v606, 16
      %v707 = vor.u32 %v704, %v705
      %v708 = vrot.slane %v704, 4
      %v710 = vshrl.u32 %v607, 16
      %v712 = vrot.slane %v710, 7
      %v713 = vshll.u32 %v607, 16
      %v715 = vor.u32 %v712, %v713
      %v716 = vsel %vm632, %v708, %v715
      %v717 = vrot.slane %v712, 4
      %v719 = vshrl.u32 %v608, 16
      %v721 = vrot.slane %v719, 7
      %v722 = vshll.u32 %v608, 16
      %v724 = vor.u32 %v721, %v722
      %v725 = vrot.slane %v721, 4
      %v727 = vshrl.u32 %v609, 16
      %v729 = vrot.slane %v727, 7
      %v730 = vshll.u32 %v609, 16
      %v732 = vor.u32 %v729, %v730
      %v733 = vsel %vm632, %v725, %v732
      %v734 = vrot.slane %v729, 4
      %v736 = vshrl.u32 %v610, 16
      %v738 = vrot.slane %v736, 7
      %v739 = vshll.u32 %v610, 16
      %v741 = vor.u32 %v738, %v739
      %v742 = vrot.slane %v738, 4
      %v744 = vshrl.u32 %v611, 16
      %v746 = vrot.slane %v744, 7
      %v747 = vshll.u32 %v611, 16
      %v749 = vor.u32 %v746, %v747
      %v750 = vsel %vm632, %v742, %v749
      %v751 = vrot.slane %v746, 4
      %v753 = vshrl.u32 %v612, 16
      %v755 = vrot.slane %v753, 7
      %v756 = vshll.u32 %v612, 16
      %v758 = vor.u32 %v755, %v756
      %v759 = vrot.slane %v755, 4
      %v761 = vshrl.u32 %v613, 16
      %v763 = vrot.slane %v761, 7
      %v764 = vshll.u32 %v613, 16
      %v766 = vor.u32 %v763, %v764
      %v767 = vsel %vm632, %v759, %v766
      %v768 = vrot.slane %v763, 4
      %v770 = vshrl.u32 %v614, 16
      %v772 = vrot.slane %v770, 7
      %v773 = vshll.u32 %v614, 16
      %v775 = vor.u32 %v772, %v773
      %v776 = vrot.slane %v772, 4
      %v778 = vshrl.u32 %v615, 16
      %v780 = vrot.slane %v778, 7
      %v781 = vshll.u32 %v615, 16
      %v783 = vor.u32 %v780, %v781
      %v784 = vsel %vm632, %v776, %v783
      %v785 = vrot.slane %v780, 4
      %v787 = vshrl.u32 %v616, 16
      %v789 = vrot.slane %v787, 7
      %v790 = vshll.u32 %v616, 16
      %v792 = vor.u32 %v789, %v790
      %v793 = vrot.slane %v789, 4
      %v795 = vshrl.u32 %v617, 16
      %v797 = vrot.slane %v795, 7
      %v798 = vshll.u32 %v617, 16
      %v800 = vor.u32 %v797, %v798
      %v801 = vsel %vm632, %v793, %v800
      %v802 = vrot.slane %v797, 4
      %v804 = vshrl.u32 %v618, 16
      %v806 = vrot.slane %v804, 7
      %v807 = vshll.u32 %v618, 16
      %v809 = vor.u32 %v806, %v807
      %v810 = vrot.slane %v806, 4
      %v812 = vshrl.u32 %v619, 16
      %v814 = vrot.slane %v812, 7
      %v815 = vshll.u32 %v619, 16
      %v817 = vor.u32 %v814, %v815
      %v818 = vsel %vm632, %v810, %v817
      %v819 = vrot.slane %v814, 4
      %v821 = vshrl.u32 %v620, 16
      %v823 = vrot.slane %v821, 7
      %v824 = vshll.u32 %v620, 16
      %v826 = vor.u32 %v823, %v824
      %v827 = vrot.slane %v823, 4
      %v829 = vshrl.u32 %v621, 16
      %v831 = vrot.slane %v829, 7
      %v832 = vshll.u32 %v621, 16
      %v834 = vor.u32 %v831, %v832
      %v835 = vsel %vm632, %v827, %v834
      %v836 = vrot.slane %v831, 4
      %v838 = vshrl.u32 %v622, 16
      %v840 = vrot.slane %v838, 7
      %v841 = vshll.u32 %v622, 16
      %v843 = vor.u32 %v840, %v841
      %v844 = vrot.slane %v840, 4
      %v846 = vshrl.u32 %v623, 16
      %v848 = vrot.slane %v846, 7
      %v849 = vshll.u32 %v623, 16
      %v851 = vor.u32 %v848, %v849
      %v852 = vsel %vm632, %v844, %v851
      %v853 = vrot.slane %v848, 4
      %v855 = vshrl.u32 %v624, 16
      %v857 = vrot.slane %v855, 7
      %v858 = vshll.u32 %v624, 16
      %v860 = vor.u32 %v857, %v858
      %v861 = vrot.slane %v857, 4
      %v863 = vshrl.u32 %v625, 16
      %v865 = vrot.slane %v863, 7
      %v866 = vshll.u32 %v625, 16
      %v868 = vor.u32 %v865, %v866
      %v869 = vsel %vm632, %v861, %v868
      %v870 = vrot.slane %v865, 4
      %v872 = vshrl.u32 %v626, 16
      %v874 = vrot.slane %v872, 7
      %v875 = vshll.u32 %v626, 16
      %v877 = vor.u32 %v874, %v875
      %v878 = vrot.slane %v874, 4
      %v880 = vshrl.u32 %v627, 16
      %v882 = vrot.slane %v880, 7
      %v883 = vshll.u32 %v627, 16
      %v885 = vor.u32 %v882, %v883
      %v886 = vsel %vm632, %v878, %v885
      %v887 = vrot.slane %v882, 4
      %v889 = vshrl.u32 %v628, 16
      %v891 = vrot.slane %v889, 7
      %v892 = vshll.u32 %v628, 16
      %v894 = vor.u32 %v891, %v892
      %v895 = vrot.slane %v891, 4
      %v897 = vshrl.u32 %v629, 16
      %v899 = vrot.slane %v897, 7
      %v900 = vshll.u32 %v629, 16
      %v902 = vor.u32 %v899, %v900
      %v903 = vsel %vm632, %v895, %v902
      %v904 = vrot.slane %v899, 4
      %s953 = scalar_lea.vmem [#allocation2], 12
      %vm954 = vcmask 257024
      %vm955 = vsmask.f32 7938
      %vm956 = vmand %vm954, %vm955
      %v957 = vld [vmem:[%s953] sm:$0xf]
      %v958 = vsel %vm956, %v639, %v957
      %959 = vst [vmem:[%s953] sm:$0xf] %v958
      %vm960 = vcmask 257024
      %961 = vst.msk [vmem:[%s953 + $0x4] sm:$0xf] %vm960, %v648
      %vm962 = vcmask 253952
      %vm963 = vmand %vm962, %vm630
      %v964 = vld [vmem:[%s953 + $0x8] sm:$0x1]
      %v965 = vsel %vm963, %v649, %v964
      %966 = vst [vmem:[%s953 + $0x8] sm:$0x1] %v965
      %v967 = vld [vmem:[%s953 + $0xc] sm:$0xf]
      %v968 = vsel %vm956, %v656, %v967
      %969 = vst [vmem:[%s953 + $0xc] sm:$0xf] %v968
      %970 = vst.msk [vmem:[%s953 + $0x10] sm:$0xf] %vm960, %v665
      %v971 = vld [vmem:[%s953 + $0x14] sm:$0x1]
      %v972 = vsel %vm963, %v666, %v971
      %973 = vst [vmem:[%s953 + $0x14] sm:$0x1] %v972
      %v974 = vld [vmem:[%s953 + $0x18] sm:$0xf]
      %v975 = vsel %vm956, %v673, %v974
      %976 = vst [vmem:[%s953 + $0x18] sm:$0xf] %v975
      %977 = vst.msk [vmem:[%s953 + $0x1c] sm:$0xf] %vm960, %v682
      %v978 = vld [vmem:[%s953 + $0x20] sm:$0x1]
      %v979 = vsel %vm963, %v683, %v978
      %980 = vst [vmem:[%s953 + $0x20] sm:$0x1] %v979
      %v981 = vld [vmem:[%s953 + $0x24] sm:$0xf]
      %v982 = vsel %vm956, %v690, %v981
      %983 = vst [vmem:[%s953 + $0x24] sm:$0xf] %v982
      %984 = vst.msk [vmem:[%s953 + $0x28] sm:$0xf] %vm960, %v699
      %v985 = vld [vmem:[%s953 + $0x2c] sm:$0x1]
      %v986 = vsel %vm963, %v700, %v985
      %987 = vst [vmem:[%s953 + $0x2c] sm:$0x1] %v986
      %v988 = vld [vmem:[%s953 + $0x30] sm:$0xf]
      %v989 = vsel %vm956, %v707, %v988
      %990 = vst [vmem:[%s953 + $0x30] sm:$0xf] %v989
      %991 = vst.msk [vmem:[%s953 + $0x34] sm:$0xf] %vm960, %v716
      %v992 = vld [vmem:[%s953 + $0x38] sm:$0x1]
      %v993 = vsel %vm963, %v717, %v992
      %994 = vst [vmem:[%s953 + $0x38] sm:$0x1] %v993
      %v995 = vld [vmem:[%s953 + $0x3c] sm:$0xf]
      %v996 = vsel %vm956, %v724, %v995
      %997 = vst [vmem:[%s953 + $0x3c] sm:$0xf] %v996
      %998 = vst.msk [vmem:[%s953 + $0x40] sm:$0xf] %vm960, %v733
      %v999 = vld [vmem:[%s953 + $0x44] sm:$0x1]
      %v1000 = vsel %vm963, %v734, %v999
      %1001 = vst [vmem:[%s953 + $0x44] sm:$0x1] %v1000
      %v1002 = vld [vmem:[%s953 + $0x48] sm:$0xf]
      %v1003 = vsel %vm956, %v741, %v1002
      %1004 = vst [vmem:[%s953 + $0x48] sm:$0xf] %v1003
      %1005 = vst.msk [vmem:[%s953 + $0x4c] sm:$0xf] %vm960, %v750
      %v1006 = vld [vmem:[%s953 + $0x50] sm:$0x1]
      %v1007 = vsel %vm963, %v751, %v1006
      %1008 = vst [vmem:[%s953 + $0x50] sm:$0x1] %v1007
      %v1009 = vld [vmem:[%s953 + $0x54] sm:$0xf]
      %v1010 = vsel %vm956, %v758, %v1009
      %1011 = vst [vmem:[%s953 + $0x54] sm:$0xf] %v1010
      %1012 = vst.msk [vmem:[%s953 + $0x58] sm:$0xf] %vm960, %v767
      %v1013 = vld [vmem:[%s953 + $0x5c] sm:$0x1]
      %v1014 = vsel %vm963, %v768, %v1013
      %1015 = vst [vmem:[%s953 + $0x5c] sm:$0x1] %v1014
      %v1016 = vld [vmem:[%s953 + $0x60] sm:$0xf]
      %v1017 = vsel %vm956, %v775, %v1016
      %1018 = vst [vmem:[%s953 + $0x60] sm:$0xf] %v1017
      %1019 = vst.msk [vmem:[%s953 + $0x64] sm:$0xf] %vm960, %v784
      %v1020 = vld [vmem:[%s953 + $0x68] sm:$0x1]
      %v1021 = vsel %vm963, %v785, %v1020
      %1022 = vst [vmem:[%s953 + $0x68] sm:$0x1] %v1021
      %v1023 = vld [vmem:[%s953 + $0x6c] sm:$0xf]
      %v1024 = vsel %vm956, %v792, %v1023
      %1025 = vst [vmem:[%s953 + $0x6c] sm:$0xf] %v1024
      %1026 = vst.msk [vmem:[%s953 + $0x70] sm:$0xf] %vm960, %v801
      %v1027 = vld [vmem:[%s953 + $0x74] sm:$0x1]
      %v1028 = vsel %vm963, %v802, %v1027
      %1029 = vst [vmem:[%s953 + $0x74] sm:$0x1] %v1028
      %v1030 = vld [vmem:[%s953 + $0x78] sm:$0xf]
      %v1031 = vsel %vm956, %v809, %v1030
      %1032 = vst [vmem:[%s953 + $0x78] sm:$0xf] %v1031
      %1033 = vst.msk [vmem:[%s953 + $0x7c] sm:$0xf] %vm960, %v818
      %v1034 = vld [vmem:[%s953 + $0x80] sm:$0x1]
      %v1035 = vsel %vm963, %v819, %v1034
      %1036 = vst [vmem:[%s953 + $0x80] sm:$0x1] %v1035
      %v1037 = vld [vmem:[%s953 + $0x84] sm:$0xf]
      %v1038 = vsel %vm956, %v826, %v1037
      %1039 = vst [vmem:[%s953 + $0x84] sm:$0xf] %v1038
      %1040 = vst.msk [vmem:[%s953 + $0x88] sm:$0xf] %vm960, %v835
      %v1041 = vld [vmem:[%s953 + $0x8c] sm:$0x1]
      %v1042 = vsel %vm963, %v836, %v1041
      %1043 = vst [vmem:[%s953 + $0x8c] sm:$0x1] %v1042
      %v1044 = vld [vmem:[%s953 + $0x90] sm:$0xf]
      %v1045 = vsel %vm956, %v843, %v1044
      %1046 = vst [vmem:[%s953 + $0x90] sm:$0xf] %v1045
      %1047 = vst.msk [vmem:[%s953 + $0x94] sm:$0xf] %vm960, %v852
      %v1048 = vld [vmem:[%s953 + $0x98] sm:$0x1]
      %v1049 = vsel %vm963, %v853, %v1048
      %1050 = vst [vmem:[%s953 + $0x98] sm:$0x1] %v1049
      %v1051 = vld [vmem:[%s953 + $0x9c] sm:$0xf]
      %v1052 = vsel %vm956, %v860, %v1051
      %1053 = vst [vmem:[%s953 + $0x9c] sm:$0xf] %v1052
      %1054 = vst.msk [vmem:[%s953 + $0xa0] sm:$0xf] %vm960, %v869
      %v1055 = vld [vmem:[%s953 + $0xa4] sm:$0x1]
      %v1056 = vsel %vm963, %v870, %v1055
      %1057 = vst [vmem:[%s953 + $0xa4] sm:$0x1] %v1056
      %v1058 = vld [vmem:[%s953 + $0xa8] sm:$0xf]
      %v1059 = vsel %vm956, %v877, %v1058
      %1060 = vst [vmem:[%s953 + $0xa8] sm:$0xf] %v1059
      %1061 = vst.msk [vmem:[%s953 + $0xac] sm:$0xf] %vm960, %v886
      %v1062 = vld [vmem:[%s953 + $0xb0] sm:$0x1]
      %v1063 = vsel %vm963, %v887, %v1062
      %1064 = vst [vmem:[%s953 + $0xb0] sm:$0x1] %v1063
      %v1065 = vld [vmem:[%s953 + $0xb4] sm:$0xf]
      %v1066 = vsel %vm956, %v894, %v1065
      %1067 = vst [vmem:[%s953 + $0xb4] sm:$0xf] %v1066
      %1068 = vst.msk [vmem:[%s953 + $0xb8] sm:$0xf] %vm960, %v903
      %v1069 = vld [vmem:[%s953 + $0xbc] sm:$0x1]
      %v1070 = vsel %vm963, %v904, %v1069
      %1071 = vst [vmem:[%s953 + $0xbc] sm:$0x1] %v1070
      %1072 = vst.msk [vmem:[#allocation2] sm:$0xf] %vm960, 0
      %1073 = vst.msk [vmem:[#allocation2 + $0x4] sm:$0xf] %vm960, 0
      %vm1074 = vcmask 253952
      %1075 = vst.msk [vmem:[#allocation2 + $0x8] sm:$0x1] %vm1074, 0
      %s1076 = scalar_lea.vmem [#allocation2], 204
      %1077 = vst.msk [vmem:[%s1076] sm:$0xf] %vm960, 0
      %1078 = vst.msk [vmem:[%s1076 + $0x4] sm:$0xf] %vm960, 0
      %1079 = vst.msk [vmem:[%s1076 + $0x8] sm:$0x1] %vm1074, 0
      %v1080 = vld [vmem:[%s953] sm:$0x1]
      %v1081 = vsel %vm963, 0, %v1080
      %1082 = vst [vmem:[%s953] sm:$0x1] %v1081
      %v1083 = vld [vmem:[%s953 + $0xc] sm:$0x1]
      %v1084 = vsel %vm963, 0, %v1083
      %1085 = vst [vmem:[%s953 + $0xc] sm:$0x1] %v1084
      %v1086 = vld [vmem:[%s953 + $0x18] sm:$0x1]
      %v1087 = vsel %vm963, 0, %v1086
      %1088 = vst [vmem:[%s953 + $0x18] sm:$0x1] %v1087
      %v1089 = vld [vmem:[%s953 + $0x24] sm:$0x1]
      %v1090 = vsel %vm963, 0, %v1089
      %1091 = vst [vmem:[%s953 + $0x24] sm:$0x1] %v1090
      %v1092 = vld [vmem:[%s953 + $0x30] sm:$0x1]
      %v1093 = vsel %vm963, 0, %v1092
      %1094 = vst [vmem:[%s953 + $0x30] sm:$0x1] %v1093
      %v1095 = vld [vmem:[%s953 + $0x3c] sm:$0x1]
      %v1096 = vsel %vm963, 0, %v1095
      %1097 = vst [vmem:[%s953 + $0x3c] sm:$0x1] %v1096
      %v1098 = vld [vmem:[%s953 + $0x48] sm:$0x1]
      %v1099 = vsel %vm963, 0, %v1098
      %1100 = vst [vmem:[%s953 + $0x48] sm:$0x1] %v1099
      %v1101 = vld [vmem:[%s953 + $0x54] sm:$0x1]
      %v1102 = vsel %vm963, 0, %v1101
      %1103 = vst [vmem:[%s953 + $0x54] sm:$0x1] %v1102
      %v1104 = vld [vmem:[%s953 + $0x60] sm:$0x1]
      %v1105 = vsel %vm963, 0, %v1104
      %1106 = vst [vmem:[%s953 + $0x60] sm:$0x1] %v1105
      %v1107 = vld [vmem:[%s953 + $0x6c] sm:$0x1]
      %v1108 = vsel %vm963, 0, %v1107
      %1109 = vst [vmem:[%s953 + $0x6c] sm:$0x1] %v1108
      %v1110 = vld [vmem:[%s953 + $0x78] sm:$0x1]
      %v1111 = vsel %vm963, 0, %v1110
      %1112 = vst [vmem:[%s953 + $0x78] sm:$0x1] %v1111
      %v1113 = vld [vmem:[%s953 + $0x84] sm:$0x1]
      %v1114 = vsel %vm963, 0, %v1113
      %1115 = vst [vmem:[%s953 + $0x84] sm:$0x1] %v1114
      %v1116 = vld [vmem:[%s953 + $0x90] sm:$0x1]
      %v1117 = vsel %vm963, 0, %v1116
      %1118 = vst [vmem:[%s953 + $0x90] sm:$0x1] %v1117
      %v1119 = vld [vmem:[%s953 + $0x9c] sm:$0x1]
      %v1120 = vsel %vm963, 0, %v1119
      %1121 = vst [vmem:[%s953 + $0x9c] sm:$0x1] %v1120
      %v1122 = vld [vmem:[%s953 + $0xa8] sm:$0x1]
      %v1123 = vsel %vm963, 0, %v1122
      %1124 = vst [vmem:[%s953 + $0xa8] sm:$0x1] %v1123
      %v1125 = vld [vmem:[%s953 + $0xb4] sm:$0x1]
      %v1126 = vsel %vm963, 0, %v1125
      %1127 = vst [vmem:[%s953 + $0xb4] sm:$0x1] %v1126
      %vm1128 = vmand %vm962, %vm955
      %v1129 = vld [vmem:[%s953 + $0x8] sm:$0x1]
      %v1130 = vsel %vm1128, 0, %v1129
      %1131 = vst [vmem:[%s953 + $0x8] sm:$0x1] %v1130
      %v1132 = vld [vmem:[%s953 + $0x14] sm:$0x1]
      %v1133 = vsel %vm1128, 0, %v1132
      %1134 = vst [vmem:[%s953 + $0x14] sm:$0x1] %v1133
      %v1135 = vld [vmem:[%s953 + $0x20] sm:$0x1]
      %v1136 = vsel %vm1128, 0, %v1135
      %1137 = vst [vmem:[%s953 + $0x20] sm:$0x1] %v1136
      %v1138 = vld [vmem:[%s953 + $0x2c] sm:$0x1]
      %v1139 = vsel %vm1128, 0, %v1138
      %1140 = vst [vmem:[%s953 + $0x2c] sm:$0x1] %v1139
      %v1141 = vld [vmem:[%s953 + $0x38] sm:$0x1]
      %v1142 = vsel %vm1128, 0, %v1141
      %1143 = vst [vmem:[%s953 + $0x38] sm:$0x1] %v1142
      %v1144 = vld [vmem:[%s953 + $0x44] sm:$0x1]
      %v1145 = vsel %vm1128, 0, %v1144
      %1146 = vst [vmem:[%s953 + $0x44] sm:$0x1] %v1145
      %v1147 = vld [vmem:[%s953 + $0x50] sm:$0x1]
      %v1148 = vsel %vm1128, 0, %v1147
      %1149 = vst [vmem:[%s953 + $0x50] sm:$0x1] %v1148
      %v1150 = vld [vmem:[%s953 + $0x5c] sm:$0x1]
      %v1151 = vsel %vm1128, 0, %v1150
      %1152 = vst [vmem:[%s953 + $0x5c] sm:$0x1] %v1151
      %v1153 = vld [vmem:[%s953 + $0x68] sm:$0x1]
      %v1154 = vsel %vm1128, 0, %v1153
      %1155 = vst [vmem:[%s953 + $0x68] sm:$0x1] %v1154
      %v1156 = vld [vmem:[%s953 + $0x74] sm:$0x1]
      %v1157 = vsel %vm1128, 0, %v1156
      %1158 = vst [vmem:[%s953 + $0x74] sm:$0x1] %v1157
      %v1159 = vld [vmem:[%s953 + $0x80] sm:$0x1]
      %v1160 = vsel %vm1128, 0, %v1159
      %1161 = vst [vmem:[%s953 + $0x80] sm:$0x1] %v1160
      %v1162 = vld [vmem:[%s953 + $0x8c] sm:$0x1]
      %v1163 = vsel %vm1128, 0, %v1162
      %1164 = vst [vmem:[%s953 + $0x8c] sm:$0x1] %v1163
      %v1165 = vld [vmem:[%s953 + $0x98] sm:$0x1]
      %v1166 = vsel %vm1128, 0, %v1165
      %1167 = vst [vmem:[%s953 + $0x98] sm:$0x1] %v1166
      %v1168 = vld [vmem:[%s953 + $0xa4] sm:$0x1]
      %v1169 = vsel %vm1128, 0, %v1168
      %1170 = vst [vmem:[%s953 + $0xa4] sm:$0x1] %v1169
      %v1171 = vld [vmem:[%s953 + $0xb0] sm:$0x1]
      %v1172 = vsel %vm1128, 0, %v1171
      %1173 = vst [vmem:[%s953 + $0xb0] sm:$0x1] %v1172
      %v1174 = vld [vmem:[%s953 + $0xbc] sm:$0x1]
      %v1175 = vsel %vm1128, 0, %v1174
      %1176 = vst [vmem:[%s953 + $0xbc] sm:$0x1] %v1175
      %v1177 = vld [vmem:[#allocation2] sm:$0xf]
      %v1178 = vld [vmem:[#allocation2 + $0x4] sm:$0xf]
      %v1179 = vld [vmem:[#allocation2 + $0xc] sm:$0xf]
      %v1180 = vld [vmem:[#allocation2 + $0x10] sm:$0xf]
      %v1181 = vld [vmem:[#allocation2 + $0x18] sm:$0xf]
      %v1182 = vld [vmem:[#allocation2 + $0x1c] sm:$0xf]
      %v1183 = vld [vmem:[#allocation2 + $0x24] sm:$0xf]
      %v1184 = vld [vmem:[#allocation2 + $0x28] sm:$0xf]
      %v1185 = vld [vmem:[#allocation2 + $0x30] sm:$0xf]
      %v1186 = vld [vmem:[#allocation2 + $0x34] sm:$0xf]
      %v1187 = vld [vmem:[#allocation2 + $0x3c] sm:$0xf]
      %v1188 = vld [vmem:[#allocation2 + $0x40] sm:$0xf]
      %v1189 = vld [vmem:[#allocation2 + $0x48] sm:$0xf]
      %v1190 = vld [vmem:[#allocation2 + $0x4c] sm:$0xf]
      %v1191 = vld [vmem:[#allocation2 + $0x54] sm:$0xf]
      %v1192 = vld [vmem:[#allocation2 + $0x58] sm:$0xf]
      %v1193 = vld [vmem:[#allocation2 + $0x60] sm:$0xf]
      %v1194 = vld [vmem:[#allocation2 + $0x64] sm:$0xf]
      %v1195 = vld [vmem:[#allocation2 + $0x6c] sm:$0xf]
      %v1196 = vld [vmem:[#allocation2 + $0x70] sm:$0xf]
      %v1197 = vld [vmem:[#allocation2 + $0x78] sm:$0xf]
      %v1198 = vld [vmem:[#allocation2 + $0x7c] sm:$0xf]
      %v1199 = vld [vmem:[#allocation2 + $0x84] sm:$0xf]
      %v1200 = vld [vmem:[#allocation2 + $0x88] sm:$0xf]
      %v1201 = vld [vmem:[#allocation2 + $0x90] sm:$0xf]
      %v1202 = vld [vmem:[#allocation2 + $0x94] sm:$0xf]
      %v1203 = vld [vmem:[#allocation2 + $0x9c] sm:$0xf]
      %v1204 = vld [vmem:[#allocation2 + $0xa0] sm:$0xf]
      %v1205 = vld [vmem:[#allocation2 + $0xa8] sm:$0xf]
      %v1206 = vld [vmem:[#allocation2 + $0xac] sm:$0xf]
      %v1207 = vld [vmem:[#allocation2 + $0xb4] sm:$0xf]
      %v1208 = vld [vmem:[#allocation2 + $0xb8] sm:$0xf]
      %v1209 = vld [vmem:[#allocation2 + $0x8] sm:$0x1]
      %v1210 = vld [vmem:[#allocation2 + $0x14] sm:$0x1]
      %v1211 = vld [vmem:[#allocation2 + $0x20] sm:$0x1]
      %v1212 = vld [vmem:[#allocation2 + $0x2c] sm:$0x1]
      %v1213 = vld [vmem:[#allocation2 + $0x38] sm:$0x1]
      %v1214 = vld [vmem:[#allocation2 + $0x44] sm:$0x1]
      %v1215 = vld [vmem:[#allocation2 + $0x50] sm:$0x1]
      %v1216 = vld [vmem:[#allocation2 + $0x5c] sm:$0x1]
      %v1217 = vld [vmem:[#allocation2 + $0x68] sm:$0x1]
      %v1218 = vld [vmem:[#allocation2 + $0x74] sm:$0x1]
      %v1219 = vld [vmem:[#allocation2 + $0x80] sm:$0x1]
      %v1220 = vld [vmem:[#allocation2 + $0x8c] sm:$0x1]
      %v1221 = vld [vmem:[#allocation2 + $0x98] sm:$0x1]
      %v1222 = vld [vmem:[#allocation2 + $0xa4] sm:$0x1]
      %v1223 = vld [vmem:[#allocation2 + $0xb0] sm:$0x1]
      %v1224 = vld [vmem:[#allocation2 + $0xbc] sm:$0x1]
      %v1225 = vld [vmem:[#allocation2] sm:$0xe]
      %v1226 = vld [vmem:[#allocation2 + $0xc] sm:$0xe]
      %v1227 = vld [vmem:[#allocation2 + $0x18] sm:$0xe]
      %v1228 = vld [vmem:[#allocation2 + $0x24] sm:$0xe]
      %v1229 = vld [vmem:[#allocation2 + $0x30] sm:$0xe]
      %v1230 = vld [vmem:[#allocation2 + $0x3c] sm:$0xe]
      %v1231 = vld [vmem:[#allocation2 + $0x48] sm:$0xe]
      %v1232 = vld [vmem:[#allocation2 + $0x54] sm:$0xe]
      %v1233 = vld [vmem:[#allocation2 + $0x60] sm:$0xe]
      %v1234 = vld [vmem:[#allocation2 + $0x6c] sm:$0xe]
      %v1235 = vld [vmem:[#allocation2 + $0x78] sm:$0xe]
      %v1236 = vld [vmem:[#allocation2 + $0x84] sm:$0xe]
      %v1237 = vld [vmem:[#allocation2 + $0x90] sm:$0xe]
      %v1238 = vld [vmem:[#allocation2 + $0x9c] sm:$0xe]
      %v1239 = vld [vmem:[#allocation2 + $0xa8] sm:$0xe]
      %v1240 = vld [vmem:[#allocation2 + $0xb4] sm:$0xe]
      %v1241 = vld [vmem:[%s953] sm:$0xf]
      %v1242 = vld [vmem:[%s953 + $0x4] sm:$0xf]
      %v1243 = vld [vmem:[%s953 + $0xc] sm:$0xf]
      %v1244 = vld [vmem:[%s953 + $0x10] sm:$0xf]
      %v1245 = vld [vmem:[%s953 + $0x18] sm:$0xf]
      %v1246 = vld [vmem:[%s953 + $0x1c] sm:$0xf]
      %v1247 = vld [vmem:[%s953 + $0x24] sm:$0xf]
      %v1248 = vld [vmem:[%s953 + $0x28] sm:$0xf]
      %v1249 = vld [vmem:[%s953 + $0x30] sm:$0xf]
      %v1250 = vld [vmem:[%s953 + $0x34] sm:$0xf]
      %v1251 = vld [vmem:[%s953 + $0x3c] sm:$0xf]
      %v1252 = vld [vmem:[%s953 + $0x40] sm:$0xf]
      %v1253 = vld [vmem:[%s953 + $0x48] sm:$0xf]
      %v1254 = vld [vmem:[%s953 + $0x4c] sm:$0xf]
      %v1255 = vld [vmem:[%s953 + $0x54] sm:$0xf]
      %v1256 = vld [vmem:[%s953 + $0x58] sm:$0xf]
      %v1257 = vld [vmem:[%s953 + $0x60] sm:$0xf]
      %v1258 = vld [vmem:[%s953 + $0x64] sm:$0xf]
      %v1259 = vld [vmem:[%s953 + $0x6c] sm:$0xf]
      %v1260 = vld [vmem:[%s953 + $0x70] sm:$0xf]
      %v1261 = vld [vmem:[%s953 + $0x78] sm:$0xf]
      %v1262 = vld [vmem:[%s953 + $0x7c] sm:$0xf]
      %v1263 = vld [vmem:[%s953 + $0x84] sm:$0xf]
      %v1264 = vld [vmem:[%s953 + $0x88] sm:$0xf]
      %v1265 = vld [vmem:[%s953 + $0x90] sm:$0xf]
      %v1266 = vld [vmem:[%s953 + $0x94] sm:$0xf]
      %v1267 = vld [vmem:[%s953 + $0x9c] sm:$0xf]
      %v1268 = vld [vmem:[%s953 + $0xa0] sm:$0xf]
      %v1269 = vld [vmem:[%s953 + $0xa8] sm:$0xf]
      %v1270 = vld [vmem:[%s953 + $0xac] sm:$0xf]
      %v1271 = vld [vmem:[%s953 + $0xb4] sm:$0xf]
      %v1272 = vld [vmem:[%s953 + $0xb8] sm:$0xf]
      %v1273 = vld [vmem:[%s953 + $0x8] sm:$0x1]
      %v1274 = vld [vmem:[%s953 + $0x14] sm:$0x1]
      %v1275 = vld [vmem:[%s953 + $0x20] sm:$0x1]
      %v1276 = vld [vmem:[%s953 + $0x2c] sm:$0x1]
      %v1277 = vld [vmem:[%s953 + $0x38] sm:$0x1]
      %v1278 = vld [vmem:[%s953 + $0x44] sm:$0x1]
      %v1279 = vld [vmem:[%s953 + $0x50] sm:$0x1]
      %v1280 = vld [vmem:[%s953 + $0x5c] sm:$0x1]
      %v1281 = vld [vmem:[%s953 + $0x68] sm:$0x1]
      %v1282 = vld [vmem:[%s953 + $0x74] sm:$0x1]
      %v1283 = vld [vmem:[%s953 + $0x80] sm:$0x1]
      %v1284 = vld [vmem:[%s953 + $0x8c] sm:$0x1]
      %v1285 = vld [vmem:[%s953 + $0x98] sm:$0x1]
      %v1286 = vld [vmem:[%s953 + $0xa4] sm:$0x1]
      %v1287 = vld [vmem:[%s953 + $0xb0] sm:$0x1]
      %v1288 = vld [vmem:[%s953 + $0xbc] sm:$0x1]
      %v1289 = vld [vmem:[%s953] sm:$0xe]
      %v1290 = vld [vmem:[%s953 + $0xc] sm:$0xe]
      %v1291 = vld [vmem:[%s953 + $0x18] sm:$0xe]
      %v1292 = vld [vmem:[%s953 + $0x24] sm:$0xe]
      %v1293 = vld [vmem:[%s953 + $0x30] sm:$0xe]
      %v1294 = vld [vmem:[%s953 + $0x3c] sm:$0xe]
      %v1295 = vld [vmem:[%s953 + $0x48] sm:$0xe]
      %v1296 = vld [vmem:[%s953 + $0x54] sm:$0xe]
      %v1297 = vld [vmem:[%s953 + $0x60] sm:$0xe]
      %v1298 = vld [vmem:[%s953 + $0x6c] sm:$0xe]
      %v1299 = vld [vmem:[%s953 + $0x78] sm:$0xe]
      %v1300 = vld [vmem:[%s953 + $0x84] sm:$0xe]
      %v1301 = vld [vmem:[%s953 + $0x90] sm:$0xe]
      %v1302 = vld [vmem:[%s953 + $0x9c] sm:$0xe]
      %v1303 = vld [vmem:[%s953 + $0xa8] sm:$0xe]
      %v1304 = vld [vmem:[%s953 + $0xb4] sm:$0xe]
      %s1305 = scalar_lea.vmem [#allocation2], 24
      %v1306 = vld [vmem:[%s1305] sm:$0xf]
      %v1307 = vld [vmem:[%s1305 + $0x4] sm:$0xf]
      %v1308 = vld [vmem:[%s1305 + $0xc] sm:$0xf]
      %v1309 = vld [vmem:[%s1305 + $0x10] sm:$0xf]
      %v1310 = vld [vmem:[%s1305 + $0x18] sm:$0xf]
      %v1311 = vld [vmem:[%s1305 + $0x1c] sm:$0xf]
      %v1312 = vld [vmem:[%s1305 + $0x24] sm:$0xf]
      %v1313 = vld [vmem:[%s1305 + $0x28] sm:$0xf]
      %v1314 = vld [vmem:[%s1305 + $0x30] sm:$0xf]
      %v1315 = vld [vmem:[%s1305 + $0x34] sm:$0xf]
      %v1316 = vld [vmem:[%s1305 + $0x3c] sm:$0xf]
      %v1317 = vld [vmem:[%s1305 + $0x40] sm:$0xf]
      %v1318 = vld [vmem:[%s1305 + $0x48] sm:$0xf]
      %v1319 = vld [vmem:[%s1305 + $0x4c] sm:$0xf]
      %v1320 = vld [vmem:[%s1305 + $0x54] sm:$0xf]
      %v1321 = vld [vmem:[%s1305 + $0x58] sm:$0xf]
      %v1322 = vld [vmem:[%s1305 + $0x60] sm:$0xf]
      %v1323 = vld [vmem:[%s1305 + $0x64] sm:$0xf]
      %v1324 = vld [vmem:[%s1305 + $0x6c] sm:$0xf]
      %v1325 = vld [vmem:[%s1305 + $0x70] sm:$0xf]
      %v1326 = vld [vmem:[%s1305 + $0x78] sm:$0xf]
      %v1327 = vld [vmem:[%s1305 + $0x7c] sm:$0xf]
      %v1328 = vld [vmem:[%s1305 + $0x84] sm:$0xf]
      %v1329 = vld [vmem:[%s1305 + $0x88] sm:$0xf]
      %v1330 = vld [vmem:[%s1305 + $0x90] sm:$0xf]
      %v1331 = vld [vmem:[%s1305 + $0x94] sm:$0xf]
      %v1332 = vld [vmem:[%s1305 + $0x9c] sm:$0xf]
      %v1333 = vld [vmem:[%s1305 + $0xa0] sm:$0xf]
      %v1334 = vld [vmem:[%s1305 + $0xa8] sm:$0xf]
      %v1335 = vld [vmem:[%s1305 + $0xac] sm:$0xf]
      %v1336 = vld [vmem:[%s1305 + $0xb4] sm:$0xf]
      %v1337 = vld [vmem:[%s1305 + $0xb8] sm:$0xf]
      %v1338 = vld [vmem:[%s1305 + $0x8] sm:$0x1]
      %v1339 = vld [vmem:[%s1305 + $0x14] sm:$0x1]
      %v1340 = vld [vmem:[%s1305 + $0x20] sm:$0x1]
      %v1341 = vld [vmem:[%s1305 + $0x2c] sm:$0x1]
      %v1342 = vld [vmem:[%s1305 + $0x38] sm:$0x1]
      %v1343 = vld [vmem:[%s1305 + $0x44] sm:$0x1]
      %v1344 = vld [vmem:[%s1305 + $0x50] sm:$0x1]
      %v1345 = vld [vmem:[%s1305 + $0x5c] sm:$0x1]
      %v1346 = vld [vmem:[%s1305 + $0x68] sm:$0x1]
      %v1347 = vld [vmem:[%s1305 + $0x74] sm:$0x1]
      %v1348 = vld [vmem:[%s1305 + $0x80] sm:$0x1]
      %v1349 = vld [vmem:[%s1305 + $0x8c] sm:$0x1]
      %v1350 = vld [vmem:[%s1305 + $0x98] sm:$0x1]
      %v1351 = vld [vmem:[%s1305 + $0xa4] sm:$0x1]
      %v1352 = vld [vmem:[%s1305 + $0xb0] sm:$0x1]
      %v1353 = vld [vmem:[%s1305 + $0xbc] sm:$0x1]
      %v1354 = vld [vmem:[%s1305] sm:$0xe]
      %v1355 = vld [vmem:[%s1305 + $0xc] sm:$0xe]
      %v1356 = vld [vmem:[%s1305 + $0x18] sm:$0xe]
      %v1357 = vld [vmem:[%s1305 + $0x24] sm:$0xe]
      %v1358 = vld [vmem:[%s1305 + $0x30] sm:$0xe]
      %v1359 = vld [vmem:[%s1305 + $0x3c] sm:$0xe]
      %v1360 = vld [vmem:[%s1305 + $0x48] sm:$0xe]
      %v1361 = vld [vmem:[%s1305 + $0x54] sm:$0xe]
      %v1362 = vld [vmem:[%s1305 + $0x60] sm:$0xe]
      %v1363 = vld [vmem:[%s1305 + $0x6c] sm:$0xe]
      %v1364 = vld [vmem:[%s1305 + $0x78] sm:$0xe]
      %v1365 = vld [vmem:[%s1305 + $0x84] sm:$0xe]
      %v1366 = vld [vmem:[%s1305 + $0x90] sm:$0xe]
      %v1367 = vld [vmem:[%s1305 + $0x9c] sm:$0xe]
      %v1368 = vld [vmem:[%s1305 + $0xa8] sm:$0xe]
      %v1369 = vld [vmem:[%s1305 + $0xb4] sm:$0xe]
      %v1402 = vunpack.c.l.b16 %v1177
      %v1403 = vunpack.c.l.b16 %v1178
      %v1404 = vunpack.c.l.b16 %v1179
      %v1405 = vunpack.c.l.b16 %v1180
      %v1406 = vunpack.c.l.b16 %v1181
      %v1407 = vunpack.c.l.b16 %v1182
      %v1408 = vunpack.c.l.b16 %v1183
      %v1409 = vunpack.c.l.b16 %v1184
      %v1410 = vunpack.c.l.b16 %v1185
      %v1411 = vunpack.c.l.b16 %v1186
      %v1412 = vunpack.c.l.b16 %v1187
      %v1413 = vunpack.c.l.b16 %v1188
      %v1414 = vunpack.c.l.b16 %v1189
      %v1415 = vunpack.c.l.b16 %v1190
      %v1416 = vunpack.c.l.b16 %v1191
      %v1417 = vunpack.c.l.b16 %v1192
      %v1418 = vunpack.c.l.b16 %v1193
      %v1419 = vunpack.c.l.b16 %v1194
      %v1420 = vunpack.c.l.b16 %v1195
      %v1421 = vunpack.c.l.b16 %v1196
      %v1422 = vunpack.c.l.b16 %v1197
      %v1423 = vunpack.c.l.b16 %v1198
      %v1424 = vunpack.c.l.b16 %v1199
      %v1425 = vunpack.c.l.b16 %v1200
      %v1426 = vunpack.c.l.b16 %v1201
      %v1427 = vunpack.c.l.b16 %v1202
      %v1428 = vunpack.c.l.b16 %v1203
      %v1429 = vunpack.c.l.b16 %v1204
      %v1430 = vunpack.c.l.b16 %v1205
      %v1431 = vunpack.c.l.b16 %v1206
      %v1432 = vunpack.c.l.b16 %v1207
      %v1433 = vunpack.c.l.b16 %v1208
      %v1434 = vpack.c.b16 %v1403, %v1402
      %v1435 = vpack.c.b16 %v1405, %v1404
      %v1436 = vpack.c.b16 %v1407, %v1406
      %v1437 = vpack.c.b16 %v1409, %v1408
      %v1438 = vpack.c.b16 %v1411, %v1410
      %v1439 = vpack.c.b16 %v1413, %v1412
      %v1440 = vpack.c.b16 %v1415, %v1414
      %v1441 = vpack.c.b16 %v1417, %v1416
      %v1442 = vpack.c.b16 %v1419, %v1418
      %v1443 = vpack.c.b16 %v1421, %v1420
      %v1444 = vpack.c.b16 %v1423, %v1422
      %v1445 = vpack.c.b16 %v1425, %v1424
      %v1446 = vpack.c.b16 %v1427, %v1426
      %v1447 = vpack.c.b16 %v1429, %v1428
      %v1448 = vpack.c.b16 %v1431, %v1430
      %v1449 = vpack.c.b16 %v1433, %v1432
      %v1466 = vunpack.c.l.b16 %v1209
      %v1467 = vunpack.c.l.b16 %v1210
      %v1468 = vunpack.c.l.b16 %v1211
      %v1469 = vunpack.c.l.b16 %v1212
      %v1470 = vunpack.c.l.b16 %v1213
      %v1471 = vunpack.c.l.b16 %v1214
      %v1472 = vunpack.c.l.b16 %v1215
      %v1473 = vunpack.c.l.b16 %v1216
      %v1474 = vunpack.c.l.b16 %v1217
      %v1475 = vunpack.c.l.b16 %v1218
      %v1476 = vunpack.c.l.b16 %v1219
      %v1477 = vunpack.c.l.b16 %v1220
      %v1478 = vunpack.c.l.b16 %v1221
      %v1479 = vunpack.c.l.b16 %v1222
      %v1480 = vunpack.c.l.b16 %v1223
      %v1481 = vunpack.c.l.b16 %v1224
      %v1482 = vpack.c.b16 %v1466, %v1466
      %v1483 = vpack.c.b16 %v1467, %v1467
      %v1484 = vpack.c.b16 %v1468, %v1468
      %v1485 = vpack.c.b16 %v1469, %v1469
      %v1486 = vpack.c.b16 %v1470, %v1470
      %v1487 = vpack.c.b16 %v1471, %v1471
      %v1488 = vpack.c.b16 %v1472, %v1472
      %v1489 = vpack.c.b16 %v1473, %v1473
      %v1490 = vpack.c.b16 %v1474, %v1474
      %v1491 = vpack.c.b16 %v1475, %v1475
      %v1492 = vpack.c.b16 %v1476, %v1476
      %v1493 = vpack.c.b16 %v1477, %v1477
      %v1494 = vpack.c.b16 %v1478, %v1478
      %v1495 = vpack.c.b16 %v1479, %v1479
      %v1496 = vpack.c.b16 %v1480, %v1480
      %v1497 = vpack.c.b16 %v1481, %v1481
      %vm1498 = vsmask.f32 7424
      %v1500 = vshrl.u32 %v1434, 16
      %v1502 = vshll.u32 %v1434, 16
      %v1504 = vrot.slane %v1502, 1
      %v1505 = vor.u32 %v1500, %v1504
      %v1507 = vshll.u32 %v1482, 16
      %v1509 = vrot.slane %v1507, 1
      %v1510 = vsel %vm1498, %v1505, %v1509
      %v1512 = vshrl.u32 %v1435, 16
      %v1514 = vshll.u32 %v1435, 16
      %v1516 = vrot.slane %v1514, 1
      %v1517 = vor.u32 %v1512, %v1516
      %v1519 = vshll.u32 %v1483, 16
      %v1521 = vrot.slane %v1519, 1
      %v1522 = vsel %vm1498, %v1517, %v1521
      %v1524 = vshrl.u32 %v1436, 16
      %v1526 = vshll.u32 %v1436, 16
      %v1528 = vrot.slane %v1526, 1
      %v1529 = vor.u32 %v1524, %v1528
      %v1531 = vshll.u32 %v1484, 16
      %v1533 = vrot.slane %v1531, 1
      %v1534 = vsel %vm1498, %v1529, %v1533
      %v1536 = vshrl.u32 %v1437, 16
      %v1538 = vshll.u32 %v1437, 16
      %v1540 = vrot.slane %v1538, 1
      %v1541 = vor.u32 %v1536, %v1540
      %v1543 = vshll.u32 %v1485, 16
      %v1545 = vrot.slane %v1543, 1
      %v1546 = vsel %vm1498, %v1541, %v1545
      %v1548 = vshrl.u32 %v1438, 16
      %v1550 = vshll.u32 %v1438, 16
      %v1552 = vrot.slane %v1550, 1
      %v1553 = vor.u32 %v1548, %v1552
      %v1555 = vshll.u32 %v1486, 16
      %v1557 = vrot.slane %v1555, 1
      %v1558 = vsel %vm1498, %v1553, %v1557
      %v1560 = vshrl.u32 %v1439, 16
      %v1562 = vshll.u32 %v1439, 16
      %v1564 = vrot.slane %v1562, 1
      %v1565 = vor.u32 %v1560, %v1564
      %v1567 = vshll.u32 %v1487, 16
      %v1569 = vrot.slane %v1567, 1
      %v1570 = vsel %vm1498, %v1565, %v1569
      %v1572 = vshrl.u32 %v1440, 16
      %v1574 = vshll.u32 %v1440, 16
      %v1576 = vrot.slane %v1574, 1
      %v1577 = vor.u32 %v1572, %v1576
      %v1579 = vshll.u32 %v1488, 16
      %v1581 = vrot.slane %v1579, 1
      %v1582 = vsel %vm1498, %v1577, %v1581
      %v1584 = vshrl.u32 %v1441, 16
      %v1586 = vshll.u32 %v1441, 16
      %v1588 = vrot.slane %v1586, 1
      %v1589 = vor.u32 %v1584, %v1588
      %v1591 = vshll.u32 %v1489, 16
      %v1593 = vrot.slane %v1591, 1
      %v1594 = vsel %vm1498, %v1589, %v1593
      %v1596 = vshrl.u32 %v1442, 16
      %v1598 = vshll.u32 %v1442, 16
      %v1600 = vrot.slane %v1598, 1
      %v1601 = vor.u32 %v1596, %v1600
      %v1603 = vshll.u32 %v1490, 16
      %v1605 = vrot.slane %v1603, 1
      %v1606 = vsel %vm1498, %v1601, %v1605
      %v1608 = vshrl.u32 %v1443, 16
      %v1610 = vshll.u32 %v1443, 16
      %v1612 = vrot.slane %v1610, 1
      %v1613 = vor.u32 %v1608, %v1612
      %v1615 = vshll.u32 %v1491, 16
      %v1617 = vrot.slane %v1615, 1
      %v1618 = vsel %vm1498, %v1613, %v1617
      %v1620 = vshrl.u32 %v1444, 16
      %v1622 = vshll.u32 %v1444, 16
      %v1624 = vrot.slane %v1622, 1
      %v1625 = vor.u32 %v1620, %v1624
      %v1627 = vshll.u32 %v1492, 16
      %v1629 = vrot.slane %v1627, 1
      %v1630 = vsel %vm1498, %v1625, %v1629
      %v1632 = vshrl.u32 %v1445, 16
      %v1634 = vshll.u32 %v1445, 16
      %v1636 = vrot.slane %v1634, 1
      %v1637 = vor.u32 %v1632, %v1636
      %v1639 = vshll.u32 %v1493, 16
      %v1641 = vrot.slane %v1639, 1
      %v1642 = vsel %vm1498, %v1637, %v1641
      %v1644 = vshrl.u32 %v1446, 16
      %v1646 = vshll.u32 %v1446, 16
      %v1648 = vrot.slane %v1646, 1
      %v1649 = vor.u32 %v1644, %v1648
      %v1651 = vshll.u32 %v1494, 16
      %v1653 = vrot.slane %v1651, 1
      %v1654 = vsel %vm1498, %v1649, %v1653
      %v1656 = vshrl.u32 %v1447, 16
      %v1658 = vshll.u32 %v1447, 16
      %v1660 = vrot.slane %v1658, 1
      %v1661 = vor.u32 %v1656, %v1660
      %v1663 = vshll.u32 %v1495, 16
      %v1665 = vrot.slane %v1663, 1
      %v1666 = vsel %vm1498, %v1661, %v1665
      %v1668 = vshrl.u32 %v1448, 16
      %v1670 = vshll.u32 %v1448, 16
      %v1672 = vrot.slane %v1670, 1
      %v1673 = vor.u32 %v1668, %v1672
      %v1675 = vshll.u32 %v1496, 16
      %v1677 = vrot.slane %v1675, 1
      %v1678 = vsel %vm1498, %v1673, %v1677
      %v1680 = vshrl.u32 %v1449, 16
      %v1682 = vshll.u32 %v1449, 16
      %v1684 = vrot.slane %v1682, 1
      %v1685 = vor.u32 %v1680, %v1684
      %v1687 = vshll.u32 %v1497, 16
      %v1689 = vrot.slane %v1687, 1
      %v1690 = vsel %vm1498, %v1685, %v1689
      %1691 = vrot.lane.b32.xlu0 %v1510, 32
      %v1692 = vpop.permute.xlu0 %1691
      %1693 = vrot.lane.b32.xlu0 %v1522, 32
      %v1694 = vpop.permute.xlu0 %1693
      %1695 = vrot.lane.b32.xlu0 %v1534, 32
      %v1696 = vpop.permute.xlu0 %1695
      %1697 = vrot.lane.b32.xlu0 %v1546, 32
      %v1698 = vpop.permute.xlu0 %1697
      %1699 = vrot.lane.b32.xlu0 %v1558, 32
      %v1700 = vpop.permute.xlu0 %1699
      %1701 = vrot.lane.b32.xlu0 %v1570, 32
      %v1702 = vpop.permute.xlu0 %1701
      %1703 = vrot.lane.b32.xlu0 %v1582, 32
      %v1704 = vpop.permute.xlu0 %1703
      %1705 = vrot.lane.b32.xlu0 %v1594, 32
      %v1706 = vpop.permute.xlu0 %1705
      %1707 = vrot.lane.b32.xlu0 %v1606, 32
      %v1708 = vpop.permute.xlu0 %1707
      %1709 = vrot.lane.b32.xlu0 %v1618, 32
      %v1710 = vpop.permute.xlu0 %1709
      %1711 = vrot.lane.b32.xlu0 %v1630, 32
      %v1712 = vpop.permute.xlu0 %1711
      %1713 = vrot.lane.b32.xlu0 %v1642, 32
      %v1714 = vpop.permute.xlu0 %1713
      %1715 = vrot.lane.b32.xlu0 %v1654, 32
      %v1716 = vpop.permute.xlu0 %1715
      %1717 = vrot.lane.b32.xlu0 %v1666, 32
      %v1718 = vpop.permute.xlu0 %1717
      %1719 = vrot.lane.b32.xlu0 %v1678, 32
      %v1720 = vpop.permute.xlu0 %1719
      %1721 = vrot.lane.b32.xlu0 %v1690, 32
      %v1722 = vpop.permute.xlu0 %1721
      %v1739 = vunpack.c.l.b16 %v1225
      %v1740 = vunpack.c.l.b16 %v1226
      %v1741 = vunpack.c.l.b16 %v1227
      %v1742 = vunpack.c.l.b16 %v1228
      %v1743 = vunpack.c.l.b16 %v1229
      %v1744 = vunpack.c.l.b16 %v1230
      %v1745 = vunpack.c.l.b16 %v1231
      %v1746 = vunpack.c.l.b16 %v1232
      %v1747 = vunpack.c.l.b16 %v1233
      %v1748 = vunpack.c.l.b16 %v1234
      %v1749 = vunpack.c.l.b16 %v1235
      %v1750 = vunpack.c.l.b16 %v1236
      %v1751 = vunpack.c.l.b16 %v1237
      %v1752 = vunpack.c.l.b16 %v1238
      %v1753 = vunpack.c.l.b16 %v1239
      %v1754 = vunpack.c.l.b16 %v1240
      %v1755 = vpack.c.b16 %v1403, %v1739
      %v1756 = vpack.c.b16 %v1405, %v1740
      %v1757 = vpack.c.b16 %v1407, %v1741
      %v1758 = vpack.c.b16 %v1409, %v1742
      %v1759 = vpack.c.b16 %v1411, %v1743
      %v1760 = vpack.c.b16 %v1413, %v1744
      %v1761 = vpack.c.b16 %v1415, %v1745
      %v1762 = vpack.c.b16 %v1417, %v1746
      %v1763 = vpack.c.b16 %v1419, %v1747
      %v1764 = vpack.c.b16 %v1421, %v1748
      %v1765 = vpack.c.b16 %v1423, %v1749
      %v1766 = vpack.c.b16 %v1425, %v1750
      %v1767 = vpack.c.b16 %v1427, %v1751
      %v1768 = vpack.c.b16 %v1429, %v1752
      %v1769 = vpack.c.b16 %v1431, %v1753
      %v1770 = vpack.c.b16 %v1433, %v1754
      %vm1771 = vcmask 1046528
      %v1772 = vrot.slane %v1755, 1
      %v1773 = vrot.slane %v1482, 1
      %v1774 = vsel %vm1771, %v1772, %v1773
      %v1775 = vrot.slane %v1756, 1
      %v1776 = vrot.slane %v1483, 1
      %v1777 = vsel %vm1771, %v1775, %v1776
      %v1778 = vrot.slane %v1757, 1
      %v1779 = vrot.slane %v1484, 1
      %v1780 = vsel %vm1771, %v1778, %v1779
      %v1781 = vrot.slane %v1758, 1
      %v1782 = vrot.slane %v1485, 1
      %v1783 = vsel %vm1771, %v1781, %v1782
      %v1784 = vrot.slane %v1759, 1
      %v1785 = vrot.slane %v1486, 1
      %v1786 = vsel %vm1771, %v1784, %v1785
      %v1787 = vrot.slane %v1760, 1
      %v1788 = vrot.slane %v1487, 1
      %v1789 = vsel %vm1771, %v1787, %v1788
      %v1790 = vrot.slane %v1761, 1
      %v1791 = vrot.slane %v1488, 1
      %v1792 = vsel %vm1771, %v1790, %v1791
      %v1793 = vrot.slane %v1762, 1
      %v1794 = vrot.slane %v1489, 1
      %v1795 = vsel %vm1771, %v1793, %v1794
      %v1796 = vrot.slane %v1763, 1
      %v1797 = vrot.slane %v1490, 1
      %v1798 = vsel %vm1771, %v1796, %v1797
      %v1799 = vrot.slane %v1764, 1
      %v1800 = vrot.slane %v1491, 1
      %v1801 = vsel %vm1771, %v1799, %v1800
      %v1802 = vrot.slane %v1765, 1
      %v1803 = vrot.slane %v1492, 1
      %v1804 = vsel %vm1771, %v1802, %v1803
      %v1805 = vrot.slane %v1766, 1
      %v1806 = vrot.slane %v1493, 1
      %v1807 = vsel %vm1771, %v1805, %v1806
      %v1808 = vrot.slane %v1767, 1
      %v1809 = vrot.slane %v1494, 1
      %v1810 = vsel %vm1771, %v1808, %v1809
      %v1811 = vrot.slane %v1768, 1
      %v1812 = vrot.slane %v1495, 1
      %v1813 = vsel %vm1771, %v1811, %v1812
      %v1814 = vrot.slane %v1769, 1
      %v1815 = vrot.slane %v1496, 1
      %v1816 = vsel %vm1771, %v1814, %v1815
      %v1817 = vrot.slane %v1770, 1
      %v1818 = vrot.slane %v1497, 1
      %v1819 = vsel %vm1771, %v1817, %v1818
      %1820 = vrot.lane.b32.xlu0 %v1774, 64
      %v1821 = vpop.permute.xlu0 %1820
      %1822 = vrot.lane.b32.xlu0 %v1777, 64
      %v1823 = vpop.permute.xlu0 %1822
      %1824 = vrot.lane.b32.xlu0 %v1780, 64
      %v1825 = vpop.permute.xlu0 %1824
      %1826 = vrot.lane.b32.xlu0 %v1783, 64
      %v1827 = vpop.permute.xlu0 %1826
      %1828 = vrot.lane.b32.xlu0 %v1786, 64
      %v1829 = vpop.permute.xlu0 %1828
      %1830 = vrot.lane.b32.xlu0 %v1789, 64
      %v1831 = vpop.permute.xlu0 %1830
      %1832 = vrot.lane.b32.xlu0 %v1792, 64
      %v1833 = vpop.permute.xlu0 %1832
      %1834 = vrot.lane.b32.xlu0 %v1795, 64
      %v1835 = vpop.permute.xlu0 %1834
      %1836 = vrot.lane.b32.xlu0 %v1798, 64
      %v1837 = vpop.permute.xlu0 %1836
      %1838 = vrot.lane.b32.xlu0 %v1801, 64
      %v1839 = vpop.permute.xlu0 %1838
      %1840 = vrot.lane.b32.xlu0 %v1804, 64
      %v1841 = vpop.permute.xlu0 %1840
      %1842 = vrot.lane.b32.xlu0 %v1807, 64
      %v1843 = vpop.permute.xlu0 %1842
      %1844 = vrot.lane.b32.xlu0 %v1810, 64
      %v1845 = vpop.permute.xlu0 %1844
      %1846 = vrot.lane.b32.xlu0 %v1813, 64
      %v1847 = vpop.permute.xlu0 %1846
      %1848 = vrot.lane.b32.xlu0 %v1816, 64
      %v1849 = vpop.permute.xlu0 %1848
      %1850 = vrot.lane.b32.xlu0 %v1819, 64
      %v1851 = vpop.permute.xlu0 %1850
      %v1884 = vunpack.c.l.b16 %v1241
      %v1885 = vunpack.c.l.b16 %v1242
      %v1886 = vunpack.c.l.b16 %v1243
      %v1887 = vunpack.c.l.b16 %v1244
      %v1888 = vunpack.c.l.b16 %v1245
      %v1889 = vunpack.c.l.b16 %v1246
      %v1890 = vunpack.c.l.b16 %v1247
      %v1891 = vunpack.c.l.b16 %v1248
      %v1892 = vunpack.c.l.b16 %v1249
      %v1893 = vunpack.c.l.b16 %v1250
      %v1894 = vunpack.c.l.b16 %v1251
      %v1895 = vunpack.c.l.b16 %v1252
      %v1896 = vunpack.c.l.b16 %v1253
      %v1897 = vunpack.c.l.b16 %v1254
      %v1898 = vunpack.c.l.b16 %v1255
      %v1899 = vunpack.c.l.b16 %v1256
      %v1900 = vunpack.c.l.b16 %v1257
      %v1901 = vunpack.c.l.b16 %v1258
      %v1902 = vunpack.c.l.b16 %v1259
      %v1903 = vunpack.c.l.b16 %v1260
      %v1904 = vunpack.c.l.b16 %v1261
      %v1905 = vunpack.c.l.b16 %v1262
      %v1906 = vunpack.c.l.b16 %v1263
      %v1907 = vunpack.c.l.b16 %v1264
      %v1908 = vunpack.c.l.b16 %v1265
      %v1909 = vunpack.c.l.b16 %v1266
      %v1910 = vunpack.c.l.b16 %v1267
      %v1911 = vunpack.c.l.b16 %v1268
      %v1912 = vunpack.c.l.b16 %v1269
      %v1913 = vunpack.c.l.b16 %v1270
      %v1914 = vunpack.c.l.b16 %v1271
      %v1915 = vunpack.c.l.b16 %v1272
      %v1916 = vpack.c.b16 %v1885, %v1884
      %v1917 = vpack.c.b16 %v1887, %v1886
      %v1918 = vpack.c.b16 %v1889, %v1888
      %v1919 = vpack.c.b16 %v1891, %v1890
      %v1920 = vpack.c.b16 %v1893, %v1892
      %v1921 = vpack.c.b16 %v1895, %v1894
      %v1922 = vpack.c.b16 %v1897, %v1896
      %v1923 = vpack.c.b16 %v1899, %v1898
      %v1924 = vpack.c.b16 %v1901, %v1900
      %v1925 = vpack.c.b16 %v1903, %v1902
      %v1926 = vpack.c.b16 %v1905, %v1904
      %v1927 = vpack.c.b16 %v1907, %v1906
      %v1928 = vpack.c.b16 %v1909, %v1908
      %v1929 = vpack.c.b16 %v1911, %v1910
      %v1930 = vpack.c.b16 %v1913, %v1912
      %v1931 = vpack.c.b16 %v1915, %v1914
      %1932 = vrot.lane.b32.xlu0 %v1916, 96
      %v1933 = vpop.permute.xlu0 %1932
      %1934 = vrot.lane.b32.xlu0 %v1917, 96
      %v1935 = vpop.permute.xlu0 %1934
      %1936 = vrot.lane.b32.xlu0 %v1918, 96
      %v1937 = vpop.permute.xlu0 %1936
      %1938 = vrot.lane.b32.xlu0 %v1919, 96
      %v1939 = vpop.permute.xlu0 %1938
      %1940 = vrot.lane.b32.xlu0 %v1920, 96
      %v1941 = vpop.permute.xlu0 %1940
      %1942 = vrot.lane.b32.xlu0 %v1921, 96
      %v1943 = vpop.permute.xlu0 %1942
      %1944 = vrot.lane.b32.xlu0 %v1922, 96
      %v1945 = vpop.permute.xlu0 %1944
      %1946 = vrot.lane.b32.xlu0 %v1923, 96
      %v1947 = vpop.permute.xlu0 %1946
      %1948 = vrot.lane.b32.xlu0 %v1924, 96
      %v1949 = vpop.permute.xlu0 %1948
      %1950 = vrot.lane.b32.xlu0 %v1925, 96
      %v1951 = vpop.permute.xlu0 %1950
      %1952 = vrot.lane.b32.xlu0 %v1926, 96
      %v1953 = vpop.permute.xlu0 %1952
      %1954 = vrot.lane.b32.xlu0 %v1927, 96
      %v1955 = vpop.permute.xlu0 %1954
      %1956 = vrot.lane.b32.xlu0 %v1928, 96
      %v1957 = vpop.permute.xlu0 %1956
      %1958 = vrot.lane.b32.xlu0 %v1929, 96
      %v1959 = vpop.permute.xlu0 %1958
      %1960 = vrot.lane.b32.xlu0 %v1930, 96
      %v1961 = vpop.permute.xlu0 %1960
      %1962 = vrot.lane.b32.xlu0 %v1931, 96
      %v1963 = vpop.permute.xlu0 %1962
      %v1980 = vunpack.c.l.b16 %v1273
      %v1981 = vunpack.c.l.b16 %v1274
      %v1982 = vunpack.c.l.b16 %v1275
      %v1983 = vunpack.c.l.b16 %v1276
      %v1984 = vunpack.c.l.b16 %v1277
      %v1985 = vunpack.c.l.b16 %v1278
      %v1986 = vunpack.c.l.b16 %v1279
      %v1987 = vunpack.c.l.b16 %v1280
      %v1988 = vunpack.c.l.b16 %v1281
      %v1989 = vunpack.c.l.b16 %v1282
      %v1990 = vunpack.c.l.b16 %v1283
      %v1991 = vunpack.c.l.b16 %v1284
      %v1992 = vunpack.c.l.b16 %v1285
      %v1993 = vunpack.c.l.b16 %v1286
      %v1994 = vunpack.c.l.b16 %v1287
      %v1995 = vunpack.c.l.b16 %v1288
      %v1996 = vpack.c.b16 %v1980, %v1980
      %v1997 = vpack.c.b16 %v1981, %v1981
      %v1998 = vpack.c.b16 %v1982, %v1982
      %v1999 = vpack.c.b16 %v1983, %v1983
      %v2000 = vpack.c.b16 %v1984, %v1984
      %v2001 = vpack.c.b16 %v1985, %v1985
      %v2002 = vpack.c.b16 %v1986, %v1986
      %v2003 = vpack.c.b16 %v1987, %v1987
      %v2004 = vpack.c.b16 %v1988, %v1988
      %v2005 = vpack.c.b16 %v1989, %v1989
      %v2006 = vpack.c.b16 %v1990, %v1990
      %v2007 = vpack.c.b16 %v1991, %v1991
      %v2008 = vpack.c.b16 %v1992, %v1992
      %v2009 = vpack.c.b16 %v1993, %v1993
      %v2010 = vpack.c.b16 %v1994, %v1994
      %v2011 = vpack.c.b16 %v1995, %v1995
      %v2013 = vshrl.u32 %v1916, 16
      %v2015 = vshll.u32 %v1916, 16
      %v2017 = vrot.slane %v2015, 1
      %v2018 = vor.u32 %v2013, %v2017
      %v2020 = vshll.u32 %v1996, 16
      %v2022 = vrot.slane %v2020, 1
      %v2023 = vsel %vm1498, %v2018, %v2022
      %v2025 = vshrl.u32 %v1917, 16
      %v2027 = vshll.u32 %v1917, 16
      %v2029 = vrot.slane %v2027, 1
      %v2030 = vor.u32 %v2025, %v2029
      %v2032 = vshll.u32 %v1997, 16
      %v2034 = vrot.slane %v2032, 1
      %v2035 = vsel %vm1498, %v2030, %v2034
      %v2037 = vshrl.u32 %v1918, 16
      %v2039 = vshll.u32 %v1918, 16
      %v2041 = vrot.slane %v2039, 1
      %v2042 = vor.u32 %v2037, %v2041
      %v2044 = vshll.u32 %v1998, 16
      %v2046 = vrot.slane %v2044, 1
      %v2047 = vsel %vm1498, %v2042, %v2046
      %v2049 = vshrl.u32 %v1919, 16
      %v2051 = vshll.u32 %v1919, 16
      %v2053 = vrot.slane %v2051, 1
      %v2054 = vor.u32 %v2049, %v2053
      %v2056 = vshll.u32 %v1999, 16
      %v2058 = vrot.slane %v2056, 1
      %v2059 = vsel %vm1498, %v2054, %v2058
      %v2061 = vshrl.u32 %v1920, 16
      %v2063 = vshll.u32 %v1920, 16
      %v2065 = vrot.slane %v2063, 1
      %v2066 = vor.u32 %v2061, %v2065
      %v2068 = vshll.u32 %v2000, 16
      %v2070 = vrot.slane %v2068, 1
      %v2071 = vsel %vm1498, %v2066, %v2070
      %v2073 = vshrl.u32 %v1921, 16
      %v2075 = vshll.u32 %v1921, 16
      %v2077 = vrot.slane %v2075, 1
      %v2078 = vor.u32 %v2073, %v2077
      %v2080 = vshll.u32 %v2001, 16
      %v2082 = vrot.slane %v2080, 1
      %v2083 = vsel %vm1498, %v2078, %v2082
      %v2085 = vshrl.u32 %v1922, 16
      %v2087 = vshll.u32 %v1922, 16
      %v2089 = vrot.slane %v2087, 1
      %v2090 = vor.u32 %v2085, %v2089
      %v2092 = vshll.u32 %v2002, 16
      %v2094 = vrot.slane %v2092, 1
      %v2095 = vsel %vm1498, %v2090, %v2094
      %v2097 = vshrl.u32 %v1923, 16
      %v2099 = vshll.u32 %v1923, 16
      %v2101 = vrot.slane %v2099, 1
      %v2102 = vor.u32 %v2097, %v2101
      %v2104 = vshll.u32 %v2003, 16
      %v2106 = vrot.slane %v2104, 1
      %v2107 = vsel %vm1498, %v2102, %v2106
      %v2109 = vshrl.u32 %v1924, 16
      %v2111 = vshll.u32 %v1924, 16
      %v2113 = vrot.slane %v2111, 1
      %v2114 = vor.u32 %v2109, %v2113
      %v2116 = vshll.u32 %v2004, 16
      %v2118 = vrot.slane %v2116, 1
      %v2119 = vsel %vm1498, %v2114, %v2118
      %v2121 = vshrl.u32 %v1925, 16
      %v2123 = vshll.u32 %v1925, 16
      %v2125 = vrot.slane %v2123, 1
      %v2126 = vor.u32 %v2121, %v2125
      %v2128 = vshll.u32 %v2005, 16
      %v2130 = vrot.slane %v2128, 1
      %v2131 = vsel %vm1498, %v2126, %v2130
      %v2133 = vshrl.u32 %v1926, 16
      %v2135 = vshll.u32 %v1926, 16
      %v2137 = vrot.slane %v2135, 1
      %v2138 = vor.u32 %v2133, %v2137
      %v2140 = vshll.u32 %v2006, 16
      %v2142 = vrot.slane %v2140, 1
      %v2143 = vsel %vm1498, %v2138, %v2142
      %v2145 = vshrl.u32 %v1927, 16
      %v2147 = vshll.u32 %v1927, 16
      %v2149 = vrot.slane %v2147, 1
      %v2150 = vor.u32 %v2145, %v2149
      %v2152 = vshll.u32 %v2007, 16
      %v2154 = vrot.slane %v2152, 1
      %v2155 = vsel %vm1498, %v2150, %v2154
      %v2157 = vshrl.u32 %v1928, 16
      %v2159 = vshll.u32 %v1928, 16
      %v2161 = vrot.slane %v2159, 1
      %v2162 = vor.u32 %v2157, %v2161
      %v2164 = vshll.u32 %v2008, 16
      %v2166 = vrot.slane %v2164, 1
      %v2167 = vsel %vm1498, %v2162, %v2166
      %v2169 = vshrl.u32 %v1929, 16
      %v2171 = vshll.u32 %v1929, 16
      %v2173 = vrot.slane %v2171, 1
      %v2174 = vor.u32 %v2169, %v2173
      %v2176 = vshll.u32 %v2009, 16
      %v2178 = vrot.slane %v2176, 1
      %v2179 = vsel %vm1498, %v2174, %v2178
      %v2181 = vshrl.u32 %v1930, 16
      %v2183 = vshll.u32 %v1930, 16
      %v2185 = vrot.slane %v2183, 1
      %v2186 = vor.u32 %v2181, %v2185
      %v2188 = vshll.u32 %v2010, 16
      %v2190 = vrot.slane %v2188, 1
      %v2191 = vsel %vm1498, %v2186, %v2190
      %v2193 = vshrl.u32 %v1931, 16
      %v2195 = vshll.u32 %v1931, 16
      %v2197 = vrot.slane %v2195, 1
      %v2198 = vor.u32 %v2193, %v2197
      %v2200 = vshll.u32 %v2011, 16
      %v2202 = vrot.slane %v2200, 1
      %v2203 = vsel %vm1498, %v2198, %v2202
      %v2220 = vunpack.c.l.b16 %v1289
      %v2221 = vunpack.c.l.b16 %v1290
      %v2222 = vunpack.c.l.b16 %v1291
      %v2223 = vunpack.c.l.b16 %v1292
      %v2224 = vunpack.c.l.b16 %v1293
      %v2225 = vunpack.c.l.b16 %v1294
      %v2226 = vunpack.c.l.b16 %v1295
      %v2227 = vunpack.c.l.b16 %v1296
      %v2228 = vunpack.c.l.b16 %v1297
      %v2229 = vunpack.c.l.b16 %v1298
      %v2230 = vunpack.c.l.b16 %v1299
      %v2231 = vunpack.c.l.b16 %v1300
      %v2232 = vunpack.c.l.b16 %v1301
      %v2233 = vunpack.c.l.b16 %v1302
      %v2234 = vunpack.c.l.b16 %v1303
      %v2235 = vunpack.c.l.b16 %v1304
      %v2236 = vpack.c.b16 %v1885, %v2220
      %v2237 = vpack.c.b16 %v1887, %v2221
      %v2238 = vpack.c.b16 %v1889, %v2222
      %v2239 = vpack.c.b16 %v1891, %v2223
      %v2240 = vpack.c.b16 %v1893, %v2224
      %v2241 = vpack.c.b16 %v1895, %v2225
      %v2242 = vpack.c.b16 %v1897, %v2226
      %v2243 = vpack.c.b16 %v1899, %v2227
      %v2244 = vpack.c.b16 %v1901, %v2228
      %v2245 = vpack.c.b16 %v1903, %v2229
      %v2246 = vpack.c.b16 %v1905, %v2230
      %v2247 = vpack.c.b16 %v1907, %v2231
      %v2248 = vpack.c.b16 %v1909, %v2232
      %v2249 = vpack.c.b16 %v1911, %v2233
      %v2250 = vpack.c.b16 %v1913, %v2234
      %v2251 = vpack.c.b16 %v1915, %v2235
      %v2252 = vrot.slane %v2236, 1
      %v2253 = vrot.slane %v1996, 1
      %v2254 = vsel %vm1771, %v2252, %v2253
      %v2255 = vrot.slane %v2237, 1
      %v2256 = vrot.slane %v1997, 1
      %v2257 = vsel %vm1771, %v2255, %v2256
      %v2258 = vrot.slane %v2238, 1
      %v2259 = vrot.slane %v1998, 1
      %v2260 = vsel %vm1771, %v2258, %v2259
      %v2261 = vrot.slane %v2239, 1
      %v2262 = vrot.slane %v1999, 1
      %v2263 = vsel %vm1771, %v2261, %v2262
      %v2264 = vrot.slane %v2240, 1
      %v2265 = vrot.slane %v2000, 1
      %v2266 = vsel %vm1771, %v2264, %v2265
      %v2267 = vrot.slane %v2241, 1
      %v2268 = vrot.slane %v2001, 1
      %v2269 = vsel %vm1771, %v2267, %v2268
      %v2270 = vrot.slane %v2242, 1
      %v2271 = vrot.slane %v2002, 1
      %v2272 = vsel %vm1771, %v2270, %v2271
      %v2273 = vrot.slane %v2243, 1
      %v2274 = vrot.slane %v2003, 1
      %v2275 = vsel %vm1771, %v2273, %v2274
      %v2276 = vrot.slane %v2244, 1
      %v2277 = vrot.slane %v2004, 1
      %v2278 = vsel %vm1771, %v2276, %v2277
      %v2279 = vrot.slane %v2245, 1
      %v2280 = vrot.slane %v2005, 1
      %v2281 = vsel %vm1771, %v2279, %v2280
      %v2282 = vrot.slane %v2246, 1
      %v2283 = vrot.slane %v2006, 1
      %v2284 = vsel %vm1771, %v2282, %v2283
      %v2285 = vrot.slane %v2247, 1
      %v2286 = vrot.slane %v2007, 1
      %v2287 = vsel %vm1771, %v2285, %v2286
      %v2288 = vrot.slane %v2248, 1
      %v2289 = vrot.slane %v2008, 1
      %v2290 = vsel %vm1771, %v2288, %v2289
      %v2291 = vrot.slane %v2249, 1
      %v2292 = vrot.slane %v2009, 1
      %v2293 = vsel %vm1771, %v2291, %v2292
      %v2294 = vrot.slane %v2250, 1
      %v2295 = vrot.slane %v2010, 1
      %v2296 = vsel %vm1771, %v2294, %v2295
      %v2297 = vrot.slane %v2251, 1
      %v2298 = vrot.slane %v2011, 1
      %v2299 = vsel %vm1771, %v2297, %v2298
      %2300 = vrot.lane.b32.xlu0 %v2254, 32
      %v2301 = vpop.permute.xlu0 %2300
      %2302 = vrot.lane.b32.xlu0 %v2257, 32
      %v2303 = vpop.permute.xlu0 %2302
      %2304 = vrot.lane.b32.xlu0 %v2260, 32
      %v2305 = vpop.permute.xlu0 %2304
      %2306 = vrot.lane.b32.xlu0 %v2263, 32
      %v2307 = vpop.permute.xlu0 %2306
      %2308 = vrot.lane.b32.xlu0 %v2266, 32
      %v2309 = vpop.permute.xlu0 %2308
      %2310 = vrot.lane.b32.xlu0 %v2269, 32
      %v2311 = vpop.permute.xlu0 %2310
      %2312 = vrot.lane.b32.xlu0 %v2272, 32
      %v2313 = vpop.permute.xlu0 %2312
      %2314 = vrot.lane.b32.xlu0 %v2275, 32
      %v2315 = vpop.permute.xlu0 %2314
      %2316 = vrot.lane.b32.xlu0 %v2278, 32
      %v2317 = vpop.permute.xlu0 %2316
      %2318 = vrot.lane.b32.xlu0 %v2281, 32
      %v2319 = vpop.permute.xlu0 %2318
      %2320 = vrot.lane.b32.xlu0 %v2284, 32
      %v2321 = vpop.permute.xlu0 %2320
      %2322 = vrot.lane.b32.xlu0 %v2287, 32
      %v2323 = vpop.permute.xlu0 %2322
      %2324 = vrot.lane.b32.xlu0 %v2290, 32
      %v2325 = vpop.permute.xlu0 %2324
      %2326 = vrot.lane.b32.xlu0 %v2293, 32
      %v2327 = vpop.permute.xlu0 %2326
      %2328 = vrot.lane.b32.xlu0 %v2296, 32
      %v2329 = vpop.permute.xlu0 %2328
      %2330 = vrot.lane.b32.xlu0 %v2299, 32
      %v2331 = vpop.permute.xlu0 %2330
      %v2364 = vunpack.c.l.b16 %v1306
      %v2365 = vunpack.c.l.b16 %v1307
      %v2366 = vunpack.c.l.b16 %v1308
      %v2367 = vunpack.c.l.b16 %v1309
      %v2368 = vunpack.c.l.b16 %v1310
      %v2369 = vunpack.c.l.b16 %v1311
      %v2370 = vunpack.c.l.b16 %v1312
      %v2371 = vunpack.c.l.b16 %v1313
      %v2372 = vunpack.c.l.b16 %v1314
      %v2373 = vunpack.c.l.b16 %v1315
      %v2374 = vunpack.c.l.b16 %v1316
      %v2375 = vunpack.c.l.b16 %v1317
      %v2376 = vunpack.c.l.b16 %v1318
      %v2377 = vunpack.c.l.b16 %v1319
      %v2378 = vunpack.c.l.b16 %v1320
      %v2379 = vunpack.c.l.b16 %v1321
      %v2380 = vunpack.c.l.b16 %v1322
      %v2381 = vunpack.c.l.b16 %v1323
      %v2382 = vunpack.c.l.b16 %v1324
      %v2383 = vunpack.c.l.b16 %v1325
      %v2384 = vunpack.c.l.b16 %v1326
      %v2385 = vunpack.c.l.b16 %v1327
      %v2386 = vunpack.c.l.b16 %v1328
      %v2387 = vunpack.c.l.b16 %v1329
      %v2388 = vunpack.c.l.b16 %v1330
      %v2389 = vunpack.c.l.b16 %v1331
      %v2390 = vunpack.c.l.b16 %v1332
      %v2391 = vunpack.c.l.b16 %v1333
      %v2392 = vunpack.c.l.b16 %v1334
      %v2393 = vunpack.c.l.b16 %v1335
      %v2394 = vunpack.c.l.b16 %v1336
      %v2395 = vunpack.c.l.b16 %v1337
      %v2396 = vpack.c.b16 %v2365, %v2364
      %v2397 = vpack.c.b16 %v2367, %v2366
      %v2398 = vpack.c.b16 %v2369, %v2368
      %v2399 = vpack.c.b16 %v2371, %v2370
      %v2400 = vpack.c.b16 %v2373, %v2372
      %v2401 = vpack.c.b16 %v2375, %v2374
      %v2402 = vpack.c.b16 %v2377, %v2376
      %v2403 = vpack.c.b16 %v2379, %v2378
      %v2404 = vpack.c.b16 %v2381, %v2380
      %v2405 = vpack.c.b16 %v2383, %v2382
      %v2406 = vpack.c.b16 %v2385, %v2384
      %v2407 = vpack.c.b16 %v2387, %v2386
      %v2408 = vpack.c.b16 %v2389, %v2388
      %v2409 = vpack.c.b16 %v2391, %v2390
      %v2410 = vpack.c.b16 %v2393, %v2392
      %v2411 = vpack.c.b16 %v2395, %v2394
      %2412 = vrot.lane.b32.xlu0 %v2396, 64
      %v2413 = vpop.permute.xlu0 %2412
      %2414 = vrot.lane.b32.xlu0 %v2397, 64
      %v2415 = vpop.permute.xlu0 %2414
      %2416 = vrot.lane.b32.xlu0 %v2398, 64
      %v2417 = vpop.permute.xlu0 %2416
      %2418 = vrot.lane.b32.xlu0 %v2399, 64
      %v2419 = vpop.permute.xlu0 %2418
      %2420 = vrot.lane.b32.xlu0 %v2400, 64
      %v2421 = vpop.permute.xlu0 %2420
      %2422 = vrot.lane.b32.xlu0 %v2401, 64
      %v2423 = vpop.permute.xlu0 %2422
      %2424 = vrot.lane.b32.xlu0 %v2402, 64
      %v2425 = vpop.permute.xlu0 %2424
      %2426 = vrot.lane.b32.xlu0 %v2403, 64
      %v2427 = vpop.permute.xlu0 %2426
      %2428 = vrot.lane.b32.xlu0 %v2404, 64
      %v2429 = vpop.permute.xlu0 %2428
      %2430 = vrot.lane.b32.xlu0 %v2405, 64
      %v2431 = vpop.permute.xlu0 %2430
      %2432 = vrot.lane.b32.xlu0 %v2406, 64
      %v2433 = vpop.permute.xlu0 %2432
      %2434 = vrot.lane.b32.xlu0 %v2407, 64
      %v2435 = vpop.permute.xlu0 %2434
      %2436 = vrot.lane.b32.xlu0 %v2408, 64
      %v2437 = vpop.permute.xlu0 %2436
      %2438 = vrot.lane.b32.xlu0 %v2409, 64
      %v2439 = vpop.permute.xlu0 %2438
      %2440 = vrot.lane.b32.xlu0 %v2410, 64
      %v2441 = vpop.permute.xlu0 %2440
      %2442 = vrot.lane.b32.xlu0 %v2411, 64
      %v2443 = vpop.permute.xlu0 %2442
      %v2460 = vunpack.c.l.b16 %v1338
      %v2461 = vunpack.c.l.b16 %v1339
      %v2462 = vunpack.c.l.b16 %v1340
      %v2463 = vunpack.c.l.b16 %v1341
      %v2464 = vunpack.c.l.b16 %v1342
      %v2465 = vunpack.c.l.b16 %v1343
      %v2466 = vunpack.c.l.b16 %v1344
      %v2467 = vunpack.c.l.b16 %v1345
      %v2468 = vunpack.c.l.b16 %v1346
      %v2469 = vunpack.c.l.b16 %v1347
      %v2470 = vunpack.c.l.b16 %v1348
      %v2471 = vunpack.c.l.b16 %v1349
      %v2472 = vunpack.c.l.b16 %v1350
      %v2473 = vunpack.c.l.b16 %v1351
      %v2474 = vunpack.c.l.b16 %v1352
      %v2475 = vunpack.c.l.b16 %v1353
      %v2476 = vpack.c.b16 %v2460, %v2460
      %v2477 = vpack.c.b16 %v2461, %v2461
      %v2478 = vpack.c.b16 %v2462, %v2462
      %v2479 = vpack.c.b16 %v2463, %v2463
      %v2480 = vpack.c.b16 %v2464, %v2464
      %v2481 = vpack.c.b16 %v2465, %v2465
      %v2482 = vpack.c.b16 %v2466, %v2466
      %v2483 = vpack.c.b16 %v2467, %v2467
      %v2484 = vpack.c.b16 %v2468, %v2468
      %v2485 = vpack.c.b16 %v2469, %v2469
      %v2486 = vpack.c.b16 %v2470, %v2470
      %v2487 = vpack.c.b16 %v2471, %v2471
      %v2488 = vpack.c.b16 %v2472, %v2472
      %v2489 = vpack.c.b16 %v2473, %v2473
      %v2490 = vpack.c.b16 %v2474, %v2474
      %v2491 = vpack.c.b16 %v2475, %v2475
      %v2493 = vshrl.u32 %v2396, 16
      %v2495 = vshll.u32 %v2396, 16
      %v2497 = vrot.slane %v2495, 1
      %v2498 = vor.u32 %v2493, %v2497
      %v2500 = vshll.u32 %v2476, 16
      %v2502 = vrot.slane %v2500, 1
      %v2503 = vsel %vm1498, %v2498, %v2502
      %v2505 = vshrl.u32 %v2397, 16
      %v2507 = vshll.u32 %v2397, 16
      %v2509 = vrot.slane %v2507, 1
      %v2510 = vor.u32 %v2505, %v2509
      %v2512 = vshll.u32 %v2477, 16
      %v2514 = vrot.slane %v2512, 1
      %v2515 = vsel %vm1498, %v2510, %v2514
      %v2517 = vshrl.u32 %v2398, 16
      %v2519 = vshll.u32 %v2398, 16
      %v2521 = vrot.slane %v2519, 1
      %v2522 = vor.u32 %v2517, %v2521
      %v2524 = vshll.u32 %v2478, 16
      %v2526 = vrot.slane %v2524, 1
      %v2527 = vsel %vm1498, %v2522, %v2526
      %v2529 = vshrl.u32 %v2399, 16
      %v2531 = vshll.u32 %v2399, 16
      %v2533 = vrot.slane %v2531, 1
      %v2534 = vor.u32 %v2529, %v2533
      %v2536 = vshll.u32 %v2479, 16
      %v2538 = vrot.slane %v2536, 1
      %v2539 = vsel %vm1498, %v2534, %v2538
      %v2541 = vshrl.u32 %v2400, 16
      %v2543 = vshll.u32 %v2400, 16
      %v2545 = vrot.slane %v2543, 1
      %v2546 = vor.u32 %v2541, %v2545
      %v2548 = vshll.u32 %v2480, 16
      %v2550 = vrot.slane %v2548, 1
      %v2551 = vsel %vm1498, %v2546, %v2550
      %v2553 = vshrl.u32 %v2401, 16
      %v2555 = vshll.u32 %v2401, 16
      %v2557 = vrot.slane %v2555, 1
      %v2558 = vor.u32 %v2553, %v2557
      %v2560 = vshll.u32 %v2481, 16
      %v2562 = vrot.slane %v2560, 1
      %v2563 = vsel %vm1498, %v2558, %v2562
      %v2565 = vshrl.u32 %v2402, 16
      %v2567 = vshll.u32 %v2402, 16
      %v2569 = vrot.slane %v2567, 1
      %v2570 = vor.u32 %v2565, %v2569
      %v2572 = vshll.u32 %v2482, 16
      %v2574 = vrot.slane %v2572, 1
      %v2575 = vsel %vm1498, %v2570, %v2574
      %v2577 = vshrl.u32 %v2403, 16
      %v2579 = vshll.u32 %v2403, 16
      %v2581 = vrot.slane %v2579, 1
      %v2582 = vor.u32 %v2577, %v2581
      %v2584 = vshll.u32 %v2483, 16
      %v2586 = vrot.slane %v2584, 1
      %v2587 = vsel %vm1498, %v2582, %v2586
      %v2589 = vshrl.u32 %v2404, 16
      %v2591 = vshll.u32 %v2404, 16
      %v2593 = vrot.slane %v2591, 1
      %v2594 = vor.u32 %v2589, %v2593
      %v2596 = vshll.u32 %v2484, 16
      %v2598 = vrot.slane %v2596, 1
      %v2599 = vsel %vm1498, %v2594, %v2598
      %v2601 = vshrl.u32 %v2405, 16
      %v2603 = vshll.u32 %v2405, 16
      %v2605 = vrot.slane %v2603, 1
      %v2606 = vor.u32 %v2601, %v2605
      %v2608 = vshll.u32 %v2485, 16
      %v2610 = vrot.slane %v2608, 1
      %v2611 = vsel %vm1498, %v2606, %v2610
      %v2613 = vshrl.u32 %v2406, 16
      %v2615 = vshll.u32 %v2406, 16
      %v2617 = vrot.slane %v2615, 1
      %v2618 = vor.u32 %v2613, %v2617
      %v2620 = vshll.u32 %v2486, 16
      %v2622 = vrot.slane %v2620, 1
      %v2623 = vsel %vm1498, %v2618, %v2622
      %v2625 = vshrl.u32 %v2407, 16
      %v2627 = vshll.u32 %v2407, 16
      %v2629 = vrot.slane %v2627, 1
      %v2630 = vor.u32 %v2625, %v2629
      %v2632 = vshll.u32 %v2487, 16
      %v2634 = vrot.slane %v2632, 1
      %v2635 = vsel %vm1498, %v2630, %v2634
      %v2637 = vshrl.u32 %v2408, 16
      %v2639 = vshll.u32 %v2408, 16
      %v2641 = vrot.slane %v2639, 1
      %v2642 = vor.u32 %v2637, %v2641
      %v2644 = vshll.u32 %v2488, 16
      %v2646 = vrot.slane %v2644, 1
      %v2647 = vsel %vm1498, %v2642, %v2646
      %v2649 = vshrl.u32 %v2409, 16
      %v2651 = vshll.u32 %v2409, 16
      %v2653 = vrot.slane %v2651, 1
      %v2654 = vor.u32 %v2649, %v2653
      %v2656 = vshll.u32 %v2489, 16
      %v2658 = vrot.slane %v2656, 1
      %v2659 = vsel %vm1498, %v2654, %v2658
      %v2661 = vshrl.u32 %v2410, 16
      %v2663 = vshll.u32 %v2410, 16
      %v2665 = vrot.slane %v2663, 1
      %v2666 = vor.u32 %v2661, %v2665
      %v2668 = vshll.u32 %v2490, 16
      %v2670 = vrot.slane %v2668, 1
      %v2671 = vsel %vm1498, %v2666, %v2670
      %v2673 = vshrl.u32 %v2411, 16
      %v2675 = vshll.u32 %v2411, 16
      %v2677 = vrot.slane %v2675, 1
      %v2678 = vor.u32 %v2673, %v2677
      %v2680 = vshll.u32 %v2491, 16
      %v2682 = vrot.slane %v2680, 1
      %v2683 = vsel %vm1498, %v2678, %v2682
      %2684 = vrot.lane.b32.xlu0 %v2503, 96
      %v2685 = vpop.permute.xlu0 %2684
      %2686 = vrot.lane.b32.xlu0 %v2515, 96
      %v2687 = vpop.permute.xlu0 %2686
      %2688 = vrot.lane.b32.xlu0 %v2527, 96
      %v2689 = vpop.permute.xlu0 %2688
      %2690 = vrot.lane.b32.xlu0 %v2539, 96
      %v2691 = vpop.permute.xlu0 %2690
      %2692 = vrot.lane.b32.xlu0 %v2551, 96
      %v2693 = vpop.permute.xlu0 %2692
      %2694 = vrot.lane.b32.xlu0 %v2563, 96
      %v2695 = vpop.permute.xlu0 %2694
      %2696 = vrot.lane.b32.xlu0 %v2575, 96
      %v2697 = vpop.permute.xlu0 %2696
      %2698 = vrot.lane.b32.xlu0 %v2587, 96
      %v2699 = vpop.permute.xlu0 %2698
      %2700 = vrot.lane.b32.xlu0 %v2599, 96
      %v2701 = vpop.permute.xlu0 %2700
      %2702 = vrot.lane.b32.xlu0 %v2611, 96
      %v2703 = vpop.permute.xlu0 %2702
      %2704 = vrot.lane.b32.xlu0 %v2623, 96
      %v2705 = vpop.permute.xlu0 %2704
      %2706 = vrot.lane.b32.xlu0 %v2635, 96
      %v2707 = vpop.permute.xlu0 %2706
      %2708 = vrot.lane.b32.xlu0 %v2647, 96
      %v2709 = vpop.permute.xlu0 %2708
      %2710 = vrot.lane.b32.xlu0 %v2659, 96
      %v2711 = vpop.permute.xlu0 %2710
      %2712 = vrot.lane.b32.xlu0 %v2671, 96
      %v2713 = vpop.permute.xlu0 %2712
      %2714 = vrot.lane.b32.xlu0 %v2683, 96
      %v2715 = vpop.permute.xlu0 %2714
      %v2732 = vunpack.c.l.b16 %v1354
      %v2733 = vunpack.c.l.b16 %v1355
      %v2734 = vunpack.c.l.b16 %v1356
      %v2735 = vunpack.c.l.b16 %v1357
      %v2736 = vunpack.c.l.b16 %v1358
      %v2737 = vunpack.c.l.b16 %v1359
      %v2738 = vunpack.c.l.b16 %v1360
      %v2739 = vunpack.c.l.b16 %v1361
      %v2740 = vunpack.c.l.b16 %v1362
      %v2741 = vunpack.c.l.b16 %v1363
      %v2742 = vunpack.c.l.b16 %v1364
      %v2743 = vunpack.c.l.b16 %v1365
      %v2744 = vunpack.c.l.b16 %v1366
      %v2745 = vunpack.c.l.b16 %v1367
      %v2746 = vunpack.c.l.b16 %v1368
      %v2747 = vunpack.c.l.b16 %v1369
      %v2748 = vpack.c.b16 %v2365, %v2732
      %v2749 = vpack.c.b16 %v2367, %v2733
      %v2750 = vpack.c.b16 %v2369, %v2734
      %v2751 = vpack.c.b16 %v2371, %v2735
      %v2752 = vpack.c.b16 %v2373, %v2736
      %v2753 = vpack.c.b16 %v2375, %v2737
      %v2754 = vpack.c.b16 %v2377, %v2738
      %v2755 = vpack.c.b16 %v2379, %v2739
      %v2756 = vpack.c.b16 %v2381, %v2740
      %v2757 = vpack.c.b16 %v2383, %v2741
      %v2758 = vpack.c.b16 %v2385, %v2742
      %v2759 = vpack.c.b16 %v2387, %v2743
      %v2760 = vpack.c.b16 %v2389, %v2744
      %v2761 = vpack.c.b16 %v2391, %v2745
      %v2762 = vpack.c.b16 %v2393, %v2746
      %v2763 = vpack.c.b16 %v2395, %v2747
      %v2764 = vrot.slane %v2748, 1
      %v2765 = vrot.slane %v2476, 1
      %v2766 = vsel %vm1771, %v2764, %v2765
      %v2767 = vrot.slane %v2749, 1
      %v2768 = vrot.slane %v2477, 1
      %v2769 = vsel %vm1771, %v2767, %v2768
      %v2770 = vrot.slane %v2750, 1
      %v2771 = vrot.slane %v2478, 1
      %v2772 = vsel %vm1771, %v2770, %v2771
      %v2773 = vrot.slane %v2751, 1
      %v2774 = vrot.slane %v2479, 1
      %v2775 = vsel %vm1771, %v2773, %v2774
      %v2776 = vrot.slane %v2752, 1
      %v2777 = vrot.slane %v2480, 1
      %v2778 = vsel %vm1771, %v2776, %v2777
      %v2779 = vrot.slane %v2753, 1
      %v2780 = vrot.slane %v2481, 1
      %v2781 = vsel %vm1771, %v2779, %v2780
      %v2782 = vrot.slane %v2754, 1
      %v2783 = vrot.slane %v2482, 1
      %v2784 = vsel %vm1771, %v2782, %v2783
      %v2785 = vrot.slane %v2755, 1
      %v2786 = vrot.slane %v2483, 1
      %v2787 = vsel %vm1771, %v2785, %v2786
      %v2788 = vrot.slane %v2756, 1
      %v2789 = vrot.slane %v2484, 1
      %v2790 = vsel %vm1771, %v2788, %v2789
      %v2791 = vrot.slane %v2757, 1
      %v2792 = vrot.slane %v2485, 1
      %v2793 = vsel %vm1771, %v2791, %v2792
      %v2794 = vrot.slane %v2758, 1
      %v2795 = vrot.slane %v2486, 1
      %v2796 = vsel %vm1771, %v2794, %v2795
      %v2797 = vrot.slane %v2759, 1
      %v2798 = vrot.slane %v2487, 1
      %v2799 = vsel %vm1771, %v2797, %v2798
      %v2800 = vrot.slane %v2760, 1
      %v2801 = vrot.slane %v2488, 1
      %v2802 = vsel %vm1771, %v2800, %v2801
      %v2803 = vrot.slane %v2761, 1
      %v2804 = vrot.slane %v2489, 1
      %v2805 = vsel %vm1771, %v2803, %v2804
      %v2806 = vrot.slane %v2762, 1
      %v2807 = vrot.slane %v2490, 1
      %v2808 = vsel %vm1771, %v2806, %v2807
      %v2809 = vrot.slane %v2763, 1
      %v2810 = vrot.slane %v2491, 1
      %v2811 = vsel %vm1771, %v2809, %v2810
      %vm2812 = vcmask 261120
      %v2814 = vsel %vm2812, %v1434, %v1692
      %v2816 = vsel %vm2812, %v1435, %v1694
      %v2818 = vsel %vm2812, %v1436, %v1696
      %v2820 = vsel %vm2812, %v1437, %v1698
      %v2822 = vsel %vm2812, %v1438, %v1700
      %v2824 = vsel %vm2812, %v1439, %v1702
      %v2826 = vsel %vm2812, %v1440, %v1704
      %v2828 = vsel %vm2812, %v1441, %v1706
      %v2830 = vsel %vm2812, %v1442, %v1708
      %v2832 = vsel %vm2812, %v1443, %v1710
      %v2834 = vsel %vm2812, %v1444, %v1712
      %v2836 = vsel %vm2812, %v1445, %v1714
      %v2838 = vsel %vm2812, %v1446, %v1716
      %v2840 = vsel %vm2812, %v1447, %v1718
      %v2842 = vsel %vm2812, %v1448, %v1720
      %v2844 = vsel %vm2812, %v1449, %v1722
      %v2846 = vsel %vm428, %v2814, %v1821
      %v2848 = vsel %vm428, %v2816, %v1823
      %v2850 = vsel %vm428, %v2818, %v1825
      %v2852 = vsel %vm428, %v2820, %v1827
      %v2854 = vsel %vm428, %v2822, %v1829
      %v2856 = vsel %vm428, %v2824, %v1831
      %v2858 = vsel %vm428, %v2826, %v1833
      %v2860 = vsel %vm428, %v2828, %v1835
      %v2862 = vsel %vm428, %v2830, %v1837
      %v2864 = vsel %vm428, %v2832, %v1839
      %v2866 = vsel %vm428, %v2834, %v1841
      %v2868 = vsel %vm428, %v2836, %v1843
      %v2870 = vsel %vm428, %v2838, %v1845
      %v2872 = vsel %vm428, %v2840, %v1847
      %v2874 = vsel %vm428, %v2842, %v1849
      %v2876 = vsel %vm428, %v2844, %v1851
      %vm2877 = vcmask 785408
      %v2879 = vsel %vm2877, %v2846, %v1933
      %v2882 = vsel %vm2877, %v2848, %v1935
      %v2885 = vsel %vm2877, %v2850, %v1937
      %v2888 = vsel %vm2877, %v2852, %v1939
      %v2891 = vsel %vm2877, %v2854, %v1941
      %v2894 = vsel %vm2877, %v2856, %v1943
      %v2897 = vsel %vm2877, %v2858, %v1945
      %v2900 = vsel %vm2877, %v2860, %v1947
      %v2903 = vsel %vm2877, %v2862, %v1949
      %v2906 = vsel %vm2877, %v2864, %v1951
      %v2909 = vsel %vm2877, %v2866, %v1953
      %v2912 = vsel %vm2877, %v2868, %v1955
      %v2915 = vsel %vm2877, %v2870, %v1957
      %v2918 = vsel %vm2877, %v2872, %v1959
      %v2921 = vsel %vm2877, %v2874, %v1961
      %v2924 = vsel %vm2877, %v2876, %v1963
      %v2928 = vsel %vm2812, %v2023, %v2301
      %v2931 = vsel %vm2812, %v2035, %v2303
      %v2934 = vsel %vm2812, %v2047, %v2305
      %v2937 = vsel %vm2812, %v2059, %v2307
      %v2940 = vsel %vm2812, %v2071, %v2309
      %v2943 = vsel %vm2812, %v2083, %v2311
      %v2946 = vsel %vm2812, %v2095, %v2313
      %v2949 = vsel %vm2812, %v2107, %v2315
      %v2952 = vsel %vm2812, %v2119, %v2317
      %v2955 = vsel %vm2812, %v2131, %v2319
      %v2958 = vsel %vm2812, %v2143, %v2321
      %v2961 = vsel %vm2812, %v2155, %v2323
      %v2964 = vsel %vm2812, %v2167, %v2325
      %v2967 = vsel %vm2812, %v2179, %v2327
      %v2970 = vsel %vm2812, %v2191, %v2329
      %v2973 = vsel %vm2812, %v2203, %v2331
      %v2975 = vsel %vm428, %v2928, %v2413
      %v2977 = vsel %vm428, %v2931, %v2415
      %v2979 = vsel %vm428, %v2934, %v2417
      %v2981 = vsel %vm428, %v2937, %v2419
      %v2983 = vsel %vm428, %v2940, %v2421
      %v2985 = vsel %vm428, %v2943, %v2423
      %v2987 = vsel %vm428, %v2946, %v2425
      %v2989 = vsel %vm428, %v2949, %v2427
      %v2991 = vsel %vm428, %v2952, %v2429
      %v2993 = vsel %vm428, %v2955, %v2431
      %v2995 = vsel %vm428, %v2958, %v2433
      %v2997 = vsel %vm428, %v2961, %v2435
      %v2999 = vsel %vm428, %v2964, %v2437
      %v3001 = vsel %vm428, %v2967, %v2439
      %v3003 = vsel %vm428, %v2970, %v2441
      %v3005 = vsel %vm428, %v2973, %v2443
      %v3007 = vsel %vm2877, %v2975, %v2685
      %v3010 = vsel %vm2877, %v2977, %v2687
      %v3013 = vsel %vm2877, %v2979, %v2689
      %v3016 = vsel %vm2877, %v2981, %v2691
      %v3019 = vsel %vm2877, %v2983, %v2693
      %v3022 = vsel %vm2877, %v2985, %v2695
      %v3025 = vsel %vm2877, %v2987, %v2697
      %v3028 = vsel %vm2877, %v2989, %v2699
      %v3031 = vsel %vm2877, %v2991, %v2701
      %v3034 = vsel %vm2877, %v2993, %v2703
      %v3037 = vsel %vm2877, %v2995, %v2705
      %v3040 = vsel %vm2877, %v2997, %v2707
      %v3043 = vsel %vm2877, %v2999, %v2709
      %v3046 = vsel %vm2877, %v3001, %v2711
      %v3049 = vsel %vm2877, %v3003, %v2713
      %v3052 = vsel %vm2877, %v3005, %v2715
      %v3054 = vld [vmem:[%s3] sm:$0xf]
      %v3055 = vld [vmem:[%s3 + $0x4] sm:$0xf]
      %v3056 = vld [vmem:[%s3 + $0x8] sm:$0xf]
      %v3057 = vld [vmem:[%s3 + $0xc] sm:$0xf]
      %v3058 = vld [vmem:[%s3 + $0x10] sm:$0xf]
      %v3059 = vld [vmem:[%s3 + $0x14] sm:$0xf]
      %v3060 = vld [vmem:[%s3 + $0x18] sm:$0xf]
      %v3061 = vld [vmem:[%s3 + $0x1c] sm:$0xf]
      %v3062 = vld [vmem:[%s3 + $0x20] sm:$0xf]
      %v3063 = vld [vmem:[%s3 + $0x24] sm:$0xf]
      %v3064 = vld [vmem:[%s3 + $0x28] sm:$0xf]
      %v3065 = vld [vmem:[%s3 + $0x2c] sm:$0xf]
      %v3066 = vld [vmem:[%s3 + $0x30] sm:$0xf]
      %v3067 = vld [vmem:[%s3 + $0x34] sm:$0xf]
      %v3068 = vld [vmem:[%s3 + $0x38] sm:$0xf]
      %v3069 = vld [vmem:[%s3 + $0x3c] sm:$0xf]
      %v3070 = vld [vmem:[%s3 + $0x40] sm:$0xf]
      %v3071 = vld [vmem:[%s3 + $0x44] sm:$0xf]
      %v3072 = vld [vmem:[%s3 + $0x48] sm:$0xf]
      %v3073 = vld [vmem:[%s3 + $0x4c] sm:$0xf]
      %v3074 = vld [vmem:[%s3 + $0x50] sm:$0xf]
      %v3075 = vld [vmem:[%s3 + $0x54] sm:$0xf]
      %v3076 = vld [vmem:[%s3 + $0x58] sm:$0xf]
      %v3077 = vld [vmem:[%s3 + $0x5c] sm:$0xf]
      %v3078 = vld [vmem:[%s3 + $0x60] sm:$0xf]
      %v3079 = vld [vmem:[%s3 + $0x64] sm:$0xf]
      %v3080 = vld [vmem:[%s3 + $0x68] sm:$0xf]
      %v3081 = vld [vmem:[%s3 + $0x6c] sm:$0xf]
      %v3082 = vld [vmem:[%s3 + $0x70] sm:$0xf]
      %v3083 = vld [vmem:[%s3 + $0x74] sm:$0xf]
      %v3084 = vld [vmem:[%s3 + $0x78] sm:$0xf]
      %v3085 = vld [vmem:[%s3 + $0x7c] sm:$0xf]
      %v3086 = vld [vmem:[%s3 + $0x80] sm:$0xf]
      %v3087 = vld [vmem:[%s3 + $0x84] sm:$0xf]
      %v3088 = vld [vmem:[%s3 + $0x88] sm:$0xf]
      %v3089 = vld [vmem:[%s3 + $0x8c] sm:$0xf]
      %v3090 = vld [vmem:[%s4] sm:$0x1]
      %v3092 = vperm.slane %v3090, 0
      %v3130 = vunpack.c.l.b16 %v3054
      %v3131 = vunpack.c.l.b16 %v3055
      %v3132 = vunpack.c.l.b16 %v3056
      %v3133 = vunpack.c.l.b16 %v3057
      %v3134 = vunpack.c.l.b16 %v3058
      %v3135 = vunpack.c.l.b16 %v3059
      %v3136 = vunpack.c.l.b16 %v3060
      %v3137 = vunpack.c.l.b16 %v3061
      %v3138 = vunpack.c.l.b16 %v3062
      %v3139 = vunpack.c.l.b16 %v3063
      %v3140 = vunpack.c.l.b16 %v3064
      %v3141 = vunpack.c.l.b16 %v3065
      %v3142 = vunpack.c.l.b16 %v3066
      %v3143 = vunpack.c.l.b16 %v3067
      %v3144 = vunpack.c.l.b16 %v3068
      %v3145 = vunpack.c.l.b16 %v3069
      %v3146 = vunpack.c.l.b16 %v3070
      %v3147 = vunpack.c.l.b16 %v3071
      %v3148 = vunpack.c.l.b16 %v3072
      %v3149 = vunpack.c.l.b16 %v3073
      %v3150 = vunpack.c.l.b16 %v3074
      %v3151 = vunpack.c.l.b16 %v3075
      %v3152 = vunpack.c.l.b16 %v3076
      %v3153 = vunpack.c.l.b16 %v3077
      %v3154 = vunpack.c.l.b16 %v3078
      %v3155 = vunpack.c.l.b16 %v3079
      %v3156 = vunpack.c.l.b16 %v3080
      %v3157 = vunpack.c.l.b16 %v3081
      %v3158 = vunpack.c.l.b16 %v3082
      %v3159 = vunpack.c.l.b16 %v3083
      %v3160 = vunpack.c.l.b16 %v3084
      %v3161 = vunpack.c.l.b16 %v3085
      %v3162 = vunpack.c.l.b16 %v3086
      %v3163 = vunpack.c.l.b16 %v3087
      %v3164 = vunpack.c.l.b16 %v3088
      %v3165 = vunpack.c.l.b16 %v3089
      %v3166 = vpack.c.b16 %v3131, %v3130
      %v3167 = vpack.c.b16 %v3133, %v3132
      %v3168 = vpack.c.b16 %v3135, %v3134
      %v3169 = vpack.c.b16 %v3137, %v3136
      %v3170 = vpack.c.b16 %v3139, %v3138
      %v3171 = vpack.c.b16 %v3141, %v3140
      %v3172 = vpack.c.b16 %v3143, %v3142
      %v3173 = vpack.c.b16 %v3145, %v3144
      %v3174 = vpack.c.b16 %v3147, %v3146
      %v3175 = vpack.c.b16 %v3149, %v3148
      %v3176 = vpack.c.b16 %v3151, %v3150
      %v3177 = vpack.c.b16 %v3153, %v3152
      %v3178 = vpack.c.b16 %v3155, %v3154
      %v3179 = vpack.c.b16 %v3157, %v3156
      %v3180 = vpack.c.b16 %v3159, %v3158
      %v3181 = vpack.c.b16 %v3161, %v3160
      %v3182 = vpack.c.b16 %v3163, %v3162
      %v3183 = vpack.c.b16 %v3165, %v3164
      %v3203 = vsel %vm2812, %v2766, 0
      %v3206 = vsel %vm2812, %v2769, 0
      %v3209 = vsel %vm2812, %v2772, 0
      %v3212 = vsel %vm2812, %v2775, 0
      %v3215 = vsel %vm2812, %v2778, 0
      %v3218 = vsel %vm2812, %v2781, 0
      %v3221 = vsel %vm2812, %v2784, 0
      %v3224 = vsel %vm2812, %v2787, 0
      %v3227 = vsel %vm2812, %v2790, 0
      %v3230 = vsel %vm2812, %v2793, 0
      %v3233 = vsel %vm2812, %v2796, 0
      %v3236 = vsel %vm2812, %v2799, 0
      %v3239 = vsel %vm2812, %v2802, 0
      %v3242 = vsel %vm2812, %v2805, 0
      %v3245 = vsel %vm2812, %v2808, 0
      %v3248 = vsel %vm2812, %v2811, 0
      %3250 = vmatpush.bf16.msra.mxu0 %v3173
      %3251 = vmatpush.bf16.msra.mxu0 %v3172
      %3252 = vmatpush.bf16.msra.mxu0 %v3171
      %3253 = vmatpush.bf16.msra.mxu0 %v3170
      %3254 = vmatpush.bf16.msra.mxu0 %v3169
      %3255 = vmatpush.bf16.msra.mxu0 %v3168
      %3256 = vmatpush.bf16.msra.mxu0 %v3167
      %3257 = vmatpush.bf16.msra.mxu0 %v3166
      %3258 = vmatmul.bf16.gmra.mxu0 %v2879
      %v3259 = vpop.f32.mrf.mxu0
      %v3260 = vadd.f32 %v3092, %v3259
      %v3261 = vpop.f32.mrf.mxu0
      %v3262 = vadd.f32 %v3092, %v3261
      %3263 = vmatmul.bf16.gmra.mxu0 %v2882
      %v3264 = vpop.f32.mrf.mxu0
      %v3265 = vadd.f32 %v3092, %v3264
      %v3266 = vpop.f32.mrf.mxu0
      %v3267 = vadd.f32 %v3092, %v3266
      %3268 = vmatmul.bf16.gmra.mxu0 %v2885
      %v3269 = vpop.f32.mrf.mxu0
      %v3270 = vadd.f32 %v3092, %v3269
      %v3271 = vpop.f32.mrf.mxu0
      %v3272 = vadd.f32 %v3092, %v3271
      %3273 = vmatmul.bf16.gmra.mxu0 %v2888
      %v3274 = vpop.f32.mrf.mxu0
      %v3275 = vadd.f32 %v3092, %v3274
      %v3276 = vpop.f32.mrf.mxu0
      %v3277 = vadd.f32 %v3092, %v3276
      %3278 = vmatmul.bf16.gmra.mxu0 %v2891
      %v3279 = vpop.f32.mrf.mxu0
      %v3280 = vadd.f32 %v3092, %v3279
      %v3281 = vpop.f32.mrf.mxu0
      %v3282 = vadd.f32 %v3092, %v3281
      %3283 = vmatmul.bf16.gmra.mxu0 %v2894
      %v3284 = vpop.f32.mrf.mxu0
      %v3285 = vadd.f32 %v3092, %v3284
      %v3286 = vpop.f32.mrf.mxu0
      %v3287 = vadd.f32 %v3092, %v3286
      %3288 = vmatmul.bf16.gmra.mxu0 %v2897
      %v3289 = vpop.f32.mrf.mxu0
      %v3290 = vadd.f32 %v3092, %v3289
      %v3291 = vpop.f32.mrf.mxu0
      %v3292 = vadd.f32 %v3092, %v3291
      %3293 = vmatmul.bf16.gmra.mxu0 %v2900
      %v3294 = vpop.f32.mrf.mxu0
      %v3295 = vadd.f32 %v3092, %v3294
      %v3296 = vpop.f32.mrf.mxu0
      %v3297 = vadd.f32 %v3092, %v3296
      %3298 = vmatmul.bf16.gmra.mxu0 %v2903
      %v3299 = vpop.f32.mrf.mxu0
      %v3300 = vadd.f32 %v3092, %v3299
      %v3301 = vpop.f32.mrf.mxu0
      %v3302 = vadd.f32 %v3092, %v3301
      %3303 = vmatmul.bf16.gmra.mxu0 %v2906
      %v3304 = vpop.f32.mrf.mxu0
      %v3305 = vadd.f32 %v3092, %v3304
      %v3306 = vpop.f32.mrf.mxu0
      %v3307 = vadd.f32 %v3092, %v3306
      %3308 = vmatmul.bf16.gmra.mxu0 %v2909
      %v3309 = vpop.f32.mrf.mxu0
      %v3310 = vadd.f32 %v3092, %v3309
      %v3311 = vpop.f32.mrf.mxu0
      %v3312 = vadd.f32 %v3092, %v3311
      %3313 = vmatmul.bf16.gmra.mxu0 %v2912
      %v3314 = vpop.f32.mrf.mxu0
      %v3315 = vadd.f32 %v3092, %v3314
      %v3316 = vpop.f32.mrf.mxu0
      %v3317 = vadd.f32 %v3092, %v3316
      %3318 = vmatmul.bf16.gmra.mxu0 %v2915
      %v3319 = vpop.f32.mrf.mxu0
      %v3320 = vadd.f32 %v3092, %v3319
      %v3321 = vpop.f32.mrf.mxu0
      %v3322 = vadd.f32 %v3092, %v3321
      %3323 = vmatmul.bf16.gmra.mxu0 %v2918
      %v3324 = vpop.f32.mrf.mxu0
      %v3325 = vadd.f32 %v3092, %v3324
      %v3326 = vpop.f32.mrf.mxu0
      %v3327 = vadd.f32 %v3092, %v3326
      %3328 = vmatmul.bf16.gmra.mxu0 %v2921
      %v3329 = vpop.f32.mrf.mxu0
      %v3330 = vadd.f32 %v3092, %v3329
      %v3331 = vpop.f32.mrf.mxu0
      %v3332 = vadd.f32 %v3092, %v3331
      %3333 = vmatmul.bf16.gmra.mxu0 %v2924
      %v3334 = vpop.f32.mrf.mxu0
      %v3335 = vadd.f32 %v3092, %v3334
      %v3336 = vpop.f32.mrf.mxu0
      %v3337 = vadd.f32 %v3092, %v3336
      %3338 = vdwg.mxu0
      %3339 = vmatpush.bf16.msra.mxu0 %v3181
      %3340 = vmatpush.bf16.msra.mxu0 %v3180
      %3341 = vmatpush.bf16.msra.mxu0 %v3179
      %3342 = vmatpush.bf16.msra.mxu0 %v3178
      %3343 = vmatpush.bf16.msra.mxu0 %v3177
      %3344 = vmatpush.bf16.msra.mxu0 %v3176
      %3345 = vmatpush.bf16.msra.mxu0 %v3175
      %3346 = vmatpush.bf16.msra.mxu0 %v3174
      %3347 = vmatmul.bf16.gmra.mxu0 %v3007
      %v3348 = vpop.f32.mrf.mxu0
      %v3349 = vadd.f32 %v3260, %v3348
      %v3350 = vpop.f32.mrf.mxu0
      %v3351 = vadd.f32 %v3262, %v3350
      %3352 = vmatmul.bf16.gmra.mxu0 %v3010
      %v3353 = vpop.f32.mrf.mxu0
      %v3354 = vadd.f32 %v3265, %v3353
      %v3355 = vpop.f32.mrf.mxu0
      %v3356 = vadd.f32 %v3267, %v3355
      %3357 = vmatmul.bf16.gmra.mxu0 %v3013
      %v3358 = vpop.f32.mrf.mxu0
      %v3359 = vadd.f32 %v3270, %v3358
      %v3360 = vpop.f32.mrf.mxu0
      %v3361 = vadd.f32 %v3272, %v3360
      %3362 = vmatmul.bf16.gmra.mxu0 %v3016
      %v3363 = vpop.f32.mrf.mxu0
      %v3364 = vadd.f32 %v3275, %v3363
      %v3365 = vpop.f32.mrf.mxu0
      %v3366 = vadd.f32 %v3277, %v3365
      %3367 = vmatmul.bf16.gmra.mxu0 %v3019
      %v3368 = vpop.f32.mrf.mxu0
      %v3369 = vadd.f32 %v3280, %v3368
      %v3370 = vpop.f32.mrf.mxu0
      %v3371 = vadd.f32 %v3282, %v3370
      %3372 = vmatmul.bf16.gmra.mxu0 %v3022
      %v3373 = vpop.f32.mrf.mxu0
      %v3374 = vadd.f32 %v3285, %v3373
      %v3375 = vpop.f32.mrf.mxu0
      %v3376 = vadd.f32 %v3287, %v3375
      %3377 = vmatmul.bf16.gmra.mxu0 %v3025
      %v3378 = vpop.f32.mrf.mxu0
      %v3379 = vadd.f32 %v3290, %v3378
      %v3380 = vpop.f32.mrf.mxu0
      %v3381 = vadd.f32 %v3292, %v3380
      %3382 = vmatmul.bf16.gmra.mxu0 %v3028
      %v3383 = vpop.f32.mrf.mxu0
      %v3384 = vadd.f32 %v3295, %v3383
      %v3385 = vpop.f32.mrf.mxu0
      %v3386 = vadd.f32 %v3297, %v3385
      %3387 = vmatmul.bf16.gmra.mxu0 %v3031
      %v3388 = vpop.f32.mrf.mxu0
      %v3389 = vadd.f32 %v3300, %v3388
      %v3390 = vpop.f32.mrf.mxu0
      %v3391 = vadd.f32 %v3302, %v3390
      %3392 = vmatmul.bf16.gmra.mxu0 %v3034
      %v3393 = vpop.f32.mrf.mxu0
      %v3394 = vadd.f32 %v3305, %v3393
      %v3395 = vpop.f32.mrf.mxu0
      %v3396 = vadd.f32 %v3307, %v3395
      %3397 = vmatmul.bf16.gmra.mxu0 %v3037
      %v3398 = vpop.f32.mrf.mxu0
      %v3399 = vadd.f32 %v3310, %v3398
      %v3400 = vpop.f32.mrf.mxu0
      %v3401 = vadd.f32 %v3312, %v3400
      %3402 = vmatmul.bf16.gmra.mxu0 %v3040
      %v3403 = vpop.f32.mrf.mxu0
      %v3404 = vadd.f32 %v3315, %v3403
      %v3405 = vpop.f32.mrf.mxu0
      %v3406 = vadd.f32 %v3317, %v3405
      %3407 = vmatmul.bf16.gmra.mxu0 %v3043
      %v3408 = vpop.f32.mrf.mxu0
      %v3409 = vadd.f32 %v3320, %v3408
      %v3410 = vpop.f32.mrf.mxu0
      %v3411 = vadd.f32 %v3322, %v3410
      %3412 = vmatmul.bf16.gmra.mxu0 %v3046
      %v3413 = vpop.f32.mrf.mxu0
      %v3414 = vadd.f32 %v3325, %v3413
      %v3415 = vpop.f32.mrf.mxu0
      %v3416 = vadd.f32 %v3327, %v3415
      %3417 = vmatmul.bf16.gmra.mxu0 %v3049
      %v3418 = vpop.f32.mrf.mxu0
      %v3419 = vadd.f32 %v3330, %v3418
      %v3420 = vpop.f32.mrf.mxu0
      %v3421 = vadd.f32 %v3332, %v3420
      %3422 = vmatmul.bf16.gmra.mxu0 %v3052
      %v3423 = vpop.f32.mrf.mxu0
      %v3424 = vadd.f32 %v3335, %v3423
      %v3425 = vpop.f32.mrf.mxu0
      %v3426 = vadd.f32 %v3337, %v3425
      %3427 = vdwg.mxu0
      %3428 = vmatpush.bf16.msra.mxu0 0
      %3429 = vmatpush.bf16.msra.mxu0 0
      %3430 = vmatpush.bf16.msra.mxu0 0
      %3431 = vmatpush.bf16.msra.mxu0 0
      %3432 = vmatpush.bf16.msra.mxu0 0
      %3433 = vmatpush.bf16.msra.mxu0 0
      %3434 = vmatpush.bf16.msra.mxu0 %v3183
      %3435 = vmatpush.bf16.msra.mxu0 %v3182
      %3436 = vmatmul.bf16.gmra.mxu0 %v3203
      %v3437 = vpop.f32.mrf.mxu0
      %v3438 = vadd.f32 %v3349, %v3437
      %v3439 = vpop.f32.mrf.mxu0
      %v3440 = vadd.f32 %v3351, %v3439
      %3441 = vmatmul.bf16.gmra.mxu0 %v3206
      %v3442 = vpop.f32.mrf.mxu0
      %v3443 = vadd.f32 %v3354, %v3442
      %v3444 = vpop.f32.mrf.mxu0
      %v3445 = vadd.f32 %v3356, %v3444
      %3446 = vmatmul.bf16.gmra.mxu0 %v3209
      %v3447 = vpop.f32.mrf.mxu0
      %v3448 = vadd.f32 %v3359, %v3447
      %v3449 = vpop.f32.mrf.mxu0
      %v3450 = vadd.f32 %v3361, %v3449
      %3451 = vmatmul.bf16.gmra.mxu0 %v3212
      %v3452 = vpop.f32.mrf.mxu0
      %v3453 = vadd.f32 %v3364, %v3452
      %v3454 = vpop.f32.mrf.mxu0
      %v3455 = vadd.f32 %v3366, %v3454
      %3456 = vmatmul.bf16.gmra.mxu0 %v3215
      %v3457 = vpop.f32.mrf.mxu0
      %v3458 = vadd.f32 %v3369, %v3457
      %v3459 = vpop.f32.mrf.mxu0
      %v3460 = vadd.f32 %v3371, %v3459
      %3461 = vmatmul.bf16.gmra.mxu0 %v3218
      %v3462 = vpop.f32.mrf.mxu0
      %v3463 = vadd.f32 %v3374, %v3462
      %v3464 = vpop.f32.mrf.mxu0
      %v3465 = vadd.f32 %v3376, %v3464
      %3466 = vmatmul.bf16.gmra.mxu0 %v3221
      %v3467 = vpop.f32.mrf.mxu0
      %v3468 = vadd.f32 %v3379, %v3467
      %v3469 = vpop.f32.mrf.mxu0
      %v3470 = vadd.f32 %v3381, %v3469
      %3471 = vmatmul.bf16.gmra.mxu0 %v3224
      %v3472 = vpop.f32.mrf.mxu0
      %v3473 = vadd.f32 %v3384, %v3472
      %v3474 = vpop.f32.mrf.mxu0
      %v3475 = vadd.f32 %v3386, %v3474
      %3476 = vmatmul.bf16.gmra.mxu0 %v3227
      %v3477 = vpop.f32.mrf.mxu0
      %v3478 = vadd.f32 %v3389, %v3477
      %v3479 = vpop.f32.mrf.mxu0
      %v3480 = vadd.f32 %v3391, %v3479
      %3481 = vmatmul.bf16.gmra.mxu0 %v3230
      %v3482 = vpop.f32.mrf.mxu0
      %v3483 = vadd.f32 %v3394, %v3482
      %v3484 = vpop.f32.mrf.mxu0
      %v3485 = vadd.f32 %v3396, %v3484
      %3486 = vmatmul.bf16.gmra.mxu0 %v3233
      %v3487 = vpop.f32.mrf.mxu0
      %v3488 = vadd.f32 %v3399, %v3487
      %v3489 = vpop.f32.mrf.mxu0
      %v3490 = vadd.f32 %v3401, %v3489
      %3491 = vmatmul.bf16.gmra.mxu0 %v3236
      %v3492 = vpop.f32.mrf.mxu0
      %v3493 = vadd.f32 %v3404, %v3492
      %v3494 = vpop.f32.mrf.mxu0
      %v3495 = vadd.f32 %v3406, %v3494
      %3496 = vmatmul.bf16.gmra.mxu0 %v3239
      %v3497 = vpop.f32.mrf.mxu0
      %v3498 = vadd.f32 %v3409, %v3497
      %v3499 = vpop.f32.mrf.mxu0
      %v3500 = vadd.f32 %v3411, %v3499
      %3501 = vmatmul.bf16.gmra.mxu0 %v3242
      %v3502 = vpop.f32.mrf.mxu0
      %v3503 = vadd.f32 %v3414, %v3502
      %v3504 = vpop.f32.mrf.mxu0
      %v3505 = vadd.f32 %v3416, %v3504
      %3506 = vmatmul.bf16.gmra.mxu0 %v3245
      %v3507 = vpop.f32.mrf.mxu0
      %v3508 = vadd.f32 %v3419, %v3507
      %v3509 = vpop.f32.mrf.mxu0
      %v3510 = vadd.f32 %v3421, %v3509
      %3511 = vmatmul.bf16.gmra.mxu0 %v3248
      %v3512 = vpop.f32.mrf.mxu0
      %v3513 = vadd.f32 %v3424, %v3512
      %v3514 = vpop.f32.mrf.mxu0
      %v3515 = vadd.f32 %v3426, %v3514
      %3516 = vdwg.mxu0
      %v3517 = vmax.f32 %v3438, 0.0
      %v3518 = vmax.f32 %v3440, 0.0
      %v3519 = vmax.f32 %v3443, 0.0
      %v3520 = vmax.f32 %v3445, 0.0
      %v3521 = vmax.f32 %v3448, 0.0
      %v3522 = vmax.f32 %v3450, 0.0
      %v3523 = vmax.f32 %v3453, 0.0
      %v3524 = vmax.f32 %v3455, 0.0
      %v3525 = vmax.f32 %v3458, 0.0
      %v3526 = vmax.f32 %v3460, 0.0
      %v3527 = vmax.f32 %v3463, 0.0
      %v3528 = vmax.f32 %v3465, 0.0
      %v3529 = vmax.f32 %v3468, 0.0
      %v3530 = vmax.f32 %v3470, 0.0
      %v3531 = vmax.f32 %v3473, 0.0
      %v3532 = vmax.f32 %v3475, 0.0
      %v3533 = vmax.f32 %v3478, 0.0
      %v3534 = vmax.f32 %v3480, 0.0
      %v3535 = vmax.f32 %v3483, 0.0
      %v3536 = vmax.f32 %v3485, 0.0
      %v3537 = vmax.f32 %v3488, 0.0
      %v3538 = vmax.f32 %v3490, 0.0
      %v3539 = vmax.f32 %v3493, 0.0
      %v3540 = vmax.f32 %v3495, 0.0
      %v3541 = vmax.f32 %v3498, 0.0
      %v3542 = vmax.f32 %v3500, 0.0
      %v3543 = vmax.f32 %v3503, 0.0
      %v3544 = vmax.f32 %v3505, 0.0
      %v3545 = vmax.f32 %v3508, 0.0
      %v3546 = vmax.f32 %v3510, 0.0
      %v3547 = vmax.f32 %v3513, 0.0
      %v3548 = vmax.f32 %v3515, 0.0
      %v3549 = vpack.c.bf16 %v3517, %v3517
      %v3550 = vpack.c.bf16 %v3518, %v3518
      %v3551 = vpack.c.bf16 %v3519, %v3519
      %v3552 = vpack.c.bf16 %v3520, %v3520
      %v3553 = vpack.c.bf16 %v3521, %v3521
      %v3554 = vpack.c.bf16 %v3522, %v3522
      %v3555 = vpack.c.bf16 %v3523, %v3523
      %v3556 = vpack.c.bf16 %v3524, %v3524
      %v3557 = vpack.c.bf16 %v3525, %v3525
      %v3558 = vpack.c.bf16 %v3526, %v3526
      %v3559 = vpack.c.bf16 %v3527, %v3527
      %v3560 = vpack.c.bf16 %v3528, %v3528
      %v3561 = vpack.c.bf16 %v3529, %v3529
      %v3562 = vpack.c.bf16 %v3530, %v3530
      %v3563 = vpack.c.bf16 %v3531, %v3531
      %v3564 = vpack.c.bf16 %v3532, %v3532
      %v3565 = vpack.c.bf16 %v3533, %v3533
      %v3566 = vpack.c.bf16 %v3534, %v3534
      %v3567 = vpack.c.bf16 %v3535, %v3535
      %v3568 = vpack.c.bf16 %v3536, %v3536
      %v3569 = vpack.c.bf16 %v3537, %v3537
      %v3570 = vpack.c.bf16 %v3538, %v3538
      %v3571 = vpack.c.bf16 %v3539, %v3539
      %v3572 = vpack.c.bf16 %v3540, %v3540
      %v3573 = vpack.c.bf16 %v3541, %v3541
      %v3574 = vpack.c.bf16 %v3542, %v3542
      %v3575 = vpack.c.bf16 %v3543, %v3543
      %v3576 = vpack.c.bf16 %v3544, %v3544
      %v3577 = vpack.c.bf16 %v3545, %v3545
      %v3578 = vpack.c.bf16 %v3546, %v3546
      %v3579 = vpack.c.bf16 %v3547, %v3547
      %v3580 = vpack.c.bf16 %v3548, %v3548
      %v3613 = vunpack.c.l.b16 %v3549
      %v3614 = vunpack.c.l.b16 %v3550
      %v3615 = vunpack.c.l.b16 %v3551
      %v3616 = vunpack.c.l.b16 %v3552
      %v3617 = vunpack.c.l.b16 %v3553
      %v3618 = vunpack.c.l.b16 %v3554
      %v3619 = vunpack.c.l.b16 %v3555
      %v3620 = vunpack.c.l.b16 %v3556
      %v3621 = vunpack.c.l.b16 %v3557
      %v3622 = vunpack.c.l.b16 %v3558
      %v3623 = vunpack.c.l.b16 %v3559
      %v3624 = vunpack.c.l.b16 %v3560
      %v3625 = vunpack.c.l.b16 %v3561
      %v3626 = vunpack.c.l.b16 %v3562
      %v3627 = vunpack.c.l.b16 %v3563
      %v3628 = vunpack.c.l.b16 %v3564
      %v3629 = vunpack.c.l.b16 %v3565
      %v3630 = vunpack.c.l.b16 %v3566
      %v3631 = vunpack.c.l.b16 %v3567
      %v3632 = vunpack.c.l.b16 %v3568
      %v3633 = vunpack.c.l.b16 %v3569
      %v3634 = vunpack.c.l.b16 %v3570
      %v3635 = vunpack.c.l.b16 %v3571
      %v3636 = vunpack.c.l.b16 %v3572
      %v3637 = vunpack.c.l.b16 %v3573
      %v3638 = vunpack.c.l.b16 %v3574
      %v3639 = vunpack.c.l.b16 %v3575
      %v3640 = vunpack.c.l.b16 %v3576
      %v3641 = vunpack.c.l.b16 %v3577
      %v3642 = vunpack.c.l.b16 %v3578
      %v3643 = vunpack.c.l.b16 %v3579
      %v3644 = vunpack.c.l.b16 %v3580
      %v3645 = vpack.c.b16 %v3614, %v3613
      %v3646 = vpack.c.b16 %v3616, %v3615
      %v3647 = vpack.c.b16 %v3618, %v3617
      %v3648 = vpack.c.b16 %v3620, %v3619
      %v3649 = vpack.c.b16 %v3622, %v3621
      %v3650 = vpack.c.b16 %v3624, %v3623
      %v3651 = vpack.c.b16 %v3626, %v3625
      %v3652 = vpack.c.b16 %v3628, %v3627
      %v3653 = vpack.c.b16 %v3630, %v3629
      %v3654 = vpack.c.b16 %v3632, %v3631
      %v3655 = vpack.c.b16 %v3634, %v3633
      %v3656 = vpack.c.b16 %v3636, %v3635
      %v3657 = vpack.c.b16 %v3638, %v3637
      %v3658 = vpack.c.b16 %v3640, %v3639
      %v3659 = vpack.c.b16 %v3642, %v3641
      %v3660 = vpack.c.b16 %v3644, %v3643
      %3661 = vrot.lane.b32.xlu0 %v388, 32
      %v3662 = vpop.permute.xlu0 %3661
      %3663 = vrot.lane.b32.xlu0 %v389, 32
      %v3664 = vpop.permute.xlu0 %3663
      %3665 = vrot.lane.b32.xlu0 %v390, 32
      %v3666 = vpop.permute.xlu0 %3665
      %3667 = vrot.lane.b32.xlu0 %v391, 32
      %v3668 = vpop.permute.xlu0 %3667
      %3669 = vrot.lane.b32.xlu0 %v392, 32
      %v3670 = vpop.permute.xlu0 %3669
      %3671 = vrot.lane.b32.xlu0 %v393, 32
      %v3672 = vpop.permute.xlu0 %3671
      %3673 = vrot.lane.b32.xlu0 %v394, 32
      %v3674 = vpop.permute.xlu0 %3673
      %3675 = vrot.lane.b32.xlu0 %v395, 32
      %v3676 = vpop.permute.xlu0 %3675
      %3677 = vrot.lane.b32.xlu0 %v396, 32
      %v3678 = vpop.permute.xlu0 %3677
      %3679 = vrot.lane.b32.xlu0 %v397, 32
      %v3680 = vpop.permute.xlu0 %3679
      %3681 = vrot.lane.b32.xlu0 %v398, 32
      %v3682 = vpop.permute.xlu0 %3681
      %3683 = vrot.lane.b32.xlu0 %v399, 32
      %v3684 = vpop.permute.xlu0 %3683
      %3685 = vrot.lane.b32.xlu0 %v400, 32
      %v3686 = vpop.permute.xlu0 %3685
      %3687 = vrot.lane.b32.xlu0 %v401, 32
      %v3688 = vpop.permute.xlu0 %3687
      %3689 = vrot.lane.b32.xlu0 %v402, 32
      %v3690 = vpop.permute.xlu0 %3689
      %3691 = vrot.lane.b32.xlu0 %v403, 32
      %v3692 = vpop.permute.xlu0 %3691
      %v3695 = vsel %vm2812, %v3645, %v3662
      %v3698 = vsel %vm2812, %v3646, %v3664
      %v3701 = vsel %vm2812, %v3647, %v3666
      %v3704 = vsel %vm2812, %v3648, %v3668
      %v3707 = vsel %vm2812, %v3649, %v3670
      %v3710 = vsel %vm2812, %v3650, %v3672
      %v3713 = vsel %vm2812, %v3651, %v3674
      %v3716 = vsel %vm2812, %v3652, %v3676
      %v3719 = vsel %vm2812, %v3653, %v3678
      %v3722 = vsel %vm2812, %v3654, %v3680
      %v3725 = vsel %vm2812, %v3655, %v3682
      %v3728 = vsel %vm2812, %v3656, %v3684
      %v3731 = vsel %vm2812, %v3657, %v3686
      %v3734 = vsel %vm2812, %v3658, %v3688
      %v3737 = vsel %vm2812, %v3659, %v3690
      %v3740 = vsel %vm2812, %v3660, %v3692
      %v3741 = vld [vmem:[%s5] sm:$0xf]
      %v3742 = vld [vmem:[%s5 + $0x4] sm:$0xf]
      %v3743 = vld [vmem:[%s5 + $0x8] sm:$0xf]
      %v3744 = vld [vmem:[%s5 + $0xc] sm:$0xf]
      %v3745 = vld [vmem:[%s5 + $0x10] sm:$0xf]
      %v3746 = vld [vmem:[%s5 + $0x14] sm:$0xf]
      %v3747 = vld [vmem:[%s5 + $0x18] sm:$0xf]
      %v3748 = vld [vmem:[%s5 + $0x1c] sm:$0xf]
      %v3749 = vld [vmem:[%s5 + $0x20] sm:$0xf]
      %v3750 = vld [vmem:[%s5 + $0x24] sm:$0xf]
      %v3751 = vld [vmem:[%s5 + $0x28] sm:$0xf]
      %v3752 = vld [vmem:[%s5 + $0x2c] sm:$0xf]
      %v3753 = vld [vmem:[%s6] sm:$0x1]
      %v3755 = vperm.slane %v3753, 0
      %v3769 = vunpack.c.l.b16 %v3741
      %v3770 = vunpack.c.l.b16 %v3742
      %v3771 = vunpack.c.l.b16 %v3743
      %v3772 = vunpack.c.l.b16 %v3744
      %v3773 = vunpack.c.l.b16 %v3745
      %v3774 = vunpack.c.l.b16 %v3746
      %v3775 = vunpack.c.l.b16 %v3747
      %v3776 = vunpack.c.l.b16 %v3748
      %v3777 = vunpack.c.l.b16 %v3749
      %v3778 = vunpack.c.l.b16 %v3750
      %v3779 = vunpack.c.l.b16 %v3751
      %v3780 = vunpack.c.l.b16 %v3752
      %v3781 = vpack.c.b16 %v3770, %v3769
      %v3782 = vpack.c.b16 %v3772, %v3771
      %v3783 = vpack.c.b16 %v3774, %v3773
      %v3784 = vpack.c.b16 %v3776, %v3775
      %v3785 = vpack.c.b16 %v3778, %v3777
      %v3786 = vpack.c.b16 %v3780, %v3779
      %v3793 = vsel %vm2877, %v3695, 0
      %v3795 = vsel %vm2877, %v3698, 0
      %v3797 = vsel %vm2877, %v3701, 0
      %v3799 = vsel %vm2877, %v3704, 0
      %v3801 = vsel %vm2877, %v3707, 0
      %v3803 = vsel %vm2877, %v3710, 0
      %v3805 = vsel %vm2877, %v3713, 0
      %v3807 = vsel %vm2877, %v3716, 0
      %v3809 = vsel %vm2877, %v3719, 0
      %v3811 = vsel %vm2877, %v3722, 0
      %v3813 = vsel %vm2877, %v3725, 0
      %v3815 = vsel %vm2877, %v3728, 0
      %v3817 = vsel %vm2877, %v3731, 0
      %v3819 = vsel %vm2877, %v3734, 0
      %v3821 = vsel %vm2877, %v3737, 0
      %v3823 = vsel %vm2877, %v3740, 0
      %3825 = vmatpush.bf16.msra.mxu0 0
      %3826 = vmatpush.bf16.msra.mxu0 0
      %3827 = vmatpush.bf16.msra.mxu0 %v3786
      %3828 = vmatpush.bf16.msra.mxu0 %v3785
      %3829 = vmatpush.bf16.msra.mxu0 %v3784
      %3830 = vmatpush.bf16.msra.mxu0 %v3783
      %3831 = vmatpush.bf16.msra.mxu0 %v3782
      %3832 = vmatpush.bf16.msra.mxu0 %v3781
      %3833 = vmatmul.bf16.gmra.mxu0 %v3793
      %v3834 = vpop.f32.mrf.mxu0
      %v3835 = vadd.f32 %v3755, %v3834
      %v3836 = vpop.f32.mrf.mxu0
      %v3837 = vadd.f32 %v3755, %v3836
      %3838 = vmatmul.bf16.gmra.mxu0 %v3795
      %v3839 = vpop.f32.mrf.mxu0
      %v3840 = vadd.f32 %v3755, %v3839
      %v3841 = vpop.f32.mrf.mxu0
      %v3842 = vadd.f32 %v3755, %v3841
      %3843 = vmatmul.bf16.gmra.mxu0 %v3797
      %v3844 = vpop.f32.mrf.mxu0
      %v3845 = vadd.f32 %v3755, %v3844
      %v3846 = vpop.f32.mrf.mxu0
      %v3847 = vadd.f32 %v3755, %v3846
      %3848 = vmatmul.bf16.gmra.mxu0 %v3799
      %v3849 = vpop.f32.mrf.mxu0
      %v3850 = vadd.f32 %v3755, %v3849
      %v3851 = vpop.f32.mrf.mxu0
      %v3852 = vadd.f32 %v3755, %v3851
      %3853 = vmatmul.bf16.gmra.mxu0 %v3801
      %v3854 = vpop.f32.mrf.mxu0
      %v3855 = vadd.f32 %v3755, %v3854
      %v3856 = vpop.f32.mrf.mxu0
      %v3857 = vadd.f32 %v3755, %v3856
      %3858 = vmatmul.bf16.gmra.mxu0 %v3803
      %v3859 = vpop.f32.mrf.mxu0
      %v3860 = vadd.f32 %v3755, %v3859
      %v3861 = vpop.f32.mrf.mxu0
      %v3862 = vadd.f32 %v3755, %v3861
      %3863 = vmatmul.bf16.gmra.mxu0 %v3805
      %v3864 = vpop.f32.mrf.mxu0
      %v3865 = vadd.f32 %v3755, %v3864
      %v3866 = vpop.f32.mrf.mxu0
      %v3867 = vadd.f32 %v3755, %v3866
      %3868 = vmatmul.bf16.gmra.mxu0 %v3807
      %v3869 = vpop.f32.mrf.mxu0
      %v3870 = vadd.f32 %v3755, %v3869
      %v3871 = vpop.f32.mrf.mxu0
      %v3872 = vadd.f32 %v3755, %v3871
      %3873 = vmatmul.bf16.gmra.mxu0 %v3809
      %v3874 = vpop.f32.mrf.mxu0
      %v3875 = vadd.f32 %v3755, %v3874
      %v3876 = vpop.f32.mrf.mxu0
      %v3877 = vadd.f32 %v3755, %v3876
      %3878 = vmatmul.bf16.gmra.mxu0 %v3811
      %v3879 = vpop.f32.mrf.mxu0
      %v3880 = vadd.f32 %v3755, %v3879
      %v3881 = vpop.f32.mrf.mxu0
      %v3882 = vadd.f32 %v3755, %v3881
      %3883 = vmatmul.bf16.gmra.mxu0 %v3813
      %v3884 = vpop.f32.mrf.mxu0
      %v3885 = vadd.f32 %v3755, %v3884
      %v3886 = vpop.f32.mrf.mxu0
      %v3887 = vadd.f32 %v3755, %v3886
      %3888 = vmatmul.bf16.gmra.mxu0 %v3815
      %v3889 = vpop.f32.mrf.mxu0
      %v3890 = vadd.f32 %v3755, %v3889
      %v3891 = vpop.f32.mrf.mxu0
      %v3892 = vadd.f32 %v3755, %v3891
      %3893 = vmatmul.bf16.gmra.mxu0 %v3817
      %v3894 = vpop.f32.mrf.mxu0
      %v3895 = vadd.f32 %v3755, %v3894
      %v3896 = vpop.f32.mrf.mxu0
      %v3897 = vadd.f32 %v3755, %v3896
      %3898 = vmatmul.bf16.gmra.mxu0 %v3819
      %v3899 = vpop.f32.mrf.mxu0
      %v3900 = vadd.f32 %v3755, %v3899
      %v3901 = vpop.f32.mrf.mxu0
      %v3902 = vadd.f32 %v3755, %v3901
      %3903 = vmatmul.bf16.gmra.mxu0 %v3821
      %v3904 = vpop.f32.mrf.mxu0
      %v3905 = vadd.f32 %v3755, %v3904
      %v3906 = vpop.f32.mrf.mxu0
      %v3907 = vadd.f32 %v3755, %v3906
      %3908 = vmatmul.bf16.gmra.mxu0 %v3823
      %v3909 = vpop.f32.mrf.mxu0
      %v3910 = vadd.f32 %v3755, %v3909
      %v3911 = vpop.f32.mrf.mxu0
      %v3912 = vadd.f32 %v3755, %v3911
      %3913 = vdwg.mxu0
      %v3914 = vmax.f32 %v3835, 0.0
      %v3915 = vmax.f32 %v3837, 0.0
      %v3916 = vmax.f32 %v3840, 0.0
      %v3917 = vmax.f32 %v3842, 0.0
      %v3918 = vmax.f32 %v3845, 0.0
      %v3919 = vmax.f32 %v3847, 0.0
      %v3920 = vmax.f32 %v3850, 0.0
      %v3921 = vmax.f32 %v3852, 0.0
      %v3922 = vmax.f32 %v3855, 0.0
      %v3923 = vmax.f32 %v3857, 0.0
      %v3924 = vmax.f32 %v3860, 0.0
      %v3925 = vmax.f32 %v3862, 0.0
      %v3926 = vmax.f32 %v3865, 0.0
      %v3927 = vmax.f32 %v3867, 0.0
      %v3928 = vmax.f32 %v3870, 0.0
      %v3929 = vmax.f32 %v3872, 0.0
      %v3930 = vmax.f32 %v3875, 0.0
      %v3931 = vmax.f32 %v3877, 0.0
      %v3932 = vmax.f32 %v3880, 0.0
      %v3933 = vmax.f32 %v3882, 0.0
      %v3934 = vmax.f32 %v3885, 0.0
      %v3935 = vmax.f32 %v3887, 0.0
      %v3936 = vmax.f32 %v3890, 0.0
      %v3937 = vmax.f32 %v3892, 0.0
      %v3938 = vmax.f32 %v3895, 0.0
      %v3939 = vmax.f32 %v3897, 0.0
      %v3940 = vmax.f32 %v3900, 0.0
      %v3941 = vmax.f32 %v3902, 0.0
      %v3942 = vmax.f32 %v3905, 0.0
      %v3943 = vmax.f32 %v3907, 0.0
      %v3944 = vmax.f32 %v3910, 0.0
      %v3945 = vmax.f32 %v3912, 0.0
      %v3946 = vpack.c.bf16 %v3914, %v3914
      %v3947 = vpack.c.bf16 %v3915, %v3915
      %v3948 = vpack.c.bf16 %v3916, %v3916
      %v3949 = vpack.c.bf16 %v3917, %v3917
      %v3950 = vpack.c.bf16 %v3918, %v3918
      %v3951 = vpack.c.bf16 %v3919, %v3919
      %v3952 = vpack.c.bf16 %v3920, %v3920
      %v3953 = vpack.c.bf16 %v3921, %v3921
      %v3954 = vpack.c.bf16 %v3922, %v3922
      %v3955 = vpack.c.bf16 %v3923, %v3923
      %v3956 = vpack.c.bf16 %v3924, %v3924
      %v3957 = vpack.c.bf16 %v3925, %v3925
      %v3958 = vpack.c.bf16 %v3926, %v3926
      %v3959 = vpack.c.bf16 %v3927, %v3927
      %v3960 = vpack.c.bf16 %v3928, %v3928
      %v3961 = vpack.c.bf16 %v3929, %v3929
      %v3962 = vpack.c.bf16 %v3930, %v3930
      %v3963 = vpack.c.bf16 %v3931, %v3931
      %v3964 = vpack.c.bf16 %v3932, %v3932
      %v3965 = vpack.c.bf16 %v3933, %v3933
      %v3966 = vpack.c.bf16 %v3934, %v3934
      %v3967 = vpack.c.bf16 %v3935, %v3935
      %v3968 = vpack.c.bf16 %v3936, %v3936
      %v3969 = vpack.c.bf16 %v3937, %v3937
      %v3970 = vpack.c.bf16 %v3938, %v3938
      %v3971 = vpack.c.bf16 %v3939, %v3939
      %v3972 = vpack.c.bf16 %v3940, %v3940
      %v3973 = vpack.c.bf16 %v3941, %v3941
      %v3974 = vpack.c.bf16 %v3942, %v3942
      %v3975 = vpack.c.bf16 %v3943, %v3943
      %v3976 = vpack.c.bf16 %v3944, %v3944
      %v3977 = vpack.c.bf16 %v3945, %v3945
      %3978 = vst [vmem:[%s278] sm:$0xf] %v3946
      %3979 = vst [vmem:[%s278 + $0x4] sm:$0xf] %v3947
      %3980 = vst [vmem:[%s278 + $0x8] sm:$0xf] %v3948
      %3981 = vst [vmem:[%s278 + $0xc] sm:$0xf] %v3949
      %3982 = vst [vmem:[%s278 + $0x10] sm:$0xf] %v3950
      %3983 = vst [vmem:[%s278 + $0x14] sm:$0xf] %v3951
      %3984 = vst [vmem:[%s278 + $0x18] sm:$0xf] %v3952
      %3985 = vst [vmem:[%s278 + $0x1c] sm:$0xf] %v3953
      %3986 = vst [vmem:[%s278 + $0x20] sm:$0xf] %v3954
      %3987 = vst [vmem:[%s278 + $0x24] sm:$0xf] %v3955
      %3988 = vst [vmem:[%s278 + $0x28] sm:$0xf] %v3956
      %3989 = vst [vmem:[%s278 + $0x2c] sm:$0xf] %v3957
      %3990 = vst [vmem:[%s278 + $0x30] sm:$0xf] %v3958
      %3991 = vst [vmem:[%s278 + $0x34] sm:$0xf] %v3959
      %3992 = vst [vmem:[%s278 + $0x38] sm:$0xf] %v3960
      %3993 = vst [vmem:[%s278 + $0x3c] sm:$0xf] %v3961
      %3994 = vst [vmem:[%s278 + $0x40] sm:$0xf] %v3962
      %3995 = vst [vmem:[%s278 + $0x44] sm:$0xf] %v3963
      %3996 = vst [vmem:[%s278 + $0x48] sm:$0xf] %v3964
      %3997 = vst [vmem:[%s278 + $0x4c] sm:$0xf] %v3965
      %3998 = vst [vmem:[%s278 + $0x50] sm:$0xf] %v3966
      %3999 = vst [vmem:[%s278 + $0x54] sm:$0xf] %v3967
      %4000 = vst [vmem:[%s278 + $0x58] sm:$0xf] %v3968
      %4001 = vst [vmem:[%s278 + $0x5c] sm:$0xf] %v3969
      %4002 = vst [vmem:[%s278 + $0x60] sm:$0xf] %v3970
      %4003 = vst [vmem:[%s278 + $0x64] sm:$0xf] %v3971
      %4004 = vst [vmem:[%s278 + $0x68] sm:$0xf] %v3972
      %4005 = vst [vmem:[%s278 + $0x6c] sm:$0xf] %v3973
      %4006 = vst [vmem:[%s278 + $0x70] sm:$0xf] %v3974
      %4007 = vst [vmem:[%s278 + $0x74] sm:$0xf] %v3975
      %4008 = vst [vmem:[%s278 + $0x78] sm:$0xf] %v3976
      %4009 = vst [vmem:[%s278 + $0x7c] sm:$0xf] %v3977
      %p4010 = scmp.lt.s32.totalorder %s18, 1
      %s4011 = scalar_select %p4010, %s18, 1
      %s4012 = smul.addr %s4011, 32
      %s4013 = smul.addr %s4012, 4
      %s4014 = scalar_lea.vmem %s7, %s4013
      // Predicated region
      $region49: #{fwd.2} parent=47 // pred_check
        %p4015 = pneg %p188
      $region50: #{fwd.2} parent=47 // pred_check_branch
        %4017 = sbr.rel (%p4015) target = $region52
      $region51: #{fwd.2} parent=47 // pred_region
        _
      $region52: #{fwd.2} parent=47 // pred_fallthru
        _
    $region48: #{fwd.2} parent=5 // pred_fallthru
      _
    %p4018 = scmp.le.s32.totalorder 2, %s13
    // Predicated region
    $region53: #{fwd.2} parent=5 // pred_check
      %p4019 = pneg %p4018
    $region54: #{fwd.2} parent=5 // pred_check_branch
      %4021 = sbr.rel (%p4019) target = $region56
    $region55: #{fwd.2} parent=5 // pred_region
      %s4022 = ssub.s32 %s13, 2
      // Predicated region
      $region57: #{fwd.2} parent=55 // pred_check
        %p4023 = pneg %p194
      $region58: #{fwd.2} parent=55 // pred_check_branch
        %4025 = sbr.rel (%p4023) target = $region60
      $region59: #{fwd.2} parent=55 // pred_region
        %p4026 = scmp.lt.s32.totalorder %s19, 1
        %s4027 = scalar_select %p4026, %s19, 1
        %s4028 = smul.addr %s4027, 32
        %s4029 = smul.addr %s4028, 4
        %s4030 = scalar_lea.vmem %s7, %s4029
      $region60: #{fwd.2} parent=55 // pred_fallthru
        _
    $region56: #{fwd.2} parent=5 // pred_fallthru
      _
  $region6: #{fwd.2} parent=0 // loop_footer
    %s17 = sadd.s32 1, %s13
  $region7: #{fwd.2} parent=0 // loop_footer_branch
    %12 = sbr.rel target = $region3
  $region8: #{fwd.2} parent=0 // loop_exit
    _

// kernel: fwd.3
$region0: #{fwd.3}
  #allocation0 [shape = 'u32[]', space=smem, size = 0x4, offset = 0x4, fixed_abs, tag = 'smem constant byte address 0x4 - core index']
  #allocation1 [shape = 'u32[72,128]{1,0:T(1,128)}', space=vmem, size = 0x9000, scoped, tag = 'internal scratch']
  #allocation2 [shape = 'bf16[1,18,18,32]{3,2,1,0:T(8,128)(2,1)}', space=vmem, size = 0x1b000, scoped, tag = 'scratch operand']
  %s0 = inlined_call_operand.vmem [shape: bf16[2,16,16,128], index: 0, kind: input, shape index: {}]
  %s1 = inlined_call_operand.vmem [shape: bf16[128,32], index: 1, kind: input, shape index: {}]
  %s2 = inlined_call_operand.vmem [shape: f32[1,32], index: 2, kind: input, shape index: {}]
  %s3 = inlined_call_operand.vmem [shape: bf16[288,32], index: 3, kind: input, shape index: {}]
  %s4 = inlined_call_operand.vmem [shape: f32[1,32], index: 4, kind: input, shape index: {}]
  %s5 = inlined_call_operand.vmem [shape: bf16[32,128], index: 5, kind: input, shape index: {}]
  %s6 = inlined_call_operand.vmem [shape: f32[1,128], index: 6, kind: input, shape index: {}]
  %s7 = inlined_call_operand.hbm [shape: bf16[2,16,16,128], index: 7, kind: output, shape index: {}]
  %s8 = sld [smem:[#allocation0]]
  $region61: #{fwd.3} parent=0
    _
  %s10 = ssub.s32 1, %s8
  %s11 = scalar_select 0, %s10, %s8
  $region1: #{fwd.3} parent=0
    #allocation3 [shape = 'u8[131072]{0}', space=vmem, size = 0x20000, scoped, tag = 'output window, operand 0']
    #allocation4 [shape = 's32[2]{0}', space=sflag, size = 0x8, scoped, tag = 'scoped memory for fwd.3']
    %12 = vsyncpa [#allocation4], 0
    %s13 = scalar_lea.sflag [#allocation4], 1
    %14 = vsyncpa %s13, 0
    loop: start=0, step=1, limit=4
    $region2: #{fwd.3} parent=1 // loop_pre_header
      _
    $region3: #{fwd.3} parent=1 // loop_header
      %s16 = sphi 0, %s20
      %p17 = scmp.ge.s32.totalorder %s16, 4
      %s26 = sphi 0, %s28
      %s29 = sphi 0, %s26
      %s30 = sphi 0, %s29
      %s46 = sphi 0, %s30
      %s50 = sphi 0, %s50
      %s52 = sphi 0, %s50
      %s53 = sphi 0, %s52
      %s67 = sphi 0, %s53
      %s71 = sphi 0, %s71
      %s73 = sphi 0, %s71
      %s74 = sphi 0, %s73
      %s88 = sphi 0, %s74
      %s92 = sphi 0, %s92
      %s94 = sphi 0, %s92
      %s95 = sphi 0, %s94
      %s109 = sphi 0, %s95
      %s113 = sphi 0, %s113
      %s115 = sphi 0, %s113
      %s116 = sphi 0, %s115
      %s130 = sphi 0, %s116
      %s134 = sphi 0, %s134
      %s136 = sphi 0, %s134
      %s137 = sphi 0, %s136
      %s151 = sphi 0, %s137
      %s155 = sphi 0, %s155
      %s157 = sphi 0, %s155
      %s158 = sphi 0, %s157
      %s172 = sphi 0, %s158
      %s178 = sphi 0, %s180
      %s181 = sphi 0, %s178
      %s182 = sphi 0, %s181
      %s198 = sphi 0, %s182
    $region4: #{fwd.3} parent=1 // loop_header_branch
      %19 = sbr.rel (%p17) target = $region8
    $region5: #{fwd.3} parent=1 // loop_body
      %s21 = ssub.s32 %s16, 1
      %s22 = ssub.s32 %s16, 2
      %s23 = sadd.s32 %s16, 1
      %s24 = ssub.s32 %s16, %s23
      %p25 = scmp.eq.s32.totalorder %s24, 0
      %s27 = sadd.s32 %s26, 1
      %s28 = scalar_select %p25, %s26, %s27
      %p31 = pneg %p25
      %p32 = scmp.eq.s32.totalorder %s16, 1
      %p33 = por %p31, %p32
      %p34 = scmp.ne.s32.totalorder %s26, %s29
      %p35 = scmp.eq.s32.totalorder %s16, 0
      %p36 = por %p34, %p35
      %p37 = scmp.ne.s32.totalorder %s26, %s29
      %p38 = scmp.eq.s32.totalorder %s21, 1
      %p39 = por %p37, %p38
      %p40 = scmp.ne.s32.totalorder %s29, %s30
      %p41 = scmp.eq.s32.totalorder %s21, 0
      %p42 = por %p40, %p41
      %p43 = scmp.ne.s32.totalorder %s29, %s30
      %p44 = scmp.eq.s32.totalorder %s22, 1
      %p45 = por %p43, %p44
      %p47 = scmp.ne.s32.totalorder %s30, %s46
      %p48 = scmp.eq.s32.totalorder %s22, 0
      %p49 = por %p47, %p48
      %s51 = sadd.s32 %s50, 1
      %p54 = scmp.eq.s32.totalorder %s16, 1
      %p55 = scmp.ne.s32.totalorder %s50, %s52
      %p56 = scmp.eq.s32.totalorder %s16, 0
      %p57 = por %p55, %p56
      %p58 = scmp.ne.s32.totalorder %s50, %s52
      %p59 = scmp.eq.s32.totalorder %s21, 1
      %p60 = por %p58, %p59
      %p61 = scmp.ne.s32.totalorder %s52, %s53
      %p62 = scmp.eq.s32.totalorder %s21, 0
      %p63 = por %p61, %p62
      %p64 = scmp.ne.s32.totalorder %s52, %s53
      %p65 = scmp.eq.s32.totalorder %s22, 1
      %p66 = por %p64, %p65
      %p68 = scmp.ne.s32.totalorder %s53, %s67
      %p69 = scmp.eq.s32.totalorder %s22, 0
      %p70 = por %p68, %p69
      %s72 = sadd.s32 %s71, 1
      %p75 = scmp.eq.s32.totalorder %s16, 1
      %p76 = scmp.ne.s32.totalorder %s71, %s73
      %p77 = scmp.eq.s32.totalorder %s16, 0
      %p78 = por %p76, %p77
      %p79 = scmp.ne.s32.totalorder %s71, %s73
      %p80 = scmp.eq.s32.totalorder %s21, 1
      %p81 = por %p79, %p80
      %p82 = scmp.ne.s32.totalorder %s73, %s74
      %p83 = scmp.eq.s32.totalorder %s21, 0
      %p84 = por %p82, %p83
      %p85 = scmp.ne.s32.totalorder %s73, %s74
      %p86 = scmp.eq.s32.totalorder %s22, 1
      %p87 = por %p85, %p86
      %p89 = scmp.ne.s32.totalorder %s74, %s88
      %p90 = scmp.eq.s32.totalorder %s22, 0
      %p91 = por %p89, %p90
      %s93 = sadd.s32 %s92, 1
      %p96 = scmp.eq.s32.totalorder %s16, 1
      %p97 = scmp.ne.s32.totalorder %s92, %s94
      %p98 = scmp.eq.s32.totalorder %s16, 0
      %p99 = por %p97, %p98
      %p100 = scmp.ne.s32.totalorder %s92, %s94
      %p101 = scmp.eq.s32.totalorder %s21, 1
      %p102 = por %p100, %p101
      %p103 = scmp.ne.s32.totalorder %s94, %s95
      %p104 = scmp.eq.s32.totalorder %s21, 0
      %p105 = por %p103, %p104
      %p106 = scmp.ne.s32.totalorder %s94, %s95
      %p107 = scmp.eq.s32.totalorder %s22, 1
      %p108 = por %p106, %p107
      %p110 = scmp.ne.s32.totalorder %s95, %s109
      %p111 = scmp.eq.s32.totalorder %s22, 0
      %p112 = por %p110, %p111
      %s114 = sadd.s32 %s113, 1
      %p117 = scmp.eq.s32.totalorder %s16, 1
      %p118 = scmp.ne.s32.totalorder %s113, %s115
      %p119 = scmp.eq.s32.totalorder %s16, 0
      %p120 = por %p118, %p119
      %p121 = scmp.ne.s32.totalorder %s113, %s115
      %p122 = scmp.eq.s32.totalorder %s21, 1
      %p123 = por %p121, %p122
      %p124 = scmp.ne.s32.totalorder %s115, %s116
      %p125 = scmp.eq.s32.totalorder %s21, 0
      %p126 = por %p124, %p125
      %p127 = scmp.ne.s32.totalorder %s115, %s116
      %p128 = scmp.eq.s32.totalorder %s22, 1
      %p129 = por %p127, %p128
      %p131 = scmp.ne.s32.totalorder %s116, %s130
      %p132 = scmp.eq.s32.totalorder %s22, 0
      %p133 = por %p131, %p132
      %s135 = sadd.s32 %s134, 1
      %p138 = scmp.eq.s32.totalorder %s16, 1
      %p139 = scmp.ne.s32.totalorder %s134, %s136
      %p140 = scmp.eq.s32.totalorder %s16, 0
      %p141 = por %p139, %p140
      %p142 = scmp.ne.s32.totalorder %s134, %s136
      %p143 = scmp.eq.s32.totalorder %s21, 1
      %p144 = por %p142, %p143
      %p145 = scmp.ne.s32.totalorder %s136, %s137
      %p146 = scmp.eq.s32.totalorder %s21, 0
      %p147 = por %p145, %p146
      %p148 = scmp.ne.s32.totalorder %s136, %s137
      %p149 = scmp.eq.s32.totalorder %s22, 1
      %p150 = por %p148, %p149
      %p152 = scmp.ne.s32.totalorder %s137, %s151
      %p153 = scmp.eq.s32.totalorder %s22, 0
      %p154 = por %p152, %p153
      %s156 = sadd.s32 %s155, 1
      %p159 = scmp.eq.s32.totalorder %s16, 1
      %p160 = scmp.ne.s32.totalorder %s155, %s157
      %p161 = scmp.eq.s32.totalorder %s16, 0
      %p162 = por %p160, %p161
      %p163 = scmp.ne.s32.totalorder %s155, %s157
      %p164 = scmp.eq.s32.totalorder %s21, 1
      %p165 = por %p163, %p164
      %p166 = scmp.ne.s32.totalorder %s157, %s158
      %p167 = scmp.eq.s32.totalorder %s21, 0
      %p168 = por %p166, %p167
      %p169 = scmp.ne.s32.totalorder %s157, %s158
      %p170 = scmp.eq.s32.totalorder %s22, 1
      %p171 = por %p169, %p170
      %p173 = scmp.ne.s32.totalorder %s158, %s172
      %p174 = scmp.eq.s32.totalorder %s22, 0
      %p175 = por %p173, %p174
      %s176 = ssub.s32 %s16, %s23
      %p177 = scmp.eq.s32.totalorder %s176, 0
      %s179 = sadd.s32 %s178, 1
      %s180 = scalar_select %p177, %s178, %s179
      %p183 = pneg %p177
      %p184 = scmp.eq.s32.totalorder %s16, 1
      %p185 = por %p183, %p184
      %p186 = scmp.ne.s32.totalorder %s178, %s181
      %p187 = scmp.eq.s32.totalorder %s16, 0
      %p188 = por %p186, %p187
      %p189 = scmp.ne.s32.totalorder %s178, %s181
      %p190 = scmp.eq.s32.totalorder %s21, 1
      %p191 = por %p189, %p190
      %p192 = scmp.ne.s32.totalorder %s181, %s182
      %p193 = scmp.eq.s32.totalorder %s21, 0
      %p194 = por %p192, %p193
      %p195 = scmp.ne.s32.totalorder %s181, %s182
      %p196 = scmp.eq.s32.totalorder %s22, 1
      %p197 = por %p195, %p196
      %p199 = scmp.ne.s32.totalorder %s182, %s198
      %p200 = scmp.eq.s32.totalorder %s22, 0
      %p201 = por %p199, %p200
      %p202 = scmp.le.s32.totalorder 1, %s16
      %p203 = scmp.lt.s32.totalorder %s16, 3
      %p204 = pnand %p202, %p203
      %p205 = pneg %p204
      // Predicated region
      $region9: #{fwd.3} parent=5 // pred_check
        _
      $region10: #{fwd.3} parent=5 // pred_check_branch
        %207 = sbr.rel (%p204) target = $region12
      $region11: #{fwd.3} parent=5 // pred_region
        %s208 = ssub.s32 %s16, 1
        // Predicated region
        $region13: #{fwd.3} parent=11 // pred_check
          %p209 = pneg %p63
        $region14: #{fwd.3} parent=11 // pred_check_branch
          %211 = sbr.rel (%p209) target = $region16
        $region15: #{fwd.3} parent=11 // pred_region
          _
        $region16: #{fwd.3} parent=11 // pred_fallthru
          _
        // Predicated region
        $region17: #{fwd.3} parent=11 // pred_check
          %p212 = pneg %p84
        $region18: #{fwd.3} parent=11 // pred_check_branch
          %214 = sbr.rel (%p212) target = $region20
        $region19: #{fwd.3} parent=11 // pred_region
          _
        $region20: #{fwd.3} parent=11 // pred_fallthru
          _
        // Predicated region
        $region21: #{fwd.3} parent=11 // pred_check
          %p215 = pneg %p105
        $region22: #{fwd.3} parent=11 // pred_check_branch
          %217 = sbr.rel (%p215) target = $region24
        $region23: #{fwd.3} parent=11 // pred_region
          _
        $region24: #{fwd.3} parent=11 // pred_fallthru
          _
        // Predicated region
        $region25: #{fwd.3} parent=11 // pred_check
          %p218 = pneg %p126
        $region26: #{fwd.3} parent=11 // pred_check_branch
          %220 = sbr.rel (%p218) target = $region28
        $region27: #{fwd.3} parent=11 // pred_region
          _
        $region28: #{fwd.3} parent=11 // pred_fallthru
          _
        // Predicated region
        $region29: #{fwd.3} parent=11 // pred_check
          %p221 = pneg %p147
        $region30: #{fwd.3} parent=11 // pred_check_branch
          %223 = sbr.rel (%p221) target = $region32
        $region31: #{fwd.3} parent=11 // pred_region
          _
        $region32: #{fwd.3} parent=11 // pred_fallthru
          _
        // Predicated region
        $region33: #{fwd.3} parent=11 // pred_check
          %p224 = pneg %p168
        $region34: #{fwd.3} parent=11 // pred_check_branch
          %226 = sbr.rel (%p224) target = $region36
        $region35: #{fwd.3} parent=11 // pred_region
          _
        $region36: #{fwd.3} parent=11 // pred_fallthru
          _
      $region12: #{fwd.3} parent=5 // pred_fallthru
        _
      %p227 = scmp.lt.s32.totalorder %s16, 2
      // Predicated region
      $region37: #{fwd.3} parent=5 // pred_check
        %p228 = pneg %p227
      $region38: #{fwd.3} parent=5 // pred_check_branch
        %230 = sbr.rel (%p228) target = $region40
      $region39: #{fwd.3} parent=5 // pred_region
        // Predicated region
        $region41: #{fwd.3} parent=39 // pred_check
          %p231 = pneg %p36
        $region42: #{fwd.3} parent=39 // pred_check_branch
          %233 = sbr.rel (%p231) target = $region44
        $region43: #{fwd.3} parent=39 // pred_region
          %p234 = scmp.lt.s32.totalorder %s16, 1
          %s235 = scalar_select %p234, %s16, 1
          %s236 = smul.addr %s235, 32
          %s237 = smul.addr %s236, 4
          %s238 = scalar_lea.vmem %s0, %s237
        $region44: #{fwd.3} parent=39 // pred_fallthru
          _
      $region40: #{fwd.3} parent=5 // pred_fallthru
        _
      %p239 = scmp.le.s32.totalorder 1, %s16
      %p240 = scmp.lt.s32.totalorder %s16, 3
      %p241 = pnand %p239, %p240
      %p242 = pneg %p241
      // Predicated region
      $region45: #{fwd.3} parent=5 // pred_check
        _
      $region46: #{fwd.3} parent=5 // pred_check_branch
        %244 = sbr.rel (%p241) target = $region48
      $region47: #{fwd.3} parent=5 // pred_region
        %s245 = ssub.s32 %s16, 1
        %p246 = scmp.lt.s32.totalorder %s21, 1
        %s247 = scalar_select %p246, %s21, 1
        %s248 = smul.addr %s247, 32
        %s249 = smul.addr %s248, 4
        %s250 = scalar_lea.vmem %s0, %s249
        %p251 = pneg %p42
        %p252 = pneg %p39
        %p253 = pneg %p63
        %p254 = pneg %p60
        %p255 = pneg %p84
        %p256 = pneg %p81
        %p257 = pneg %p105
        %p258 = pneg %p102
        %p259 = pneg %p126
        %p260 = pneg %p123
        %p261 = pneg %p147
        %p262 = pneg %p144
        %p263 = pneg %p168
        %p264 = pneg %p165
        %p265 = pneg %p194
        %p266 = pneg %p191
        %s267 = sand.u32 %s181, 1
        %s268 = scalar_lea.sflag [#allocation4], %s267
        %s269 = sand.u32 %s181, 1
        %s270 = smul.addr %s269, 128
        %s271 = scalar_lea.vmem [#allocation3], %s270
        %p272 = scmp.lt.s32.totalorder %s21, 1
        %s273 = scalar_select %p272, %s21, 1
        %s274 = smul.addr %s273, 32
        %s275 = smul.addr %s274, 4
        %s276 = scalar_lea.vmem %s0, %s275
        %v278 = vld [vmem:[%s276] sm:$0xf]
        %v279 = vld [vmem:[%s276 + $0x4] sm:$0xf]
        %v280 = vld [vmem:[%s276 + $0x8] sm:$0xf]
        %v281 = vld [vmem:[%s276 + $0xc] sm:$0xf]
        %v282 = vld [vmem:[%s276 + $0x10] sm:$0xf]
        %v283 = vld [vmem:[%s276 + $0x14] sm:$0xf]
        %v284 = vld [vmem:[%s276 + $0x18] sm:$0xf]
        %v285 = vld [vmem:[%s276 + $0x1c] sm:$0xf]
        %v286 = vld [vmem:[%s276 + $0x20] sm:$0xf]
        %v287 = vld [vmem:[%s276 + $0x24] sm:$0xf]
        %v288 = vld [vmem:[%s276 + $0x28] sm:$0xf]
        %v289 = vld [vmem:[%s276 + $0x2c] sm:$0xf]
        %v290 = vld [vmem:[%s276 + $0x30] sm:$0xf]
        %v291 = vld [vmem:[%s276 + $0x34] sm:$0xf]
        %v292 = vld [vmem:[%s276 + $0x38] sm:$0xf]
        %v293 = vld [vmem:[%s276 + $0x3c] sm:$0xf]
        %v294 = vld [vmem:[%s276 + $0x40] sm:$0xf]
        %v295 = vld [vmem:[%s276 + $0x44] sm:$0xf]
        %v296 = vld [vmem:[%s276 + $0x48] sm:$0xf]
        %v297 = vld [vmem:[%s276 + $0x4c] sm:$0xf]
        %v298 = vld [vmem:[%s276 + $0x50] sm:$0xf]
        %v299 = vld [vmem:[%s276 + $0x54] sm:$0xf]
        %v300 = vld [vmem:[%s276 + $0x58] sm:$0xf]
        %v301 = vld [vmem:[%s276 + $0x5c] sm:$0xf]
        %v302 = vld [vmem:[%s276 + $0x60] sm:$0xf]
        %v303 = vld [vmem:[%s276 + $0x64] sm:$0xf]
        %v304 = vld [vmem:[%s276 + $0x68] sm:$0xf]
        %v305 = vld [vmem:[%s276 + $0x6c] sm:$0xf]
        %v306 = vld [vmem:[%s276 + $0x70] sm:$0xf]
        %v307 = vld [vmem:[%s276 + $0x74] sm:$0xf]
        %v308 = vld [vmem:[%s276 + $0x78] sm:$0xf]
        %v309 = vld [vmem:[%s276 + $0x7c] sm:$0xf]
        %v310 = vld [vmem:[%s1] sm:$0xf]
        %v311 = vld [vmem:[%s1 + $0x4] sm:$0xf]
        %v312 = vld [vmem:[%s1 + $0x8] sm:$0xf]
        %v313 = vld [vmem:[%s1 + $0xc] sm:$0xf]
        %v314 = vld [vmem:[%s1 + $0x10] sm:$0xf]
        %v315 = vld [vmem:[%s1 + $0x14] sm:$0xf]
        %v316 = vld [vmem:[%s1 + $0x18] sm:$0xf]
        %v317 = vld [vmem:[%s1 + $0x1c] sm:$0xf]
        %v318 = vld [vmem:[%s1 + $0x20] sm:$0xf]
        %v319 = vld [vmem:[%s1 + $0x24] sm:$0xf]
        %v320 = vld [vmem:[%s1 + $0x28] sm:$0xf]
        %v321 = vld [vmem:[%s1 + $0x2c] sm:$0xf]
        %v322 = vld [vmem:[%s1 + $0x30] sm:$0xf]
        %v323 = vld [vmem:[%s1 + $0x34] sm:$0xf]
        %v324 = vld [vmem:[%s1 + $0x38] sm:$0xf]
        %v325 = vld [vmem:[%s1 + $0x3c] sm:$0xf]
        %v326 = vld [vmem:[%s2] sm:$0x1]
        %v328 = vperm.slane %v326, 0
        %v362 = vunpack.c.l.b16 %v278
        %v363 = vunpack.c.l.b16 %v279
        %v364 = vunpack.c.l.b16 %v280
        %v365 = vunpack.c.l.b16 %v281
        %v366 = vunpack.c.l.b16 %v282
        %v367 = vunpack.c.l.b16 %v283
        %v368 = vunpack.c.l.b16 %v284
        %v369 = vunpack.c.l.b16 %v285
        %v370 = vunpack.c.l.b16 %v286
        %v371 = vunpack.c.l.b16 %v287
        %v372 = vunpack.c.l.b16 %v288
        %v373 = vunpack.c.l.b16 %v289
        %v374 = vunpack.c.l.b16 %v290
        %v375 = vunpack.c.l.b16 %v291
        %v376 = vunpack.c.l.b16 %v292
        %v377 = vunpack.c.l.b16 %v293
        %v378 = vunpack.c.l.b16 %v294
        %v379 = vunpack.c.l.b16 %v295
        %v380 = vunpack.c.l.b16 %v296
        %v381 = vunpack.c.l.b16 %v297
        %v382 = vunpack.c.l.b16 %v298
        %v383 = vunpack.c.l.b16 %v299
        %v384 = vunpack.c.l.b16 %v300
        %v385 = vunpack.c.l.b16 %v301
        %v386 = vunpack.c.l.b16 %v302
        %v387 = vunpack.c.l.b16 %v303
        %v388 = vunpack.c.l.b16 %v304
        %v389 = vunpack.c.l.b16 %v305
        %v390 = vunpack.c.l.b16 %v306
        %v391 = vunpack.c.l.b16 %v307
        %v392 = vunpack.c.l.b16 %v308
        %v393 = vunpack.c.l.b16 %v309
        %v394 = vpack.c.b16 %v363, %v362
        %v395 = vpack.c.b16 %v365, %v364
        %v396 = vpack.c.b16 %v367, %v366
        %v397 = vpack.c.b16 %v369, %v368
        %v398 = vpack.c.b16 %v371, %v370
        %v399 = vpack.c.b16 %v373, %v372
        %v400 = vpack.c.b16 %v375, %v374
        %v401 = vpack.c.b16 %v377, %v376
        %v402 = vpack.c.b16 %v379, %v378
        %v403 = vpack.c.b16 %v381, %v380
        %v404 = vpack.c.b16 %v383, %v382
        %v405 = vpack.c.b16 %v385, %v384
        %v406 = vpack.c.b16 %v387, %v386
        %v407 = vpack.c.b16 %v389, %v388
        %v408 = vpack.c.b16 %v391, %v390
        %v409 = vpack.c.b16 %v393, %v392
        %v442 = vunpack.c.l.b16 %v310
        %v443 = vunpack.c.l.b16 %v311
        %v444 = vunpack.c.l.b16 %v312
        %v445 = vunpack.c.l.b16 %v313
        %v446 = vunpack.c.l.b16 %v314
        %v447 = vunpack.c.l.b16 %v315
        %v448 = vunpack.c.l.b16 %v316
        %v449 = vunpack.c.l.b16 %v317
        %v450 = vunpack.c.l.b16 %v318
        %v451 = vunpack.c.l.b16 %v319
        %v452 = vunpack.c.l.b16 %v320
        %v453 = vunpack.c.l.b16 %v321
        %v454 = vunpack.c.l.b16 %v322
        %v455 = vunpack.c.l.b16 %v323
        %v456 = vunpack.c.l.b16 %v324
        %v457 = vunpack.c.l.b16 %v325
        %v458 = vpack.c.b16 %v443, %v442
        %v459 = vpack.c.b16 %v445, %v444
        %v460 = vpack.c.b16 %v447, %v446
        %v461 = vpack.c.b16 %v449, %v448
        %v462 = vpack.c.b16 %v451, %v450
        %v463 = vpack.c.b16 %v453, %v452
        %v464 = vpack.c.b16 %v455, %v454
        %v465 = vpack.c.b16 %v457, %v456
        %474 = vmatpush.bf16.msra.mxu0 %v465
        %475 = vmatpush.bf16.msra.mxu0 %v464
        %476 = vmatpush.bf16.msra.mxu0 %v463
        %477 = vmatpush.bf16.msra.mxu0 %v462
        %478 = vmatpush.bf16.msra.mxu0 %v461
        %479 = vmatpush.bf16.msra.mxu0 %v460
        %480 = vmatpush.bf16.msra.mxu0 %v459
        %481 = vmatpush.bf16.msra.mxu0 %v458
        %482 = vmatmul.bf16.gmra.mxu0 %v394
        %v483 = vpop.f32.mrf.mxu0
        %v484 = vadd.f32 %v328, %v483
        %v485 = vpop.f32.mrf.mxu0
        %v486 = vadd.f32 %v328, %v485
        %487 = vmatmul.bf16.gmra.mxu0 %v395
        %v488 = vpop.f32.mrf.mxu0
        %v489 = vadd.f32 %v328, %v488
        %v490 = vpop.f32.mrf.mxu0
        %v491 = vadd.f32 %v328, %v490
        %492 = vmatmul.bf16.gmra.mxu0 %v396
        %v493 = vpop.f32.mrf.mxu0
        %v494 = vadd.f32 %v328, %v493
        %v495 = vpop.f32.mrf.mxu0
        %v496 = vadd.f32 %v328, %v495
        %497 = vmatmul.bf16.gmra.mxu0 %v397
        %v498 = vpop.f32.mrf.mxu0
        %v499 = vadd.f32 %v328, %v498
        %v500 = vpop.f32.mrf.mxu0
        %v501 = vadd.f32 %v328, %v500
        %502 = vmatmul.bf16.gmra.mxu0 %v398
        %v503 = vpop.f32.mrf.mxu0
        %v504 = vadd.f32 %v328, %v503
        %v505 = vpop.f32.mrf.mxu0
        %v506 = vadd.f32 %v328, %v505
        %507 = vmatmul.bf16.gmra.mxu0 %v399
        %v508 = vpop.f32.mrf.mxu0
        %v509 = vadd.f32 %v328, %v508
        %v510 = vpop.f32.mrf.mxu0
        %v511 = vadd.f32 %v328, %v510
        %512 = vmatmul.bf16.gmra.mxu0 %v400
        %v513 = vpop.f32.mrf.mxu0
        %v514 = vadd.f32 %v328, %v513
        %v515 = vpop.f32.mrf.mxu0
        %v516 = vadd.f32 %v328, %v515
        %517 = vmatmul.bf16.gmra.mxu0 %v401
        %v518 = vpop.f32.mrf.mxu0
        %v519 = vadd.f32 %v328, %v518
        %v520 = vpop.f32.mrf.mxu0
        %v521 = vadd.f32 %v328, %v520
        %522 = vmatmul.bf16.gmra.mxu0 %v402
        %v523 = vpop.f32.mrf.mxu0
        %v524 = vadd.f32 %v328, %v523
        %v525 = vpop.f32.mrf.mxu0
        %v526 = vadd.f32 %v328, %v525
        %527 = vmatmul.bf16.gmra.mxu0 %v403
        %v528 = vpop.f32.mrf.mxu0
        %v529 = vadd.f32 %v328, %v528
        %v530 = vpop.f32.mrf.mxu0
        %v531 = vadd.f32 %v328, %v530
        %532 = vmatmul.bf16.gmra.mxu0 %v404
        %v533 = vpop.f32.mrf.mxu0
        %v534 = vadd.f32 %v328, %v533
        %v535 = vpop.f32.mrf.mxu0
        %v536 = vadd.f32 %v328, %v535
        %537 = vmatmul.bf16.gmra.mxu0 %v405
        %v538 = vpop.f32.mrf.mxu0
        %v539 = vadd.f32 %v328, %v538
        %v540 = vpop.f32.mrf.mxu0
        %v541 = vadd.f32 %v328, %v540
        %542 = vmatmul.bf16.gmra.mxu0 %v406
        %v543 = vpop.f32.mrf.mxu0
        %v544 = vadd.f32 %v328, %v543
        %v545 = vpop.f32.mrf.mxu0
        %v546 = vadd.f32 %v328, %v545
        %547 = vmatmul.bf16.gmra.mxu0 %v407
        %v548 = vpop.f32.mrf.mxu0
        %v549 = vadd.f32 %v328, %v548
        %v550 = vpop.f32.mrf.mxu0
        %v551 = vadd.f32 %v328, %v550
        %552 = vmatmul.bf16.gmra.mxu0 %v408
        %v553 = vpop.f32.mrf.mxu0
        %v554 = vadd.f32 %v328, %v553
        %v555 = vpop.f32.mrf.mxu0
        %v556 = vadd.f32 %v328, %v555
        %557 = vmatmul.bf16.gmra.mxu0 %v409
        %v558 = vpop.f32.mrf.mxu0
        %v559 = vadd.f32 %v328, %v558
        %v560 = vpop.f32.mrf.mxu0
        %v561 = vadd.f32 %v328, %v560
        %562 = vdwg.mxu0
        %v563 = vmax.f32 %v484, 0.0
        %v564 = vmax.f32 %v486, 0.0
        %v565 = vmax.f32 %v489, 0.0
        %v566 = vmax.f32 %v491, 0.0
        %v567 = vmax.f32 %v494, 0.0
        %v568 = vmax.f32 %v496, 0.0
        %v569 = vmax.f32 %v499, 0.0
        %v570 = vmax.f32 %v501, 0.0
        %v571 = vmax.f32 %v504, 0.0
        %v572 = vmax.f32 %v506, 0.0
        %v573 = vmax.f32 %v509, 0.0
        %v574 = vmax.f32 %v511, 0.0
        %v575 = vmax.f32 %v514, 0.0
        %v576 = vmax.f32 %v516, 0.0
        %v577 = vmax.f32 %v519, 0.0
        %v578 = vmax.f32 %v521, 0.0
        %v579 = vmax.f32 %v524, 0.0
        %v580 = vmax.f32 %v526, 0.0
        %v581 = vmax.f32 %v529, 0.0
        %v582 = vmax.f32 %v531, 0.0
        %v583 = vmax.f32 %v534, 0.0
        %v584 = vmax.f32 %v536, 0.0
        %v585 = vmax.f32 %v539, 0.0
        %v586 = vmax.f32 %v541, 0.0
        %v587 = vmax.f32 %v544, 0.0
        %v588 = vmax.f32 %v546, 0.0
        %v589 = vmax.f32 %v549, 0.0
        %v590 = vmax.f32 %v551, 0.0
        %v591 = vmax.f32 %v554, 0.0
        %v592 = vmax.f32 %v556, 0.0
        %v593 = vmax.f32 %v559, 0.0
        %v594 = vmax.f32 %v561, 0.0
        %v595 = vpack.c.bf16 %v563, %v563
        %v596 = vpack.c.bf16 %v564, %v564
        %v597 = vpack.c.bf16 %v565, %v565
        %v598 = vpack.c.bf16 %v566, %v566
        %v599 = vpack.c.bf16 %v567, %v567
        %v600 = vpack.c.bf16 %v568, %v568
        %v601 = vpack.c.bf16 %v569, %v569
        %v602 = vpack.c.bf16 %v570, %v570
        %v603 = vpack.c.bf16 %v571, %v571
        %v604 = vpack.c.bf16 %v572, %v572
        %v605 = vpack.c.bf16 %v573, %v573
        %v606 = vpack.c.bf16 %v574, %v574
        %v607 = vpack.c.bf16 %v575, %v575
        %v608 = vpack.c.bf16 %v576, %v576
        %v609 = vpack.c.bf16 %v577, %v577
        %v610 = vpack.c.bf16 %v578, %v578
        %v611 = vpack.c.bf16 %v579, %v579
        %v612 = vpack.c.bf16 %v580, %v580
        %v613 = vpack.c.bf16 %v581, %v581
        %v614 = vpack.c.bf16 %v582, %v582
        %v615 = vpack.c.bf16 %v583, %v583
        %v616 = vpack.c.bf16 %v584, %v584
        %v617 = vpack.c.bf16 %v585, %v585
        %v618 = vpack.c.bf16 %v586, %v586
        %v619 = vpack.c.bf16 %v587, %v587
        %v620 = vpack.c.bf16 %v588, %v588
        %v621 = vpack.c.bf16 %v589, %v589
        %v622 = vpack.c.bf16 %v590, %v590
        %v623 = vpack.c.bf16 %v591, %v591
        %v624 = vpack.c.bf16 %v592, %v592
        %v625 = vpack.c.bf16 %v593, %v593
        %v626 = vpack.c.bf16 %v594, %v594
        %vm627 = vsmask.f32 256
        %vm628 = vsmask.f32 4368
        %vm629 = vmor %vm627, %vm628
        %v631 = vshrl.u32 %v595, 16
        %v633 = vrot.slane %v631, 7
        %v634 = vshll.u32 %v595, 16
        %v636 = vor.u32 %v633, %v634
        %v637 = vrot.slane %v633, 4
        %v639 = vshrl.u32 %v596, 16
        %v641 = vrot.slane %v639, 7
        %v642 = vshll.u32 %v596, 16
        %v644 = vor.u32 %v641, %v642
        %v645 = vsel %vm629, %v637, %v644
        %v646 = vrot.slane %v641, 4
        %v648 = vshrl.u32 %v597, 16
        %v650 = vrot.slane %v648, 7
        %v651 = vshll.u32 %v597, 16
        %v653 = vor.u32 %v650, %v651
        %v654 = vrot.slane %v650, 4
        %v656 = vshrl.u32 %v598, 16
        %v658 = vrot.slane %v656, 7
        %v659 = vshll.u32 %v598, 16
        %v661 = vor.u32 %v658, %v659
        %v662 = vsel %vm629, %v654, %v661
        %v663 = vrot.slane %v658, 4
        %v665 = vshrl.u32 %v599, 16
        %v667 = vrot.slane %v665, 7
        %v668 = vshll.u32 %v599, 16
        %v670 = vor.u32 %v667, %v668
        %v671 = vrot.slane %v667, 4
        %v673 = vshrl.u32 %v600, 16
        %v675 = vrot.slane %v673, 7
        %v676 = vshll.u32 %v600, 16
        %v678 = vor.u32 %v675, %v676
        %v679 = vsel %vm629, %v671, %v678
        %v680 = vrot.slane %v675, 4
        %v682 = vshrl.u32 %v601, 16
        %v684 = vrot.slane %v682, 7
        %v685 = vshll.u32 %v601, 16
        %v687 = vor.u32 %v684, %v685
        %v688 = vrot.slane %v684, 4
        %v690 = vshrl.u32 %v602, 16
        %v692 = vrot.slane %v690, 7
        %v693 = vshll.u32 %v602, 16
        %v695 = vor.u32 %v692, %v693
        %v696 = vsel %vm629, %v688, %v695
        %v697 = vrot.slane %v692, 4
        %v699 = vshrl.u32 %v603, 16
        %v701 = vrot.slane %v699, 7
        %v702 = vshll.u32 %v603, 16
        %v704 = vor.u32 %v701, %v702
        %v705 = vrot.slane %v701, 4
        %v707 = vshrl.u32 %v604, 16
        %v709 = vrot.slane %v707, 7
        %v710 = vshll.u32 %v604, 16
        %v712 = vor.u32 %v709, %v710
        %v713 = vsel %vm629, %v705, %v712
        %v714 = vrot.slane %v709, 4
        %v716 = vshrl.u32 %v605, 16
        %v718 = vrot.slane %v716, 7
        %v719 = vshll.u32 %v605, 16
        %v721 = vor.u32 %v718, %v719
        %v722 = vrot.slane %v718, 4
        %v724 = vshrl.u32 %v606, 16
        %v726 = vrot.slane %v724, 7
        %v727 = vshll.u32 %v606, 16
        %v729 = vor.u32 %v726, %v727
        %v730 = vsel %vm629, %v722, %v729
        %v731 = vrot.slane %v726, 4
        %v733 = vshrl.u32 %v607, 16
        %v735 = vrot.slane %v733, 7
        %v736 = vshll.u32 %v607, 16
        %v738 = vor.u32 %v735, %v736
        %v739 = vrot.slane %v735, 4
        %v741 = vshrl.u32 %v608, 16
        %v743 = vrot.slane %v741, 7
        %v744 = vshll.u32 %v608, 16
        %v746 = vor.u32 %v743, %v744
        %v747 = vsel %vm629, %v739, %v746
        %v748 = vrot.slane %v743, 4
        %v750 = vshrl.u32 %v609, 16
        %v752 = vrot.slane %v750, 7
        %v753 = vshll.u32 %v609, 16
        %v755 = vor.u32 %v752, %v753
        %v756 = vrot.slane %v752, 4
        %v758 = vshrl.u32 %v610, 16
        %v760 = vrot.slane %v758, 7
        %v761 = vshll.u32 %v610, 16
        %v763 = vor.u32 %v760, %v761
        %v764 = vsel %vm629, %v756, %v763
        %v765 = vrot.slane %v760, 4
        %v767 = vshrl.u32 %v611, 16
        %v769 = vrot.slane %v767, 7
        %v770 = vshll.u32 %v611, 16
        %v772 = vor.u32 %v769, %v770
        %v773 = vrot.slane %v769, 4
        %v775 = vshrl.u32 %v612, 16
        %v777 = vrot.slane %v775, 7
        %v778 = vshll.u32 %v612, 16
        %v780 = vor.u32 %v777, %v778
        %v781 = vsel %vm629, %v773, %v780
        %v782 = vrot.slane %v777, 4
        %v784 = vshrl.u32 %v613, 16
        %v786 = vrot.slane %v784, 7
        %v787 = vshll.u32 %v613, 16
        %v789 = vor.u32 %v786, %v787
        %v790 = vrot.slane %v786, 4
        %v792 = vshrl.u32 %v614, 16
        %v794 = vrot.slane %v792, 7
        %v795 = vshll.u32 %v614, 16
        %v797 = vor.u32 %v794, %v795
        %v798 = vsel %vm629, %v790, %v797
        %v799 = vrot.slane %v794, 4
        %v801 = vshrl.u32 %v615, 16
        %v803 = vrot.slane %v801, 7
        %v804 = vshll.u32 %v615, 16
        %v806 = vor.u32 %v803, %v804
        %v807 = vrot.slane %v803, 4
        %v809 = vshrl.u32 %v616, 16
        %v811 = vrot.slane %v809, 7
        %v812 = vshll.u32 %v616, 16
        %v814 = vor.u32 %v811, %v812
        %v815 = vsel %vm629, %v807, %v814
        %v816 = vrot.slane %v811, 4
        %v818 = vshrl.u32 %v617, 16
        %v820 = vrot.slane %v818, 7
        %v821 = vshll.u32 %v617, 16
        %v823 = vor.u32 %v820, %v821
        %v824 = vrot.slane %v820, 4
        %v826 = vshrl.u32 %v618, 16
        %v828 = vrot.slane %v826, 7
        %v829 = vshll.u32 %v618, 16
        %v831 = vor.u32 %v828, %v829
        %v832 = vsel %vm629, %v824, %v831
        %v833 = vrot.slane %v828, 4
        %v835 = vshrl.u32 %v619, 16
        %v837 = vrot.slane %v835, 7
        %v838 = vshll.u32 %v619, 16
        %v840 = vor.u32 %v837, %v838
        %v841 = vrot.slane %v837, 4
        %v843 = vshrl.u32 %v620, 16
        %v845 = vrot.slane %v843, 7
        %v846 = vshll.u32 %v620, 16
        %v848 = vor.u32 %v845, %v846
        %v849 = vsel %vm629, %v841, %v848
        %v850 = vrot.slane %v845, 4
        %v852 = vshrl.u32 %v621, 16
        %v854 = vrot.slane %v852, 7
        %v855 = vshll.u32 %v621, 16
        %v857 = vor.u32 %v854, %v855
        %v858 = vrot.slane %v854, 4
        %v860 = vshrl.u32 %v622, 16
        %v862 = vrot.slane %v860, 7
        %v863 = vshll.u32 %v622, 16
        %v865 = vor.u32 %v862, %v863
        %v866 = vsel %vm629, %v858, %v865
        %v867 = vrot.slane %v862, 4
        %v869 = vshrl.u32 %v623, 16
        %v871 = vrot.slane %v869, 7
        %v872 = vshll.u32 %v623, 16
        %v874 = vor.u32 %v871, %v872
        %v875 = vrot.slane %v871, 4
        %v877 = vshrl.u32 %v624, 16
        %v879 = vrot.slane %v877, 7
        %v880 = vshll.u32 %v624, 16
        %v882 = vor.u32 %v879, %v880
        %v883 = vsel %vm629, %v875, %v882
        %v884 = vrot.slane %v879, 4
        %v886 = vshrl.u32 %v625, 16
        %v888 = vrot.slane %v886, 7
        %v889 = vshll.u32 %v625, 16
        %v891 = vor.u32 %v888, %v889
        %v892 = vrot.slane %v888, 4
        %v894 = vshrl.u32 %v626, 16
        %v896 = vrot.slane %v894, 7
        %v897 = vshll.u32 %v626, 16
        %v899 = vor.u32 %v896, %v897
        %v900 = vsel %vm629, %v892, %v899
        %v901 = vrot.slane %v896, 4
        %s950 = scalar_lea.vmem [#allocation2], 12
        %vm951 = vcmask 257024
        %vm952 = vsmask.f32 7938
        %vm953 = vmand %vm951, %vm952
        %v954 = vld [vmem:[%s950] sm:$0xf]
        %v955 = vsel %vm953, %v636, %v954
        %956 = vst [vmem:[%s950] sm:$0xf] %v955
        %vm957 = vcmask 257024
        %958 = vst.msk [vmem:[%s950 + $0x4] sm:$0xf] %vm957, %v645
        %vm959 = vcmask 253952
        %vm960 = vmand %vm959, %vm627
        %v961 = vld [vmem:[%s950 + $0x8] sm:$0x1]
        %v962 = vsel %vm960, %v646, %v961
        %963 = vst [vmem:[%s950 + $0x8] sm:$0x1] %v962
        %v964 = vld [vmem:[%s950 + $0xc] sm:$0xf]
        %v965 = vsel %vm953, %v653, %v964
        %966 = vst [vmem:[%s950 + $0xc] sm:$0xf] %v965
        %967 = vst.msk [vmem:[%s950 + $0x10] sm:$0xf] %vm957, %v662
        %v968 = vld [vmem:[%s950 + $0x14] sm:$0x1]
        %v969 = vsel %vm960, %v663, %v968
        %970 = vst [vmem:[%s950 + $0x14] sm:$0x1] %v969
        %v971 = vld [vmem:[%s950 + $0x18] sm:$0xf]
        %v972 = vsel %vm953, %v670, %v971
        %973 = vst [vmem:[%s950 + $0x18] sm:$0xf] %v972
        %974 = vst.msk [vmem:[%s950 + $0x1c] sm:$0xf] %vm957, %v679
        %v975 = vld [vmem:[%s950 + $0x20] sm:$0x1]
        %v976 = vsel %vm960, %v680, %v975
        %977 = vst [vmem:[%s950 + $0x20] sm:$0x1] %v976
        %v978 = vld [vmem:[%s950 + $0x24] sm:$0xf]
        %v979 = vsel %vm953, %v687, %v978
        %980 = vst [vmem:[%s950 + $0x24] sm:$0xf] %v979
        %981 = vst.msk [vmem:[%s950 + $0x28] sm:$0xf] %vm957, %v696
        %v982 = vld [vmem:[%s950 + $0x2c] sm:$0x1]
        %v983 = vsel %vm960, %v697, %v982
        %984 = vst [vmem:[%s950 + $0x2c] sm:$0x1] %v983
        %v985 = vld [vmem:[%s950 + $0x30] sm:$0xf]
        %v986 = vsel %vm953, %v704, %v985
        %987 = vst [vmem:[%s950 + $0x30] sm:$0xf] %v986
        %988 = vst.msk [vmem:[%s950 + $0x34] sm:$0xf] %vm957, %v713
        %v989 = vld [vmem:[%s950 + $0x38] sm:$0x1]
        %v990 = vsel %vm960, %v714, %v989
        %991 = vst [vmem:[%s950 + $0x38] sm:$0x1] %v990
        %v992 = vld [vmem:[%s950 + $0x3c] sm:$0xf]
        %v993 = vsel %vm953, %v721, %v992
        %994 = vst [vmem:[%s950 + $0x3c] sm:$0xf] %v993
        %995 = vst.msk [vmem:[%s950 + $0x40] sm:$0xf] %vm957, %v730
        %v996 = vld [vmem:[%s950 + $0x44] sm:$0x1]
        %v997 = vsel %vm960, %v731, %v996
        %998 = vst [vmem:[%s950 + $0x44] sm:$0x1] %v997
        %v999 = vld [vmem:[%s950 + $0x48] sm:$0xf]
        %v1000 = vsel %vm953, %v738, %v999
        %1001 = vst [vmem:[%s950 + $0x48] sm:$0xf] %v1000
        %1002 = vst.msk [vmem:[%s950 + $0x4c] sm:$0xf] %vm957, %v747
        %v1003 = vld [vmem:[%s950 + $0x50] sm:$0x1]
        %v1004 = vsel %vm960, %v748, %v1003
        %1005 = vst [vmem:[%s950 + $0x50] sm:$0x1] %v1004
        %v1006 = vld [vmem:[%s950 + $0x54] sm:$0xf]
        %v1007 = vsel %vm953, %v755, %v1006
        %1008 = vst [vmem:[%s950 + $0x54] sm:$0xf] %v1007
        %1009 = vst.msk [vmem:[%s950 + $0x58] sm:$0xf] %vm957, %v764
        %v1010 = vld [vmem:[%s950 + $0x5c] sm:$0x1]
        %v1011 = vsel %vm960, %v765, %v1010
        %1012 = vst [vmem:[%s950 + $0x5c] sm:$0x1] %v1011
        %v1013 = vld [vmem:[%s950 + $0x60] sm:$0xf]
        %v1014 = vsel %vm953, %v772, %v1013
        %1015 = vst [vmem:[%s950 + $0x60] sm:$0xf] %v1014
        %1016 = vst.msk [vmem:[%s950 + $0x64] sm:$0xf] %vm957, %v781
        %v1017 = vld [vmem:[%s950 + $0x68] sm:$0x1]
        %v1018 = vsel %vm960, %v782, %v1017
        %1019 = vst [vmem:[%s950 + $0x68] sm:$0x1] %v1018
        %v1020 = vld [vmem:[%s950 + $0x6c] sm:$0xf]
        %v1021 = vsel %vm953, %v789, %v1020
        %1022 = vst [vmem:[%s950 + $0x6c] sm:$0xf] %v1021
        %1023 = vst.msk [vmem:[%s950 + $0x70] sm:$0xf] %vm957, %v798
        %v1024 = vld [vmem:[%s950 + $0x74] sm:$0x1]
        %v1025 = vsel %vm960, %v799, %v1024
        %1026 = vst [vmem:[%s950 + $0x74] sm:$0x1] %v1025
        %v1027 = vld [vmem:[%s950 + $0x78] sm:$0xf]
        %v1028 = vsel %vm953, %v806, %v1027
        %1029 = vst [vmem:[%s950 + $0x78] sm:$0xf] %v1028
        %1030 = vst.msk [vmem:[%s950 + $0x7c] sm:$0xf] %vm957, %v815
        %v1031 = vld [vmem:[%s950 + $0x80] sm:$0x1]
        %v1032 = vsel %vm960, %v816, %v1031
        %1033 = vst [vmem:[%s950 + $0x80] sm:$0x1] %v1032
        %v1034 = vld [vmem:[%s950 + $0x84] sm:$0xf]
        %v1035 = vsel %vm953, %v823, %v1034
        %1036 = vst [vmem:[%s950 + $0x84] sm:$0xf] %v1035
        %1037 = vst.msk [vmem:[%s950 + $0x88] sm:$0xf] %vm957, %v832
        %v1038 = vld [vmem:[%s950 + $0x8c] sm:$0x1]
        %v1039 = vsel %vm960, %v833, %v1038
        %1040 = vst [vmem:[%s950 + $0x8c] sm:$0x1] %v1039
        %v1041 = vld [vmem:[%s950 + $0x90] sm:$0xf]
        %v1042 = vsel %vm953, %v840, %v1041
        %1043 = vst [vmem:[%s950 + $0x90] sm:$0xf] %v1042
        %1044 = vst.msk [vmem:[%s950 + $0x94] sm:$0xf] %vm957, %v849
        %v1045 = vld [vmem:[%s950 + $0x98] sm:$0x1]
        %v1046 = vsel %vm960, %v850, %v1045
        %1047 = vst [vmem:[%s950 + $0x98] sm:$0x1] %v1046
        %v1048 = vld [vmem:[%s950 + $0x9c] sm:$0xf]
        %v1049 = vsel %vm953, %v857, %v1048
        %1050 = vst [vmem:[%s950 + $0x9c] sm:$0xf] %v1049
        %1051 = vst.msk [vmem:[%s950 + $0xa0] sm:$0xf] %vm957, %v866
        %v1052 = vld [vmem:[%s950 + $0xa4] sm:$0x1]
        %v1053 = vsel %vm960, %v867, %v1052
        %1054 = vst [vmem:[%s950 + $0xa4] sm:$0x1] %v1053
        %v1055 = vld [vmem:[%s950 + $0xa8] sm:$0xf]
        %v1056 = vsel %vm953, %v874, %v1055
        %1057 = vst [vmem:[%s950 + $0xa8] sm:$0xf] %v1056
        %1058 = vst.msk [vmem:[%s950 + $0xac] sm:$0xf] %vm957, %v883
        %v1059 = vld [vmem:[%s950 + $0xb0] sm:$0x1]
        %v1060 = vsel %vm960, %v884, %v1059
        %1061 = vst [vmem:[%s950 + $0xb0] sm:$0x1] %v1060
        %v1062 = vld [vmem:[%s950 + $0xb4] sm:$0xf]
        %v1063 = vsel %vm953, %v891, %v1062
        %1064 = vst [vmem:[%s950 + $0xb4] sm:$0xf] %v1063
        %1065 = vst.msk [vmem:[%s950 + $0xb8] sm:$0xf] %vm957, %v900
        %v1066 = vld [vmem:[%s950 + $0xbc] sm:$0x1]
        %v1067 = vsel %vm960, %v901, %v1066
        %1068 = vst [vmem:[%s950 + $0xbc] sm:$0x1] %v1067
        %1069 = vst.msk [vmem:[#allocation2] sm:$0xf] %vm957, 0
        %1070 = vst.msk [vmem:[#allocation2 + $0x4] sm:$0xf] %vm957, 0
        %vm1071 = vcmask 253952
        %1072 = vst.msk [vmem:[#allocation2 + $0x8] sm:$0x1] %vm1071, 0
        %s1073 = scalar_lea.vmem [#allocation2], 204
        %1074 = vst.msk [vmem:[%s1073] sm:$0xf] %vm957, 0
        %1075 = vst.msk [vmem:[%s1073 + $0x4] sm:$0xf] %vm957, 0
        %1076 = vst.msk [vmem:[%s1073 + $0x8] sm:$0x1] %vm1071, 0
        %v1077 = vld [vmem:[%s950] sm:$0x1]
        %v1078 = vsel %vm960, 0, %v1077
        %1079 = vst [vmem:[%s950] sm:$0x1] %v1078
        %v1080 = vld [vmem:[%s950 + $0xc] sm:$0x1]
        %v1081 = vsel %vm960, 0, %v1080
        %1082 = vst [vmem:[%s950 + $0xc] sm:$0x1] %v1081
        %v1083 = vld [vmem:[%s950 + $0x18] sm:$0x1]
        %v1084 = vsel %vm960, 0, %v1083
        %1085 = vst [vmem:[%s950 + $0x18] sm:$0x1] %v1084
        %v1086 = vld [vmem:[%s950 + $0x24] sm:$0x1]
        %v1087 = vsel %vm960, 0, %v1086
        %1088 = vst [vmem:[%s950 + $0x24] sm:$0x1] %v1087
        %v1089 = vld [vmem:[%s950 + $0x30] sm:$0x1]
        %v1090 = vsel %vm960, 0, %v1089
        %1091 = vst [vmem:[%s950 + $0x30] sm:$0x1] %v1090
        %v1092 = vld [vmem:[%s950 + $0x3c] sm:$0x1]
        %v1093 = vsel %vm960, 0, %v1092
        %1094 = vst [vmem:[%s950 + $0x3c] sm:$0x1] %v1093
        %v1095 = vld [vmem:[%s950 + $0x48] sm:$0x1]
        %v1096 = vsel %vm960, 0, %v1095
        %1097 = vst [vmem:[%s950 + $0x48] sm:$0x1] %v1096
        %v1098 = vld [vmem:[%s950 + $0x54] sm:$0x1]
        %v1099 = vsel %vm960, 0, %v1098
        %1100 = vst [vmem:[%s950 + $0x54] sm:$0x1] %v1099
        %v1101 = vld [vmem:[%s950 + $0x60] sm:$0x1]
        %v1102 = vsel %vm960, 0, %v1101
        %1103 = vst [vmem:[%s950 + $0x60] sm:$0x1] %v1102
        %v1104 = vld [vmem:[%s950 + $0x6c] sm:$0x1]
        %v1105 = vsel %vm960, 0, %v1104
        %1106 = vst [vmem:[%s950 + $0x6c] sm:$0x1] %v1105
        %v1107 = vld [vmem:[%s950 + $0x78] sm:$0x1]
        %v1108 = vsel %vm960, 0, %v1107
        %1109 = vst [vmem:[%s950 + $0x78] sm:$0x1] %v1108
        %v1110 = vld [vmem:[%s950 + $0x84] sm:$0x1]
        %v1111 = vsel %vm960, 0, %v1110
        %1112 = vst [vmem:[%s950 + $0x84] sm:$0x1] %v1111
        %v1113 = vld [vmem:[%s950 + $0x90] sm:$0x1]
        %v1114 = vsel %vm960, 0, %v1113
        %1115 = vst [vmem:[%s950 + $0x90] sm:$0x1] %v1114
        %v1116 = vld [vmem:[%s950 + $0x9c] sm:$0x1]
        %v1117 = vsel %vm960, 0, %v1116
        %1118 = vst [vmem:[%s950 + $0x9c] sm:$0x1] %v1117
        %v1119 = vld [vmem:[%s950 + $0xa8] sm:$0x1]
        %v1120 = vsel %vm960, 0, %v1119
        %1121 = vst [vmem:[%s950 + $0xa8] sm:$0x1] %v1120
        %v1122 = vld [vmem:[%s950 + $0xb4] sm:$0x1]
        %v1123 = vsel %vm960, 0, %v1122
        %1124 = vst [vmem:[%s950 + $0xb4] sm:$0x1] %v1123
        %vm1125 = vmand %vm959, %vm952
        %v1126 = vld [vmem:[%s950 + $0x8] sm:$0x1]
        %v1127 = vsel %vm1125, 0, %v1126
        %1128 = vst [vmem:[%s950 + $0x8] sm:$0x1] %v1127
        %v1129 = vld [vmem:[%s950 + $0x14] sm:$0x1]
        %v1130 = vsel %vm1125, 0, %v1129
        %1131 = vst [vmem:[%s950 + $0x14] sm:$0x1] %v1130
        %v1132 = vld [vmem:[%s950 + $0x20] sm:$0x1]
        %v1133 = vsel %vm1125, 0, %v1132
        %1134 = vst [vmem:[%s950 + $0x20] sm:$0x1] %v1133
        %v1135 = vld [vmem:[%s950 + $0x2c] sm:$0x1]
        %v1136 = vsel %vm1125, 0, %v1135
        %1137 = vst [vmem:[%s950 + $0x2c] sm:$0x1] %v1136
        %v1138 = vld [vmem:[%s950 + $0x38] sm:$0x1]
        %v1139 = vsel %vm1125, 0, %v1138
        %1140 = vst [vmem:[%s950 + $0x38] sm:$0x1] %v1139
        %v1141 = vld [vmem:[%s950 + $0x44] sm:$0x1]
        %v1142 = vsel %vm1125, 0, %v1141
        %1143 = vst [vmem:[%s950 + $0x44] sm:$0x1] %v1142
        %v1144 = vld [vmem:[%s950 + $0x50] sm:$0x1]
        %v1145 = vsel %vm1125, 0, %v1144
        %1146 = vst [vmem:[%s950 + $0x50] sm:$0x1] %v1145
        %v1147 = vld [vmem:[%s950 + $0x5c] sm:$0x1]
        %v1148 = vsel %vm1125, 0, %v1147
        %1149 = vst [vmem:[%s950 + $0x5c] sm:$0x1] %v1148
        %v1150 = vld [vmem:[%s950 + $0x68] sm:$0x1]
        %v1151 = vsel %vm1125, 0, %v1150
        %1152 = vst [vmem:[%s950 + $0x68] sm:$0x1] %v1151
        %v1153 = vld [vmem:[%s950 + $0x74] sm:$0x1]
        %v1154 = vsel %vm1125, 0, %v1153
        %1155 = vst [vmem:[%s950 + $0x74] sm:$0x1] %v1154
        %v1156 = vld [vmem:[%s950 + $0x80] sm:$0x1]
        %v1157 = vsel %vm1125, 0, %v1156
        %1158 = vst [vmem:[%s950 + $0x80] sm:$0x1] %v1157
        %v1159 = vld [vmem:[%s950 + $0x8c] sm:$0x1]
        %v1160 = vsel %vm1125, 0, %v1159
        %1161 = vst [vmem:[%s950 + $0x8c] sm:$0x1] %v1160
        %v1162 = vld [vmem:[%s950 + $0x98] sm:$0x1]
        %v1163 = vsel %vm1125, 0, %v1162
        %1164 = vst [vmem:[%s950 + $0x98] sm:$0x1] %v1163
        %v1165 = vld [vmem:[%s950 + $0xa4] sm:$0x1]
        %v1166 = vsel %vm1125, 0, %v1165
        %1167 = vst [vmem:[%s950 + $0xa4] sm:$0x1] %v1166
        %v1168 = vld [vmem:[%s950 + $0xb0] sm:$0x1]
        %v1169 = vsel %vm1125, 0, %v1168
        %1170 = vst [vmem:[%s950 + $0xb0] sm:$0x1] %v1169
        %v1171 = vld [vmem:[%s950 + $0xbc] sm:$0x1]
        %v1172 = vsel %vm1125, 0, %v1171
        %1173 = vst [vmem:[%s950 + $0xbc] sm:$0x1] %v1172
        %v1174 = vld [vmem:[#allocation2] sm:$0xf]
        %v1175 = vld [vmem:[#allocation2 + $0x4] sm:$0xf]
        %v1176 = vld [vmem:[#allocation2 + $0xc] sm:$0xf]
        %v1177 = vld [vmem:[#allocation2 + $0x10] sm:$0xf]
        %v1178 = vld [vmem:[#allocation2 + $0x18] sm:$0xf]
        %v1179 = vld [vmem:[#allocation2 + $0x1c] sm:$0xf]
        %v1180 = vld [vmem:[#allocation2 + $0x24] sm:$0xf]
        %v1181 = vld [vmem:[#allocation2 + $0x28] sm:$0xf]
        %v1182 = vld [vmem:[#allocation2 + $0x30] sm:$0xf]
        %v1183 = vld [vmem:[#allocation2 + $0x34] sm:$0xf]
        %v1184 = vld [vmem:[#allocation2 + $0x3c] sm:$0xf]
        %v1185 = vld [vmem:[#allocation2 + $0x40] sm:$0xf]
        %v1186 = vld [vmem:[#allocation2 + $0x48] sm:$0xf]
        %v1187 = vld [vmem:[#allocation2 + $0x4c] sm:$0xf]
        %v1188 = vld [vmem:[#allocation2 + $0x54] sm:$0xf]
        %v1189 = vld [vmem:[#allocation2 + $0x58] sm:$0xf]
        %v1190 = vld [vmem:[#allocation2 + $0x60] sm:$0xf]
        %v1191 = vld [vmem:[#allocation2 + $0x64] sm:$0xf]
        %v1192 = vld [vmem:[#allocation2 + $0x6c] sm:$0xf]
        %v1193 = vld [vmem:[#allocation2 + $0x70] sm:$0xf]
        %v1194 = vld [vmem:[#allocation2 + $0x78] sm:$0xf]
        %v1195 = vld [vmem:[#allocation2 + $0x7c] sm:$0xf]
        %v1196 = vld [vmem:[#allocation2 + $0x84] sm:$0xf]
        %v1197 = vld [vmem:[#allocation2 + $0x88] sm:$0xf]
        %v1198 = vld [vmem:[#allocation2 + $0x90] sm:$0xf]
        %v1199 = vld [vmem:[#allocation2 + $0x94] sm:$0xf]
        %v1200 = vld [vmem:[#allocation2 + $0x9c] sm:$0xf]
        %v1201 = vld [vmem:[#allocation2 + $0xa0] sm:$0xf]
        %v1202 = vld [vmem:[#allocation2 + $0xa8] sm:$0xf]
        %v1203 = vld [vmem:[#allocation2 + $0xac] sm:$0xf]
        %v1204 = vld [vmem:[#allocation2 + $0xb4] sm:$0xf]
        %v1205 = vld [vmem:[#allocation2 + $0xb8] sm:$0xf]
        %v1206 = vld [vmem:[#allocation2 + $0x8] sm:$0x1]
        %v1207 = vld [vmem:[#allocation2 + $0x14] sm:$0x1]
        %v1208 = vld [vmem:[#allocation2 + $0x20] sm:$0x1]
        %v1209 = vld [vmem:[#allocation2 + $0x2c] sm:$0x1]
        %v1210 = vld [vmem:[#allocation2 + $0x38] sm:$0x1]
        %v1211 = vld [vmem:[#allocation2 + $0x44] sm:$0x1]
        %v1212 = vld [vmem:[#allocation2 + $0x50] sm:$0x1]
        %v1213 = vld [vmem:[#allocation2 + $0x5c] sm:$0x1]
        %v1214 = vld [vmem:[#allocation2 + $0x68] sm:$0x1]
        %v1215 = vld [vmem:[#allocation2 + $0x74] sm:$0x1]
        %v1216 = vld [vmem:[#allocation2 + $0x80] sm:$0x1]
        %v1217 = vld [vmem:[#allocation2 + $0x8c] sm:$0x1]
        %v1218 = vld [vmem:[#allocation2 + $0x98] sm:$0x1]
        %v1219 = vld [vmem:[#allocation2 + $0xa4] sm:$0x1]
        %v1220 = vld [vmem:[#allocation2 + $0xb0] sm:$0x1]
        %v1221 = vld [vmem:[#allocation2 + $0xbc] sm:$0x1]
        %v1222 = vld [vmem:[#allocation2] sm:$0xe]
        %v1223 = vld [vmem:[#allocation2 + $0xc] sm:$0xe]
        %v1224 = vld [vmem:[#allocation2 + $0x18] sm:$0xe]
        %v1225 = vld [vmem:[#allocation2 + $0x24] sm:$0xe]
        %v1226 = vld [vmem:[#allocation2 + $0x30] sm:$0xe]
        %v1227 = vld [vmem:[#allocation2 + $0x3c] sm:$0xe]
        %v1228 = vld [vmem:[#allocation2 + $0x48] sm:$0xe]
        %v1229 = vld [vmem:[#allocation2 + $0x54] sm:$0xe]
        %v1230 = vld [vmem:[#allocation2 + $0x60] sm:$0xe]
        %v1231 = vld [vmem:[#allocation2 + $0x6c] sm:$0xe]
        %v1232 = vld [vmem:[#allocation2 + $0x78] sm:$0xe]
        %v1233 = vld [vmem:[#allocation2 + $0x84] sm:$0xe]
        %v1234 = vld [vmem:[#allocation2 + $0x90] sm:$0xe]
        %v1235 = vld [vmem:[#allocation2 + $0x9c] sm:$0xe]
        %v1236 = vld [vmem:[#allocation2 + $0xa8] sm:$0xe]
        %v1237 = vld [vmem:[#allocation2 + $0xb4] sm:$0xe]
        %v1238 = vld [vmem:[%s950] sm:$0xf]
        %v1239 = vld [vmem:[%s950 + $0x4] sm:$0xf]
        %v1240 = vld [vmem:[%s950 + $0xc] sm:$0xf]
        %v1241 = vld [vmem:[%s950 + $0x10] sm:$0xf]
        %v1242 = vld [vmem:[%s950 + $0x18] sm:$0xf]
        %v1243 = vld [vmem:[%s950 + $0x1c] sm:$0xf]
        %v1244 = vld [vmem:[%s950 + $0x24] sm:$0xf]
        %v1245 = vld [vmem:[%s950 + $0x28] sm:$0xf]
        %v1246 = vld [vmem:[%s950 + $0x30] sm:$0xf]
        %v1247 = vld [vmem:[%s950 + $0x34] sm:$0xf]
        %v1248 = vld [vmem:[%s950 + $0x3c] sm:$0xf]
        %v1249 = vld [vmem:[%s950 + $0x40] sm:$0xf]
        %v1250 = vld [vmem:[%s950 + $0x48] sm:$0xf]
        %v1251 = vld [vmem:[%s950 + $0x4c] sm:$0xf]
        %v1252 = vld [vmem:[%s950 + $0x54] sm:$0xf]
        %v1253 = vld [vmem:[%s950 + $0x58] sm:$0xf]
        %v1254 = vld [vmem:[%s950 + $0x60] sm:$0xf]
        %v1255 = vld [vmem:[%s950 + $0x64] sm:$0xf]
        %v1256 = vld [vmem:[%s950 + $0x6c] sm:$0xf]
        %v1257 = vld [vmem:[%s950 + $0x70] sm:$0xf]
        %v1258 = vld [vmem:[%s950 + $0x78] sm:$0xf]
        %v1259 = vld [vmem:[%s950 + $0x7c] sm:$0xf]
        %v1260 = vld [vmem:[%s950 + $0x84] sm:$0xf]
        %v1261 = vld [vmem:[%s950 + $0x88] sm:$0xf]
        %v1262 = vld [vmem:[%s950 + $0x90] sm:$0xf]
        %v1263 = vld [vmem:[%s950 + $0x94] sm:$0xf]
        %v1264 = vld [vmem:[%s950 + $0x9c] sm:$0xf]
        %v1265 = vld [vmem:[%s950 + $0xa0] sm:$0xf]
        %v1266 = vld [vmem:[%s950 + $0xa8] sm:$0xf]
        %v1267 = vld [vmem:[%s950 + $0xac] sm:$0xf]
        %v1268 = vld [vmem:[%s950 + $0xb4] sm:$0xf]
        %v1269 = vld [vmem:[%s950 + $0xb8] sm:$0xf]
        %v1270 = vld [vmem:[%s950 + $0x8] sm:$0x1]
        %v1271 = vld [vmem:[%s950 + $0x14] sm:$0x1]
        %v1272 = vld [vmem:[%s950 + $0x20] sm:$0x1]
        %v1273 = vld [vmem:[%s950 + $0x2c] sm:$0x1]
        %v1274 = vld [vmem:[%s950 + $0x38] sm:$0x1]
        %v1275 = vld [vmem:[%s950 + $0x44] sm:$0x1]
        %v1276 = vld [vmem:[%s950 + $0x50] sm:$0x1]
        %v1277 = vld [vmem:[%s950 + $0x5c] sm:$0x1]
        %v1278 = vld [vmem:[%s950 + $0x68] sm:$0x1]
        %v1279 = vld [vmem:[%s950 + $0x74] sm:$0x1]
        %v1280 = vld [vmem:[%s950 + $0x80] sm:$0x1]
        %v1281 = vld [vmem:[%s950 + $0x8c] sm:$0x1]
        %v1282 = vld [vmem:[%s950 + $0x98] sm:$0x1]
        %v1283 = vld [vmem:[%s950 + $0xa4] sm:$0x1]
        %v1284 = vld [vmem:[%s950 + $0xb0] sm:$0x1]
        %v1285 = vld [vmem:[%s950 + $0xbc] sm:$0x1]
        %v1286 = vld [vmem:[%s950] sm:$0xe]
        %v1287 = vld [vmem:[%s950 + $0xc] sm:$0xe]
        %v1288 = vld [vmem:[%s950 + $0x18] sm:$0xe]
        %v1289 = vld [vmem:[%s950 + $0x24] sm:$0xe]
        %v1290 = vld [vmem:[%s950 + $0x30] sm:$0xe]
        %v1291 = vld [vmem:[%s950 + $0x3c] sm:$0xe]
        %v1292 = vld [vmem:[%s950 + $0x48] sm:$0xe]
        %v1293 = vld [vmem:[%s950 + $0x54] sm:$0xe]
        %v1294 = vld [vmem:[%s950 + $0x60] sm:$0xe]
        %v1295 = vld [vmem:[%s950 + $0x6c] sm:$0xe]
        %v1296 = vld [vmem:[%s950 + $0x78] sm:$0xe]
        %v1297 = vld [vmem:[%s950 + $0x84] sm:$0xe]
        %v1298 = vld [vmem:[%s950 + $0x90] sm:$0xe]
        %v1299 = vld [vmem:[%s950 + $0x9c] sm:$0xe]
        %v1300 = vld [vmem:[%s950 + $0xa8] sm:$0xe]
        %v1301 = vld [vmem:[%s950 + $0xb4] sm:$0xe]
        %s1302 = scalar_lea.vmem [#allocation2], 24
        %v1303 = vld [vmem:[%s1302] sm:$0xf]
        %v1304 = vld [vmem:[%s1302 + $0x4] sm:$0xf]
        %v1305 = vld [vmem:[%s1302 + $0xc] sm:$0xf]
        %v1306 = vld [vmem:[%s1302 + $0x10] sm:$0xf]
        %v1307 = vld [vmem:[%s1302 + $0x18] sm:$0xf]
        %v1308 = vld [vmem:[%s1302 + $0x1c] sm:$0xf]
        %v1309 = vld [vmem:[%s1302 + $0x24] sm:$0xf]
        %v1310 = vld [vmem:[%s1302 + $0x28] sm:$0xf]
        %v1311 = vld [vmem:[%s1302 + $0x30] sm:$0xf]
        %v1312 = vld [vmem:[%s1302 + $0x34] sm:$0xf]
        %v1313 = vld [vmem:[%s1302 + $0x3c] sm:$0xf]
        %v1314 = vld [vmem:[%s1302 + $0x40] sm:$0xf]
        %v1315 = vld [vmem:[%s1302 + $0x48] sm:$0xf]
        %v1316 = vld [vmem:[%s1302 + $0x4c] sm:$0xf]
        %v1317 = vld [vmem:[%s1302 + $0x54] sm:$0xf]
        %v1318 = vld [vmem:[%s1302 + $0x58] sm:$0xf]
        %v1319 = vld [vmem:[%s1302 + $0x60] sm:$0xf]
        %v1320 = vld [vmem:[%s1302 + $0x64] sm:$0xf]
        %v1321 = vld [vmem:[%s1302 + $0x6c] sm:$0xf]
        %v1322 = vld [vmem:[%s1302 + $0x70] sm:$0xf]
        %v1323 = vld [vmem:[%s1302 + $0x78] sm:$0xf]
        %v1324 = vld [vmem:[%s1302 + $0x7c] sm:$0xf]
        %v1325 = vld [vmem:[%s1302 + $0x84] sm:$0xf]
        %v1326 = vld [vmem:[%s1302 + $0x88] sm:$0xf]
        %v1327 = vld [vmem:[%s1302 + $0x90] sm:$0xf]
        %v1328 = vld [vmem:[%s1302 + $0x94] sm:$0xf]
        %v1329 = vld [vmem:[%s1302 + $0x9c] sm:$0xf]
        %v1330 = vld [vmem:[%s1302 + $0xa0] sm:$0xf]
        %v1331 = vld [vmem:[%s1302 + $0xa8] sm:$0xf]
        %v1332 = vld [vmem:[%s1302 + $0xac] sm:$0xf]
        %v1333 = vld [vmem:[%s1302 + $0xb4] sm:$0xf]
        %v1334 = vld [vmem:[%s1302 + $0xb8] sm:$0xf]
        %v1335 = vld [vmem:[%s1302 + $0x8] sm:$0x1]
        %v1336 = vld [vmem:[%s1302 + $0x14] sm:$0x1]
        %v1337 = vld [vmem:[%s1302 + $0x20] sm:$0x1]
        %v1338 = vld [vmem:[%s1302 + $0x2c] sm:$0x1]
        %v1339 = vld [vmem:[%s1302 + $0x38] sm:$0x1]
        %v1340 = vld [vmem:[%s1302 + $0x44] sm:$0x1]
        %v1341 = vld [vmem:[%s1302 + $0x50] sm:$0x1]
        %v1342 = vld [vmem:[%s1302 + $0x5c] sm:$0x1]
        %v1343 = vld [vmem:[%s1302 + $0x68] sm:$0x1]
        %v1344 = vld [vmem:[%s1302 + $0x74] sm:$0x1]
        %v1345 = vld [vmem:[%s1302 + $0x80] sm:$0x1]
        %v1346 = vld [vmem:[%s1302 + $0x8c] sm:$0x1]
        %v1347 = vld [vmem:[%s1302 + $0x98] sm:$0x1]
        %v1348 = vld [vmem:[%s1302 + $0xa4] sm:$0x1]
        %v1349 = vld [vmem:[%s1302 + $0xb0] sm:$0x1]
        %v1350 = vld [vmem:[%s1302 + $0xbc] sm:$0x1]
        %v1351 = vld [vmem:[%s1302] sm:$0xe]
        %v1352 = vld [vmem:[%s1302 + $0xc] sm:$0xe]
        %v1353 = vld [vmem:[%s1302 + $0x18] sm:$0xe]
        %v1354 = vld [vmem:[%s1302 + $0x24] sm:$0xe]
        %v1355 = vld [vmem:[%s1302 + $0x30] sm:$0xe]
        %v1356 = vld [vmem:[%s1302 + $0x3c] sm:$0xe]
        %v1357 = vld [vmem:[%s1302 + $0x48] sm:$0xe]
        %v1358 = vld [vmem:[%s1302 + $0x54] sm:$0xe]
        %v1359 = vld [vmem:[%s1302 + $0x60] sm:$0xe]
        %v1360 = vld [vmem:[%s1302 + $0x6c] sm:$0xe]
        %v1361 = vld [vmem:[%s1302 + $0x78] sm:$0xe]
        %v1362 = vld [vmem:[%s1302 + $0x84] sm:$0xe]
        %v1363 = vld [vmem:[%s1302 + $0x90] sm:$0xe]
        %v1364 = vld [vmem:[%s1302 + $0x9c] sm:$0xe]
        %v1365 = vld [vmem:[%s1302 + $0xa8] sm:$0xe]
        %v1366 = vld [vmem:[%s1302 + $0xb4] sm:$0xe]
        %v1399 = vunpack.c.l.b16 %v1174
        %v1400 = vunpack.c.l.b16 %v1175
        %v1401 = vunpack.c.l.b16 %v1176
        %v1402 = vunpack.c.l.b16 %v1177
        %v1403 = vunpack.c.l.b16 %v1178
        %v1404 = vunpack.c.l.b16 %v1179
        %v1405 = vunpack.c.l.b16 %v1180
        %v1406 = vunpack.c.l.b16 %v1181
        %v1407 = vunpack.c.l.b16 %v1182
        %v1408 = vunpack.c.l.b16 %v1183
        %v1409 = vunpack.c.l.b16 %v1184
        %v1410 = vunpack.c.l.b16 %v1185
        %v1411 = vunpack.c.l.b16 %v1186
        %v1412 = vunpack.c.l.b16 %v1187
        %v1413 = vunpack.c.l.b16 %v1188
        %v1414 = vunpack.c.l.b16 %v1189
        %v1415 = vunpack.c.l.b16 %v1190
        %v1416 = vunpack.c.l.b16 %v1191
        %v1417 = vunpack.c.l.b16 %v1192
        %v1418 = vunpack.c.l.b16 %v1193
        %v1419 = vunpack.c.l.b16 %v1194
        %v1420 = vunpack.c.l.b16 %v1195
        %v1421 = vunpack.c.l.b16 %v1196
        %v1422 = vunpack.c.l.b16 %v1197
        %v1423 = vunpack.c.l.b16 %v1198
        %v1424 = vunpack.c.l.b16 %v1199
        %v1425 = vunpack.c.l.b16 %v1200
        %v1426 = vunpack.c.l.b16 %v1201
        %v1427 = vunpack.c.l.b16 %v1202
        %v1428 = vunpack.c.l.b16 %v1203
        %v1429 = vunpack.c.l.b16 %v1204
        %v1430 = vunpack.c.l.b16 %v1205
        %v1431 = vpack.c.b16 %v1400, %v1399
        %v1432 = vpack.c.b16 %v1402, %v1401
        %v1433 = vpack.c.b16 %v1404, %v1403
        %v1434 = vpack.c.b16 %v1406, %v1405
        %v1435 = vpack.c.b16 %v1408, %v1407
        %v1436 = vpack.c.b16 %v1410, %v1409
        %v1437 = vpack.c.b16 %v1412, %v1411
        %v1438 = vpack.c.b16 %v1414, %v1413
        %v1439 = vpack.c.b16 %v1416, %v1415
        %v1440 = vpack.c.b16 %v1418, %v1417
        %v1441 = vpack.c.b16 %v1420, %v1419
        %v1442 = vpack.c.b16 %v1422, %v1421
        %v1443 = vpack.c.b16 %v1424, %v1423
        %v1444 = vpack.c.b16 %v1426, %v1425
        %v1445 = vpack.c.b16 %v1428, %v1427
        %v1446 = vpack.c.b16 %v1430, %v1429
        %v1463 = vunpack.c.l.b16 %v1206
        %v1464 = vunpack.c.l.b16 %v1207
        %v1465 = vunpack.c.l.b16 %v1208
        %v1466 = vunpack.c.l.b16 %v1209
        %v1467 = vunpack.c.l.b16 %v1210
        %v1468 = vunpack.c.l.b16 %v1211
        %v1469 = vunpack.c.l.b16 %v1212
        %v1470 = vunpack.c.l.b16 %v1213
        %v1471 = vunpack.c.l.b16 %v1214
        %v1472 = vunpack.c.l.b16 %v1215
        %v1473 = vunpack.c.l.b16 %v1216
        %v1474 = vunpack.c.l.b16 %v1217
        %v1475 = vunpack.c.l.b16 %v1218
        %v1476 = vunpack.c.l.b16 %v1219
        %v1477 = vunpack.c.l.b16 %v1220
        %v1478 = vunpack.c.l.b16 %v1221
        %v1479 = vpack.c.b16 %v1463, %v1463
        %v1480 = vpack.c.b16 %v1464, %v1464
        %v1481 = vpack.c.b16 %v1465, %v1465
        %v1482 = vpack.c.b16 %v1466, %v1466
        %v1483 = vpack.c.b16 %v1467, %v1467
        %v1484 = vpack.c.b16 %v1468, %v1468
        %v1485 = vpack.c.b16 %v1469, %v1469
        %v1486 = vpack.c.b16 %v1470, %v1470
        %v1487 = vpack.c.b16 %v1471, %v1471
        %v1488 = vpack.c.b16 %v1472, %v1472
        %v1489 = vpack.c.b16 %v1473, %v1473
        %v1490 = vpack.c.b16 %v1474, %v1474
        %v1491 = vpack.c.b16 %v1475, %v1475
        %v1492 = vpack.c.b16 %v1476, %v1476
        %v1493 = vpack.c.b16 %v1477, %v1477
        %v1494 = vpack.c.b16 %v1478, %v1478
        %vm1495 = vsmask.f32 7424
        %v1497 = vshrl.u32 %v1431, 16
        %v1499 = vshll.u32 %v1431, 16
        %v1501 = vrot.slane %v1499, 1
        %v1502 = vor.u32 %v1497, %v1501
        %v1504 = vshll.u32 %v1479, 16
        %v1506 = vrot.slane %v1504, 1
        %v1507 = vsel %vm1495, %v1502, %v1506
        %v1509 = vshrl.u32 %v1432, 16
        %v1511 = vshll.u32 %v1432, 16
        %v1513 = vrot.slane %v1511, 1
        %v1514 = vor.u32 %v1509, %v1513
        %v1516 = vshll.u32 %v1480, 16
        %v1518 = vrot.slane %v1516, 1
        %v1519 = vsel %vm1495, %v1514, %v1518
        %v1521 = vshrl.u32 %v1433, 16
        %v1523 = vshll.u32 %v1433, 16
        %v1525 = vrot.slane %v1523, 1
        %v1526 = vor.u32 %v1521, %v1525
        %v1528 = vshll.u32 %v1481, 16
        %v1530 = vrot.slane %v1528, 1
        %v1531 = vsel %vm1495, %v1526, %v1530
        %v1533 = vshrl.u32 %v1434, 16
        %v1535 = vshll.u32 %v1434, 16
        %v1537 = vrot.slane %v1535, 1
        %v1538 = vor.u32 %v1533, %v1537
        %v1540 = vshll.u32 %v1482, 16
        %v1542 = vrot.slane %v1540, 1
        %v1543 = vsel %vm1495, %v1538, %v1542
        %v1545 = vshrl.u32 %v1435, 16
        %v1547 = vshll.u32 %v1435, 16
        %v1549 = vrot.slane %v1547, 1
        %v1550 = vor.u32 %v1545, %v1549
        %v1552 = vshll.u32 %v1483, 16
        %v1554 = vrot.slane %v1552, 1
        %v1555 = vsel %vm1495, %v1550, %v1554
        %v1557 = vshrl.u32 %v1436, 16
        %v1559 = vshll.u32 %v1436, 16
        %v1561 = vrot.slane %v1559, 1
        %v1562 = vor.u32 %v1557, %v1561
        %v1564 = vshll.u32 %v1484, 16
        %v1566 = vrot.slane %v1564, 1
        %v1567 = vsel %vm1495, %v1562, %v1566
        %v1569 = vshrl.u32 %v1437, 16
        %v1571 = vshll.u32 %v1437, 16
        %v1573 = vrot.slane %v1571, 1
        %v1574 = vor.u32 %v1569, %v1573
        %v1576 = vshll.u32 %v1485, 16
        %v1578 = vrot.slane %v1576, 1
        %v1579 = vsel %vm1495, %v1574, %v1578
        %v1581 = vshrl.u32 %v1438, 16
        %v1583 = vshll.u32 %v1438, 16
        %v1585 = vrot.slane %v1583, 1
        %v1586 = vor.u32 %v1581, %v1585
        %v1588 = vshll.u32 %v1486, 16
        %v1590 = vrot.slane %v1588, 1
        %v1591 = vsel %vm1495, %v1586, %v1590
        %v1593 = vshrl.u32 %v1439, 16
        %v1595 = vshll.u32 %v1439, 16
        %v1597 = vrot.slane %v1595, 1
        %v1598 = vor.u32 %v1593, %v1597
        %v1600 = vshll.u32 %v1487, 16
        %v1602 = vrot.slane %v1600, 1
        %v1603 = vsel %vm1495, %v1598, %v1602
        %v1605 = vshrl.u32 %v1440, 16
        %v1607 = vshll.u32 %v1440, 16
        %v1609 = vrot.slane %v1607, 1
        %v1610 = vor.u32 %v1605, %v1609
        %v1612 = vshll.u32 %v1488, 16
        %v1614 = vrot.slane %v1612, 1
        %v1615 = vsel %vm1495, %v1610, %v1614
        %v1617 = vshrl.u32 %v1441, 16
        %v1619 = vshll.u32 %v1441, 16
        %v1621 = vrot.slane %v1619, 1
        %v1622 = vor.u32 %v1617, %v1621
        %v1624 = vshll.u32 %v1489, 16
        %v1626 = vrot.slane %v1624, 1
        %v1627 = vsel %vm1495, %v1622, %v1626
        %v1629 = vshrl.u32 %v1442, 16
        %v1631 = vshll.u32 %v1442, 16
        %v1633 = vrot.slane %v1631, 1
        %v1634 = vor.u32 %v1629, %v1633
        %v1636 = vshll.u32 %v1490, 16
        %v1638 = vrot.slane %v1636, 1
        %v1639 = vsel %vm1495, %v1634, %v1638
        %v1641 = vshrl.u32 %v1443, 16
        %v1643 = vshll.u32 %v1443, 16
        %v1645 = vrot.slane %v1643, 1
        %v1646 = vor.u32 %v1641, %v1645
        %v1648 = vshll.u32 %v1491, 16
        %v1650 = vrot.slane %v1648, 1
        %v1651 = vsel %vm1495, %v1646, %v1650
        %v1653 = vshrl.u32 %v1444, 16
        %v1655 = vshll.u32 %v1444, 16
        %v1657 = vrot.slane %v1655, 1
        %v1658 = vor.u32 %v1653, %v1657
        %v1660 = vshll.u32 %v1492, 16
        %v1662 = vrot.slane %v1660, 1
        %v1663 = vsel %vm1495, %v1658, %v1662
        %v1665 = vshrl.u32 %v1445, 16
        %v1667 = vshll.u32 %v1445, 16
        %v1669 = vrot.slane %v1667, 1
        %v1670 = vor.u32 %v1665, %v1669
        %v1672 = vshll.u32 %v1493, 16
        %v1674 = vrot.slane %v1672, 1
        %v1675 = vsel %vm1495, %v1670, %v1674
        %v1677 = vshrl.u32 %v1446, 16
        %v1679 = vshll.u32 %v1446, 16
        %v1681 = vrot.slane %v1679, 1
        %v1682 = vor.u32 %v1677, %v1681
        %v1684 = vshll.u32 %v1494, 16
        %v1686 = vrot.slane %v1684, 1
        %v1687 = vsel %vm1495, %v1682, %v1686
        %1688 = vrot.lane.b32.xlu0 %v1507, 32
        %v1689 = vpop.permute.xlu0 %1688
        %1690 = vrot.lane.b32.xlu0 %v1519, 32
        %v1691 = vpop.permute.xlu0 %1690
        %1692 = vrot.lane.b32.xlu0 %v1531, 32
        %v1693 = vpop.permute.xlu0 %1692
        %1694 = vrot.lane.b32.xlu0 %v1543, 32
        %v1695 = vpop.permute.xlu0 %1694
        %1696 = vrot.lane.b32.xlu0 %v1555, 32
        %v1697 = vpop.permute.xlu0 %1696
        %1698 = vrot.lane.b32.xlu0 %v1567, 32
        %v1699 = vpop.permute.xlu0 %1698
        %1700 = vrot.lane.b32.xlu0 %v1579, 32
        %v1701 = vpop.permute.xlu0 %1700
        %1702 = vrot.lane.b32.xlu0 %v1591, 32
        %v1703 = vpop.permute.xlu0 %1702
        %1704 = vrot.lane.b32.xlu0 %v1603, 32
        %v1705 = vpop.permute.xlu0 %1704
        %1706 = vrot.lane.b32.xlu0 %v1615, 32
        %v1707 = vpop.permute.xlu0 %1706
        %1708 = vrot.lane.b32.xlu0 %v1627, 32
        %v1709 = vpop.permute.xlu0 %1708
        %1710 = vrot.lane.b32.xlu0 %v1639, 32
        %v1711 = vpop.permute.xlu0 %1710
        %1712 = vrot.lane.b32.xlu0 %v1651, 32
        %v1713 = vpop.permute.xlu0 %1712
        %1714 = vrot.lane.b32.xlu0 %v1663, 32
        %v1715 = vpop.permute.xlu0 %1714
        %1716 = vrot.lane.b32.xlu0 %v1675, 32
        %v1717 = vpop.permute.xlu0 %1716
        %1718 = vrot.lane.b32.xlu0 %v1687, 32
        %v1719 = vpop.permute.xlu0 %1718
        %v1736 = vunpack.c.l.b16 %v1222
        %v1737 = vunpack.c.l.b16 %v1223
        %v1738 = vunpack.c.l.b16 %v1224
        %v1739 = vunpack.c.l.b16 %v1225
        %v1740 = vunpack.c.l.b16 %v1226
        %v1741 = vunpack.c.l.b16 %v1227
        %v1742 = vunpack.c.l.b16 %v1228
        %v1743 = vunpack.c.l.b16 %v1229
        %v1744 = vunpack.c.l.b16 %v1230
        %v1745 = vunpack.c.l.b16 %v1231
        %v1746 = vunpack.c.l.b16 %v1232
        %v1747 = vunpack.c.l.b16 %v1233
        %v1748 = vunpack.c.l.b16 %v1234
        %v1749 = vunpack.c.l.b16 %v1235
        %v1750 = vunpack.c.l.b16 %v1236
        %v1751 = vunpack.c.l.b16 %v1237
        %v1752 = vpack.c.b16 %v1400, %v1736
        %v1753 = vpack.c.b16 %v1402, %v1737
        %v1754 = vpack.c.b16 %v1404, %v1738
        %v1755 = vpack.c.b16 %v1406, %v1739
        %v1756 = vpack.c.b16 %v1408, %v1740
        %v1757 = vpack.c.b16 %v1410, %v1741
        %v1758 = vpack.c.b16 %v1412, %v1742
        %v1759 = vpack.c.b16 %v1414, %v1743
        %v1760 = vpack.c.b16 %v1416, %v1744
        %v1761 = vpack.c.b16 %v1418, %v1745
        %v1762 = vpack.c.b16 %v1420, %v1746
        %v1763 = vpack.c.b16 %v1422, %v1747
        %v1764 = vpack.c.b16 %v1424, %v1748
        %v1765 = vpack.c.b16 %v1426, %v1749
        %v1766 = vpack.c.b16 %v1428, %v1750
        %v1767 = vpack.c.b16 %v1430, %v1751
        %vm1768 = vcmask 1046528
        %v1769 = vrot.slane %v1752, 1
        %v1770 = vrot.slane %v1479, 1
        %v1771 = vsel %vm1768, %v1769, %v1770
        %v1772 = vrot.slane %v1753, 1
        %v1773 = vrot.slane %v1480, 1
        %v1774 = vsel %vm1768, %v1772, %v1773
        %v1775 = vrot.slane %v1754, 1
        %v1776 = vrot.slane %v1481, 1
        %v1777 = vsel %vm1768, %v1775, %v1776
        %v1778 = vrot.slane %v1755, 1
        %v1779 = vrot.slane %v1482, 1
        %v1780 = vsel %vm1768, %v1778, %v1779
        %v1781 = vrot.slane %v1756, 1
        %v1782 = vrot.slane %v1483, 1
        %v1783 = vsel %vm1768, %v1781, %v1782
        %v1784 = vrot.slane %v1757, 1
        %v1785 = vrot.slane %v1484, 1
        %v1786 = vsel %vm1768, %v1784, %v1785
        %v1787 = vrot.slane %v1758, 1
        %v1788 = vrot.slane %v1485, 1
        %v1789 = vsel %vm1768, %v1787, %v1788
        %v1790 = vrot.slane %v1759, 1
        %v1791 = vrot.slane %v1486, 1
        %v1792 = vsel %vm1768, %v1790, %v1791
        %v1793 = vrot.slane %v1760, 1
        %v1794 = vrot.slane %v1487, 1
        %v1795 = vsel %vm1768, %v1793, %v1794
        %v1796 = vrot.slane %v1761, 1
        %v1797 = vrot.slane %v1488, 1
        %v1798 = vsel %vm1768, %v1796, %v1797
        %v1799 = vrot.slane %v1762, 1
        %v1800 = vrot.slane %v1489, 1
        %v1801 = vsel %vm1768, %v1799, %v1800
        %v1802 = vrot.slane %v1763, 1
        %v1803 = vrot.slane %v1490, 1
        %v1804 = vsel %vm1768, %v1802, %v1803
        %v1805 = vrot.slane %v1764, 1
        %v1806 = vrot.slane %v1491, 1
        %v1807 = vsel %vm1768, %v1805, %v1806
        %v1808 = vrot.slane %v1765, 1
        %v1809 = vrot.slane %v1492, 1
        %v1810 = vsel %vm1768, %v1808, %v1809
        %v1811 = vrot.slane %v1766, 1
        %v1812 = vrot.slane %v1493, 1
        %v1813 = vsel %vm1768, %v1811, %v1812
        %v1814 = vrot.slane %v1767, 1
        %v1815 = vrot.slane %v1494, 1
        %v1816 = vsel %vm1768, %v1814, %v1815
        %1817 = vrot.lane.b32.xlu0 %v1771, 64
        %v1818 = vpop.permute.xlu0 %1817
        %1819 = vrot.lane.b32.xlu0 %v1774, 64
        %v1820 = vpop.permute.xlu0 %1819
        %1821 = vrot.lane.b32.xlu0 %v1777, 64
        %v1822 = vpop.permute.xlu0 %1821
        %1823 = vrot.lane.b32.xlu0 %v1780, 64
        %v1824 = vpop.permute.xlu0 %1823
        %1825 = vrot.lane.b32.xlu0 %v1783, 64
        %v1826 = vpop.permute.xlu0 %1825
        %1827 = vrot.lane.b32.xlu0 %v1786, 64
        %v1828 = vpop.permute.xlu0 %1827
        %1829 = vrot.lane.b32.xlu0 %v1789, 64
        %v1830 = vpop.permute.xlu0 %1829
        %1831 = vrot.lane.b32.xlu0 %v1792, 64
        %v1832 = vpop.permute.xlu0 %1831
        %1833 = vrot.lane.b32.xlu0 %v1795, 64
        %v1834 = vpop.permute.xlu0 %1833
        %1835 = vrot.lane.b32.xlu0 %v1798, 64
        %v1836 = vpop.permute.xlu0 %1835
        %1837 = vrot.lane.b32.xlu0 %v1801, 64
        %v1838 = vpop.permute.xlu0 %1837
        %1839 = vrot.lane.b32.xlu0 %v1804, 64
        %v1840 = vpop.permute.xlu0 %1839
        %1841 = vrot.lane.b32.xlu0 %v1807, 64
        %v1842 = vpop.permute.xlu0 %1841
        %1843 = vrot.lane.b32.xlu0 %v1810, 64
        %v1844 = vpop.permute.xlu0 %1843
        %1845 = vrot.lane.b32.xlu0 %v1813, 64
        %v1846 = vpop.permute.xlu0 %1845
        %1847 = vrot.lane.b32.xlu0 %v1816, 64
        %v1848 = vpop.permute.xlu0 %1847
        %v1881 = vunpack.c.l.b16 %v1238
        %v1882 = vunpack.c.l.b16 %v1239
        %v1883 = vunpack.c.l.b16 %v1240
        %v1884 = vunpack.c.l.b16 %v1241
        %v1885 = vunpack.c.l.b16 %v1242
        %v1886 = vunpack.c.l.b16 %v1243
        %v1887 = vunpack.c.l.b16 %v1244
        %v1888 = vunpack.c.l.b16 %v1245
        %v1889 = vunpack.c.l.b16 %v1246
        %v1890 = vunpack.c.l.b16 %v1247
        %v1891 = vunpack.c.l.b16 %v1248
        %v1892 = vunpack.c.l.b16 %v1249
        %v1893 = vunpack.c.l.b16 %v1250
        %v1894 = vunpack.c.l.b16 %v1251
        %v1895 = vunpack.c.l.b16 %v1252
        %v1896 = vunpack.c.l.b16 %v1253
        %v1897 = vunpack.c.l.b16 %v1254
        %v1898 = vunpack.c.l.b16 %v1255
        %v1899 = vunpack.c.l.b16 %v1256
        %v1900 = vunpack.c.l.b16 %v1257
        %v1901 = vunpack.c.l.b16 %v1258
        %v1902 = vunpack.c.l.b16 %v1259
        %v1903 = vunpack.c.l.b16 %v1260
        %v1904 = vunpack.c.l.b16 %v1261
        %v1905 = vunpack.c.l.b16 %v1262
        %v1906 = vunpack.c.l.b16 %v1263
        %v1907 = vunpack.c.l.b16 %v1264
        %v1908 = vunpack.c.l.b16 %v1265
        %v1909 = vunpack.c.l.b16 %v1266
        %v1910 = vunpack.c.l.b16 %v1267
        %v1911 = vunpack.c.l.b16 %v1268
        %v1912 = vunpack.c.l.b16 %v1269
        %v1913 = vpack.c.b16 %v1882, %v1881
        %v1914 = vpack.c.b16 %v1884, %v1883
        %v1915 = vpack.c.b16 %v1886, %v1885
        %v1916 = vpack.c.b16 %v1888, %v1887
        %v1917 = vpack.c.b16 %v1890, %v1889
        %v1918 = vpack.c.b16 %v1892, %v1891
        %v1919 = vpack.c.b16 %v1894, %v1893
        %v1920 = vpack.c.b16 %v1896, %v1895
        %v1921 = vpack.c.b16 %v1898, %v1897
        %v1922 = vpack.c.b16 %v1900, %v1899
        %v1923 = vpack.c.b16 %v1902, %v1901
        %v1924 = vpack.c.b16 %v1904, %v1903
        %v1925 = vpack.c.b16 %v1906, %v1905
        %v1926 = vpack.c.b16 %v1908, %v1907
        %v1927 = vpack.c.b16 %v1910, %v1909
        %v1928 = vpack.c.b16 %v1912, %v1911
        %1929 = vrot.lane.b32.xlu0 %v1913, 96
        %v1930 = vpop.permute.xlu0 %1929
        %1931 = vrot.lane.b32.xlu0 %v1914, 96
        %v1932 = vpop.permute.xlu0 %1931
        %1933 = vrot.lane.b32.xlu0 %v1915, 96
        %v1934 = vpop.permute.xlu0 %1933
        %1935 = vrot.lane.b32.xlu0 %v1916, 96
        %v1936 = vpop.permute.xlu0 %1935
        %1937 = vrot.lane.b32.xlu0 %v1917, 96
        %v1938 = vpop.permute.xlu0 %1937
        %1939 = vrot.lane.b32.xlu0 %v1918, 96
        %v1940 = vpop.permute.xlu0 %1939
        %1941 = vrot.lane.b32.xlu0 %v1919, 96
        %v1942 = vpop.permute.xlu0 %1941
        %1943 = vrot.lane.b32.xlu0 %v1920, 96
        %v1944 = vpop.permute.xlu0 %1943
        %1945 = vrot.lane.b32.xlu0 %v1921, 96
        %v1946 = vpop.permute.xlu0 %1945
        %1947 = vrot.lane.b32.xlu0 %v1922, 96
        %v1948 = vpop.permute.xlu0 %1947
        %1949 = vrot.lane.b32.xlu0 %v1923, 96
        %v1950 = vpop.permute.xlu0 %1949
        %1951 = vrot.lane.b32.xlu0 %v1924, 96
        %v1952 = vpop.permute.xlu0 %1951
        %1953 = vrot.lane.b32.xlu0 %v1925, 96
        %v1954 = vpop.permute.xlu0 %1953
        %1955 = vrot.lane.b32.xlu0 %v1926, 96
        %v1956 = vpop.permute.xlu0 %1955
        %1957 = vrot.lane.b32.xlu0 %v1927, 96
        %v1958 = vpop.permute.xlu0 %1957
        %1959 = vrot.lane.b32.xlu0 %v1928, 96
        %v1960 = vpop.permute.xlu0 %1959
        %v1977 = vunpack.c.l.b16 %v1270
        %v1978 = vunpack.c.l.b16 %v1271
        %v1979 = vunpack.c.l.b16 %v1272
        %v1980 = vunpack.c.l.b16 %v1273
        %v1981 = vunpack.c.l.b16 %v1274
        %v1982 = vunpack.c.l.b16 %v1275
        %v1983 = vunpack.c.l.b16 %v1276
        %v1984 = vunpack.c.l.b16 %v1277
        %v1985 = vunpack.c.l.b16 %v1278
        %v1986 = vunpack.c.l.b16 %v1279
        %v1987 = vunpack.c.l.b16 %v1280
        %v1988 = vunpack.c.l.b16 %v1281
        %v1989 = vunpack.c.l.b16 %v1282
        %v1990 = vunpack.c.l.b16 %v1283
        %v1991 = vunpack.c.l.b16 %v1284
        %v1992 = vunpack.c.l.b16 %v1285
        %v1993 = vpack.c.b16 %v1977, %v1977
        %v1994 = vpack.c.b16 %v1978, %v1978
        %v1995 = vpack.c.b16 %v1979, %v1979
        %v1996 = vpack.c.b16 %v1980, %v1980
        %v1997 = vpack.c.b16 %v1981, %v1981
        %v1998 = vpack.c.b16 %v1982, %v1982
        %v1999 = vpack.c.b16 %v1983, %v1983
        %v2000 = vpack.c.b16 %v1984, %v1984
        %v2001 = vpack.c.b16 %v1985, %v1985
        %v2002 = vpack.c.b16 %v1986, %v1986
        %v2003 = vpack.c.b16 %v1987, %v1987
        %v2004 = vpack.c.b16 %v1988, %v1988
        %v2005 = vpack.c.b16 %v1989, %v1989
        %v2006 = vpack.c.b16 %v1990, %v1990
        %v2007 = vpack.c.b16 %v1991, %v1991
        %v2008 = vpack.c.b16 %v1992, %v1992
        %v2010 = vshrl.u32 %v1913, 16
        %v2012 = vshll.u32 %v1913, 16
        %v2014 = vrot.slane %v2012, 1
        %v2015 = vor.u32 %v2010, %v2014
        %v2017 = vshll.u32 %v1993, 16
        %v2019 = vrot.slane %v2017, 1
        %v2020 = vsel %vm1495, %v2015, %v2019
        %v2022 = vshrl.u32 %v1914, 16
        %v2024 = vshll.u32 %v1914, 16
        %v2026 = vrot.slane %v2024, 1
        %v2027 = vor.u32 %v2022, %v2026
        %v2029 = vshll.u32 %v1994, 16
        %v2031 = vrot.slane %v2029, 1
        %v2032 = vsel %vm1495, %v2027, %v2031
        %v2034 = vshrl.u32 %v1915, 16
        %v2036 = vshll.u32 %v1915, 16
        %v2038 = vrot.slane %v2036, 1
        %v2039 = vor.u32 %v2034, %v2038
        %v2041 = vshll.u32 %v1995, 16
        %v2043 = vrot.slane %v2041, 1
        %v2044 = vsel %vm1495, %v2039, %v2043
        %v2046 = vshrl.u32 %v1916, 16
        %v2048 = vshll.u32 %v1916, 16
        %v2050 = vrot.slane %v2048, 1
        %v2051 = vor.u32 %v2046, %v2050
        %v2053 = vshll.u32 %v1996, 16
        %v2055 = vrot.slane %v2053, 1
        %v2056 = vsel %vm1495, %v2051, %v2055
        %v2058 = vshrl.u32 %v1917, 16
        %v2060 = vshll.u32 %v1917, 16
        %v2062 = vrot.slane %v2060, 1
        %v2063 = vor.u32 %v2058, %v2062
        %v2065 = vshll.u32 %v1997, 16
        %v2067 = vrot.slane %v2065, 1
        %v2068 = vsel %vm1495, %v2063, %v2067
        %v2070 = vshrl.u32 %v1918, 16
        %v2072 = vshll.u32 %v1918, 16
        %v2074 = vrot.slane %v2072, 1
        %v2075 = vor.u32 %v2070, %v2074
        %v2077 = vshll.u32 %v1998, 16
        %v2079 = vrot.slane %v2077, 1
        %v2080 = vsel %vm1495, %v2075, %v2079
        %v2082 = vshrl.u32 %v1919, 16
        %v2084 = vshll.u32 %v1919, 16
        %v2086 = vrot.slane %v2084, 1
        %v2087 = vor.u32 %v2082, %v2086
        %v2089 = vshll.u32 %v1999, 16
        %v2091 = vrot.slane %v2089, 1
        %v2092 = vsel %vm1495, %v2087, %v2091
        %v2094 = vshrl.u32 %v1920, 16
        %v2096 = vshll.u32 %v1920, 16
        %v2098 = vrot.slane %v2096, 1
        %v2099 = vor.u32 %v2094, %v2098
        %v2101 = vshll.u32 %v2000, 16
        %v2103 = vrot.slane %v2101, 1
        %v2104 = vsel %vm1495, %v2099, %v2103
        %v2106 = vshrl.u32 %v1921, 16
        %v2108 = vshll.u32 %v1921, 16
        %v2110 = vrot.slane %v2108, 1
        %v2111 = vor.u32 %v2106, %v2110
        %v2113 = vshll.u32 %v2001, 16
        %v2115 = vrot.slane %v2113, 1
        %v2116 = vsel %vm1495, %v2111, %v2115
        %v2118 = vshrl.u32 %v1922, 16
        %v2120 = vshll.u32 %v1922, 16
        %v2122 = vrot.slane %v2120, 1
        %v2123 = vor.u32 %v2118, %v2122
        %v2125 = vshll.u32 %v2002, 16
        %v2127 = vrot.slane %v2125, 1
        %v2128 = vsel %vm1495, %v2123, %v2127
        %v2130 = vshrl.u32 %v1923, 16
        %v2132 = vshll.u32 %v1923, 16
        %v2134 = vrot.slane %v2132, 1
        %v2135 = vor.u32 %v2130, %v2134
        %v2137 = vshll.u32 %v2003, 16
        %v2139 = vrot.slane %v2137, 1
        %v2140 = vsel %vm1495, %v2135, %v2139
        %v2142 = vshrl.u32 %v1924, 16
        %v2144 = vshll.u32 %v1924, 16
        %v2146 = vrot.slane %v2144, 1
        %v2147 = vor.u32 %v2142, %v2146
        %v2149 = vshll.u32 %v2004, 16
        %v2151 = vrot.slane %v2149, 1
        %v2152 = vsel %vm1495, %v2147, %v2151
        %v2154 = vshrl.u32 %v1925, 16
        %v2156 = vshll.u32 %v1925, 16
        %v2158 = vrot.slane %v2156, 1
        %v2159 = vor.u32 %v2154, %v2158
        %v2161 = vshll.u32 %v2005, 16
        %v2163 = vrot.slane %v2161, 1
        %v2164 = vsel %vm1495, %v2159, %v2163
        %v2166 = vshrl.u32 %v1926, 16
        %v2168 = vshll.u32 %v1926, 16
        %v2170 = vrot.slane %v2168, 1
        %v2171 = vor.u32 %v2166, %v2170
        %v2173 = vshll.u32 %v2006, 16
        %v2175 = vrot.slane %v2173, 1
        %v2176 = vsel %vm1495, %v2171, %v2175
        %v2178 = vshrl.u32 %v1927, 16
        %v2180 = vshll.u32 %v1927, 16
        %v2182 = vrot.slane %v2180, 1
        %v2183 = vor.u32 %v2178, %v2182
        %v2185 = vshll.u32 %v2007, 16
        %v2187 = vrot.slane %v2185, 1
        %v2188 = vsel %vm1495, %v2183, %v2187
        %v2190 = vshrl.u32 %v1928, 16
        %v2192 = vshll.u32 %v1928, 16
        %v2194 = vrot.slane %v2192, 1
        %v2195 = vor.u32 %v2190, %v2194
        %v2197 = vshll.u32 %v2008, 16
        %v2199 = vrot.slane %v2197, 1
        %v2200 = vsel %vm1495, %v2195, %v2199
        %v2217 = vunpack.c.l.b16 %v1286
        %v2218 = vunpack.c.l.b16 %v1287
        %v2219 = vunpack.c.l.b16 %v1288
        %v2220 = vunpack.c.l.b16 %v1289
        %v2221 = vunpack.c.l.b16 %v1290
        %v2222 = vunpack.c.l.b16 %v1291
        %v2223 = vunpack.c.l.b16 %v1292
        %v2224 = vunpack.c.l.b16 %v1293
        %v2225 = vunpack.c.l.b16 %v1294
        %v2226 = vunpack.c.l.b16 %v1295
        %v2227 = vunpack.c.l.b16 %v1296
        %v2228 = vunpack.c.l.b16 %v1297
        %v2229 = vunpack.c.l.b16 %v1298
        %v2230 = vunpack.c.l.b16 %v1299
        %v2231 = vunpack.c.l.b16 %v1300
        %v2232 = vunpack.c.l.b16 %v1301
        %v2233 = vpack.c.b16 %v1882, %v2217
        %v2234 = vpack.c.b16 %v1884, %v2218
        %v2235 = vpack.c.b16 %v1886, %v2219
        %v2236 = vpack.c.b16 %v1888, %v2220
        %v2237 = vpack.c.b16 %v1890, %v2221
        %v2238 = vpack.c.b16 %v1892, %v2222
        %v2239 = vpack.c.b16 %v1894, %v2223
        %v2240 = vpack.c.b16 %v1896, %v2224
        %v2241 = vpack.c.b16 %v1898, %v2225
        %v2242 = vpack.c.b16 %v1900, %v2226
        %v2243 = vpack.c.b16 %v1902, %v2227
        %v2244 = vpack.c.b16 %v1904, %v2228
        %v2245 = vpack.c.b16 %v1906, %v2229
        %v2246 = vpack.c.b16 %v1908, %v2230
        %v2247 = vpack.c.b16 %v1910, %v2231
        %v2248 = vpack.c.b16 %v1912, %v2232
        %v2249 = vrot.slane %v2233, 1
        %v2250 = vrot.slane %v1993, 1
        %v2251 = vsel %vm1768, %v2249, %v2250
        %v2252 = vrot.slane %v2234, 1
        %v2253 = vrot.slane %v1994, 1
        %v2254 = vsel %vm1768, %v2252, %v2253
        %v2255 = vrot.slane %v2235, 1
        %v2256 = vrot.slane %v1995, 1
        %v2257 = vsel %vm1768, %v2255, %v2256
        %v2258 = vrot.slane %v2236, 1
        %v2259 = vrot.slane %v1996, 1
        %v2260 = vsel %vm1768, %v2258, %v2259
        %v2261 = vrot.slane %v2237, 1
        %v2262 = vrot.slane %v1997, 1
        %v2263 = vsel %vm1768, %v2261, %v2262
        %v2264 = vrot.slane %v2238, 1
        %v2265 = vrot.slane %v1998, 1
        %v2266 = vsel %vm1768, %v2264, %v2265
        %v2267 = vrot.slane %v2239, 1
        %v2268 = vrot.slane %v1999, 1
        %v2269 = vsel %vm1768, %v2267, %v2268
        %v2270 = vrot.slane %v2240, 1
        %v2271 = vrot.slane %v2000, 1
        %v2272 = vsel %vm1768, %v2270, %v2271
        %v2273 = vrot.slane %v2241, 1
        %v2274 = vrot.slane %v2001, 1
        %v2275 = vsel %vm1768, %v2273, %v2274
        %v2276 = vrot.slane %v2242, 1
        %v2277 = vrot.slane %v2002, 1
        %v2278 = vsel %vm1768, %v2276, %v2277
        %v2279 = vrot.slane %v2243, 1
        %v2280 = vrot.slane %v2003, 1
        %v2281 = vsel %vm1768, %v2279, %v2280
        %v2282 = vrot.slane %v2244, 1
        %v2283 = vrot.slane %v2004, 1
        %v2284 = vsel %vm1768, %v2282, %v2283
        %v2285 = vrot.slane %v2245, 1
        %v2286 = vrot.slane %v2005, 1
        %v2287 = vsel %vm1768, %v2285, %v2286
        %v2288 = vrot.slane %v2246, 1
        %v2289 = vrot.slane %v2006, 1
        %v2290 = vsel %vm1768, %v2288, %v2289
        %v2291 = vrot.slane %v2247, 1
        %v2292 = vrot.slane %v2007, 1
        %v2293 = vsel %vm1768, %v2291, %v2292
        %v2294 = vrot.slane %v2248, 1
        %v2295 = vrot.slane %v2008, 1
        %v2296 = vsel %vm1768, %v2294, %v2295
        %2297 = vrot.lane.b32.xlu0 %v2251, 32
        %v2298 = vpop.permute.xlu0 %2297
        %2299 = vrot.lane.b32.xlu0 %v2254, 32
        %v2300 = vpop.permute.xlu0 %2299
        %2301 = vrot.lane.b32.xlu0 %v2257, 32
        %v2302 = vpop.permute.xlu0 %2301
        %2303 = vrot.lane.b32.xlu0 %v2260, 32
        %v2304 = vpop.permute.xlu0 %2303
        %2305 = vrot.lane.b32.xlu0 %v2263, 32
        %v2306 = vpop.permute.xlu0 %2305
        %2307 = vrot.lane.b32.xlu0 %v2266, 32
        %v2308 = vpop.permute.xlu0 %2307
        %2309 = vrot.lane.b32.xlu0 %v2269, 32
        %v2310 = vpop.permute.xlu0 %2309
        %2311 = vrot.lane.b32.xlu0 %v2272, 32
        %v2312 = vpop.permute.xlu0 %2311
        %2313 = vrot.lane.b32.xlu0 %v2275, 32
        %v2314 = vpop.permute.xlu0 %2313
        %2315 = vrot.lane.b32.xlu0 %v2278, 32
        %v2316 = vpop.permute.xlu0 %2315
        %2317 = vrot.lane.b32.xlu0 %v2281, 32
        %v2318 = vpop.permute.xlu0 %2317
        %2319 = vrot.lane.b32.xlu0 %v2284, 32
        %v2320 = vpop.permute.xlu0 %2319
        %2321 = vrot.lane.b32.xlu0 %v2287, 32
        %v2322 = vpop.permute.xlu0 %2321
        %2323 = vrot.lane.b32.xlu0 %v2290, 32
        %v2324 = vpop.permute.xlu0 %2323
        %2325 = vrot.lane.b32.xlu0 %v2293, 32
        %v2326 = vpop.permute.xlu0 %2325
        %2327 = vrot.lane.b32.xlu0 %v2296, 32
        %v2328 = vpop.permute.xlu0 %2327
        %v2361 = vunpack.c.l.b16 %v1303
        %v2362 = vunpack.c.l.b16 %v1304
        %v2363 = vunpack.c.l.b16 %v1305
        %v2364 = vunpack.c.l.b16 %v1306
        %v2365 = vunpack.c.l.b16 %v1307
        %v2366 = vunpack.c.l.b16 %v1308
        %v2367 = vunpack.c.l.b16 %v1309
        %v2368 = vunpack.c.l.b16 %v1310
        %v2369 = vunpack.c.l.b16 %v1311
        %v2370 = vunpack.c.l.b16 %v1312
        %v2371 = vunpack.c.l.b16 %v1313
        %v2372 = vunpack.c.l.b16 %v1314
        %v2373 = vunpack.c.l.b16 %v1315
        %v2374 = vunpack.c.l.b16 %v1316
        %v2375 = vunpack.c.l.b16 %v1317
        %v2376 = vunpack.c.l.b16 %v1318
        %v2377 = vunpack.c.l.b16 %v1319
        %v2378 = vunpack.c.l.b16 %v1320
        %v2379 = vunpack.c.l.b16 %v1321
        %v2380 = vunpack.c.l.b16 %v1322
        %v2381 = vunpack.c.l.b16 %v1323
        %v2382 = vunpack.c.l.b16 %v1324
        %v2383 = vunpack.c.l.b16 %v1325
        %v2384 = vunpack.c.l.b16 %v1326
        %v2385 = vunpack.c.l.b16 %v1327
        %v2386 = vunpack.c.l.b16 %v1328
        %v2387 = vunpack.c.l.b16 %v1329
        %v2388 = vunpack.c.l.b16 %v1330
        %v2389 = vunpack.c.l.b16 %v1331
        %v2390 = vunpack.c.l.b16 %v1332
        %v2391 = vunpack.c.l.b16 %v1333
        %v2392 = vunpack.c.l.b16 %v1334
        %v2393 = vpack.c.b16 %v2362, %v2361
        %v2394 = vpack.c.b16 %v2364, %v2363
        %v2395 = vpack.c.b16 %v2366, %v2365
        %v2396 = vpack.c.b16 %v2368, %v2367
        %v2397 = vpack.c.b16 %v2370, %v2369
        %v2398 = vpack.c.b16 %v2372, %v2371
        %v2399 = vpack.c.b16 %v2374, %v2373
        %v2400 = vpack.c.b16 %v2376, %v2375
        %v2401 = vpack.c.b16 %v2378, %v2377
        %v2402 = vpack.c.b16 %v2380, %v2379
        %v2403 = vpack.c.b16 %v2382, %v2381
        %v2404 = vpack.c.b16 %v2384, %v2383
        %v2405 = vpack.c.b16 %v2386, %v2385
        %v2406 = vpack.c.b16 %v2388, %v2387
        %v2407 = vpack.c.b16 %v2390, %v2389
        %v2408 = vpack.c.b16 %v2392, %v2391
        %2409 = vrot.lane.b32.xlu0 %v2393, 64
        %v2410 = vpop.permute.xlu0 %2409
        %2411 = vrot.lane.b32.xlu0 %v2394, 64
        %v2412 = vpop.permute.xlu0 %2411
        %2413 = vrot.lane.b32.xlu0 %v2395, 64
        %v2414 = vpop.permute.xlu0 %2413
        %2415 = vrot.lane.b32.xlu0 %v2396, 64
        %v2416 = vpop.permute.xlu0 %2415
        %2417 = vrot.lane.b32.xlu0 %v2397, 64
        %v2418 = vpop.permute.xlu0 %2417
        %2419 = vrot.lane.b32.xlu0 %v2398, 64
        %v2420 = vpop.permute.xlu0 %2419
        %2421 = vrot.lane.b32.xlu0 %v2399, 64
        %v2422 = vpop.permute.xlu0 %2421
        %2423 = vrot.lane.b32.xlu0 %v2400, 64
        %v2424 = vpop.permute.xlu0 %2423
        %2425 = vrot.lane.b32.xlu0 %v2401, 64
        %v2426 = vpop.permute.xlu0 %2425
        %2427 = vrot.lane.b32.xlu0 %v2402, 64
        %v2428 = vpop.permute.xlu0 %2427
        %2429 = vrot.lane.b32.xlu0 %v2403, 64
        %v2430 = vpop.permute.xlu0 %2429
        %2431 = vrot.lane.b32.xlu0 %v2404, 64
        %v2432 = vpop.permute.xlu0 %2431
        %2433 = vrot.lane.b32.xlu0 %v2405, 64
        %v2434 = vpop.permute.xlu0 %2433
        %2435 = vrot.lane.b32.xlu0 %v2406, 64
        %v2436 = vpop.permute.xlu0 %2435
        %2437 = vrot.lane.b32.xlu0 %v2407, 64
        %v2438 = vpop.permute.xlu0 %2437
        %2439 = vrot.lane.b32.xlu0 %v2408, 64
        %v2440 = vpop.permute.xlu0 %2439
        %v2457 = vunpack.c.l.b16 %v1335
        %v2458 = vunpack.c.l.b16 %v1336
        %v2459 = vunpack.c.l.b16 %v1337
        %v2460 = vunpack.c.l.b16 %v1338
        %v2461 = vunpack.c.l.b16 %v1339
        %v2462 = vunpack.c.l.b16 %v1340
        %v2463 = vunpack.c.l.b16 %v1341
        %v2464 = vunpack.c.l.b16 %v1342
        %v2465 = vunpack.c.l.b16 %v1343
        %v2466 = vunpack.c.l.b16 %v1344
        %v2467 = vunpack.c.l.b16 %v1345
        %v2468 = vunpack.c.l.b16 %v1346
        %v2469 = vunpack.c.l.b16 %v1347
        %v2470 = vunpack.c.l.b16 %v1348
        %v2471 = vunpack.c.l.b16 %v1349
        %v2472 = vunpack.c.l.b16 %v1350
        %v2473 = vpack.c.b16 %v2457, %v2457
        %v2474 = vpack.c.b16 %v2458, %v2458
        %v2475 = vpack.c.b16 %v2459, %v2459
        %v2476 = vpack.c.b16 %v2460, %v2460
        %v2477 = vpack.c.b16 %v2461, %v2461
        %v2478 = vpack.c.b16 %v2462, %v2462
        %v2479 = vpack.c.b16 %v2463, %v2463
        %v2480 = vpack.c.b16 %v2464, %v2464
        %v2481 = vpack.c.b16 %v2465, %v2465
        %v2482 = vpack.c.b16 %v2466, %v2466
        %v2483 = vpack.c.b16 %v2467, %v2467
        %v2484 = vpack.c.b16 %v2468, %v2468
        %v2485 = vpack.c.b16 %v2469, %v2469
        %v2486 = vpack.c.b16 %v2470, %v2470
        %v2487 = vpack.c.b16 %v2471, %v2471
        %v2488 = vpack.c.b16 %v2472, %v2472
        %v2490 = vshrl.u32 %v2393, 16
        %v2492 = vshll.u32 %v2393, 16
        %v2494 = vrot.slane %v2492, 1
        %v2495 = vor.u32 %v2490, %v2494
        %v2497 = vshll.u32 %v2473, 16
        %v2499 = vrot.slane %v2497, 1
        %v2500 = vsel %vm1495, %v2495, %v2499
        %v2502 = vshrl.u32 %v2394, 16
        %v2504 = vshll.u32 %v2394, 16
        %v2506 = vrot.slane %v2504, 1
        %v2507 = vor.u32 %v2502, %v2506
        %v2509 = vshll.u32 %v2474, 16
        %v2511 = vrot.slane %v2509, 1
        %v2512 = vsel %vm1495, %v2507, %v2511
        %v2514 = vshrl.u32 %v2395, 16
        %v2516 = vshll.u32 %v2395, 16
        %v2518 = vrot.slane %v2516, 1
        %v2519 = vor.u32 %v2514, %v2518
        %v2521 = vshll.u32 %v2475, 16
        %v2523 = vrot.slane %v2521, 1
        %v2524 = vsel %vm1495, %v2519, %v2523
        %v2526 = vshrl.u32 %v2396, 16
        %v2528 = vshll.u32 %v2396, 16
        %v2530 = vrot.slane %v2528, 1
        %v2531 = vor.u32 %v2526, %v2530
        %v2533 = vshll.u32 %v2476, 16
        %v2535 = vrot.slane %v2533, 1
        %v2536 = vsel %vm1495, %v2531, %v2535
        %v2538 = vshrl.u32 %v2397, 16
        %v2540 = vshll.u32 %v2397, 16
        %v2542 = vrot.slane %v2540, 1
        %v2543 = vor.u32 %v2538, %v2542
        %v2545 = vshll.u32 %v2477, 16
        %v2547 = vrot.slane %v2545, 1
        %v2548 = vsel %vm1495, %v2543, %v2547
        %v2550 = vshrl.u32 %v2398, 16
        %v2552 = vshll.u32 %v2398, 16
        %v2554 = vrot.slane %v2552, 1
        %v2555 = vor.u32 %v2550, %v2554
        %v2557 = vshll.u32 %v2478, 16
        %v2559 = vrot.slane %v2557, 1
        %v2560 = vsel %vm1495, %v2555, %v2559
        %v2562 = vshrl.u32 %v2399, 16
        %v2564 = vshll.u32 %v2399, 16
        %v2566 = vrot.slane %v2564, 1
        %v2567 = vor.u32 %v2562, %v2566
        %v2569 = vshll.u32 %v2479, 16
        %v2571 = vrot.slane %v2569, 1
        %v2572 = vsel %vm1495, %v2567, %v2571
        %v2574 = vshrl.u32 %v2400, 16
        %v2576 = vshll.u32 %v2400, 16
        %v2578 = vrot.slane %v2576, 1
        %v2579 = vor.u32 %v2574, %v2578
        %v2581 = vshll.u32 %v2480, 16
        %v2583 = vrot.slane %v2581, 1
        %v2584 = vsel %vm1495, %v2579, %v2583
        %v2586 = vshrl.u32 %v2401, 16
        %v2588 = vshll.u32 %v2401, 16
        %v2590 = vrot.slane %v2588, 1
        %v2591 = vor.u32 %v2586, %v2590
        %v2593 = vshll.u32 %v2481, 16
        %v2595 = vrot.slane %v2593, 1
        %v2596 = vsel %vm1495, %v2591, %v2595
        %v2598 = vshrl.u32 %v2402, 16
        %v2600 = vshll.u32 %v2402, 16
        %v2602 = vrot.slane %v2600, 1
        %v2603 = vor.u32 %v2598, %v2602
        %v2605 = vshll.u32 %v2482, 16
        %v2607 = vrot.slane %v2605, 1
        %v2608 = vsel %vm1495, %v2603, %v2607
        %v2610 = vshrl.u32 %v2403, 16
        %v2612 = vshll.u32 %v2403, 16
        %v2614 = vrot.slane %v2612, 1
        %v2615 = vor.u32 %v2610, %v2614
        %v2617 = vshll.u32 %v2483, 16
        %v2619 = vrot.slane %v2617, 1
        %v2620 = vsel %vm1495, %v2615, %v2619
        %v2622 = vshrl.u32 %v2404, 16
        %v2624 = vshll.u32 %v2404, 16
        %v2626 = vrot.slane %v2624, 1
        %v2627 = vor.u32 %v2622, %v2626
        %v2629 = vshll.u32 %v2484, 16
        %v2631 = vrot.slane %v2629, 1
        %v2632 = vsel %vm1495, %v2627, %v2631
        %v2634 = vshrl.u32 %v2405, 16
        %v2636 = vshll.u32 %v2405, 16
        %v2638 = vrot.slane %v2636, 1
        %v2639 = vor.u32 %v2634, %v2638
        %v2641 = vshll.u32 %v2485, 16
        %v2643 = vrot.slane %v2641, 1
        %v2644 = vsel %vm1495, %v2639, %v2643
        %v2646 = vshrl.u32 %v2406, 16
        %v2648 = vshll.u32 %v2406, 16
        %v2650 = vrot.slane %v2648, 1
        %v2651 = vor.u32 %v2646, %v2650
        %v2653 = vshll.u32 %v2486, 16
        %v2655 = vrot.slane %v2653, 1
        %v2656 = vsel %vm1495, %v2651, %v2655
        %v2658 = vshrl.u32 %v2407, 16
        %v2660 = vshll.u32 %v2407, 16
        %v2662 = vrot.slane %v2660, 1
        %v2663 = vor.u32 %v2658, %v2662
        %v2665 = vshll.u32 %v2487, 16
        %v2667 = vrot.slane %v2665, 1
        %v2668 = vsel %vm1495, %v2663, %v2667
        %v2670 = vshrl.u32 %v2408, 16
        %v2672 = vshll.u32 %v2408, 16
        %v2674 = vrot.slane %v2672, 1
        %v2675 = vor.u32 %v2670, %v2674
        %v2677 = vshll.u32 %v2488, 16
        %v2679 = vrot.slane %v2677, 1
        %v2680 = vsel %vm1495, %v2675, %v2679
        %2681 = vrot.lane.b32.xlu0 %v2500, 96
        %v2682 = vpop.permute.xlu0 %2681
        %2683 = vrot.lane.b32.xlu0 %v2512, 96
        %v2684 = vpop.permute.xlu0 %2683
        %2685 = vrot.lane.b32.xlu0 %v2524, 96
        %v2686 = vpop.permute.xlu0 %2685
        %2687 = vrot.lane.b32.xlu0 %v2536, 96
        %v2688 = vpop.permute.xlu0 %2687
        %2689 = vrot.lane.b32.xlu0 %v2548, 96
        %v2690 = vpop.permute.xlu0 %2689
        %2691 = vrot.lane.b32.xlu0 %v2560, 96
        %v2692 = vpop.permute.xlu0 %2691
        %2693 = vrot.lane.b32.xlu0 %v2572, 96
        %v2694 = vpop.permute.xlu0 %2693
        %2695 = vrot.lane.b32.xlu0 %v2584, 96
        %v2696 = vpop.permute.xlu0 %2695
        %2697 = vrot.lane.b32.xlu0 %v2596, 96
        %v2698 = vpop.permute.xlu0 %2697
        %2699 = vrot.lane.b32.xlu0 %v2608, 96
        %v2700 = vpop.permute.xlu0 %2699
        %2701 = vrot.lane.b32.xlu0 %v2620, 96
        %v2702 = vpop.permute.xlu0 %2701
        %2703 = vrot.lane.b32.xlu0 %v2632, 96
        %v2704 = vpop.permute.xlu0 %2703
        %2705 = vrot.lane.b32.xlu0 %v2644, 96
        %v2706 = vpop.permute.xlu0 %2705
        %2707 = vrot.lane.b32.xlu0 %v2656, 96
        %v2708 = vpop.permute.xlu0 %2707
        %2709 = vrot.lane.b32.xlu0 %v2668, 96
        %v2710 = vpop.permute.xlu0 %2709
        %2711 = vrot.lane.b32.xlu0 %v2680, 96
        %v2712 = vpop.permute.xlu0 %2711
        %v2729 = vunpack.c.l.b16 %v1351
        %v2730 = vunpack.c.l.b16 %v1352
        %v2731 = vunpack.c.l.b16 %v1353
        %v2732 = vunpack.c.l.b16 %v1354
        %v2733 = vunpack.c.l.b16 %v1355
        %v2734 = vunpack.c.l.b16 %v1356
        %v2735 = vunpack.c.l.b16 %v1357
        %v2736 = vunpack.c.l.b16 %v1358
        %v2737 = vunpack.c.l.b16 %v1359
        %v2738 = vunpack.c.l.b16 %v1360
        %v2739 = vunpack.c.l.b16 %v1361
        %v2740 = vunpack.c.l.b16 %v1362
        %v2741 = vunpack.c.l.b16 %v1363
        %v2742 = vunpack.c.l.b16 %v1364
        %v2743 = vunpack.c.l.b16 %v1365
        %v2744 = vunpack.c.l.b16 %v1366
        %v2745 = vpack.c.b16 %v2362, %v2729
        %v2746 = vpack.c.b16 %v2364, %v2730
        %v2747 = vpack.c.b16 %v2366, %v2731
        %v2748 = vpack.c.b16 %v2368, %v2732
        %v2749 = vpack.c.b16 %v2370, %v2733
        %v2750 = vpack.c.b16 %v2372, %v2734
        %v2751 = vpack.c.b16 %v2374, %v2735
        %v2752 = vpack.c.b16 %v2376, %v2736
        %v2753 = vpack.c.b16 %v2378, %v2737
        %v2754 = vpack.c.b16 %v2380, %v2738
        %v2755 = vpack.c.b16 %v2382, %v2739
        %v2756 = vpack.c.b16 %v2384, %v2740
        %v2757 = vpack.c.b16 %v2386, %v2741
        %v2758 = vpack.c.b16 %v2388, %v2742
        %v2759 = vpack.c.b16 %v2390, %v2743
        %v2760 = vpack.c.b16 %v2392, %v2744
        %v2761 = vrot.slane %v2745, 1
        %v2762 = vrot.slane %v2473, 1
        %v2763 = vsel %vm1768, %v2761, %v2762
        %v2764 = vrot.slane %v2746, 1
        %v2765 = vrot.slane %v2474, 1
        %v2766 = vsel %vm1768, %v2764, %v2765
        %v2767 = vrot.slane %v2747, 1
        %v2768 = vrot.slane %v2475, 1
        %v2769 = vsel %vm1768, %v2767, %v2768
        %v2770 = vrot.slane %v2748, 1
        %v2771 = vrot.slane %v2476, 1
        %v2772 = vsel %vm1768, %v2770, %v2771
        %v2773 = vrot.slane %v2749, 1
        %v2774 = vrot.slane %v2477, 1
        %v2775 = vsel %vm1768, %v2773, %v2774
        %v2776 = vrot.slane %v2750, 1
        %v2777 = vrot.slane %v2478, 1
        %v2778 = vsel %vm1768, %v2776, %v2777
        %v2779 = vrot.slane %v2751, 1
        %v2780 = vrot.slane %v2479, 1
        %v2781 = vsel %vm1768, %v2779, %v2780
        %v2782 = vrot.slane %v2752, 1
        %v2783 = vrot.slane %v2480, 1
        %v2784 = vsel %vm1768, %v2782, %v2783
        %v2785 = vrot.slane %v2753, 1
        %v2786 = vrot.slane %v2481, 1
        %v2787 = vsel %vm1768, %v2785, %v2786
        %v2788 = vrot.slane %v2754, 1
        %v2789 = vrot.slane %v2482, 1
        %v2790 = vsel %vm1768, %v2788, %v2789
        %v2791 = vrot.slane %v2755, 1
        %v2792 = vrot.slane %v2483, 1
        %v2793 = vsel %vm1768, %v2791, %v2792
        %v2794 = vrot.slane %v2756, 1
        %v2795 = vrot.slane %v2484, 1
        %v2796 = vsel %vm1768, %v2794, %v2795
        %v2797 = vrot.slane %v2757, 1
        %v2798 = vrot.slane %v2485, 1
        %v2799 = vsel %vm1768, %v2797, %v2798
        %v2800 = vrot.slane %v2758, 1
        %v2801 = vrot.slane %v2486, 1
        %v2802 = vsel %vm1768, %v2800, %v2801
        %v2803 = vrot.slane %v2759, 1
        %v2804 = vrot.slane %v2487, 1
        %v2805 = vsel %vm1768, %v2803, %v2804
        %v2806 = vrot.slane %v2760, 1
        %v2807 = vrot.slane %v2488, 1
        %v2808 = vsel %vm1768, %v2806, %v2807
        %vm2809 = vcmask 261120
        %v2811 = vsel %vm2809, %v1431, %v1689
        %v2813 = vsel %vm2809, %v1432, %v1691
        %v2815 = vsel %vm2809, %v1433, %v1693
        %v2817 = vsel %vm2809, %v1434, %v1695
        %v2819 = vsel %vm2809, %v1435, %v1697
        %v2821 = vsel %vm2809, %v1436, %v1699
        %v2823 = vsel %vm2809, %v1437, %v1701
        %v2825 = vsel %vm2809, %v1438, %v1703
        %v2827 = vsel %vm2809, %v1439, %v1705
        %v2829 = vsel %vm2809, %v1440, %v1707
        %v2831 = vsel %vm2809, %v1441, %v1709
        %v2833 = vsel %vm2809, %v1442, %v1711
        %v2835 = vsel %vm2809, %v1443, %v1713
        %v2837 = vsel %vm2809, %v1444, %v1715
        %v2839 = vsel %vm2809, %v1445, %v1717
        %v2841 = vsel %vm2809, %v1446, %v1719
        %vm2842 = vcmask 523264
        %v2844 = vsel %vm2842, %v2811, %v1818
        %v2846 = vsel %vm2842, %v2813, %v1820
        %v2848 = vsel %vm2842, %v2815, %v1822
        %v2850 = vsel %vm2842, %v2817, %v1824
        %v2852 = vsel %vm2842, %v2819, %v1826
        %v2854 = vsel %vm2842, %v2821, %v1828
        %v2856 = vsel %vm2842, %v2823, %v1830
        %v2858 = vsel %vm2842, %v2825, %v1832
        %v2860 = vsel %vm2842, %v2827, %v1834
        %v2862 = vsel %vm2842, %v2829, %v1836
        %v2864 = vsel %vm2842, %v2831, %v1838
        %v2866 = vsel %vm2842, %v2833, %v1840
        %v2868 = vsel %vm2842, %v2835, %v1842
        %v2870 = vsel %vm2842, %v2837, %v1844
        %v2872 = vsel %vm2842, %v2839, %v1846
        %v2874 = vsel %vm2842, %v2841, %v1848
        %vm2875 = vcmask 785408
        %v2877 = vsel %vm2875, %v2844, %v1930
        %v2880 = vsel %vm2875, %v2846, %v1932
        %v2883 = vsel %vm2875, %v2848, %v1934
        %v2886 = vsel %vm2875, %v2850, %v1936
        %v2889 = vsel %vm2875, %v2852, %v1938
        %v2892 = vsel %vm2875, %v2854, %v1940
        %v2895 = vsel %vm2875, %v2856, %v1942
        %v2898 = vsel %vm2875, %v2858, %v1944
        %v2901 = vsel %vm2875, %v2860, %v1946
        %v2904 = vsel %vm2875, %v2862, %v1948
        %v2907 = vsel %vm2875, %v2864, %v1950
        %v2910 = vsel %vm2875, %v2866, %v1952
        %v2913 = vsel %vm2875, %v2868, %v1954
        %v2916 = vsel %vm2875, %v2870, %v1956
        %v2919 = vsel %vm2875, %v2872, %v1958
        %v2922 = vsel %vm2875, %v2874, %v1960
        %v2926 = vsel %vm2809, %v2020, %v2298
        %v2929 = vsel %vm2809, %v2032, %v2300
        %v2932 = vsel %vm2809, %v2044, %v2302
        %v2935 = vsel %vm2809, %v2056, %v2304
        %v2938 = vsel %vm2809, %v2068, %v2306
        %v2941 = vsel %vm2809, %v2080, %v2308
        %v2944 = vsel %vm2809, %v2092, %v2310
        %v2947 = vsel %vm2809, %v2104, %v2312
        %v2950 = vsel %vm2809, %v2116, %v2314
        %v2953 = vsel %vm2809, %v2128, %v2316
        %v2956 = vsel %vm2809, %v2140, %v2318
        %v2959 = vsel %vm2809, %v2152, %v2320
        %v2962 = vsel %vm2809, %v2164, %v2322
        %v2965 = vsel %vm2809, %v2176, %v2324
        %v2968 = vsel %vm2809, %v2188, %v2326
        %v2971 = vsel %vm2809, %v2200, %v2328
        %v2973 = vsel %vm2842, %v2926, %v2410
        %v2975 = vsel %vm2842, %v2929, %v2412
        %v2977 = vsel %vm2842, %v2932, %v2414
        %v2979 = vsel %vm2842, %v2935, %v2416
        %v2981 = vsel %vm2842, %v2938, %v2418
        %v2983 = vsel %vm2842, %v2941, %v2420
        %v2985 = vsel %vm2842, %v2944, %v2422
        %v2987 = vsel %vm2842, %v2947, %v2424
        %v2989 = vsel %vm2842, %v2950, %v2426
        %v2991 = vsel %vm2842, %v2953, %v2428
        %v2993 = vsel %vm2842, %v2956, %v2430
        %v2995 = vsel %vm2842, %v2959, %v2432
        %v2997 = vsel %vm2842, %v2962, %v2434
        %v2999 = vsel %vm2842, %v2965, %v2436
        %v3001 = vsel %vm2842, %v2968, %v2438
        %v3003 = vsel %vm2842, %v2971, %v2440
        %v3005 = vsel %vm2875, %v2973, %v2682
        %v3008 = vsel %vm2875, %v2975, %v2684
        %v3011 = vsel %vm2875, %v2977, %v2686
        %v3014 = vsel %vm2875, %v2979, %v2688
        %v3017 = vsel %vm2875, %v2981, %v2690
        %v3020 = vsel %vm2875, %v2983, %v2692
        %v3023 = vsel %vm2875, %v2985, %v2694
        %v3026 = vsel %vm2875, %v2987, %v2696
        %v3029 = vsel %vm2875, %v2989, %v2698
        %v3032 = vsel %vm2875, %v2991, %v2700
        %v3035 = vsel %vm2875, %v2993, %v2702
        %v3038 = vsel %vm2875, %v2995, %v2704
        %v3041 = vsel %vm2875, %v2997, %v2706
        %v3044 = vsel %vm2875, %v2999, %v2708
        %v3047 = vsel %vm2875, %v3001, %v2710
        %v3050 = vsel %vm2875, %v3003, %v2712
        %v3052 = vld [vmem:[%s3] sm:$0xf]
        %v3053 = vld [vmem:[%s3 + $0x4] sm:$0xf]
        %v3054 = vld [vmem:[%s3 + $0x8] sm:$0xf]
        %v3055 = vld [vmem:[%s3 + $0xc] sm:$0xf]
        %v3056 = vld [vmem:[%s3 + $0x10] sm:$0xf]
        %v3057 = vld [vmem:[%s3 + $0x14] sm:$0xf]
        %v3058 = vld [vmem:[%s3 + $0x18] sm:$0xf]
        %v3059 = vld [vmem:[%s3 + $0x1c] sm:$0xf]
        %v3060 = vld [vmem:[%s3 + $0x20] sm:$0xf]
        %v3061 = vld [vmem:[%s3 + $0x24] sm:$0xf]
        %v3062 = vld [vmem:[%s3 + $0x28] sm:$0xf]
        %v3063 = vld [vmem:[%s3 + $0x2c] sm:$0xf]
        %v3064 = vld [vmem:[%s3 + $0x30] sm:$0xf]
        %v3065 = vld [vmem:[%s3 + $0x34] sm:$0xf]
        %v3066 = vld [vmem:[%s3 + $0x38] sm:$0xf]
        %v3067 = vld [vmem:[%s3 + $0x3c] sm:$0xf]
        %v3068 = vld [vmem:[%s3 + $0x40] sm:$0xf]
        %v3069 = vld [vmem:[%s3 + $0x44] sm:$0xf]
        %v3070 = vld [vmem:[%s3 + $0x48] sm:$0xf]
        %v3071 = vld [vmem:[%s3 + $0x4c] sm:$0xf]
        %v3072 = vld [vmem:[%s3 + $0x50] sm:$0xf]
        %v3073 = vld [vmem:[%s3 + $0x54] sm:$0xf]
        %v3074 = vld [vmem:[%s3 + $0x58] sm:$0xf]
        %v3075 = vld [vmem:[%s3 + $0x5c] sm:$0xf]
        %v3076 = vld [vmem:[%s3 + $0x60] sm:$0xf]
        %v3077 = vld [vmem:[%s3 + $0x64] sm:$0xf]
        %v3078 = vld [vmem:[%s3 + $0x68] sm:$0xf]
        %v3079 = vld [vmem:[%s3 + $0x6c] sm:$0xf]
        %v3080 = vld [vmem:[%s3 + $0x70] sm:$0xf]
        %v3081 = vld [vmem:[%s3 + $0x74] sm:$0xf]
        %v3082 = vld [vmem:[%s3 + $0x78] sm:$0xf]
        %v3083 = vld [vmem:[%s3 + $0x7c] sm:$0xf]
        %v3084 = vld [vmem:[%s3 + $0x80] sm:$0xf]
        %v3085 = vld [vmem:[%s3 + $0x84] sm:$0xf]
        %v3086 = vld [vmem:[%s3 + $0x88] sm:$0xf]
        %v3087 = vld [vmem:[%s3 + $0x8c] sm:$0xf]
        %v3088 = vld [vmem:[%s4] sm:$0x1]
        %v3090 = vperm.slane %v3088, 0
        %v3128 = vunpack.c.l.b16 %v3052
        %v3129 = vunpack.c.l.b16 %v3053
        %v3130 = vunpack.c.l.b16 %v3054
        %v3131 = vunpack.c.l.b16 %v3055
        %v3132 = vunpack.c.l.b16 %v3056
        %v3133 = vunpack.c.l.b16 %v3057
        %v3134 = vunpack.c.l.b16 %v3058
        %v3135 = vunpack.c.l.b16 %v3059
        %v3136 = vunpack.c.l.b16 %v3060
        %v3137 = vunpack.c.l.b16 %v3061
        %v3138 = vunpack.c.l.b16 %v3062
        %v3139 = vunpack.c.l.b16 %v3063
        %v3140 = vunpack.c.l.b16 %v3064
        %v3141 = vunpack.c.l.b16 %v3065
        %v3142 = vunpack.c.l.b16 %v3066
        %v3143 = vunpack.c.l.b16 %v3067
        %v3144 = vunpack.c.l.b16 %v3068
        %v3145 = vunpack.c.l.b16 %v3069
        %v3146 = vunpack.c.l.b16 %v3070
        %v3147 = vunpack.c.l.b16 %v3071
        %v3148 = vunpack.c.l.b16 %v3072
        %v3149 = vunpack.c.l.b16 %v3073
        %v3150 = vunpack.c.l.b16 %v3074
        %v3151 = vunpack.c.l.b16 %v3075
        %v3152 = vunpack.c.l.b16 %v3076
        %v3153 = vunpack.c.l.b16 %v3077
        %v3154 = vunpack.c.l.b16 %v3078
        %v3155 = vunpack.c.l.b16 %v3079
        %v3156 = vunpack.c.l.b16 %v3080
        %v3157 = vunpack.c.l.b16 %v3081
        %v3158 = vunpack.c.l.b16 %v3082
        %v3159 = vunpack.c.l.b16 %v3083
        %v3160 = vunpack.c.l.b16 %v3084
        %v3161 = vunpack.c.l.b16 %v3085
        %v3162 = vunpack.c.l.b16 %v3086
        %v3163 = vunpack.c.l.b16 %v3087
        %v3164 = vpack.c.b16 %v3129, %v3128
        %v3165 = vpack.c.b16 %v3131, %v3130
        %v3166 = vpack.c.b16 %v3133, %v3132
        %v3167 = vpack.c.b16 %v3135, %v3134
        %v3168 = vpack.c.b16 %v3137, %v3136
        %v3169 = vpack.c.b16 %v3139, %v3138
        %v3170 = vpack.c.b16 %v3141, %v3140
        %v3171 = vpack.c.b16 %v3143, %v3142
        %v3172 = vpack.c.b16 %v3145, %v3144
        %v3173 = vpack.c.b16 %v3147, %v3146
        %v3174 = vpack.c.b16 %v3149, %v3148
        %v3175 = vpack.c.b16 %v3151, %v3150
        %v3176 = vpack.c.b16 %v3153, %v3152
        %v3177 = vpack.c.b16 %v3155, %v3154
        %v3178 = vpack.c.b16 %v3157, %v3156
        %v3179 = vpack.c.b16 %v3159, %v3158
        %v3180 = vpack.c.b16 %v3161, %v3160
        %v3181 = vpack.c.b16 %v3163, %v3162
        %v3201 = vsel %vm2809, %v2763, 0
        %v3204 = vsel %vm2809, %v2766, 0
        %v3207 = vsel %vm2809, %v2769, 0
        %v3210 = vsel %vm2809, %v2772, 0
        %v3213 = vsel %vm2809, %v2775, 0
        %v3216 = vsel %vm2809, %v2778, 0
        %v3219 = vsel %vm2809, %v2781, 0
        %v3222 = vsel %vm2809, %v2784, 0
        %v3225 = vsel %vm2809, %v2787, 0
        %v3228 = vsel %vm2809, %v2790, 0
        %v3231 = vsel %vm2809, %v2793, 0
        %v3234 = vsel %vm2809, %v2796, 0
        %v3237 = vsel %vm2809, %v2799, 0
        %v3240 = vsel %vm2809, %v2802, 0
        %v3243 = vsel %vm2809, %v2805, 0
        %v3246 = vsel %vm2809, %v2808, 0
        %3248 = vmatpush.bf16.msra.mxu0 %v3171
        %3249 = vmatpush.bf16.msra.mxu0 %v3170
        %3250 = vmatpush.bf16.msra.mxu0 %v3169
        %3251 = vmatpush.bf16.msra.mxu0 %v3168
        %3252 = vmatpush.bf16.msra.mxu0 %v3167
        %3253 = vmatpush.bf16.msra.mxu0 %v3166
        %3254 = vmatpush.bf16.msra.mxu0 %v3165
        %3255 = vmatpush.bf16.msra.mxu0 %v3164
        %3256 = vmatmul.bf16.gmra.mxu0 %v2877
        %v3257 = vpop.f32.mrf.mxu0
        %v3258 = vadd.f32 %v3090, %v3257
        %v3259 = vpop.f32.mrf.mxu0
        %v3260 = vadd.f32 %v3090, %v3259
        %3261 = vmatmul.bf16.gmra.mxu0 %v2880
        %v3262 = vpop.f32.mrf.mxu0
        %v3263 = vadd.f32 %v3090, %v3262
        %v3264 = vpop.f32.mrf.mxu0
        %v3265 = vadd.f32 %v3090, %v3264
        %3266 = vmatmul.bf16.gmra.mxu0 %v2883
        %v3267 = vpop.f32.mrf.mxu0
        %v3268 = vadd.f32 %v3090, %v3267
        %v3269 = vpop.f32.mrf.mxu0
        %v3270 = vadd.f32 %v3090, %v3269
        %3271 = vmatmul.bf16.gmra.mxu0 %v2886
        %v3272 = vpop.f32.mrf.mxu0
        %v3273 = vadd.f32 %v3090, %v3272
        %v3274 = vpop.f32.mrf.mxu0
        %v3275 = vadd.f32 %v3090, %v3274
        %3276 = vmatmul.bf16.gmra.mxu0 %v2889
        %v3277 = vpop.f32.mrf.mxu0
        %v3278 = vadd.f32 %v3090, %v3277
        %v3279 = vpop.f32.mrf.mxu0
        %v3280 = vadd.f32 %v3090, %v3279
        %3281 = vmatmul.bf16.gmra.mxu0 %v2892
        %v3282 = vpop.f32.mrf.mxu0
        %v3283 = vadd.f32 %v3090, %v3282
        %v3284 = vpop.f32.mrf.mxu0
        %v3285 = vadd.f32 %v3090, %v3284
        %3286 = vmatmul.bf16.gmra.mxu0 %v2895
        %v3287 = vpop.f32.mrf.mxu0
        %v3288 = vadd.f32 %v3090, %v3287
        %v3289 = vpop.f32.mrf.mxu0
        %v3290 = vadd.f32 %v3090, %v3289
        %3291 = vmatmul.bf16.gmra.mxu0 %v2898
        %v3292 = vpop.f32.mrf.mxu0
        %v3293 = vadd.f32 %v3090, %v3292
        %v3294 = vpop.f32.mrf.mxu0
        %v3295 = vadd.f32 %v3090, %v3294
        %3296 = vmatmul.bf16.gmra.mxu0 %v2901
        %v3297 = vpop.f32.mrf.mxu0
        %v3298 = vadd.f32 %v3090, %v3297
        %v3299 = vpop.f32.mrf.mxu0
        %v3300 = vadd.f32 %v3090, %v3299
        %3301 = vmatmul.bf16.gmra.mxu0 %v2904
        %v3302 = vpop.f32.mrf.mxu0
        %v3303 = vadd.f32 %v3090, %v3302
        %v3304 = vpop.f32.mrf.mxu0
        %v3305 = vadd.f32 %v3090, %v3304
        %3306 = vmatmul.bf16.gmra.mxu0 %v2907
        %v3307 = vpop.f32.mrf.mxu0
        %v3308 = vadd.f32 %v3090, %v3307
        %v3309 = vpop.f32.mrf.mxu0
        %v3310 = vadd.f32 %v3090, %v3309
        %3311 = vmatmul.bf16.gmra.mxu0 %v2910
        %v3312 = vpop.f32.mrf.mxu0
        %v3313 = vadd.f32 %v3090, %v3312
        %v3314 = vpop.f32.mrf.mxu0
        %v3315 = vadd.f32 %v3090, %v3314
        %3316 = vmatmul.bf16.gmra.mxu0 %v2913
        %v3317 = vpop.f32.mrf.mxu0
        %v3318 = vadd.f32 %v3090, %v3317
        %v3319 = vpop.f32.mrf.mxu0
        %v3320 = vadd.f32 %v3090, %v3319
        %3321 = vmatmul.bf16.gmra.mxu0 %v2916
        %v3322 = vpop.f32.mrf.mxu0
        %v3323 = vadd.f32 %v3090, %v3322
        %v3324 = vpop.f32.mrf.mxu0
        %v3325 = vadd.f32 %v3090, %v3324
        %3326 = vmatmul.bf16.gmra.mxu0 %v2919
        %v3327 = vpop.f32.mrf.mxu0
        %v3328 = vadd.f32 %v3090, %v3327
        %v3329 = vpop.f32.mrf.mxu0
        %v3330 = vadd.f32 %v3090, %v3329
        %3331 = vmatmul.bf16.gmra.mxu0 %v2922
        %v3332 = vpop.f32.mrf.mxu0
        %v3333 = vadd.f32 %v3090, %v3332
        %v3334 = vpop.f32.mrf.mxu0
        %v3335 = vadd.f32 %v3090, %v3334
        %3336 = vdwg.mxu0
        %3337 = vmatpush.bf16.msra.mxu0 %v3179
        %3338 = vmatpush.bf16.msra.mxu0 %v3178
        %3339 = vmatpush.bf16.msra.mxu0 %v3177
        %3340 = vmatpush.bf16.msra.mxu0 %v3176
        %3341 = vmatpush.bf16.msra.mxu0 %v3175
        %3342 = vmatpush.bf16.msra.mxu0 %v3174
        %3343 = vmatpush.bf16.msra.mxu0 %v3173
        %3344 = vmatpush.bf16.msra.mxu0 %v3172
        %3345 = vmatmul.bf16.gmra.mxu0 %v3005
        %v3346 = vpop.f32.mrf.mxu0
        %v3347 = vadd.f32 %v3258, %v3346
        %v3348 = vpop.f32.mrf.mxu0
        %v3349 = vadd.f32 %v3260, %v3348
        %3350 = vmatmul.bf16.gmra.mxu0 %v3008
        %v3351 = vpop.f32.mrf.mxu0
        %v3352 = vadd.f32 %v3263, %v3351
        %v3353 = vpop.f32.mrf.mxu0
        %v3354 = vadd.f32 %v3265, %v3353
        %3355 = vmatmul.bf16.gmra.mxu0 %v3011
        %v3356 = vpop.f32.mrf.mxu0
        %v3357 = vadd.f32 %v3268, %v3356
        %v3358 = vpop.f32.mrf.mxu0
        %v3359 = vadd.f32 %v3270, %v3358
        %3360 = vmatmul.bf16.gmra.mxu0 %v3014
        %v3361 = vpop.f32.mrf.mxu0
        %v3362 = vadd.f32 %v3273, %v3361
        %v3363 = vpop.f32.mrf.mxu0
        %v3364 = vadd.f32 %v3275, %v3363
        %3365 = vmatmul.bf16.gmra.mxu0 %v3017
        %v3366 = vpop.f32.mrf.mxu0
        %v3367 = vadd.f32 %v3278, %v3366
        %v3368 = vpop.f32.mrf.mxu0
        %v3369 = vadd.f32 %v3280, %v3368
        %3370 = vmatmul.bf16.gmra.mxu0 %v3020
        %v3371 = vpop.f32.mrf.mxu0
        %v3372 = vadd.f32 %v3283, %v3371
        %v3373 = vpop.f32.mrf.mxu0
        %v3374 = vadd.f32 %v3285, %v3373
        %3375 = vmatmul.bf16.gmra.mxu0 %v3023
        %v3376 = vpop.f32.mrf.mxu0
        %v3377 = vadd.f32 %v3288, %v3376
        %v3378 = vpop.f32.mrf.mxu0
        %v3379 = vadd.f32 %v3290, %v3378
        %3380 = vmatmul.bf16.gmra.mxu0 %v3026
        %v3381 = vpop.f32.mrf.mxu0
        %v3382 = vadd.f32 %v3293, %v3381
        %v3383 = vpop.f32.mrf.mxu0
        %v3384 = vadd.f32 %v3295, %v3383
        %3385 = vmatmul.bf16.gmra.mxu0 %v3029
        %v3386 = vpop.f32.mrf.mxu0
        %v3387 = vadd.f32 %v3298, %v3386
        %v3388 = vpop.f32.mrf.mxu0
        %v3389 = vadd.f32 %v3300, %v3388
        %3390 = vmatmul.bf16.gmra.mxu0 %v3032
        %v3391 = vpop.f32.mrf.mxu0
        %v3392 = vadd.f32 %v3303, %v3391
        %v3393 = vpop.f32.mrf.mxu0
        %v3394 = vadd.f32 %v3305, %v3393
        %3395 = vmatmul.bf16.gmra.mxu0 %v3035
        %v3396 = vpop.f32.mrf.mxu0
        %v3397 = vadd.f32 %v3308, %v3396
        %v3398 = vpop.f32.mrf.mxu0
        %v3399 = vadd.f32 %v3310, %v3398
        %3400 = vmatmul.bf16.gmra.mxu0 %v3038
        %v3401 = vpop.f32.mrf.mxu0
        %v3402 = vadd.f32 %v3313, %v3401
        %v3403 = vpop.f32.mrf.mxu0
        %v3404 = vadd.f32 %v3315, %v3403
        %3405 = vmatmul.bf16.gmra.mxu0 %v3041
        %v3406 = vpop.f32.mrf.mxu0
        %v3407 = vadd.f32 %v3318, %v3406
        %v3408 = vpop.f32.mrf.mxu0
        %v3409 = vadd.f32 %v3320, %v3408
        %3410 = vmatmul.bf16.gmra.mxu0 %v3044
        %v3411 = vpop.f32.mrf.mxu0
        %v3412 = vadd.f32 %v3323, %v3411
        %v3413 = vpop.f32.mrf.mxu0
        %v3414 = vadd.f32 %v3325, %v3413
        %3415 = vmatmul.bf16.gmra.mxu0 %v3047
        %v3416 = vpop.f32.mrf.mxu0
        %v3417 = vadd.f32 %v3328, %v3416
        %v3418 = vpop.f32.mrf.mxu0
        %v3419 = vadd.f32 %v3330, %v3418
        %3420 = vmatmul.bf16.gmra.mxu0 %v3050
        %v3421 = vpop.f32.mrf.mxu0
        %v3422 = vadd.f32 %v3333, %v3421
        %v3423 = vpop.f32.mrf.mxu0
        %v3424 = vadd.f32 %v3335, %v3423
        %3425 = vdwg.mxu0
        %3426 = vmatpush.bf16.msra.mxu0 0
        %3427 = vmatpush.bf16.msra.mxu0 0
        %3428 = vmatpush.bf16.msra.mxu0 0
        %3429 = vmatpush.bf16.msra.mxu0 0
        %3430 = vmatpush.bf16.msra.mxu0 0
        %3431 = vmatpush.bf16.msra.mxu0 0
        %3432 = vmatpush.bf16.msra.mxu0 %v3181
        %3433 = vmatpush.bf16.msra.mxu0 %v3180
        %3434 = vmatmul.bf16.gmra.mxu0 %v3201
        %v3435 = vpop.f32.mrf.mxu0
        %v3436 = vadd.f32 %v3347, %v3435
        %v3437 = vpop.f32.mrf.mxu0
        %v3438 = vadd.f32 %v3349, %v3437
        %3439 = vmatmul.bf16.gmra.mxu0 %v3204
        %v3440 = vpop.f32.mrf.mxu0
        %v3441 = vadd.f32 %v3352, %v3440
        %v3442 = vpop.f32.mrf.mxu0
        %v3443 = vadd.f32 %v3354, %v3442
        %3444 = vmatmul.bf16.gmra.mxu0 %v3207
        %v3445 = vpop.f32.mrf.mxu0
        %v3446 = vadd.f32 %v3357, %v3445
        %v3447 = vpop.f32.mrf.mxu0
        %v3448 = vadd.f32 %v3359, %v3447
        %3449 = vmatmul.bf16.gmra.mxu0 %v3210
        %v3450 = vpop.f32.mrf.mxu0
        %v3451 = vadd.f32 %v3362, %v3450
        %v3452 = vpop.f32.mrf.mxu0
        %v3453 = vadd.f32 %v3364, %v3452
        %3454 = vmatmul.bf16.gmra.mxu0 %v3213
        %v3455 = vpop.f32.mrf.mxu0
        %v3456 = vadd.f32 %v3367, %v3455
        %v3457 = vpop.f32.mrf.mxu0
        %v3458 = vadd.f32 %v3369, %v3457
        %3459 = vmatmul.bf16.gmra.mxu0 %v3216
        %v3460 = vpop.f32.mrf.mxu0
        %v3461 = vadd.f32 %v3372, %v3460
        %v3462 = vpop.f32.mrf.mxu0
        %v3463 = vadd.f32 %v3374, %v3462
        %3464 = vmatmul.bf16.gmra.mxu0 %v3219
        %v3465 = vpop.f32.mrf.mxu0
        %v3466 = vadd.f32 %v3377, %v3465
        %v3467 = vpop.f32.mrf.mxu0
        %v3468 = vadd.f32 %v3379, %v3467
        %3469 = vmatmul.bf16.gmra.mxu0 %v3222
        %v3470 = vpop.f32.mrf.mxu0
        %v3471 = vadd.f32 %v3382, %v3470
        %v3472 = vpop.f32.mrf.mxu0
        %v3473 = vadd.f32 %v3384, %v3472
        %3474 = vmatmul.bf16.gmra.mxu0 %v3225
        %v3475 = vpop.f32.mrf.mxu0
        %v3476 = vadd.f32 %v3387, %v3475
        %v3477 = vpop.f32.mrf.mxu0
        %v3478 = vadd.f32 %v3389, %v3477
        %3479 = vmatmul.bf16.gmra.mxu0 %v3228
        %v3480 = vpop.f32.mrf.mxu0
        %v3481 = vadd.f32 %v3392, %v3480
        %v3482 = vpop.f32.mrf.mxu0
        %v3483 = vadd.f32 %v3394, %v3482
        %3484 = vmatmul.bf16.gmra.mxu0 %v3231
        %v3485 = vpop.f32.mrf.mxu0
        %v3486 = vadd.f32 %v3397, %v3485
        %v3487 = vpop.f32.mrf.mxu0
        %v3488 = vadd.f32 %v3399, %v3487
        %3489 = vmatmul.bf16.gmra.mxu0 %v3234
        %v3490 = vpop.f32.mrf.mxu0
        %v3491 = vadd.f32 %v3402, %v3490
        %v3492 = vpop.f32.mrf.mxu0
        %v3493 = vadd.f32 %v3404, %v3492
        %3494 = vmatmul.bf16.gmra.mxu0 %v3237
        %v3495 = vpop.f32.mrf.mxu0
        %v3496 = vadd.f32 %v3407, %v3495
        %v3497 = vpop.f32.mrf.mxu0
        %v3498 = vadd.f32 %v3409, %v3497
        %3499 = vmatmul.bf16.gmra.mxu0 %v3240
        %v3500 = vpop.f32.mrf.mxu0
        %v3501 = vadd.f32 %v3412, %v3500
        %v3502 = vpop.f32.mrf.mxu0
        %v3503 = vadd.f32 %v3414, %v3502
        %3504 = vmatmul.bf16.gmra.mxu0 %v3243
        %v3505 = vpop.f32.mrf.mxu0
        %v3506 = vadd.f32 %v3417, %v3505
        %v3507 = vpop.f32.mrf.mxu0
        %v3508 = vadd.f32 %v3419, %v3507
        %3509 = vmatmul.bf16.gmra.mxu0 %v3246
        %v3510 = vpop.f32.mrf.mxu0
        %v3511 = vadd.f32 %v3422, %v3510
        %v3512 = vpop.f32.mrf.mxu0
        %v3513 = vadd.f32 %v3424, %v3512
        %3514 = vdwg.mxu0
        %v3515 = vmax.f32 %v3436, 0.0
        %v3516 = vmax.f32 %v3438, 0.0
        %v3517 = vmax.f32 %v3441, 0.0
        %v3518 = vmax.f32 %v3443, 0.0
        %v3519 = vmax.f32 %v3446, 0.0
        %v3520 = vmax.f32 %v3448, 0.0
        %v3521 = vmax.f32 %v3451, 0.0
        %v3522 = vmax.f32 %v3453, 0.0
        %v3523 = vmax.f32 %v3456, 0.0
        %v3524 = vmax.f32 %v3458, 0.0
        %v3525 = vmax.f32 %v3461, 0.0
        %v3526 = vmax.f32 %v3463, 0.0
        %v3527 = vmax.f32 %v3466, 0.0
        %v3528 = vmax.f32 %v3468, 0.0
        %v3529 = vmax.f32 %v3471, 0.0
        %v3530 = vmax.f32 %v3473, 0.0
        %v3531 = vmax.f32 %v3476, 0.0
        %v3532 = vmax.f32 %v3478, 0.0
        %v3533 = vmax.f32 %v3481, 0.0
        %v3534 = vmax.f32 %v3483, 0.0
        %v3535 = vmax.f32 %v3486, 0.0
        %v3536 = vmax.f32 %v3488, 0.0
        %v3537 = vmax.f32 %v3491, 0.0
        %v3538 = vmax.f32 %v3493, 0.0
        %v3539 = vmax.f32 %v3496, 0.0
        %v3540 = vmax.f32 %v3498, 0.0
        %v3541 = vmax.f32 %v3501, 0.0
        %v3542 = vmax.f32 %v3503, 0.0
        %v3543 = vmax.f32 %v3506, 0.0
        %v3544 = vmax.f32 %v3508, 0.0
        %v3545 = vmax.f32 %v3511, 0.0
        %v3546 = vmax.f32 %v3513, 0.0
        %v3547 = vpack.c.bf16 %v3516, %v3515
        %v3548 = vpack.c.bf16 %v3518, %v3517
        %v3549 = vpack.c.bf16 %v3520, %v3519
        %v3550 = vpack.c.bf16 %v3522, %v3521
        %v3551 = vpack.c.bf16 %v3524, %v3523
        %v3552 = vpack.c.bf16 %v3526, %v3525
        %v3553 = vpack.c.bf16 %v3528, %v3527
        %v3554 = vpack.c.bf16 %v3530, %v3529
        %v3555 = vpack.c.bf16 %v3532, %v3531
        %v3556 = vpack.c.bf16 %v3534, %v3533
        %v3557 = vpack.c.bf16 %v3536, %v3535
        %v3558 = vpack.c.bf16 %v3538, %v3537
        %v3559 = vpack.c.bf16 %v3540, %v3539
        %v3560 = vpack.c.bf16 %v3542, %v3541
        %v3561 = vpack.c.bf16 %v3544, %v3543
        %v3562 = vpack.c.bf16 %v3546, %v3545
        %v3563 = vld [vmem:[%s5] sm:$0xf]
        %v3564 = vld [vmem:[%s5 + $0x4] sm:$0xf]
        %v3565 = vld [vmem:[%s5 + $0x8] sm:$0xf]
        %v3566 = vld [vmem:[%s5 + $0xc] sm:$0xf]
        %v3567 = vld [vmem:[%s6] sm:$0x1]
        %v3569 = vperm.slane %v3567, 0
        %v3575 = vunpack.c.l.b16 %v3563
        %v3576 = vunpack.c.l.b16 %v3564
        %v3577 = vunpack.c.l.b16 %v3565
        %v3578 = vunpack.c.l.b16 %v3566
        %v3579 = vpack.c.b16 %v3576, %v3575
        %v3580 = vpack.c.b16 %v3578, %v3577
        %v3584 = vsel %vm2809, %v3547, 0
        %v3587 = vsel %vm2809, %v3548, 0
        %v3590 = vsel %vm2809, %v3549, 0
        %v3593 = vsel %vm2809, %v3550, 0
        %v3596 = vsel %vm2809, %v3551, 0
        %v3599 = vsel %vm2809, %v3552, 0
        %v3602 = vsel %vm2809, %v3553, 0
        %v3605 = vsel %vm2809, %v3554, 0
        %v3608 = vsel %vm2809, %v3555, 0
        %v3611 = vsel %vm2809, %v3556, 0
        %v3614 = vsel %vm2809, %v3557, 0
        %v3617 = vsel %vm2809, %v3558, 0
        %v3620 = vsel %vm2809, %v3559, 0
        %v3623 = vsel %vm2809, %v3560, 0
        %v3626 = vsel %vm2809, %v3561, 0
        %v3629 = vsel %vm2809, %v3562, 0
        %3631 = vmatpush.bf16.msra.mxu0 0
        %3632 = vmatpush.bf16.msra.mxu0 0
        %3633 = vmatpush.bf16.msra.mxu0 0
        %3634 = vmatpush.bf16.msra.mxu0 0
        %3635 = vmatpush.bf16.msra.mxu0 0
        %3636 = vmatpush.bf16.msra.mxu0 0
        %3637 = vmatpush.bf16.msra.mxu0 %v3580
        %3638 = vmatpush.bf16.msra.mxu0 %v3579
        %3639 = vmatmul.bf16.gmra.mxu0 %v3584
        %v3640 = vpop.f32.mrf.mxu0
        %v3641 = vadd.f32 %v3569, %v3640
        %v3642 = vpop.f32.mrf.mxu0
        %v3643 = vadd.f32 %v3569, %v3642
        %3644 = vmatmul.bf16.gmra.mxu0 %v3587
        %v3645 = vpop.f32.mrf.mxu0
        %v3646 = vadd.f32 %v3569, %v3645
        %v3647 = vpop.f32.mrf.mxu0
        %v3648 = vadd.f32 %v3569, %v3647
        %3649 = vmatmul.bf16.gmra.mxu0 %v3590
        %v3650 = vpop.f32.mrf.mxu0
        %v3651 = vadd.f32 %v3569, %v3650
        %v3652 = vpop.f32.mrf.mxu0
        %v3653 = vadd.f32 %v3569, %v3652
        %3654 = vmatmul.bf16.gmra.mxu0 %v3593
        %v3655 = vpop.f32.mrf.mxu0
        %v3656 = vadd.f32 %v3569, %v3655
        %v3657 = vpop.f32.mrf.mxu0
        %v3658 = vadd.f32 %v3569, %v3657
        %3659 = vmatmul.bf16.gmra.mxu0 %v3596
        %v3660 = vpop.f32.mrf.mxu0
        %v3661 = vadd.f32 %v3569, %v3660
        %v3662 = vpop.f32.mrf.mxu0
        %v3663 = vadd.f32 %v3569, %v3662
        %3664 = vmatmul.bf16.gmra.mxu0 %v3599
        %v3665 = vpop.f32.mrf.mxu0
        %v3666 = vadd.f32 %v3569, %v3665
        %v3667 = vpop.f32.mrf.mxu0
        %v3668 = vadd.f32 %v3569, %v3667
        %3669 = vmatmul.bf16.gmra.mxu0 %v3602
        %v3670 = vpop.f32.mrf.mxu0
        %v3671 = vadd.f32 %v3569, %v3670
        %v3672 = vpop.f32.mrf.mxu0
        %v3673 = vadd.f32 %v3569, %v3672
        %3674 = vmatmul.bf16.gmra.mxu0 %v3605
        %v3675 = vpop.f32.mrf.mxu0
        %v3676 = vadd.f32 %v3569, %v3675
        %v3677 = vpop.f32.mrf.mxu0
        %v3678 = vadd.f32 %v3569, %v3677
        %3679 = vmatmul.bf16.gmra.mxu0 %v3608
        %v3680 = vpop.f32.mrf.mxu0
        %v3681 = vadd.f32 %v3569, %v3680
        %v3682 = vpop.f32.mrf.mxu0
        %v3683 = vadd.f32 %v3569, %v3682
        %3684 = vmatmul.bf16.gmra.mxu0 %v3611
        %v3685 = vpop.f32.mrf.mxu0
        %v3686 = vadd.f32 %v3569, %v3685
        %v3687 = vpop.f32.mrf.mxu0
        %v3688 = vadd.f32 %v3569, %v3687
        %3689 = vmatmul.bf16.gmra.mxu0 %v3614
        %v3690 = vpop.f32.mrf.mxu0
        %v3691 = vadd.f32 %v3569, %v3690
        %v3692 = vpop.f32.mrf.mxu0
        %v3693 = vadd.f32 %v3569, %v3692
        %3694 = vmatmul.bf16.gmra.mxu0 %v3617
        %v3695 = vpop.f32.mrf.mxu0
        %v3696 = vadd.f32 %v3569, %v3695
        %v3697 = vpop.f32.mrf.mxu0
        %v3698 = vadd.f32 %v3569, %v3697
        %3699 = vmatmul.bf16.gmra.mxu0 %v3620
        %v3700 = vpop.f32.mrf.mxu0
        %v3701 = vadd.f32 %v3569, %v3700
        %v3702 = vpop.f32.mrf.mxu0
        %v3703 = vadd.f32 %v3569, %v3702
        %3704 = vmatmul.bf16.gmra.mxu0 %v3623
        %v3705 = vpop.f32.mrf.mxu0
        %v3706 = vadd.f32 %v3569, %v3705
        %v3707 = vpop.f32.mrf.mxu0
        %v3708 = vadd.f32 %v3569, %v3707
        %3709 = vmatmul.bf16.gmra.mxu0 %v3626
        %v3710 = vpop.f32.mrf.mxu0
        %v3711 = vadd.f32 %v3569, %v3710
        %v3712 = vpop.f32.mrf.mxu0
        %v3713 = vadd.f32 %v3569, %v3712
        %3714 = vmatmul.bf16.gmra.mxu0 %v3629
        %v3715 = vpop.f32.mrf.mxu0
        %v3716 = vadd.f32 %v3569, %v3715
        %v3717 = vpop.f32.mrf.mxu0
        %v3718 = vadd.f32 %v3569, %v3717
        %3719 = vdwg.mxu0
        %v3720 = vunpack.c.l.bf16 %v278
        %v3721 = vunpack.c.l.bf16 %v279
        %v3722 = vunpack.c.l.bf16 %v280
        %v3723 = vunpack.c.l.bf16 %v281
        %v3724 = vunpack.c.l.bf16 %v282
        %v3725 = vunpack.c.l.bf16 %v283
        %v3726 = vunpack.c.l.bf16 %v284
        %v3727 = vunpack.c.l.bf16 %v285
        %v3728 = vunpack.c.l.bf16 %v286
        %v3729 = vunpack.c.l.bf16 %v287
        %v3730 = vunpack.c.l.bf16 %v288
        %v3731 = vunpack.c.l.bf16 %v289
        %v3732 = vunpack.c.l.bf16 %v290
        %v3733 = vunpack.c.l.bf16 %v291
        %v3734 = vunpack.c.l.bf16 %v292
        %v3735 = vunpack.c.l.bf16 %v293
        %v3736 = vunpack.c.l.bf16 %v294
        %v3737 = vunpack.c.l.bf16 %v295
        %v3738 = vunpack.c.l.bf16 %v296
        %v3739 = vunpack.c.l.bf16 %v297
        %v3740 = vunpack.c.l.bf16 %v298
        %v3741 = vunpack.c.l.bf16 %v299
        %v3742 = vunpack.c.l.bf16 %v300
        %v3743 = vunpack.c.l.bf16 %v301
        %v3744 = vunpack.c.l.bf16 %v302
        %v3745 = vunpack.c.l.bf16 %v303
        %v3746 = vunpack.c.l.bf16 %v304
        %v3747 = vunpack.c.l.bf16 %v305
        %v3748 = vunpack.c.l.bf16 %v306
        %v3749 = vunpack.c.l.bf16 %v307
        %v3750 = vunpack.c.l.bf16 %v308
        %v3751 = vunpack.c.l.bf16 %v309
        %v3752 = vadd.f32 %v3641, %v3720
        %v3753 = vadd.f32 %v3643, %v3721
        %v3754 = vadd.f32 %v3646, %v3722
        %v3755 = vadd.f32 %v3648, %v3723
        %v3756 = vadd.f32 %v3651, %v3724
        %v3757 = vadd.f32 %v3653, %v3725
        %v3758 = vadd.f32 %v3656, %v3726
        %v3759 = vadd.f32 %v3658, %v3727
        %v3760 = vadd.f32 %v3661, %v3728
        %v3761 = vadd.f32 %v3663, %v3729
        %v3762 = vadd.f32 %v3666, %v3730
        %v3763 = vadd.f32 %v3668, %v3731
        %v3764 = vadd.f32 %v3671, %v3732
        %v3765 = vadd.f32 %v3673, %v3733
        %v3766 = vadd.f32 %v3676, %v3734
        %v3767 = vadd.f32 %v3678, %v3735
        %v3768 = vadd.f32 %v3681, %v3736
        %v3769 = vadd.f32 %v3683, %v3737
        %v3770 = vadd.f32 %v3686, %v3738
        %v3771 = vadd.f32 %v3688, %v3739
        %v3772 = vadd.f32 %v3691, %v3740
        %v3773 = vadd.f32 %v3693, %v3741
        %v3774 = vadd.f32 %v3696, %v3742
        %v3775 = vadd.f32 %v3698, %v3743
        %v3776 = vadd.f32 %v3701, %v3744
        %v3777 = vadd.f32 %v3703, %v3745
        %v3778 = vadd.f32 %v3706, %v3746
        %v3779 = vadd.f32 %v3708, %v3747
        %v3780 = vadd.f32 %v3711, %v3748
        %v3781 = vadd.f32 %v3713, %v3749
        %v3782 = vadd.f32 %v3716, %v3750
        %v3783 = vadd.f32 %v3718, %v3751
        %v3784 = vmax.f32 %v3752, 0.0
        %v3785 = vmax.f32 %v3753, 0.0
        %v3786 = vmax.f32 %v3754, 0.0
        %v3787 = vmax.f32 %v3755, 0.0
        %v3788 = vmax.f32 %v3756, 0.0
        %v3789 = vmax.f32 %v3757, 0.0
        %v3790 = vmax.f32 %v3758, 0.0
        %v3791 = vmax.f32 %v3759, 0.0
        %v3792 = vmax.f32 %v3760, 0.0
        %v3793 = vmax.f32 %v3761, 0.0
        %v3794 = vmax.f32 %v3762, 0.0
        %v3795 = vmax.f32 %v3763, 0.0
        %v3796 = vmax.f32 %v3764, 0.0
        %v3797 = vmax.f32 %v3765, 0.0
        %v3798 = vmax.f32 %v3766, 0.0
        %v3799 = vmax.f32 %v3767, 0.0
        %v3800 = vmax.f32 %v3768, 0.0
        %v3801 = vmax.f32 %v3769, 0.0
        %v3802 = vmax.f32 %v3770, 0.0
        %v3803 = vmax.f32 %v3771, 0.0
        %v3804 = vmax.f32 %v3772, 0.0
        %v3805 = vmax.f32 %v3773, 0.0
        %v3806 = vmax.f32 %v3774, 0.0
        %v3807 = vmax.f32 %v3775, 0.0
        %v3808 = vmax.f32 %v3776, 0.0
        %v3809 = vmax.f32 %v3777, 0.0
        %v3810 = vmax.f32 %v3778, 0.0
        %v3811 = vmax.f32 %v3779, 0.0
        %v3812 = vmax.f32 %v3780, 0.0
        %v3813 = vmax.f32 %v3781, 0.0
        %v3814 = vmax.f32 %v3782, 0.0
        %v3815 = vmax.f32 %v3783, 0.0
        %v3816 = vpack.c.bf16 %v3784, %v3784
        %v3817 = vpack.c.bf16 %v3785, %v3785
        %v3818 = vpack.c.bf16 %v3786, %v3786
        %v3819 = vpack.c.bf16 %v3787, %v3787
        %v3820 = vpack.c.bf16 %v3788, %v3788
        %v3821 = vpack.c.bf16 %v3789, %v3789
        %v3822 = vpack.c.bf16 %v3790, %v3790
        %v3823 = vpack.c.bf16 %v3791, %v3791
        %v3824 = vpack.c.bf16 %v3792, %v3792
        %v3825 = vpack.c.bf16 %v3793, %v3793
        %v3826 = vpack.c.bf16 %v3794, %v3794
        %v3827 = vpack.c.bf16 %v3795, %v3795
        %v3828 = vpack.c.bf16 %v3796, %v3796
        %v3829 = vpack.c.bf16 %v3797, %v3797
        %v3830 = vpack.c.bf16 %v3798, %v3798
        %v3831 = vpack.c.bf16 %v3799, %v3799
        %v3832 = vpack.c.bf16 %v3800, %v3800
        %v3833 = vpack.c.bf16 %v3801, %v3801
        %v3834 = vpack.c.bf16 %v3802, %v3802
        %v3835 = vpack.c.bf16 %v3803, %v3803
        %v3836 = vpack.c.bf16 %v3804, %v3804
        %v3837 = vpack.c.bf16 %v3805, %v3805
        %v3838 = vpack.c.bf16 %v3806, %v3806
        %v3839 = vpack.c.bf16 %v3807, %v3807
        %v3840 = vpack.c.bf16 %v3808, %v3808
        %v3841 = vpack.c.bf16 %v3809, %v3809
        %v3842 = vpack.c.bf16 %v3810, %v3810
        %v3843 = vpack.c.bf16 %v3811, %v3811
        %v3844 = vpack.c.bf16 %v3812, %v3812
        %v3845 = vpack.c.bf16 %v3813, %v3813
        %v3846 = vpack.c.bf16 %v3814, %v3814
        %v3847 = vpack.c.bf16 %v3815, %v3815
        %3848 = vst [vmem:[%s271] sm:$0xf] %v3816
        %3849 = vst [vmem:[%s271 + $0x4] sm:$0xf] %v3817
        %3850 = vst [vmem:[%s271 + $0x8] sm:$0xf] %v3818
        %3851 = vst [vmem:[%s271 + $0xc] sm:$0xf] %v3819
        %3852 = vst [vmem:[%s271 + $0x10] sm:$0xf] %v3820
        %3853 = vst [vmem:[%s271 + $0x14] sm:$0xf] %v3821
        %3854 = vst [vmem:[%s271 + $0x18] sm:$0xf] %v3822
        %3855 = vst [vmem:[%s271 + $0x1c] sm:$0xf] %v3823
        %3856 = vst [vmem:[%s271 + $0x20] sm:$0xf] %v3824
        %3857 = vst [vmem:[%s271 + $0x24] sm:$0xf] %v3825
        %3858 = vst [vmem:[%s271 + $0x28] sm:$0xf] %v3826
        %3859 = vst [vmem:[%s271 + $0x2c] sm:$0xf] %v3827
        %3860 = vst [vmem:[%s271 + $0x30] sm:$0xf] %v3828
        %3861 = vst [vmem:[%s271 + $0x34] sm:$0xf] %v3829
        %3862 = vst [vmem:[%s271 + $0x38] sm:$0xf] %v3830
        %3863 = vst [vmem:[%s271 + $0x3c] sm:$0xf] %v3831
        %3864 = vst [vmem:[%s271 + $0x40] sm:$0xf] %v3832
        %3865 = vst [vmem:[%s271 + $0x44] sm:$0xf] %v3833
        %3866 = vst [vmem:[%s271 + $0x48] sm:$0xf] %v3834
        %3867 = vst [vmem:[%s271 + $0x4c] sm:$0xf] %v3835
        %3868 = vst [vmem:[%s271 + $0x50] sm:$0xf] %v3836
        %3869 = vst [vmem:[%s271 + $0x54] sm:$0xf] %v3837
        %3870 = vst [vmem:[%s271 + $0x58] sm:$0xf] %v3838
        %3871 = vst [vmem:[%s271 + $0x5c] sm:$0xf] %v3839
        %3872 = vst [vmem:[%s271 + $0x60] sm:$0xf] %v3840
        %3873 = vst [vmem:[%s271 + $0x64] sm:$0xf] %v3841
        %3874 = vst [vmem:[%s271 + $0x68] sm:$0xf] %v3842
        %3875 = vst [vmem:[%s271 + $0x6c] sm:$0xf] %v3843
        %3876 = vst [vmem:[%s271 + $0x70] sm:$0xf] %v3844
        %3877 = vst [vmem:[%s271 + $0x74] sm:$0xf] %v3845
        %3878 = vst [vmem:[%s271 + $0x78] sm:$0xf] %v3846
        %3879 = vst [vmem:[%s271 + $0x7c] sm:$0xf] %v3847
        %s3880 = sand.u32 %s181, 1
        %s3881 = scalar_lea.sflag [#allocation4], %s3880
        %s3882 = sand.u32 %s181, 1
        %s3883 = smul.addr %s3882, 128
        %s3884 = scalar_lea.vmem [#allocation3], %s3883
        // Predicated region
        $region49: #{fwd.3} parent=47 // pred_check
          %p3885 = pneg %p191
        $region50: #{fwd.3} parent=47 // pred_check_branch
          %3887 = sbr.rel (%p3885) target = $region52
        $region51: #{fwd.3} parent=47 // pred_region
          %3889 = vsyncadd %s3881, 0
          %s3890 = smul.addr %s21, 32
          %s3891 = smul.addr %s3890, 4
          %s3892 = scalar_lea.hbm %s7, %s3891
          %s3893 = sshll.u32 %s3884, 4
          %s3894 = int_to_ptr.vmem [resolvable:$true] %s3893
          %s3895 = sshll.u32 %s3892, 4
          %s3896 = int_to_ptr.hbm [resolvable:$true] %s3895
          %3901 = dma.vmem_to_hbm [thread:$0]  %s3894, 2048, %s3896, %s3881, 64, 64, 4
        $region52: #{fwd.3} parent=47 // pred_fallthru
          _
      $region48: #{fwd.3} parent=5 // pred_fallthru
        _
      %p3902 = scmp.le.s32.totalorder 2, %s16
      // Predicated region
      $region53: #{fwd.3} parent=5 // pred_check
        %p3903 = pneg %p3902
      $region54: #{fwd.3} parent=5 // pred_check_branch
        %3905 = sbr.rel (%p3903) target = $region56
      $region55: #{fwd.3} parent=5 // pred_region
        %s3906 = ssub.s32 %s16, 2
        // Predicated region
        $region57: #{fwd.3} parent=55 // pred_check
          %p3907 = pneg %p197
        $region58: #{fwd.3} parent=55 // pred_check_branch
          %3909 = sbr.rel (%p3907) target = $region60
        $region59: #{fwd.3} parent=55 // pred_region
          %s3910 = sand.u32 %s182, 1
          %s3911 = scalar_lea.sflag [#allocation4], %s3910
          %s3912 = sand.u32 %s182, 1
          %s3913 = smul.addr %s3912, 128
          %s3914 = scalar_lea.vmem [#allocation3], %s3913
          %3916 = dma.done %s3911, 2048
        $region60: #{fwd.3} parent=55 // pred_fallthru
          _
      $region56: #{fwd.3} parent=5 // pred_fallthru
        _
    $region6: #{fwd.3} parent=1 // loop_footer
      %s20 = sadd.s32 1, %s16
    $region7: #{fwd.3} parent=1 // loop_footer_branch
      %15 = sbr.rel target = $region3
    $region8: #{fwd.3} parent=1 // loop_exit
      _
    %3917 = vsyncpa [#allocation4], 1
    %s3918 = scalar_lea.sflag [#allocation4], 1
    %3919 = vsyncpa %s3918, 1

</llo_original>
